<compile_context>
chip_gen: v7x
topology: tpu7x:2x2x1
jax: 0.10.0
libtpu: 0.0.40
codegen_flags: <defaults>
</compile_context>

<pallas_src>
import functools

import jax
import jax.numpy as jnp
from jax.experimental import pallas as pl
from jax.experimental.pallas import tpu as pltpu

H1 = 2048
H2 = 1024


def hansa_mlp_kernel(x_ref, w1_ref, b1_ref, w2_ref, b2_ref, w3_ref, b3_ref,
                     o_ref):
    # x arrives f32; cast to bf16 on the fly (hidden under the MXU).
    x = x_ref[...].astype(jnp.bfloat16)
    # layer1 + ReLU (bf16 MXU inputs, f32 accumulation)
    h1 = jnp.dot(x, w1_ref[...], preferred_element_type=jnp.float32)
    h1 = jnp.maximum(h1 + b1_ref[...], 0.0)
    # layer2 + ReLU
    h2 = jnp.dot(h1.astype(jnp.bfloat16), w2_ref[...],
                 preferred_element_type=jnp.float32)
    h2 = jnp.maximum(h2 + b2_ref[...], 0.0)
    # layer3 (logits)
    logits = jnp.dot(h2.astype(jnp.bfloat16), w3_ref[...],
                     preferred_element_type=jnp.float32)
    logits = logits + b3_ref[...]
    # numerically stable softmax along the last dim, exact normalization
    m = jnp.max(logits, axis=-1, keepdims=True)
    e = jnp.exp(logits - m)
    denom = jnp.sum(e, axis=-1, keepdims=True)
    o_ref[...] = (e / denom).astype(o_ref.dtype)


def _round_up(x, m):
    return (x + m - 1) // m * m


def _cdiv(a, b):
    return -(-a // b)


def _choose_bm(batch, block_m):
    """Balanced batch tile: avoids a nearly-empty trailing tile."""
    if batch <= block_m:
        return max(8, _round_up(batch, 8))
    n_tiles = _cdiv(batch, block_m)
    return _round_up(_cdiv(batch, n_tiles), 16)


def _resident_spec(shape):
    # Constant block index -> the operand is fetched once and stays in VMEM.
    # Single-buffer it: no refetch ever happens, so the second buffer is waste.
    return pl.BlockSpec(shape, lambda i: (0, 0), pipeline_mode=pl.Buffered(1))


@functools.partial(jax.jit, static_argnames=("block_m",))
def hansa_forward(x, w1, b1, w2, b2, w3, b3, *, block_m=512):
    """Fused forward pass.  Expects weights already converted to bf16
    (see to_inference_params); biases stay f32."""
    batch, in_size = x.shape
    h1_size = w1.shape[1]
    h2_size = w2.shape[1]
    out_size = w3.shape[1]

    bm = _choose_bm(batch, block_m)
    b_pad = _round_up(batch, bm)
    if b_pad != batch:
        x = jnp.pad(x, ((0, b_pad - batch), (0, 0)))

    grid = (b_pad // bm,)

    flops = 2 * b_pad * (in_size * h1_size + h1_size * h2_size
                         + h2_size * out_size)
    bytes_accessed = (
        x.size * x.dtype.itemsize
        + w1.size * w1.dtype.itemsize + b1.size * b1.dtype.itemsize
        + w2.size * w2.dtype.itemsize + b2.size * b2.dtype.itemsize
        + w3.size * w3.dtype.itemsize + b3.size * b3.dtype.itemsize
        + b_pad * out_size * 4)

    out = pl.pallas_call(
        hansa_mlp_kernel,
        out_shape=jax.ShapeDtypeStruct((b_pad, out_size), jnp.float32),
        grid=grid,
        in_specs=[
            pl.BlockSpec((bm, in_size), lambda i: (i, 0)),   # x tile (pipelined)
            _resident_spec((in_size, h1_size)),              # w1
            _resident_spec((1, h1_size)),                    # b1
            _resident_spec((h1_size, h2_size)),              # w2
            _resident_spec((1, h2_size)),                    # b2
            _resident_spec((h2_size, out_size)),             # w3
            _resident_spec((1, out_size)),                   # b3
        ],
        out_specs=pl.BlockSpec((bm, out_size), lambda i: (i, 0)),
        compiler_params=pltpu.CompilerParams(
            dimension_semantics=("parallel",),
            vmem_limit_bytes=64 << 20,
        ),
        cost_estimate=pl.CostEstimate(
            flops=flops,
            transcendentals=b_pad * out_size,
            bytes_accessed=bytes_accessed,
        ),
    )(x, w1, b1, w2, b2, w3, b3)

    return out[:batch]


def init_params(key, input_size, output_size):
    """Deterministic f32 init mirroring nn.Linear (weights stored (in, out))."""
    k1, k2, k3, k4, k5, k6 = jax.random.split(key, 6)

    def linear_init(kw, kb, fan_in, fan_out):
        bound = 1.0 / jnp.sqrt(fan_in)
        w = jax.random.uniform(kw, (fan_in, fan_out), jnp.float32, -bound, bound)
        b = jax.random.uniform(kb, (1, fan_out), jnp.float32, -bound, bound)
        return w, b

    w1, b1 = linear_init(k1, k2, input_size, H1)
    w2, b2 = linear_init(k3, k4, H1, H2)
    w3, b3 = linear_init(k5, k6, H2, output_size)
    return w1, b1, w2, b2, w3, b3


def to_inference_params(params):
    """One-time conversion: weights -> bf16 (halves HBM weight stream, native
    MXU input dtype); biases stay f32."""
    w1, b1, w2, b2, w3, b3 = params
    return (w1.astype(jnp.bfloat16), b1,
            w2.astype(jnp.bfloat16), b2,
            w3.astype(jnp.bfloat16), b3)


def _reference(x, w1, b1, w2, b2, w3, b3):
    """Plain-JAX reference using the same bf16-input / f32-accum recipe."""
    xb = x.astype(jnp.bfloat16)
    h1 = jnp.maximum(
        jnp.dot(xb, w1.astype(jnp.bfloat16),
                preferred_element_type=jnp.float32) + b1, 0.0)
    h2 = jnp.maximum(
        jnp.dot(h1.astype(jnp.bfloat16), w2.astype(jnp.bfloat16),
                preferred_element_type=jnp.float32) + b2, 0.0)
    logits = jnp.dot(h2.astype(jnp.bfloat16), w3.astype(jnp.bfloat16),
                     preferred_element_type=jnp.float32) + b3
    return jax.nn.softmax(logits, axis=-1)


if __name__ == "__main__":
    input_size = 32
    output_size = 128

    key = jax.random.PRNGKey(0)
    kx, kp = jax.random.split(key)
    params_f32 = init_params(kp, input_size, output_size)
    params = to_inference_params(params_f32)   # bf16 weights, once, outside jit

    # ---- small batch: single 8-row tile ----
    batch = 8
    x = jax.random.normal(kx, (batch, input_size), jnp.float32)
    out = hansa_forward(x, *params)
    out = jax.block_until_ready(out)
    ref = _reference(x, *params)
    assert out.shape == (batch, output_size)
    assert jnp.allclose(out, ref, atol=5e-3, rtol=5e-3)
    assert jnp.allclose(jnp.sum(out, axis=-1), 1.0, atol=1e-3)

    # ---- gridded path: ragged batch, balanced tiles, weights resident ----
    batch2 = 300
    x2 = jax.random.normal(jax.random.PRNGKey(1), (batch2, input_size),
                           jnp.float32)
    out2 = hansa_forward(x2, *params, block_m=128)   # grid of 3 balanced tiles
    out2 = jax.block_until_ready(out2)
    ref2 = _reference(x2, *params)
    assert out2.shape == (batch2, output_size)
    assert jnp.allclose(out2, ref2, atol=5e-3, rtol=5e-3)
    assert jnp.allclose(jnp.sum(out2, axis=-1), 1.0, atol=1e-3)

    print("KERNEL_OK")
</pallas_src>

<mosaic_0001>
module attributes {stable_mosaic.version = 11 : i64} {
  func.func @hansa_mlp_kernel(%arg0: i32, %arg1: memref<8x32xf32, #tpu.memory_space<vmem>>, %arg2: memref<32x2048xbf16, #tpu.memory_space<vmem>>, %arg3: memref<1x2048xf32, #tpu.memory_space<vmem>>, %arg4: memref<2048x1024xbf16, #tpu.memory_space<vmem>>, %arg5: memref<1x1024xf32, #tpu.memory_space<vmem>>, %arg6: memref<1024x128xbf16, #tpu.memory_space<vmem>>, %arg7: memref<1x128xf32, #tpu.memory_space<vmem>>, %arg8: memref<8x128xf32, #tpu.memory_space<vmem>>) attributes {dimension_semantics = [#tpu.dimension_semantics<parallel>], iteration_bounds = array<i64: 1>, scalar_prefetch = 0 : i64, scratch_operands = 0 : i64, tpu.core_type = #tpu.core_type<tc>, window_params = [{transform_indices = @transform_0, window_bounds = array<i64: 8, 32>}, {pipeline_mode = #tpu.pipeline_mode<synchronous>, transform_indices = @transform_1, window_bounds = array<i64: 32, 2048>}, {pipeline_mode = #tpu.pipeline_mode<synchronous>, transform_indices = @transform_2, window_bounds = array<i64: 1, 2048>}, {pipeline_mode = #tpu.pipeline_mode<synchronous>, transform_indices = @transform_3, window_bounds = array<i64: 2048, 1024>}, {pipeline_mode = #tpu.pipeline_mode<synchronous>, transform_indices = @transform_4, window_bounds = array<i64: 1, 1024>}, {pipeline_mode = #tpu.pipeline_mode<synchronous>, transform_indices = @transform_5, window_bounds = array<i64: 1024, 128>}, {pipeline_mode = #tpu.pipeline_mode<synchronous>, transform_indices = @transform_6, window_bounds = array<i64: 1, 128>}, {transform_indices = @transform_7, window_bounds = array<i64: 8, 128>}]} {
    %c0 = arith.constant 0 : index
    %c0_0 = arith.constant 0 : index
    %0 = vector.load %arg1[%c0, %c0_0] : memref<8x32xf32, #tpu.memory_space<vmem>>, vector<8x32xf32>
    %1 = arith.truncf %0 : vector<8x32xf32> to vector<8x32xbf16>
    %c0_1 = arith.constant 0 : index
    %c0_2 = arith.constant 0 : index
    %2 = vector.load %arg2[%c0_1, %c0_2] : memref<32x2048xbf16, #tpu.memory_space<vmem>>, vector<32x2048xbf16>
    %cst = arith.constant dense<0.000000e+00> : vector<8x2048xf32>
    %3 = tpu.matmul %1, %2, %cst {dimension_numbers = #tpu.dot_dimension_numbers<[1], [0], [0], [1], [0, 0, 1, 1], [], []>} : vector<8x32xbf16>, vector<32x2048xbf16>, vector<8x2048xf32> -> vector<8x2048xf32>
    %c0_3 = arith.constant 0 : index
    %c0_4 = arith.constant 0 : index
    %4 = vector.load %arg3[%c0_3, %c0_4] : memref<1x2048xf32, #tpu.memory_space<vmem>>, vector<1x2048xf32>
    %5 = vector.broadcast %4 : vector<1x2048xf32> to vector<8x2048xf32>
    %6 = arith.addf %3, %5 : vector<8x2048xf32>
    %cst_5 = arith.constant 0.000000e+00 : f32
    %7 = vector.broadcast %cst_5 : f32 to vector<8x2048xf32>
    %8 = arith.maximumf %6, %7 : vector<8x2048xf32>
    %9 = arith.truncf %8 : vector<8x2048xf32> to vector<8x2048xbf16>
    %c0_6 = arith.constant 0 : index
    %c0_7 = arith.constant 0 : index
    %10 = vector.load %arg4[%c0_6, %c0_7] : memref<2048x1024xbf16, #tpu.memory_space<vmem>>, vector<2048x1024xbf16>
    %cst_8 = arith.constant dense<0.000000e+00> : vector<8x1024xf32>
    %11 = tpu.matmul %9, %10, %cst_8 {dimension_numbers = #tpu.dot_dimension_numbers<[1], [0], [0], [1], [0, 0, 1, 1], [], []>} : vector<8x2048xbf16>, vector<2048x1024xbf16>, vector<8x1024xf32> -> vector<8x1024xf32>
    %c0_9 = arith.constant 0 : index
    %c0_10 = arith.constant 0 : index
    %12 = vector.load %arg5[%c0_9, %c0_10] : memref<1x1024xf32, #tpu.memory_space<vmem>>, vector<1x1024xf32>
    %13 = vector.broadcast %12 : vector<1x1024xf32> to vector<8x1024xf32>
    %14 = arith.addf %11, %13 : vector<8x1024xf32>
    %cst_11 = arith.constant 0.000000e+00 : f32
    %15 = vector.broadcast %cst_11 : f32 to vector<8x1024xf32>
    %16 = arith.maximumf %14, %15 : vector<8x1024xf32>
    %17 = arith.truncf %16 : vector<8x1024xf32> to vector<8x1024xbf16>
    %c0_12 = arith.constant 0 : index
    %c0_13 = arith.constant 0 : index
    %18 = vector.load %arg6[%c0_12, %c0_13] : memref<1024x128xbf16, #tpu.memory_space<vmem>>, vector<1024x128xbf16>
    %cst_14 = arith.constant dense<0.000000e+00> : vector<8x128xf32>
    %19 = tpu.matmul %17, %18, %cst_14 {dimension_numbers = #tpu.dot_dimension_numbers<[1], [0], [0], [1], [0, 0, 1, 1], [], []>} : vector<8x1024xbf16>, vector<1024x128xbf16>, vector<8x128xf32> -> vector<8x128xf32>
    %c0_15 = arith.constant 0 : index
    %c0_16 = arith.constant 0 : index
    %20 = vector.load %arg7[%c0_15, %c0_16] : memref<1x128xf32, #tpu.memory_space<vmem>>, vector<1x128xf32>
    %21 = vector.broadcast %20 : vector<1x128xf32> to vector<8x128xf32>
    %22 = arith.addf %19, %21 : vector<8x128xf32>
    %cst_17 = arith.constant dense<0xFF800000> : vector<8xf32>
    %23 = vector.multi_reduction <maximumf>, %22, %cst_17 [1] : vector<8x128xf32> to vector<8xf32>
    %24 = vector.shape_cast %23 : vector<8xf32> to vector<8x1xf32>
    %25 = vector.broadcast %24 : vector<8x1xf32> to vector<8x128xf32>
    %26 = arith.subf %22, %25 : vector<8x128xf32>
    %27 = math.exp %26 : vector<8x128xf32>
    %cst_18 = arith.constant dense<0.000000e+00> : vector<8xf32>
    %28 = vector.multi_reduction <add>, %27, %cst_18 [1] : vector<8x128xf32> to vector<8xf32>
    %29 = vector.shape_cast %28 : vector<8xf32> to vector<8x1xf32>
    %30 = vector.broadcast %29 : vector<8x1xf32> to vector<8x128xf32>
    %31 = arith.divf %27, %30 : vector<8x128xf32>
    %c0_19 = arith.constant 0 : index
    %c0_20 = arith.constant 0 : index
    %32 = vector.load %arg8[%c0_19, %c0_20] : memref<8x128xf32, #tpu.memory_space<vmem>>, vector<8x128xf32>
    tpu.vector_store %arg8[%c0_19, %c0_20], %31 {strides = array<i32>} : memref<8x128xf32, #tpu.memory_space<vmem>>, vector<8x128xf32>,
    return
  }
  func.func @transform_0(%arg0: i32) -> (i32, i32) {
    %c0_i32 = arith.constant 0 : i32
    %c0_i32_0 = arith.constant 0 : i32
    return %arg0, %c0_i32 : i32, i32
  }
  func.func @transform_1(%arg0: i32) -> (i32, i32) {
    %c0_i32 = arith.constant 0 : i32
    %c0_i32_0 = arith.constant 0 : i32
    %c0_i32_1 = arith.constant 0 : i32
    return %c0_i32, %c0_i32_0 : i32, i32
  }
  func.func @transform_2(%arg0: i32) -> (i32, i32) {
    %c0_i32 = arith.constant 0 : i32
    %c0_i32_0 = arith.constant 0 : i32
    %c0_i32_1 = arith.constant 0 : i32
    return %c0_i32, %c0_i32_0 : i32, i32
  }
  func.func @transform_3(%arg0: i32) -> (i32, i32) {
    %c0_i32 = arith.constant 0 : i32
    %c0_i32_0 = arith.constant 0 : i32
    %c0_i32_1 = arith.constant 0 : i32
    return %c0_i32, %c0_i32_0 : i32, i32
  }
  func.func @transform_4(%arg0: i32) -> (i32, i32) {
    %c0_i32 = arith.constant 0 : i32
    %c0_i32_0 = arith.constant 0 : i32
    %c0_i32_1 = arith.constant 0 : i32
    return %c0_i32, %c0_i32_0 : i32, i32
  }
  func.func @transform_5(%arg0: i32) -> (i32, i32) {
    %c0_i32 = arith.constant 0 : i32
    %c0_i32_0 = arith.constant 0 : i32
    %c0_i32_1 = arith.constant 0 : i32
    return %c0_i32, %c0_i32_0 : i32, i32
  }
  func.func @transform_6(%arg0: i32) -> (i32, i32) {
    %c0_i32 = arith.constant 0 : i32
    %c0_i32_0 = arith.constant 0 : i32
    %c0_i32_1 = arith.constant 0 : i32
    return %c0_i32, %c0_i32_0 : i32, i32
  }
  func.func @transform_7(%arg0: i32) -> (i32, i32) {
    %c0_i32 = arith.constant 0 : i32
    %c0_i32_0 = arith.constant 0 : i32
    return %arg0, %c0_i32 : i32, i32
  }
}

</mosaic_0001>

<llo_original>
// kernel: hansa_forward.1
$region0: #{hansa_forward.1}
  #allocation0 [shape = 'u32[]', space=smem, size = 0x4, offset = 0x4, fixed_abs, tag = 'smem constant byte address 0x4 - core index']
  #allocation1 [shape = 'u32[144,128]{1,0:T(1,128)}', space=vmem, size = 0x12000, scoped, tag = 'internal scratch']
  %s0 = inlined_call_operand.hbm [shape: f32[8,32], index: 0, kind: input, shape index: {}]
  %s1 = inlined_call_operand.hbm [shape: bf16[32,2048], index: 1, kind: input, shape index: {}]
  %s2 = inlined_call_operand.hbm [shape: f32[1,2048], index: 2, kind: input, shape index: {}]
  %s3 = inlined_call_operand.hbm [shape: bf16[2048,1024], index: 3, kind: input, shape index: {}]
  %s4 = inlined_call_operand.hbm [shape: f32[1,1024], index: 4, kind: input, shape index: {}]
  %s5 = inlined_call_operand.hbm [shape: bf16[1024,128], index: 5, kind: input, shape index: {}]
  %s6 = inlined_call_operand.hbm [shape: f32[1,128], index: 6, kind: input, shape index: {}]
  %s7 = inlined_call_operand.hbm [shape: f32[8,128], index: 7, kind: output, shape index: {}]
  %s8 = sld [smem:[#allocation0]]
  $region66: #{hansa_forward.1} parent=0
    _
  %s10 = ssub.s32 1, %s8
  %s11 = scalar_select 0, %s10, %s8
  $region1: #{hansa_forward.1} parent=0
    #allocation2 [shape = 'u8[4096]{0}', space=vmem, size = 0x1000, scoped, tag = 'input window, operand 0, single buffered']
    #allocation3 [shape = 's32[1]{0}', space=sflag, size = 0x4, scoped, tag = 'scoped memory for hansa_forward.1']
    #allocation4 [shape = 's32[1]{0}', space=sflag, size = 0x4, scoped, tag = 'scoped memory for hansa_forward.1']
    #allocation5 [shape = 'u8[131072]{0}', space=vmem, size = 0x20000, scoped, tag = 'input window, operand 1, single buffered']
    #allocation6 [shape = 's32[1]{0}', space=sflag, size = 0x4, scoped, tag = 'scoped memory for hansa_forward.1']
    #allocation7 [shape = 'u8[8192]{0}', space=vmem, size = 0x2000, scoped, tag = 'input window, operand 2, single buffered']
    #allocation8 [shape = 'u8[4194304]{0}', space=vmem, size = 0x400000, scoped, tag = 'input window, operand 3, single buffered']
    #allocation9 [shape = 's32[1]{0}', space=sflag, size = 0x4, scoped, tag = 'scoped memory for hansa_forward.1']
    #allocation10 [shape = 'u8[4096]{0}', space=vmem, size = 0x1000, scoped, tag = 'input window, operand 4, single buffered']
    #allocation11 [shape = 'u8[262144]{0}', space=vmem, size = 0x40000, scoped, tag = 'input window, operand 5, single buffered']
    #allocation12 [shape = 's32[1]{0}', space=sflag, size = 0x4, scoped, tag = 'scoped memory for hansa_forward.1']
    #allocation13 [shape = 'u8[512]{0}', space=vmem, size = 0x400, scoped, tag = 'input window, operand 6, single buffered']
    #allocation14 [shape = 'u8[4096]{0}', space=vmem, size = 0x1000, scoped, tag = 'output window, operand 0, single buffered']
    %12 = vsyncpa [#allocation3], 0
    %13 = vsyncpa [#allocation6], 0
    %14 = vsyncpa [#allocation9], 0
    %15 = vsyncpa [#allocation12], 0
    %16 = vsyncpa [#allocation4], 0
    // Predicated region
    $region2: #{hansa_forward.1} parent=1 // pred_check
      _
    $region3: #{hansa_forward.1} parent=1 // pred_check_branch
      %18 = sbr.rel (0) target = $region5
    $region4: #{hansa_forward.1} parent=1 // pred_region
      %s20 = ssub.s32 128, 128
      %21 = vsyncadd [#allocation3], %s20
      %s23 = sshll.u32 [#allocation2], 4
      %s24 = int_to_ptr.vmem [resolvable:$true] %s23
      %26 = dma.hbm_to_vmem [thread:$0]  %s0, 128, %s24, [#allocation3]
    $region5: #{hansa_forward.1} parent=1 // pred_fallthru
      _
    // Predicated region
    $region6: #{hansa_forward.1} parent=1 // pred_check
      _
    $region7: #{hansa_forward.1} parent=1 // pred_check_branch
      %28 = sbr.rel (0) target = $region9
    $region8: #{hansa_forward.1} parent=1 // pred_region
      %s30 = ssub.s32 4096, 4096
      %31 = vsyncadd [#allocation6], %s30
      %s32 = sshll.u32 [#allocation5], 4
      %s33 = int_to_ptr.vmem [resolvable:$true] %s32
      %38 = dma.hbm_to_vmem [thread:$0]  %s1, 4096, %s33, [#allocation6], 1024, 1024, 64
    $region9: #{hansa_forward.1} parent=1 // pred_fallthru
      _
    // Predicated region
    $region10: #{hansa_forward.1} parent=1 // pred_check
      _
    $region11: #{hansa_forward.1} parent=1 // pred_check_branch
      %40 = sbr.rel (0) target = $region13
    $region12: #{hansa_forward.1} parent=1 // pred_region
      %s42 = ssub.s32 256, 256
      %43 = vsyncadd [#allocation6], %s42
      %s45 = sshll.u32 [#allocation7], 4
      %s46 = int_to_ptr.vmem [resolvable:$true] %s45
      %48 = dma.hbm_to_vmem [thread:$0]  %s2, 256, %s46, [#allocation6]
    $region13: #{hansa_forward.1} parent=1 // pred_fallthru
      _
    // Predicated region
    $region14: #{hansa_forward.1} parent=1 // pred_check
      _
    $region15: #{hansa_forward.1} parent=1 // pred_check_branch
      %50 = sbr.rel (0) target = $region17
    $region16: #{hansa_forward.1} parent=1 // pred_region
      %s52 = ssub.s32 131072, 131072
      %53 = vsyncadd [#allocation9], %s52
      %s54 = sshll.u32 [#allocation8], 4
      %s55 = int_to_ptr.vmem [resolvable:$true] %s54
      %60 = dma.hbm_to_vmem [thread:$0]  %s3, 131072, %s55, [#allocation9], 512, 512, 32
    $region17: #{hansa_forward.1} parent=1 // pred_fallthru
      _
    // Predicated region
    $region18: #{hansa_forward.1} parent=1 // pred_check
      _
    $region19: #{hansa_forward.1} parent=1 // pred_check_branch
      %62 = sbr.rel (0) target = $region21
    $region20: #{hansa_forward.1} parent=1 // pred_region
      %s64 = ssub.s32 128, 128
      %65 = vsyncadd [#allocation9], %s64
      %s67 = sshll.u32 [#allocation10], 4
      %s68 = int_to_ptr.vmem [resolvable:$true] %s67
      %70 = dma.hbm_to_vmem [thread:$0]  %s4, 128, %s68, [#allocation9]
    $region21: #{hansa_forward.1} parent=1 // pred_fallthru
      _
    // Predicated region
    $region22: #{hansa_forward.1} parent=1 // pred_check
      _
    $region23: #{hansa_forward.1} parent=1 // pred_check_branch
      %72 = sbr.rel (0) target = $region25
    $region24: #{hansa_forward.1} parent=1 // pred_region
      %s74 = ssub.s32 8192, 8192
      %75 = vsyncadd [#allocation12], %s74
      %s76 = sshll.u32 [#allocation11], 4
      %s77 = int_to_ptr.vmem [resolvable:$true] %s76
      %82 = dma.hbm_to_vmem [thread:$0]  %s5, 8192, %s77, [#allocation12], 64, 64, 4
    $region25: #{hansa_forward.1} parent=1 // pred_fallthru
      _
    // Predicated region
    $region26: #{hansa_forward.1} parent=1 // pred_check
      _
    $region27: #{hansa_forward.1} parent=1 // pred_check_branch
      %84 = sbr.rel (0) target = $region29
    $region28: #{hansa_forward.1} parent=1 // pred_region
      %s86 = ssub.s32 16, 16
      %87 = vsyncadd [#allocation12], %s86
      %s89 = sshll.u32 [#allocation13], 4
      %s90 = int_to_ptr.vmem [resolvable:$true] %s89
      %92 = dma.hbm_to_vmem [thread:$0]  %s6, 16, %s90, [#allocation12]
    $region29: #{hansa_forward.1} parent=1 // pred_fallthru
      _
    // Predicated region
    $region30: #{hansa_forward.1} parent=1 // pred_check
      _
    $region31: #{hansa_forward.1} parent=1 // pred_check_branch
      %94 = sbr.rel (0) target = $region33
    $region32: #{hansa_forward.1} parent=1 // pred_region
      %95 = dma.done [#allocation3], 128
    $region33: #{hansa_forward.1} parent=1 // pred_fallthru
      _
    // Predicated region
    $region34: #{hansa_forward.1} parent=1 // pred_check
      _
    $region35: #{hansa_forward.1} parent=1 // pred_check_branch
      %97 = sbr.rel (0) target = $region37
    $region36: #{hansa_forward.1} parent=1 // pred_region
      %98 = dma.done [#allocation6], 4096
    $region37: #{hansa_forward.1} parent=1 // pred_fallthru
      _
    // Predicated region
    $region38: #{hansa_forward.1} parent=1 // pred_check
      _
    $region39: #{hansa_forward.1} parent=1 // pred_check_branch
      %100 = sbr.rel (0) target = $region41
    $region40: #{hansa_forward.1} parent=1 // pred_region
      %101 = dma.done [#allocation6], 256
    $region41: #{hansa_forward.1} parent=1 // pred_fallthru
      _
    // Predicated region
    $region42: #{hansa_forward.1} parent=1 // pred_check
      _
    $region43: #{hansa_forward.1} parent=1 // pred_check_branch
      %103 = sbr.rel (0) target = $region45
    $region44: #{hansa_forward.1} parent=1 // pred_region
      %104 = dma.done [#allocation9], 131072
    $region45: #{hansa_forward.1} parent=1 // pred_fallthru
      _
    // Predicated region
    $region46: #{hansa_forward.1} parent=1 // pred_check
      _
    $region47: #{hansa_forward.1} parent=1 // pred_check_branch
      %106 = sbr.rel (0) target = $region49
    $region48: #{hansa_forward.1} parent=1 // pred_region
      %107 = dma.done [#allocation9], 128
    $region49: #{hansa_forward.1} parent=1 // pred_fallthru
      _
    // Predicated region
    $region50: #{hansa_forward.1} parent=1 // pred_check
      _
    $region51: #{hansa_forward.1} parent=1 // pred_check_branch
      %109 = sbr.rel (0) target = $region53
    $region52: #{hansa_forward.1} parent=1 // pred_region
      %110 = dma.done [#allocation12], 8192
    $region53: #{hansa_forward.1} parent=1 // pred_fallthru
      _
    // Predicated region
    $region54: #{hansa_forward.1} parent=1 // pred_check
      _
    $region55: #{hansa_forward.1} parent=1 // pred_check_branch
      %112 = sbr.rel (0) target = $region57
    $region56: #{hansa_forward.1} parent=1 // pred_region
      %113 = dma.done [#allocation12], 16
    $region57: #{hansa_forward.1} parent=1 // pred_fallthru
      _
    %v115 = vld [vmem:[#allocation2] sm:$0xff]
    %v116 = vpack.c.bf16 %v115, %v115
    %v117 = vld [vmem:[#allocation5] sm:$0xff]
    %v118 = vld [vmem:[#allocation5 + $0x8] sm:$0xff]
    %v119 = vld [vmem:[#allocation5 + $0x10] sm:$0xff]
    %v120 = vld [vmem:[#allocation5 + $0x18] sm:$0xff]
    %v121 = vld [vmem:[#allocation5 + $0x20] sm:$0xff]
    %v122 = vld [vmem:[#allocation5 + $0x28] sm:$0xff]
    %v123 = vld [vmem:[#allocation5 + $0x30] sm:$0xff]
    %v124 = vld [vmem:[#allocation5 + $0x38] sm:$0xff]
    %v125 = vld [vmem:[#allocation5 + $0x40] sm:$0xff]
    %v126 = vld [vmem:[#allocation5 + $0x48] sm:$0xff]
    %v127 = vld [vmem:[#allocation5 + $0x50] sm:$0xff]
    %v128 = vld [vmem:[#allocation5 + $0x58] sm:$0xff]
    %v129 = vld [vmem:[#allocation5 + $0x60] sm:$0xff]
    %v130 = vld [vmem:[#allocation5 + $0x68] sm:$0xff]
    %v131 = vld [vmem:[#allocation5 + $0x70] sm:$0xff]
    %v132 = vld [vmem:[#allocation5 + $0x78] sm:$0xff]
    %v133 = vld [vmem:[#allocation5 + $0x80] sm:$0xff]
    %v134 = vld [vmem:[#allocation5 + $0x88] sm:$0xff]
    %v135 = vld [vmem:[#allocation5 + $0x90] sm:$0xff]
    %v136 = vld [vmem:[#allocation5 + $0x98] sm:$0xff]
    %v137 = vld [vmem:[#allocation5 + $0xa0] sm:$0xff]
    %v138 = vld [vmem:[#allocation5 + $0xa8] sm:$0xff]
    %v139 = vld [vmem:[#allocation5 + $0xb0] sm:$0xff]
    %v140 = vld [vmem:[#allocation5 + $0xb8] sm:$0xff]
    %v141 = vld [vmem:[#allocation5 + $0xc0] sm:$0xff]
    %v142 = vld [vmem:[#allocation5 + $0xc8] sm:$0xff]
    %v143 = vld [vmem:[#allocation5 + $0xd0] sm:$0xff]
    %v144 = vld [vmem:[#allocation5 + $0xd8] sm:$0xff]
    %v145 = vld [vmem:[#allocation5 + $0xe0] sm:$0xff]
    %v146 = vld [vmem:[#allocation5 + $0xe8] sm:$0xff]
    %v147 = vld [vmem:[#allocation5 + $0xf0] sm:$0xff]
    %v148 = vld [vmem:[#allocation5 + $0xf8] sm:$0xff]
    %v149 = vld [vmem:[#allocation7] sm:$0xff]
    %v150 = vld [vmem:[#allocation7 + $0x8] sm:$0xff]
    %v153 = vlaneseq
    %v154 = vshrl.u32 %v153, 7
    %v155 = vsub.s32 0, %v154
    %v156 = vrot.slane %v149, %v155
    %v157 = vlaneseq
    %v158 = vshrl.u32 %v157, 7
    %v159 = vsub.s32 1, %v158
    %v160 = vrot.slane %v149, %v159
    %v161 = vlaneseq
    %v162 = vshrl.u32 %v161, 7
    %v163 = vsub.s32 2, %v162
    %v164 = vrot.slane %v149, %v163
    %v165 = vlaneseq
    %v166 = vshrl.u32 %v165, 7
    %v167 = vsub.s32 3, %v166
    %v168 = vrot.slane %v149, %v167
    %v169 = vlaneseq
    %v170 = vshrl.u32 %v169, 7
    %v171 = vsub.s32 4, %v170
    %v172 = vrot.slane %v149, %v171
    %v173 = vlaneseq
    %v174 = vshrl.u32 %v173, 7
    %v175 = vsub.s32 5, %v174
    %v176 = vrot.slane %v149, %v175
    %v177 = vlaneseq
    %v178 = vshrl.u32 %v177, 7
    %v179 = vsub.s32 6, %v178
    %v180 = vrot.slane %v149, %v179
    %v181 = vlaneseq
    %v182 = vshrl.u32 %v181, 7
    %v183 = vsub.s32 7, %v182
    %v184 = vrot.slane %v149, %v183
    %v185 = vlaneseq
    %v186 = vshrl.u32 %v185, 7
    %v187 = vsub.s32 0, %v186
    %v188 = vrot.slane %v150, %v187
    %v189 = vlaneseq
    %v190 = vshrl.u32 %v189, 7
    %v191 = vsub.s32 1, %v190
    %v192 = vrot.slane %v150, %v191
    %v193 = vlaneseq
    %v194 = vshrl.u32 %v193, 7
    %v195 = vsub.s32 2, %v194
    %v196 = vrot.slane %v150, %v195
    %v197 = vlaneseq
    %v198 = vshrl.u32 %v197, 7
    %v199 = vsub.s32 3, %v198
    %v200 = vrot.slane %v150, %v199
    %v201 = vlaneseq
    %v202 = vshrl.u32 %v201, 7
    %v203 = vsub.s32 4, %v202
    %v204 = vrot.slane %v150, %v203
    %v205 = vlaneseq
    %v206 = vshrl.u32 %v205, 7
    %v207 = vsub.s32 5, %v206
    %v208 = vrot.slane %v150, %v207
    %v209 = vlaneseq
    %v210 = vshrl.u32 %v209, 7
    %v211 = vsub.s32 6, %v210
    %v212 = vrot.slane %v150, %v211
    %v213 = vlaneseq
    %v214 = vshrl.u32 %v213, 7
    %v215 = vsub.s32 7, %v214
    %v216 = vrot.slane %v150, %v215
    %v265 = vunpack.c.l.b16 %v117
    %v266 = vunpack.c.h.b16 %v117
    %v267 = vunpack.c.l.b16 %v118
    %v268 = vunpack.c.h.b16 %v118
    %v269 = vunpack.c.l.b16 %v119
    %v270 = vunpack.c.h.b16 %v119
    %v271 = vunpack.c.l.b16 %v120
    %v272 = vunpack.c.h.b16 %v120
    %v273 = vunpack.c.l.b16 %v121
    %v274 = vunpack.c.h.b16 %v121
    %v275 = vunpack.c.l.b16 %v122
    %v276 = vunpack.c.h.b16 %v122
    %v277 = vunpack.c.l.b16 %v123
    %v278 = vunpack.c.h.b16 %v123
    %v279 = vunpack.c.l.b16 %v124
    %v280 = vunpack.c.h.b16 %v124
    %v281 = vunpack.c.l.b16 %v125
    %v282 = vunpack.c.h.b16 %v125
    %v283 = vunpack.c.l.b16 %v126
    %v284 = vunpack.c.h.b16 %v126
    %v285 = vunpack.c.l.b16 %v127
    %v286 = vunpack.c.h.b16 %v127
    %v287 = vunpack.c.l.b16 %v128
    %v288 = vunpack.c.h.b16 %v128
    %v289 = vunpack.c.l.b16 %v129
    %v290 = vunpack.c.h.b16 %v129
    %v291 = vunpack.c.l.b16 %v130
    %v292 = vunpack.c.h.b16 %v130
    %v293 = vunpack.c.l.b16 %v131
    %v294 = vunpack.c.h.b16 %v131
    %v295 = vunpack.c.l.b16 %v132
    %v296 = vunpack.c.h.b16 %v132
    %v297 = vunpack.c.l.b16 %v133
    %v298 = vunpack.c.h.b16 %v133
    %v299 = vunpack.c.l.b16 %v134
    %v300 = vunpack.c.h.b16 %v134
    %v301 = vunpack.c.l.b16 %v135
    %v302 = vunpack.c.h.b16 %v135
    %v303 = vunpack.c.l.b16 %v136
    %v304 = vunpack.c.h.b16 %v136
    %v305 = vunpack.c.l.b16 %v137
    %v306 = vunpack.c.h.b16 %v137
    %v307 = vunpack.c.l.b16 %v138
    %v308 = vunpack.c.h.b16 %v138
    %v309 = vunpack.c.l.b16 %v139
    %v310 = vunpack.c.h.b16 %v139
    %v311 = vunpack.c.l.b16 %v140
    %v312 = vunpack.c.h.b16 %v140
    %v313 = vunpack.c.l.b16 %v141
    %v314 = vunpack.c.h.b16 %v141
    %v315 = vunpack.c.l.b16 %v142
    %v316 = vunpack.c.h.b16 %v142
    %v317 = vunpack.c.l.b16 %v143
    %v318 = vunpack.c.h.b16 %v143
    %v319 = vunpack.c.l.b16 %v144
    %v320 = vunpack.c.h.b16 %v144
    %v321 = vunpack.c.l.b16 %v145
    %v322 = vunpack.c.h.b16 %v145
    %v323 = vunpack.c.l.b16 %v146
    %v324 = vunpack.c.h.b16 %v146
    %v325 = vunpack.c.l.b16 %v147
    %v326 = vunpack.c.h.b16 %v147
    %v327 = vunpack.c.l.b16 %v148
    %v328 = vunpack.c.h.b16 %v148
    %v329 = vpack.c.b16 %v281, %v265
    %v330 = vpack.c.b16 %v282, %v266
    %v331 = vpack.c.b16 %v283, %v267
    %v332 = vpack.c.b16 %v284, %v268
    %v333 = vpack.c.b16 %v285, %v269
    %v334 = vpack.c.b16 %v286, %v270
    %v335 = vpack.c.b16 %v287, %v271
    %v336 = vpack.c.b16 %v288, %v272
    %v337 = vpack.c.b16 %v289, %v273
    %v338 = vpack.c.b16 %v290, %v274
    %v339 = vpack.c.b16 %v291, %v275
    %v340 = vpack.c.b16 %v292, %v276
    %v341 = vpack.c.b16 %v293, %v277
    %v342 = vpack.c.b16 %v294, %v278
    %v343 = vpack.c.b16 %v295, %v279
    %v344 = vpack.c.b16 %v296, %v280
    %v345 = vpack.c.b16 %v313, %v297
    %v346 = vpack.c.b16 %v314, %v298
    %v347 = vpack.c.b16 %v315, %v299
    %v348 = vpack.c.b16 %v316, %v300
    %v349 = vpack.c.b16 %v317, %v301
    %v350 = vpack.c.b16 %v318, %v302
    %v351 = vpack.c.b16 %v319, %v303
    %v352 = vpack.c.b16 %v320, %v304
    %v353 = vpack.c.b16 %v321, %v305
    %v354 = vpack.c.b16 %v322, %v306
    %v355 = vpack.c.b16 %v323, %v307
    %v356 = vpack.c.b16 %v324, %v308
    %v357 = vpack.c.b16 %v325, %v309
    %v358 = vpack.c.b16 %v326, %v310
    %v359 = vpack.c.b16 %v327, %v311
    %v360 = vpack.c.b16 %v328, %v312
    %vm393 = vcmask 261120
    %v395 = vsel %vm393, %v116, 0
    %397 = vmatprep.subr.bf16.mxu0 %v330
    %398 = vmatpush1.bf16.msra.mxu0 %v329
    %399 = vmatprep.subr.bf16.mxu0 %v346
    %400 = vmatpush1.bf16.msra.mxu0 %v345
    %401 = vmatprep.subr.bf16.mxu0 0
    %402 = vmatpush1.bf16.msra.mxu0 0
    %403 = vmatprep.subr.bf16.mxu0 0
    %404 = vmatpush1.bf16.msra.mxu0 0
    %405 = vmatprep.subr.bf16.mxu0 0
    %406 = vmatpush1.bf16.msra.mxu0 0
    %407 = vmatprep.subr.bf16.mxu0 0
    %408 = vmatpush1.bf16.msra.mxu0 0
    %409 = vmatprep.subr.bf16.mxu0 0
    %410 = vmatpush1.bf16.msra.mxu0 0
    %411 = vmatprep.subr.bf16.mxu0 0
    %412 = vmatpush1.bf16.msra.mxu0 0
    %413 = vmatprep.subr.bf16.mxu0 0
    %414 = vmatpush1.bf16.msra.mxu0 0
    %415 = vmatprep.subr.bf16.mxu0 0
    %416 = vmatpush1.bf16.msra.mxu0 0
    %417 = vmatprep.subr.bf16.mxu0 0
    %418 = vmatpush1.bf16.msra.mxu0 0
    %419 = vmatprep.subr.bf16.mxu0 0
    %420 = vmatpush1.bf16.msra.mxu0 0
    %421 = vmatprep.subr.bf16.mxu0 0
    %422 = vmatpush1.bf16.msra.mxu0 0
    %423 = vmatprep.subr.bf16.mxu0 0
    %424 = vmatpush1.bf16.msra.mxu0 0
    %425 = vmatprep.subr.bf16.mxu0 0
    %426 = vmatpush1.bf16.msra.mxu0 0
    %427 = vmatprep.subr.bf16.mxu0 0
    %428 = vmatpush1.bf16.msra.mxu0 0
    %429 = vmatprep.mubr.bf16.mxu0 0
    %430 = vmatmul.mubr.bf16.gmra.mrb[0].mxu0 %v395
    %v431 = vpop.f32.mrb[0].mxu0
    %v432 = vadd.f32 %v156, %v431
    %v433 = vpop.f32.mrb[0].mxu0
    %v434 = vadd.f32 %v160, %v433
    %v435 = vpop.f32.mrb[0].mxu0
    %v436 = vpop.f32.mrb[0].mxu0
    %437 = vdwg.mxu0
    %438 = vmatprep.subr.bf16.mxu0 %v332
    %439 = vmatpush1.bf16.msra.mxu0 %v331
    %440 = vmatprep.subr.bf16.mxu0 %v348
    %441 = vmatpush1.bf16.msra.mxu0 %v347
    %442 = vmatprep.subr.bf16.mxu0 0
    %443 = vmatpush1.bf16.msra.mxu0 0
    %444 = vmatprep.subr.bf16.mxu0 0
    %445 = vmatpush1.bf16.msra.mxu0 0
    %446 = vmatprep.subr.bf16.mxu0 0
    %447 = vmatpush1.bf16.msra.mxu0 0
    %448 = vmatprep.subr.bf16.mxu0 0
    %449 = vmatpush1.bf16.msra.mxu0 0
    %450 = vmatprep.subr.bf16.mxu0 0
    %451 = vmatpush1.bf16.msra.mxu0 0
    %452 = vmatprep.subr.bf16.mxu0 0
    %453 = vmatpush1.bf16.msra.mxu0 0
    %454 = vmatprep.subr.bf16.mxu0 0
    %455 = vmatpush1.bf16.msra.mxu0 0
    %456 = vmatprep.subr.bf16.mxu0 0
    %457 = vmatpush1.bf16.msra.mxu0 0
    %458 = vmatprep.subr.bf16.mxu0 0
    %459 = vmatpush1.bf16.msra.mxu0 0
    %460 = vmatprep.subr.bf16.mxu0 0
    %461 = vmatpush1.bf16.msra.mxu0 0
    %462 = vmatprep.subr.bf16.mxu0 0
    %463 = vmatpush1.bf16.msra.mxu0 0
    %464 = vmatprep.subr.bf16.mxu0 0
    %465 = vmatpush1.bf16.msra.mxu0 0
    %466 = vmatprep.subr.bf16.mxu0 0
    %467 = vmatpush1.bf16.msra.mxu0 0
    %468 = vmatprep.subr.bf16.mxu0 0
    %469 = vmatpush1.bf16.msra.mxu0 0
    %470 = vmatprep.mubr.bf16.mxu0 0
    %471 = vmatmul.mubr.bf16.gmra.mrb[0].mxu0 %v395
    %v472 = vpop.f32.mrb[0].mxu0
    %v473 = vadd.f32 %v164, %v472
    %v474 = vpop.f32.mrb[0].mxu0
    %v475 = vadd.f32 %v168, %v474
    %v476 = vpop.f32.mrb[0].mxu0
    %v477 = vpop.f32.mrb[0].mxu0
    %478 = vdwg.mxu0
    %479 = vmatprep.subr.bf16.mxu0 %v334
    %480 = vmatpush1.bf16.msra.mxu0 %v333
    %481 = vmatprep.subr.bf16.mxu0 %v350
    %482 = vmatpush1.bf16.msra.mxu0 %v349
    %483 = vmatprep.subr.bf16.mxu0 0
    %484 = vmatpush1.bf16.msra.mxu0 0
    %485 = vmatprep.subr.bf16.mxu0 0
    %486 = vmatpush1.bf16.msra.mxu0 0
    %487 = vmatprep.subr.bf16.mxu0 0
    %488 = vmatpush1.bf16.msra.mxu0 0
    %489 = vmatprep.subr.bf16.mxu0 0
    %490 = vmatpush1.bf16.msra.mxu0 0
    %491 = vmatprep.subr.bf16.mxu0 0
    %492 = vmatpush1.bf16.msra.mxu0 0
    %493 = vmatprep.subr.bf16.mxu0 0
    %494 = vmatpush1.bf16.msra.mxu0 0
    %495 = vmatprep.subr.bf16.mxu0 0
    %496 = vmatpush1.bf16.msra.mxu0 0
    %497 = vmatprep.subr.bf16.mxu0 0
    %498 = vmatpush1.bf16.msra.mxu0 0
    %499 = vmatprep.subr.bf16.mxu0 0
    %500 = vmatpush1.bf16.msra.mxu0 0
    %501 = vmatprep.subr.bf16.mxu0 0
    %502 = vmatpush1.bf16.msra.mxu0 0
    %503 = vmatprep.subr.bf16.mxu0 0
    %504 = vmatpush1.bf16.msra.mxu0 0
    %505 = vmatprep.subr.bf16.mxu0 0
    %506 = vmatpush1.bf16.msra.mxu0 0
    %507 = vmatprep.subr.bf16.mxu0 0
    %508 = vmatpush1.bf16.msra.mxu0 0
    %509 = vmatprep.subr.bf16.mxu0 0
    %510 = vmatpush1.bf16.msra.mxu0 0
    %511 = vmatprep.mubr.bf16.mxu0 0
    %512 = vmatmul.mubr.bf16.gmra.mrb[0].mxu0 %v395
    %v513 = vpop.f32.mrb[0].mxu0
    %v514 = vadd.f32 %v172, %v513
    %v515 = vpop.f32.mrb[0].mxu0
    %v516 = vadd.f32 %v176, %v515
    %v517 = vpop.f32.mrb[0].mxu0
    %v518 = vpop.f32.mrb[0].mxu0
    %519 = vdwg.mxu0
    %520 = vmatprep.subr.bf16.mxu0 %v336
    %521 = vmatpush1.bf16.msra.mxu0 %v335
    %522 = vmatprep.subr.bf16.mxu0 %v352
    %523 = vmatpush1.bf16.msra.mxu0 %v351
    %524 = vmatprep.subr.bf16.mxu0 0
    %525 = vmatpush1.bf16.msra.mxu0 0
    %526 = vmatprep.subr.bf16.mxu0 0
    %527 = vmatpush1.bf16.msra.mxu0 0
    %528 = vmatprep.subr.bf16.mxu0 0
    %529 = vmatpush1.bf16.msra.mxu0 0
    %530 = vmatprep.subr.bf16.mxu0 0
    %531 = vmatpush1.bf16.msra.mxu0 0
    %532 = vmatprep.subr.bf16.mxu0 0
    %533 = vmatpush1.bf16.msra.mxu0 0
    %534 = vmatprep.subr.bf16.mxu0 0
    %535 = vmatpush1.bf16.msra.mxu0 0
    %536 = vmatprep.subr.bf16.mxu0 0
    %537 = vmatpush1.bf16.msra.mxu0 0
    %538 = vmatprep.subr.bf16.mxu0 0
    %539 = vmatpush1.bf16.msra.mxu0 0
    %540 = vmatprep.subr.bf16.mxu0 0
    %541 = vmatpush1.bf16.msra.mxu0 0
    %542 = vmatprep.subr.bf16.mxu0 0
    %543 = vmatpush1.bf16.msra.mxu0 0
    %544 = vmatprep.subr.bf16.mxu0 0
    %545 = vmatpush1.bf16.msra.mxu0 0
    %546 = vmatprep.subr.bf16.mxu0 0
    %547 = vmatpush1.bf16.msra.mxu0 0
    %548 = vmatprep.subr.bf16.mxu0 0
    %549 = vmatpush1.bf16.msra.mxu0 0
    %550 = vmatprep.subr.bf16.mxu0 0
    %551 = vmatpush1.bf16.msra.mxu0 0
    %552 = vmatprep.mubr.bf16.mxu0 0
    %553 = vmatmul.mubr.bf16.gmra.mrb[0].mxu0 %v395
    %v554 = vpop.f32.mrb[0].mxu0
    %v555 = vadd.f32 %v180, %v554
    %v556 = vpop.f32.mrb[0].mxu0
    %v557 = vadd.f32 %v184, %v556
    %v558 = vpop.f32.mrb[0].mxu0
    %v559 = vpop.f32.mrb[0].mxu0
    %560 = vdwg.mxu0
    %561 = vmatprep.subr.bf16.mxu0 %v338
    %562 = vmatpush1.bf16.msra.mxu0 %v337
    %563 = vmatprep.subr.bf16.mxu0 %v354
    %564 = vmatpush1.bf16.msra.mxu0 %v353
    %565 = vmatprep.subr.bf16.mxu0 0
    %566 = vmatpush1.bf16.msra.mxu0 0
    %567 = vmatprep.subr.bf16.mxu0 0
    %568 = vmatpush1.bf16.msra.mxu0 0
    %569 = vmatprep.subr.bf16.mxu0 0
    %570 = vmatpush1.bf16.msra.mxu0 0
    %571 = vmatprep.subr.bf16.mxu0 0
    %572 = vmatpush1.bf16.msra.mxu0 0
    %573 = vmatprep.subr.bf16.mxu0 0
    %574 = vmatpush1.bf16.msra.mxu0 0
    %575 = vmatprep.subr.bf16.mxu0 0
    %576 = vmatpush1.bf16.msra.mxu0 0
    %577 = vmatprep.subr.bf16.mxu0 0
    %578 = vmatpush1.bf16.msra.mxu0 0
    %579 = vmatprep.subr.bf16.mxu0 0
    %580 = vmatpush1.bf16.msra.mxu0 0
    %581 = vmatprep.subr.bf16.mxu0 0
    %582 = vmatpush1.bf16.msra.mxu0 0
    %583 = vmatprep.subr.bf16.mxu0 0
    %584 = vmatpush1.bf16.msra.mxu0 0
    %585 = vmatprep.subr.bf16.mxu0 0
    %586 = vmatpush1.bf16.msra.mxu0 0
    %587 = vmatprep.subr.bf16.mxu0 0
    %588 = vmatpush1.bf16.msra.mxu0 0
    %589 = vmatprep.subr.bf16.mxu0 0
    %590 = vmatpush1.bf16.msra.mxu0 0
    %591 = vmatprep.subr.bf16.mxu0 0
    %592 = vmatpush1.bf16.msra.mxu0 0
    %593 = vmatprep.mubr.bf16.mxu0 0
    %594 = vmatmul.mubr.bf16.gmra.mrb[0].mxu0 %v395
    %v595 = vpop.f32.mrb[0].mxu0
    %v596 = vadd.f32 %v188, %v595
    %v597 = vpop.f32.mrb[0].mxu0
    %v598 = vadd.f32 %v192, %v597
    %v599 = vpop.f32.mrb[0].mxu0
    %v600 = vpop.f32.mrb[0].mxu0
    %601 = vdwg.mxu0
    %602 = vmatprep.subr.bf16.mxu0 %v340
    %603 = vmatpush1.bf16.msra.mxu0 %v339
    %604 = vmatprep.subr.bf16.mxu0 %v356
    %605 = vmatpush1.bf16.msra.mxu0 %v355
    %606 = vmatprep.subr.bf16.mxu0 0
    %607 = vmatpush1.bf16.msra.mxu0 0
    %608 = vmatprep.subr.bf16.mxu0 0
    %609 = vmatpush1.bf16.msra.mxu0 0
    %610 = vmatprep.subr.bf16.mxu0 0
    %611 = vmatpush1.bf16.msra.mxu0 0
    %612 = vmatprep.subr.bf16.mxu0 0
    %613 = vmatpush1.bf16.msra.mxu0 0
    %614 = vmatprep.subr.bf16.mxu0 0
    %615 = vmatpush1.bf16.msra.mxu0 0
    %616 = vmatprep.subr.bf16.mxu0 0
    %617 = vmatpush1.bf16.msra.mxu0 0
    %618 = vmatprep.subr.bf16.mxu0 0
    %619 = vmatpush1.bf16.msra.mxu0 0
    %620 = vmatprep.subr.bf16.mxu0 0
    %621 = vmatpush1.bf16.msra.mxu0 0
    %622 = vmatprep.subr.bf16.mxu0 0
    %623 = vmatpush1.bf16.msra.mxu0 0
    %624 = vmatprep.subr.bf16.mxu0 0
    %625 = vmatpush1.bf16.msra.mxu0 0
    %626 = vmatprep.subr.bf16.mxu0 0
    %627 = vmatpush1.bf16.msra.mxu0 0
    %628 = vmatprep.subr.bf16.mxu0 0
    %629 = vmatpush1.bf16.msra.mxu0 0
    %630 = vmatprep.subr.bf16.mxu0 0
    %631 = vmatpush1.bf16.msra.mxu0 0
    %632 = vmatprep.subr.bf16.mxu0 0
    %633 = vmatpush1.bf16.msra.mxu0 0
    %634 = vmatprep.mubr.bf16.mxu0 0
    %635 = vmatmul.mubr.bf16.gmra.mrb[0].mxu0 %v395
    %v636 = vpop.f32.mrb[0].mxu0
    %v637 = vadd.f32 %v196, %v636
    %v638 = vpop.f32.mrb[0].mxu0
    %v639 = vadd.f32 %v200, %v638
    %v640 = vpop.f32.mrb[0].mxu0
    %v641 = vpop.f32.mrb[0].mxu0
    %642 = vdwg.mxu0
    %643 = vmatprep.subr.bf16.mxu0 %v342
    %644 = vmatpush1.bf16.msra.mxu0 %v341
    %645 = vmatprep.subr.bf16.mxu0 %v358
    %646 = vmatpush1.bf16.msra.mxu0 %v357
    %647 = vmatprep.subr.bf16.mxu0 0
    %648 = vmatpush1.bf16.msra.mxu0 0
    %649 = vmatprep.subr.bf16.mxu0 0
    %650 = vmatpush1.bf16.msra.mxu0 0
    %651 = vmatprep.subr.bf16.mxu0 0
    %652 = vmatpush1.bf16.msra.mxu0 0
    %653 = vmatprep.subr.bf16.mxu0 0
    %654 = vmatpush1.bf16.msra.mxu0 0
    %655 = vmatprep.subr.bf16.mxu0 0
    %656 = vmatpush1.bf16.msra.mxu0 0
    %657 = vmatprep.subr.bf16.mxu0 0
    %658 = vmatpush1.bf16.msra.mxu0 0
    %659 = vmatprep.subr.bf16.mxu0 0
    %660 = vmatpush1.bf16.msra.mxu0 0
    %661 = vmatprep.subr.bf16.mxu0 0
    %662 = vmatpush1.bf16.msra.mxu0 0
    %663 = vmatprep.subr.bf16.mxu0 0
    %664 = vmatpush1.bf16.msra.mxu0 0
    %665 = vmatprep.subr.bf16.mxu0 0
    %666 = vmatpush1.bf16.msra.mxu0 0
    %667 = vmatprep.subr.bf16.mxu0 0
    %668 = vmatpush1.bf16.msra.mxu0 0
    %669 = vmatprep.subr.bf16.mxu0 0
    %670 = vmatpush1.bf16.msra.mxu0 0
    %671 = vmatprep.subr.bf16.mxu0 0
    %672 = vmatpush1.bf16.msra.mxu0 0
    %673 = vmatprep.subr.bf16.mxu0 0
    %674 = vmatpush1.bf16.msra.mxu0 0
    %675 = vmatprep.mubr.bf16.mxu0 0
    %676 = vmatmul.mubr.bf16.gmra.mrb[0].mxu0 %v395
    %v677 = vpop.f32.mrb[0].mxu0
    %v678 = vadd.f32 %v204, %v677
    %v679 = vpop.f32.mrb[0].mxu0
    %v680 = vadd.f32 %v208, %v679
    %v681 = vpop.f32.mrb[0].mxu0
    %v682 = vpop.f32.mrb[0].mxu0
    %683 = vdwg.mxu0
    %684 = vmatprep.subr.bf16.mxu0 %v344
    %685 = vmatpush1.bf16.msra.mxu0 %v343
    %686 = vmatprep.subr.bf16.mxu0 %v360
    %687 = vmatpush1.bf16.msra.mxu0 %v359
    %688 = vmatprep.subr.bf16.mxu0 0
    %689 = vmatpush1.bf16.msra.mxu0 0
    %690 = vmatprep.subr.bf16.mxu0 0
    %691 = vmatpush1.bf16.msra.mxu0 0
    %692 = vmatprep.subr.bf16.mxu0 0
    %693 = vmatpush1.bf16.msra.mxu0 0
    %694 = vmatprep.subr.bf16.mxu0 0
    %695 = vmatpush1.bf16.msra.mxu0 0
    %696 = vmatprep.subr.bf16.mxu0 0
    %697 = vmatpush1.bf16.msra.mxu0 0
    %698 = vmatprep.subr.bf16.mxu0 0
    %699 = vmatpush1.bf16.msra.mxu0 0
    %700 = vmatprep.subr.bf16.mxu0 0
    %701 = vmatpush1.bf16.msra.mxu0 0
    %702 = vmatprep.subr.bf16.mxu0 0
    %703 = vmatpush1.bf16.msra.mxu0 0
    %704 = vmatprep.subr.bf16.mxu0 0
    %705 = vmatpush1.bf16.msra.mxu0 0
    %706 = vmatprep.subr.bf16.mxu0 0
    %707 = vmatpush1.bf16.msra.mxu0 0
    %708 = vmatprep.subr.bf16.mxu0 0
    %709 = vmatpush1.bf16.msra.mxu0 0
    %710 = vmatprep.subr.bf16.mxu0 0
    %711 = vmatpush1.bf16.msra.mxu0 0
    %712 = vmatprep.subr.bf16.mxu0 0
    %713 = vmatpush1.bf16.msra.mxu0 0
    %714 = vmatprep.subr.bf16.mxu0 0
    %715 = vmatpush1.bf16.msra.mxu0 0
    %716 = vmatprep.mubr.bf16.mxu0 0
    %717 = vmatmul.mubr.bf16.gmra.mrb[0].mxu0 %v395
    %v718 = vpop.f32.mrb[0].mxu0
    %v719 = vadd.f32 %v212, %v718
    %v720 = vpop.f32.mrb[0].mxu0
    %v721 = vadd.f32 %v216, %v720
    %v722 = vpop.f32.mrb[0].mxu0
    %v723 = vpop.f32.mrb[0].mxu0
    %724 = vdwg.mxu0
    %v725 = vmax.f32 %v432, 0.0
    %v726 = vmax.f32 %v434, 0.0
    %v727 = vmax.f32 %v473, 0.0
    %v728 = vmax.f32 %v475, 0.0
    %v729 = vmax.f32 %v514, 0.0
    %v730 = vmax.f32 %v516, 0.0
    %v731 = vmax.f32 %v555, 0.0
    %v732 = vmax.f32 %v557, 0.0
    %v733 = vmax.f32 %v596, 0.0
    %v734 = vmax.f32 %v598, 0.0
    %v735 = vmax.f32 %v637, 0.0
    %v736 = vmax.f32 %v639, 0.0
    %v737 = vmax.f32 %v678, 0.0
    %v738 = vmax.f32 %v680, 0.0
    %v739 = vmax.f32 %v719, 0.0
    %v740 = vmax.f32 %v721, 0.0
    %v741 = vpack.c.bf16 %v725, %v725
    %v742 = vpack.c.bf16 %v726, %v726
    %v743 = vpack.c.bf16 %v727, %v727
    %v744 = vpack.c.bf16 %v728, %v728
    %v745 = vpack.c.bf16 %v729, %v729
    %v746 = vpack.c.bf16 %v730, %v730
    %v747 = vpack.c.bf16 %v731, %v731
    %v748 = vpack.c.bf16 %v732, %v732
    %v749 = vpack.c.bf16 %v733, %v733
    %v750 = vpack.c.bf16 %v734, %v734
    %v751 = vpack.c.bf16 %v735, %v735
    %v752 = vpack.c.bf16 %v736, %v736
    %v753 = vpack.c.bf16 %v737, %v737
    %v754 = vpack.c.bf16 %v738, %v738
    %v755 = vpack.c.bf16 %v739, %v739
    %v756 = vpack.c.bf16 %v740, %v740
    %v757 = vld [vmem:[#allocation8] sm:$0xff]
    %v758 = vld [vmem:[#allocation8 + $0x8] sm:$0xff]
    %v759 = vld [vmem:[#allocation8 + $0x10] sm:$0xff]
    %v760 = vld [vmem:[#allocation8 + $0x18] sm:$0xff]
    %v761 = vld [vmem:[#allocation8 + $0x20] sm:$0xff]
    %v762 = vld [vmem:[#allocation8 + $0x28] sm:$0xff]
    %v763 = vld [vmem:[#allocation8 + $0x30] sm:$0xff]
    %v764 = vld [vmem:[#allocation8 + $0x38] sm:$0xff]
    %v765 = vld [vmem:[#allocation8 + $0x40] sm:$0xff]
    %v766 = vld [vmem:[#allocation8 + $0x48] sm:$0xff]
    %v767 = vld [vmem:[#allocation8 + $0x50] sm:$0xff]
    %v768 = vld [vmem:[#allocation8 + $0x58] sm:$0xff]
    %v769 = vld [vmem:[#allocation8 + $0x60] sm:$0xff]
    %v770 = vld [vmem:[#allocation8 + $0x68] sm:$0xff]
    %v771 = vld [vmem:[#allocation8 + $0x70] sm:$0xff]
    %v772 = vld [vmem:[#allocation8 + $0x78] sm:$0xff]
    %v773 = vld [vmem:[#allocation8 + $0x80] sm:$0xff]
    %v774 = vld [vmem:[#allocation8 + $0x88] sm:$0xff]
    %v775 = vld [vmem:[#allocation8 + $0x90] sm:$0xff]
    %v776 = vld [vmem:[#allocation8 + $0x98] sm:$0xff]
    %v777 = vld [vmem:[#allocation8 + $0xa0] sm:$0xff]
    %v778 = vld [vmem:[#allocation8 + $0xa8] sm:$0xff]
    %v779 = vld [vmem:[#allocation8 + $0xb0] sm:$0xff]
    %v780 = vld [vmem:[#allocation8 + $0xb8] sm:$0xff]
    %v781 = vld [vmem:[#allocation8 + $0xc0] sm:$0xff]
    %v782 = vld [vmem:[#allocation8 + $0xc8] sm:$0xff]
    %v783 = vld [vmem:[#allocation8 + $0xd0] sm:$0xff]
    %v784 = vld [vmem:[#allocation8 + $0xd8] sm:$0xff]
    %v785 = vld [vmem:[#allocation8 + $0xe0] sm:$0xff]
    %v786 = vld [vmem:[#allocation8 + $0xe8] sm:$0xff]
    %v787 = vld [vmem:[#allocation8 + $0xf0] sm:$0xff]
    %v788 = vld [vmem:[#allocation8 + $0xf8] sm:$0xff]
    %v789 = vld [vmem:[#allocation8 + $0x100] sm:$0xff]
    %v790 = vld [vmem:[#allocation8 + $0x108] sm:$0xff]
    %v791 = vld [vmem:[#allocation8 + $0x110] sm:$0xff]
    %v792 = vld [vmem:[#allocation8 + $0x118] sm:$0xff]
    %v793 = vld [vmem:[#allocation8 + $0x120] sm:$0xff]
    %v794 = vld [vmem:[#allocation8 + $0x128] sm:$0xff]
    %v795 = vld [vmem:[#allocation8 + $0x130] sm:$0xff]
    %v796 = vld [vmem:[#allocation8 + $0x138] sm:$0xff]
    %v797 = vld [vmem:[#allocation8 + $0x140] sm:$0xff]
    %v798 = vld [vmem:[#allocation8 + $0x148] sm:$0xff]
    %v799 = vld [vmem:[#allocation8 + $0x150] sm:$0xff]
    %v800 = vld [vmem:[#allocation8 + $0x158] sm:$0xff]
    %v801 = vld [vmem:[#allocation8 + $0x160] sm:$0xff]
    %v802 = vld [vmem:[#allocation8 + $0x168] sm:$0xff]
    %v803 = vld [vmem:[#allocation8 + $0x170] sm:$0xff]
    %v804 = vld [vmem:[#allocation8 + $0x178] sm:$0xff]
    %v805 = vld [vmem:[#allocation8 + $0x180] sm:$0xff]
    %v806 = vld [vmem:[#allocation8 + $0x188] sm:$0xff]
    %v807 = vld [vmem:[#allocation8 + $0x190] sm:$0xff]
    %v808 = vld [vmem:[#allocation8 + $0x198] sm:$0xff]
    %v809 = vld [vmem:[#allocation8 + $0x1a0] sm:$0xff]
    %v810 = vld [vmem:[#allocation8 + $0x1a8] sm:$0xff]
    %v811 = vld [vmem:[#allocation8 + $0x1b0] sm:$0xff]
    %v812 = vld [vmem:[#allocation8 + $0x1b8] sm:$0xff]
    %v813 = vld [vmem:[#allocation8 + $0x1c0] sm:$0xff]
    %v814 = vld [vmem:[#allocation8 + $0x1c8] sm:$0xff]
    %v815 = vld [vmem:[#allocation8 + $0x1d0] sm:$0xff]
    %v816 = vld [vmem:[#allocation8 + $0x1d8] sm:$0xff]
    %v817 = vld [vmem:[#allocation8 + $0x1e0] sm:$0xff]
    %v818 = vld [vmem:[#allocation8 + $0x1e8] sm:$0xff]
    %v819 = vld [vmem:[#allocation8 + $0x1f0] sm:$0xff]
    %v820 = vld [vmem:[#allocation8 + $0x1f8] sm:$0xff]
    %v821 = vld [vmem:[#allocation8 + $0x200] sm:$0xff]
    %v822 = vld [vmem:[#allocation8 + $0x208] sm:$0xff]
    %v823 = vld [vmem:[#allocation8 + $0x210] sm:$0xff]
    %v824 = vld [vmem:[#allocation8 + $0x218] sm:$0xff]
    %v825 = vld [vmem:[#allocation8 + $0x220] sm:$0xff]
    %v826 = vld [vmem:[#allocation8 + $0x228] sm:$0xff]
    %v827 = vld [vmem:[#allocation8 + $0x230] sm:$0xff]
    %v828 = vld [vmem:[#allocation8 + $0x238] sm:$0xff]
    %v829 = vld [vmem:[#allocation8 + $0x240] sm:$0xff]
    %v830 = vld [vmem:[#allocation8 + $0x248] sm:$0xff]
    %v831 = vld [vmem:[#allocation8 + $0x250] sm:$0xff]
    %v832 = vld [vmem:[#allocation8 + $0x258] sm:$0xff]
    %v833 = vld [vmem:[#allocation8 + $0x260] sm:$0xff]
    %v834 = vld [vmem:[#allocation8 + $0x268] sm:$0xff]
    %v835 = vld [vmem:[#allocation8 + $0x270] sm:$0xff]
    %v836 = vld [vmem:[#allocation8 + $0x278] sm:$0xff]
    %v837 = vld [vmem:[#allocation8 + $0x280] sm:$0xff]
    %v838 = vld [vmem:[#allocation8 + $0x288] sm:$0xff]
    %v839 = vld [vmem:[#allocation8 + $0x290] sm:$0xff]
    %v840 = vld [vmem:[#allocation8 + $0x298] sm:$0xff]
    %v841 = vld [vmem:[#allocation8 + $0x2a0] sm:$0xff]
    %v842 = vld [vmem:[#allocation8 + $0x2a8] sm:$0xff]
    %v843 = vld [vmem:[#allocation8 + $0x2b0] sm:$0xff]
    %v844 = vld [vmem:[#allocation8 + $0x2b8] sm:$0xff]
    %v845 = vld [vmem:[#allocation8 + $0x2c0] sm:$0xff]
    %v846 = vld [vmem:[#allocation8 + $0x2c8] sm:$0xff]
    %v847 = vld [vmem:[#allocation8 + $0x2d0] sm:$0xff]
    %v848 = vld [vmem:[#allocation8 + $0x2d8] sm:$0xff]
    %v849 = vld [vmem:[#allocation8 + $0x2e0] sm:$0xff]
    %v850 = vld [vmem:[#allocation8 + $0x2e8] sm:$0xff]
    %v851 = vld [vmem:[#allocation8 + $0x2f0] sm:$0xff]
    %v852 = vld [vmem:[#allocation8 + $0x2f8] sm:$0xff]
    %v853 = vld [vmem:[#allocation8 + $0x300] sm:$0xff]
    %v854 = vld [vmem:[#allocation8 + $0x308] sm:$0xff]
    %v855 = vld [vmem:[#allocation8 + $0x310] sm:$0xff]
    %v856 = vld [vmem:[#allocation8 + $0x318] sm:$0xff]
    %v857 = vld [vmem:[#allocation8 + $0x320] sm:$0xff]
    %v858 = vld [vmem:[#allocation8 + $0x328] sm:$0xff]
    %v859 = vld [vmem:[#allocation8 + $0x330] sm:$0xff]
    %v860 = vld [vmem:[#allocation8 + $0x338] sm:$0xff]
    %v861 = vld [vmem:[#allocation8 + $0x340] sm:$0xff]
    %v862 = vld [vmem:[#allocation8 + $0x348] sm:$0xff]
    %v863 = vld [vmem:[#allocation8 + $0x350] sm:$0xff]
    %v864 = vld [vmem:[#allocation8 + $0x358] sm:$0xff]
    %v865 = vld [vmem:[#allocation8 + $0x360] sm:$0xff]
    %v866 = vld [vmem:[#allocation8 + $0x368] sm:$0xff]
    %v867 = vld [vmem:[#allocation8 + $0x370] sm:$0xff]
    %v868 = vld [vmem:[#allocation8 + $0x378] sm:$0xff]
    %v869 = vld [vmem:[#allocation8 + $0x380] sm:$0xff]
    %v870 = vld [vmem:[#allocation8 + $0x388] sm:$0xff]
    %v871 = vld [vmem:[#allocation8 + $0x390] sm:$0xff]
    %v872 = vld [vmem:[#allocation8 + $0x398] sm:$0xff]
    %v873 = vld [vmem:[#allocation8 + $0x3a0] sm:$0xff]
    %v874 = vld [vmem:[#allocation8 + $0x3a8] sm:$0xff]
    %v875 = vld [vmem:[#allocation8 + $0x3b0] sm:$0xff]
    %v876 = vld [vmem:[#allocation8 + $0x3b8] sm:$0xff]
    %v877 = vld [vmem:[#allocation8 + $0x3c0] sm:$0xff]
    %v878 = vld [vmem:[#allocation8 + $0x3c8] sm:$0xff]
    %v879 = vld [vmem:[#allocation8 + $0x3d0] sm:$0xff]
    %v880 = vld [vmem:[#allocation8 + $0x3d8] sm:$0xff]
    %v881 = vld [vmem:[#allocation8 + $0x3e0] sm:$0xff]
    %v882 = vld [vmem:[#allocation8 + $0x3e8] sm:$0xff]
    %v883 = vld [vmem:[#allocation8 + $0x3f0] sm:$0xff]
    %v884 = vld [vmem:[#allocation8 + $0x3f8] sm:$0xff]
    %v885 = vld [vmem:[#allocation8 + $0x400] sm:$0xff]
    %v886 = vld [vmem:[#allocation8 + $0x408] sm:$0xff]
    %v887 = vld [vmem:[#allocation8 + $0x410] sm:$0xff]
    %v888 = vld [vmem:[#allocation8 + $0x418] sm:$0xff]
    %v889 = vld [vmem:[#allocation8 + $0x420] sm:$0xff]
    %v890 = vld [vmem:[#allocation8 + $0x428] sm:$0xff]
    %v891 = vld [vmem:[#allocation8 + $0x430] sm:$0xff]
    %v892 = vld [vmem:[#allocation8 + $0x438] sm:$0xff]
    %v893 = vld [vmem:[#allocation8 + $0x440] sm:$0xff]
    %v894 = vld [vmem:[#allocation8 + $0x448] sm:$0xff]
    %v895 = vld [vmem:[#allocation8 + $0x450] sm:$0xff]
    %v896 = vld [vmem:[#allocation8 + $0x458] sm:$0xff]
    %v897 = vld [vmem:[#allocation8 + $0x460] sm:$0xff]
    %v898 = vld [vmem:[#allocation8 + $0x468] sm:$0xff]
    %v899 = vld [vmem:[#allocation8 + $0x470] sm:$0xff]
    %v900 = vld [vmem:[#allocation8 + $0x478] sm:$0xff]
    %v901 = vld [vmem:[#allocation8 + $0x480] sm:$0xff]
    %v902 = vld [vmem:[#allocation8 + $0x488] sm:$0xff]
    %v903 = vld [vmem:[#allocation8 + $0x490] sm:$0xff]
    %v904 = vld [vmem:[#allocation8 + $0x498] sm:$0xff]
    %v905 = vld [vmem:[#allocation8 + $0x4a0] sm:$0xff]
    %v906 = vld [vmem:[#allocation8 + $0x4a8] sm:$0xff]
    %v907 = vld [vmem:[#allocation8 + $0x4b0] sm:$0xff]
    %v908 = vld [vmem:[#allocation8 + $0x4b8] sm:$0xff]
    %v909 = vld [vmem:[#allocation8 + $0x4c0] sm:$0xff]
    %v910 = vld [vmem:[#allocation8 + $0x4c8] sm:$0xff]
    %v911 = vld [vmem:[#allocation8 + $0x4d0] sm:$0xff]
    %v912 = vld [vmem:[#allocation8 + $0x4d8] sm:$0xff]
    %v913 = vld [vmem:[#allocation8 + $0x4e0] sm:$0xff]
    %v914 = vld [vmem:[#allocation8 + $0x4e8] sm:$0xff]
    %v915 = vld [vmem:[#allocation8 + $0x4f0] sm:$0xff]
    %v916 = vld [vmem:[#allocation8 + $0x4f8] sm:$0xff]
    %v917 = vld [vmem:[#allocation8 + $0x500] sm:$0xff]
    %v918 = vld [vmem:[#allocation8 + $0x508] sm:$0xff]
    %v919 = vld [vmem:[#allocation8 + $0x510] sm:$0xff]
    %v920 = vld [vmem:[#allocation8 + $0x518] sm:$0xff]
    %v921 = vld [vmem:[#allocation8 + $0x520] sm:$0xff]
    %v922 = vld [vmem:[#allocation8 + $0x528] sm:$0xff]
    %v923 = vld [vmem:[#allocation8 + $0x530] sm:$0xff]
    %v924 = vld [vmem:[#allocation8 + $0x538] sm:$0xff]
    %v925 = vld [vmem:[#allocation8 + $0x540] sm:$0xff]
    %v926 = vld [vmem:[#allocation8 + $0x548] sm:$0xff]
    %v927 = vld [vmem:[#allocation8 + $0x550] sm:$0xff]
    %v928 = vld [vmem:[#allocation8 + $0x558] sm:$0xff]
    %v929 = vld [vmem:[#allocation8 + $0x560] sm:$0xff]
    %v930 = vld [vmem:[#allocation8 + $0x568] sm:$0xff]
    %v931 = vld [vmem:[#allocation8 + $0x570] sm:$0xff]
    %v932 = vld [vmem:[#allocation8 + $0x578] sm:$0xff]
    %v933 = vld [vmem:[#allocation8 + $0x580] sm:$0xff]
    %v934 = vld [vmem:[#allocation8 + $0x588] sm:$0xff]
    %v935 = vld [vmem:[#allocation8 + $0x590] sm:$0xff]
    %v936 = vld [vmem:[#allocation8 + $0x598] sm:$0xff]
    %v937 = vld [vmem:[#allocation8 + $0x5a0] sm:$0xff]
    %v938 = vld [vmem:[#allocation8 + $0x5a8] sm:$0xff]
    %v939 = vld [vmem:[#allocation8 + $0x5b0] sm:$0xff]
    %v940 = vld [vmem:[#allocation8 + $0x5b8] sm:$0xff]
    %v941 = vld [vmem:[#allocation8 + $0x5c0] sm:$0xff]
    %v942 = vld [vmem:[#allocation8 + $0x5c8] sm:$0xff]
    %v943 = vld [vmem:[#allocation8 + $0x5d0] sm:$0xff]
    %v944 = vld [vmem:[#allocation8 + $0x5d8] sm:$0xff]
    %v945 = vld [vmem:[#allocation8 + $0x5e0] sm:$0xff]
    %v946 = vld [vmem:[#allocation8 + $0x5e8] sm:$0xff]
    %v947 = vld [vmem:[#allocation8 + $0x5f0] sm:$0xff]
    %v948 = vld [vmem:[#allocation8 + $0x5f8] sm:$0xff]
    %v949 = vld [vmem:[#allocation8 + $0x600] sm:$0xff]
    %v950 = vld [vmem:[#allocation8 + $0x608] sm:$0xff]
    %v951 = vld [vmem:[#allocation8 + $0x610] sm:$0xff]
    %v952 = vld [vmem:[#allocation8 + $0x618] sm:$0xff]
    %v953 = vld [vmem:[#allocation8 + $0x620] sm:$0xff]
    %v954 = vld [vmem:[#allocation8 + $0x628] sm:$0xff]
    %v955 = vld [vmem:[#allocation8 + $0x630] sm:$0xff]
    %v956 = vld [vmem:[#allocation8 + $0x638] sm:$0xff]
    %v957 = vld [vmem:[#allocation8 + $0x640] sm:$0xff]
    %v958 = vld [vmem:[#allocation8 + $0x648] sm:$0xff]
    %v959 = vld [vmem:[#allocation8 + $0x650] sm:$0xff]
    %v960 = vld [vmem:[#allocation8 + $0x658] sm:$0xff]
    %v961 = vld [vmem:[#allocation8 + $0x660] sm:$0xff]
    %v962 = vld [vmem:[#allocation8 + $0x668] sm:$0xff]
    %v963 = vld [vmem:[#allocation8 + $0x670] sm:$0xff]
    %v964 = vld [vmem:[#allocation8 + $0x678] sm:$0xff]
    %v965 = vld [vmem:[#allocation8 + $0x680] sm:$0xff]
    %v966 = vld [vmem:[#allocation8 + $0x688] sm:$0xff]
    %v967 = vld [vmem:[#allocation8 + $0x690] sm:$0xff]
    %v968 = vld [vmem:[#allocation8 + $0x698] sm:$0xff]
    %v969 = vld [vmem:[#allocation8 + $0x6a0] sm:$0xff]
    %v970 = vld [vmem:[#allocation8 + $0x6a8] sm:$0xff]
    %v971 = vld [vmem:[#allocation8 + $0x6b0] sm:$0xff]
    %v972 = vld [vmem:[#allocation8 + $0x6b8] sm:$0xff]
    %v973 = vld [vmem:[#allocation8 + $0x6c0] sm:$0xff]
    %v974 = vld [vmem:[#allocation8 + $0x6c8] sm:$0xff]
    %v975 = vld [vmem:[#allocation8 + $0x6d0] sm:$0xff]
    %v976 = vld [vmem:[#allocation8 + $0x6d8] sm:$0xff]
    %v977 = vld [vmem:[#allocation8 + $0x6e0] sm:$0xff]
    %v978 = vld [vmem:[#allocation8 + $0x6e8] sm:$0xff]
    %v979 = vld [vmem:[#allocation8 + $0x6f0] sm:$0xff]
    %v980 = vld [vmem:[#allocation8 + $0x6f8] sm:$0xff]
    %v981 = vld [vmem:[#allocation8 + $0x700] sm:$0xff]
    %v982 = vld [vmem:[#allocation8 + $0x708] sm:$0xff]
    %v983 = vld [vmem:[#allocation8 + $0x710] sm:$0xff]
    %v984 = vld [vmem:[#allocation8 + $0x718] sm:$0xff]
    %v985 = vld [vmem:[#allocation8 + $0x720] sm:$0xff]
    %v986 = vld [vmem:[#allocation8 + $0x728] sm:$0xff]
    %v987 = vld [vmem:[#allocation8 + $0x730] sm:$0xff]
    %v988 = vld [vmem:[#allocation8 + $0x738] sm:$0xff]
    %v989 = vld [vmem:[#allocation8 + $0x740] sm:$0xff]
    %v990 = vld [vmem:[#allocation8 + $0x748] sm:$0xff]
    %v991 = vld [vmem:[#allocation8 + $0x750] sm:$0xff]
    %v992 = vld [vmem:[#allocation8 + $0x758] sm:$0xff]
    %v993 = vld [vmem:[#allocation8 + $0x760] sm:$0xff]
    %v994 = vld [vmem:[#allocation8 + $0x768] sm:$0xff]
    %v995 = vld [vmem:[#allocation8 + $0x770] sm:$0xff]
    %v996 = vld [vmem:[#allocation8 + $0x778] sm:$0xff]
    %v997 = vld [vmem:[#allocation8 + $0x780] sm:$0xff]
    %v998 = vld [vmem:[#allocation8 + $0x788] sm:$0xff]
    %v999 = vld [vmem:[#allocation8 + $0x790] sm:$0xff]
    %v1000 = vld [vmem:[#allocation8 + $0x798] sm:$0xff]
    %v1001 = vld [vmem:[#allocation8 + $0x7a0] sm:$0xff]
    %v1002 = vld [vmem:[#allocation8 + $0x7a8] sm:$0xff]
    %v1003 = vld [vmem:[#allocation8 + $0x7b0] sm:$0xff]
    %v1004 = vld [vmem:[#allocation8 + $0x7b8] sm:$0xff]
    %v1005 = vld [vmem:[#allocation8 + $0x7c0] sm:$0xff]
    %v1006 = vld [vmem:[#allocation8 + $0x7c8] sm:$0xff]
    %v1007 = vld [vmem:[#allocation8 + $0x7d0] sm:$0xff]
    %v1008 = vld [vmem:[#allocation8 + $0x7d8] sm:$0xff]
    %v1009 = vld [vmem:[#allocation8 + $0x7e0] sm:$0xff]
    %v1010 = vld [vmem:[#allocation8 + $0x7e8] sm:$0xff]
    %v1011 = vld [vmem:[#allocation8 + $0x7f0] sm:$0xff]
    %v1012 = vld [vmem:[#allocation8 + $0x7f8] sm:$0xff]
    %v1013 = vld [vmem:[#allocation8 + $0x800] sm:$0xff]
    %v1014 = vld [vmem:[#allocation8 + $0x808] sm:$0xff]
    %v1015 = vld [vmem:[#allocation8 + $0x810] sm:$0xff]
    %v1016 = vld [vmem:[#allocation8 + $0x818] sm:$0xff]
    %v1017 = vld [vmem:[#allocation8 + $0x820] sm:$0xff]
    %v1018 = vld [vmem:[#allocation8 + $0x828] sm:$0xff]
    %v1019 = vld [vmem:[#allocation8 + $0x830] sm:$0xff]
    %v1020 = vld [vmem:[#allocation8 + $0x838] sm:$0xff]
    %v1021 = vld [vmem:[#allocation8 + $0x840] sm:$0xff]
    %v1022 = vld [vmem:[#allocation8 + $0x848] sm:$0xff]
    %v1023 = vld [vmem:[#allocation8 + $0x850] sm:$0xff]
    %v1024 = vld [vmem:[#allocation8 + $0x858] sm:$0xff]
    %v1025 = vld [vmem:[#allocation8 + $0x860] sm:$0xff]
    %v1026 = vld [vmem:[#allocation8 + $0x868] sm:$0xff]
    %v1027 = vld [vmem:[#allocation8 + $0x870] sm:$0xff]
    %v1028 = vld [vmem:[#allocation8 + $0x878] sm:$0xff]
    %v1029 = vld [vmem:[#allocation8 + $0x880] sm:$0xff]
    %v1030 = vld [vmem:[#allocation8 + $0x888] sm:$0xff]
    %v1031 = vld [vmem:[#allocation8 + $0x890] sm:$0xff]
    %v1032 = vld [vmem:[#allocation8 + $0x898] sm:$0xff]
    %v1033 = vld [vmem:[#allocation8 + $0x8a0] sm:$0xff]
    %v1034 = vld [vmem:[#allocation8 + $0x8a8] sm:$0xff]
    %v1035 = vld [vmem:[#allocation8 + $0x8b0] sm:$0xff]
    %v1036 = vld [vmem:[#allocation8 + $0x8b8] sm:$0xff]
    %v1037 = vld [vmem:[#allocation8 + $0x8c0] sm:$0xff]
    %v1038 = vld [vmem:[#allocation8 + $0x8c8] sm:$0xff]
    %v1039 = vld [vmem:[#allocation8 + $0x8d0] sm:$0xff]
    %v1040 = vld [vmem:[#allocation8 + $0x8d8] sm:$0xff]
    %v1041 = vld [vmem:[#allocation8 + $0x8e0] sm:$0xff]
    %v1042 = vld [vmem:[#allocation8 + $0x8e8] sm:$0xff]
    %v1043 = vld [vmem:[#allocation8 + $0x8f0] sm:$0xff]
    %v1044 = vld [vmem:[#allocation8 + $0x8f8] sm:$0xff]
    %v1045 = vld [vmem:[#allocation8 + $0x900] sm:$0xff]
    %v1046 = vld [vmem:[#allocation8 + $0x908] sm:$0xff]
    %v1047 = vld [vmem:[#allocation8 + $0x910] sm:$0xff]
    %v1048 = vld [vmem:[#allocation8 + $0x918] sm:$0xff]
    %v1049 = vld [vmem:[#allocation8 + $0x920] sm:$0xff]
    %v1050 = vld [vmem:[#allocation8 + $0x928] sm:$0xff]
    %v1051 = vld [vmem:[#allocation8 + $0x930] sm:$0xff]
    %v1052 = vld [vmem:[#allocation8 + $0x938] sm:$0xff]
    %v1053 = vld [vmem:[#allocation8 + $0x940] sm:$0xff]
    %v1054 = vld [vmem:[#allocation8 + $0x948] sm:$0xff]
    %v1055 = vld [vmem:[#allocation8 + $0x950] sm:$0xff]
    %v1056 = vld [vmem:[#allocation8 + $0x958] sm:$0xff]
    %v1057 = vld [vmem:[#allocation8 + $0x960] sm:$0xff]
    %v1058 = vld [vmem:[#allocation8 + $0x968] sm:$0xff]
    %v1059 = vld [vmem:[#allocation8 + $0x970] sm:$0xff]
    %v1060 = vld [vmem:[#allocation8 + $0x978] sm:$0xff]
    %v1061 = vld [vmem:[#allocation8 + $0x980] sm:$0xff]
    %v1062 = vld [vmem:[#allocation8 + $0x988] sm:$0xff]
    %v1063 = vld [vmem:[#allocation8 + $0x990] sm:$0xff]
    %v1064 = vld [vmem:[#allocation8 + $0x998] sm:$0xff]
    %v1065 = vld [vmem:[#allocation8 + $0x9a0] sm:$0xff]
    %v1066 = vld [vmem:[#allocation8 + $0x9a8] sm:$0xff]
    %v1067 = vld [vmem:[#allocation8 + $0x9b0] sm:$0xff]
    %v1068 = vld [vmem:[#allocation8 + $0x9b8] sm:$0xff]
    %v1069 = vld [vmem:[#allocation8 + $0x9c0] sm:$0xff]
    %v1070 = vld [vmem:[#allocation8 + $0x9c8] sm:$0xff]
    %v1071 = vld [vmem:[#allocation8 + $0x9d0] sm:$0xff]
    %v1072 = vld [vmem:[#allocation8 + $0x9d8] sm:$0xff]
    %v1073 = vld [vmem:[#allocation8 + $0x9e0] sm:$0xff]
    %v1074 = vld [vmem:[#allocation8 + $0x9e8] sm:$0xff]
    %v1075 = vld [vmem:[#allocation8 + $0x9f0] sm:$0xff]
    %v1076 = vld [vmem:[#allocation8 + $0x9f8] sm:$0xff]
    %v1077 = vld [vmem:[#allocation8 + $0xa00] sm:$0xff]
    %v1078 = vld [vmem:[#allocation8 + $0xa08] sm:$0xff]
    %v1079 = vld [vmem:[#allocation8 + $0xa10] sm:$0xff]
    %v1080 = vld [vmem:[#allocation8 + $0xa18] sm:$0xff]
    %v1081 = vld [vmem:[#allocation8 + $0xa20] sm:$0xff]
    %v1082 = vld [vmem:[#allocation8 + $0xa28] sm:$0xff]
    %v1083 = vld [vmem:[#allocation8 + $0xa30] sm:$0xff]
    %v1084 = vld [vmem:[#allocation8 + $0xa38] sm:$0xff]
    %v1085 = vld [vmem:[#allocation8 + $0xa40] sm:$0xff]
    %v1086 = vld [vmem:[#allocation8 + $0xa48] sm:$0xff]
    %v1087 = vld [vmem:[#allocation8 + $0xa50] sm:$0xff]
    %v1088 = vld [vmem:[#allocation8 + $0xa58] sm:$0xff]
    %v1089 = vld [vmem:[#allocation8 + $0xa60] sm:$0xff]
    %v1090 = vld [vmem:[#allocation8 + $0xa68] sm:$0xff]
    %v1091 = vld [vmem:[#allocation8 + $0xa70] sm:$0xff]
    %v1092 = vld [vmem:[#allocation8 + $0xa78] sm:$0xff]
    %v1093 = vld [vmem:[#allocation8 + $0xa80] sm:$0xff]
    %v1094 = vld [vmem:[#allocation8 + $0xa88] sm:$0xff]
    %v1095 = vld [vmem:[#allocation8 + $0xa90] sm:$0xff]
    %v1096 = vld [vmem:[#allocation8 + $0xa98] sm:$0xff]
    %v1097 = vld [vmem:[#allocation8 + $0xaa0] sm:$0xff]
    %v1098 = vld [vmem:[#allocation8 + $0xaa8] sm:$0xff]
    %v1099 = vld [vmem:[#allocation8 + $0xab0] sm:$0xff]
    %v1100 = vld [vmem:[#allocation8 + $0xab8] sm:$0xff]
    %v1101 = vld [vmem:[#allocation8 + $0xac0] sm:$0xff]
    %v1102 = vld [vmem:[#allocation8 + $0xac8] sm:$0xff]
    %v1103 = vld [vmem:[#allocation8 + $0xad0] sm:$0xff]
    %v1104 = vld [vmem:[#allocation8 + $0xad8] sm:$0xff]
    %v1105 = vld [vmem:[#allocation8 + $0xae0] sm:$0xff]
    %v1106 = vld [vmem:[#allocation8 + $0xae8] sm:$0xff]
    %v1107 = vld [vmem:[#allocation8 + $0xaf0] sm:$0xff]
    %v1108 = vld [vmem:[#allocation8 + $0xaf8] sm:$0xff]
    %v1109 = vld [vmem:[#allocation8 + $0xb00] sm:$0xff]
    %v1110 = vld [vmem:[#allocation8 + $0xb08] sm:$0xff]
    %v1111 = vld [vmem:[#allocation8 + $0xb10] sm:$0xff]
    %v1112 = vld [vmem:[#allocation8 + $0xb18] sm:$0xff]
    %v1113 = vld [vmem:[#allocation8 + $0xb20] sm:$0xff]
    %v1114 = vld [vmem:[#allocation8 + $0xb28] sm:$0xff]
    %v1115 = vld [vmem:[#allocation8 + $0xb30] sm:$0xff]
    %v1116 = vld [vmem:[#allocation8 + $0xb38] sm:$0xff]
    %v1117 = vld [vmem:[#allocation8 + $0xb40] sm:$0xff]
    %v1118 = vld [vmem:[#allocation8 + $0xb48] sm:$0xff]
    %v1119 = vld [vmem:[#allocation8 + $0xb50] sm:$0xff]
    %v1120 = vld [vmem:[#allocation8 + $0xb58] sm:$0xff]
    %v1121 = vld [vmem:[#allocation8 + $0xb60] sm:$0xff]
    %v1122 = vld [vmem:[#allocation8 + $0xb68] sm:$0xff]
    %v1123 = vld [vmem:[#allocation8 + $0xb70] sm:$0xff]
    %v1124 = vld [vmem:[#allocation8 + $0xb78] sm:$0xff]
    %v1125 = vld [vmem:[#allocation8 + $0xb80] sm:$0xff]
    %v1126 = vld [vmem:[#allocation8 + $0xb88] sm:$0xff]
    %v1127 = vld [vmem:[#allocation8 + $0xb90] sm:$0xff]
    %v1128 = vld [vmem:[#allocation8 + $0xb98] sm:$0xff]
    %v1129 = vld [vmem:[#allocation8 + $0xba0] sm:$0xff]
    %v1130 = vld [vmem:[#allocation8 + $0xba8] sm:$0xff]
    %v1131 = vld [vmem:[#allocation8 + $0xbb0] sm:$0xff]
    %v1132 = vld [vmem:[#allocation8 + $0xbb8] sm:$0xff]
    %v1133 = vld [vmem:[#allocation8 + $0xbc0] sm:$0xff]
    %v1134 = vld [vmem:[#allocation8 + $0xbc8] sm:$0xff]
    %v1135 = vld [vmem:[#allocation8 + $0xbd0] sm:$0xff]
    %v1136 = vld [vmem:[#allocation8 + $0xbd8] sm:$0xff]
    %v1137 = vld [vmem:[#allocation8 + $0xbe0] sm:$0xff]
    %v1138 = vld [vmem:[#allocation8 + $0xbe8] sm:$0xff]
    %v1139 = vld [vmem:[#allocation8 + $0xbf0] sm:$0xff]
    %v1140 = vld [vmem:[#allocation8 + $0xbf8] sm:$0xff]
    %v1141 = vld [vmem:[#allocation8 + $0xc00] sm:$0xff]
    %v1142 = vld [vmem:[#allocation8 + $0xc08] sm:$0xff]
    %v1143 = vld [vmem:[#allocation8 + $0xc10] sm:$0xff]
    %v1144 = vld [vmem:[#allocation8 + $0xc18] sm:$0xff]
    %v1145 = vld [vmem:[#allocation8 + $0xc20] sm:$0xff]
    %v1146 = vld [vmem:[#allocation8 + $0xc28] sm:$0xff]
    %v1147 = vld [vmem:[#allocation8 + $0xc30] sm:$0xff]
    %v1148 = vld [vmem:[#allocation8 + $0xc38] sm:$0xff]
    %v1149 = vld [vmem:[#allocation8 + $0xc40] sm:$0xff]
    %v1150 = vld [vmem:[#allocation8 + $0xc48] sm:$0xff]
    %v1151 = vld [vmem:[#allocation8 + $0xc50] sm:$0xff]
    %v1152 = vld [vmem:[#allocation8 + $0xc58] sm:$0xff]
    %v1153 = vld [vmem:[#allocation8 + $0xc60] sm:$0xff]
    %v1154 = vld [vmem:[#allocation8 + $0xc68] sm:$0xff]
    %v1155 = vld [vmem:[#allocation8 + $0xc70] sm:$0xff]
    %v1156 = vld [vmem:[#allocation8 + $0xc78] sm:$0xff]
    %v1157 = vld [vmem:[#allocation8 + $0xc80] sm:$0xff]
    %v1158 = vld [vmem:[#allocation8 + $0xc88] sm:$0xff]
    %v1159 = vld [vmem:[#allocation8 + $0xc90] sm:$0xff]
    %v1160 = vld [vmem:[#allocation8 + $0xc98] sm:$0xff]
    %v1161 = vld [vmem:[#allocation8 + $0xca0] sm:$0xff]
    %v1162 = vld [vmem:[#allocation8 + $0xca8] sm:$0xff]
    %v1163 = vld [vmem:[#allocation8 + $0xcb0] sm:$0xff]
    %v1164 = vld [vmem:[#allocation8 + $0xcb8] sm:$0xff]
    %v1165 = vld [vmem:[#allocation8 + $0xcc0] sm:$0xff]
    %v1166 = vld [vmem:[#allocation8 + $0xcc8] sm:$0xff]
    %v1167 = vld [vmem:[#allocation8 + $0xcd0] sm:$0xff]
    %v1168 = vld [vmem:[#allocation8 + $0xcd8] sm:$0xff]
    %v1169 = vld [vmem:[#allocation8 + $0xce0] sm:$0xff]
    %v1170 = vld [vmem:[#allocation8 + $0xce8] sm:$0xff]
    %v1171 = vld [vmem:[#allocation8 + $0xcf0] sm:$0xff]
    %v1172 = vld [vmem:[#allocation8 + $0xcf8] sm:$0xff]
    %v1173 = vld [vmem:[#allocation8 + $0xd00] sm:$0xff]
    %v1174 = vld [vmem:[#allocation8 + $0xd08] sm:$0xff]
    %v1175 = vld [vmem:[#allocation8 + $0xd10] sm:$0xff]
    %v1176 = vld [vmem:[#allocation8 + $0xd18] sm:$0xff]
    %v1177 = vld [vmem:[#allocation8 + $0xd20] sm:$0xff]
    %v1178 = vld [vmem:[#allocation8 + $0xd28] sm:$0xff]
    %v1179 = vld [vmem:[#allocation8 + $0xd30] sm:$0xff]
    %v1180 = vld [vmem:[#allocation8 + $0xd38] sm:$0xff]
    %v1181 = vld [vmem:[#allocation8 + $0xd40] sm:$0xff]
    %v1182 = vld [vmem:[#allocation8 + $0xd48] sm:$0xff]
    %v1183 = vld [vmem:[#allocation8 + $0xd50] sm:$0xff]
    %v1184 = vld [vmem:[#allocation8 + $0xd58] sm:$0xff]
    %v1185 = vld [vmem:[#allocation8 + $0xd60] sm:$0xff]
    %v1186 = vld [vmem:[#allocation8 + $0xd68] sm:$0xff]
    %v1187 = vld [vmem:[#allocation8 + $0xd70] sm:$0xff]
    %v1188 = vld [vmem:[#allocation8 + $0xd78] sm:$0xff]
    %v1189 = vld [vmem:[#allocation8 + $0xd80] sm:$0xff]
    %v1190 = vld [vmem:[#allocation8 + $0xd88] sm:$0xff]
    %v1191 = vld [vmem:[#allocation8 + $0xd90] sm:$0xff]
    %v1192 = vld [vmem:[#allocation8 + $0xd98] sm:$0xff]
    %v1193 = vld [vmem:[#allocation8 + $0xda0] sm:$0xff]
    %v1194 = vld [vmem:[#allocation8 + $0xda8] sm:$0xff]
    %v1195 = vld [vmem:[#allocation8 + $0xdb0] sm:$0xff]
    %v1196 = vld [vmem:[#allocation8 + $0xdb8] sm:$0xff]
    %v1197 = vld [vmem:[#allocation8 + $0xdc0] sm:$0xff]
    %v1198 = vld [vmem:[#allocation8 + $0xdc8] sm:$0xff]
    %v1199 = vld [vmem:[#allocation8 + $0xdd0] sm:$0xff]
    %v1200 = vld [vmem:[#allocation8 + $0xdd8] sm:$0xff]
    %v1201 = vld [vmem:[#allocation8 + $0xde0] sm:$0xff]
    %v1202 = vld [vmem:[#allocation8 + $0xde8] sm:$0xff]
    %v1203 = vld [vmem:[#allocation8 + $0xdf0] sm:$0xff]
    %v1204 = vld [vmem:[#allocation8 + $0xdf8] sm:$0xff]
    %v1205 = vld [vmem:[#allocation8 + $0xe00] sm:$0xff]
    %v1206 = vld [vmem:[#allocation8 + $0xe08] sm:$0xff]
    %v1207 = vld [vmem:[#allocation8 + $0xe10] sm:$0xff]
    %v1208 = vld [vmem:[#allocation8 + $0xe18] sm:$0xff]
    %v1209 = vld [vmem:[#allocation8 + $0xe20] sm:$0xff]
    %v1210 = vld [vmem:[#allocation8 + $0xe28] sm:$0xff]
    %v1211 = vld [vmem:[#allocation8 + $0xe30] sm:$0xff]
    %v1212 = vld [vmem:[#allocation8 + $0xe38] sm:$0xff]
    %v1213 = vld [vmem:[#allocation8 + $0xe40] sm:$0xff]
    %v1214 = vld [vmem:[#allocation8 + $0xe48] sm:$0xff]
    %v1215 = vld [vmem:[#allocation8 + $0xe50] sm:$0xff]
    %v1216 = vld [vmem:[#allocation8 + $0xe58] sm:$0xff]
    %v1217 = vld [vmem:[#allocation8 + $0xe60] sm:$0xff]
    %v1218 = vld [vmem:[#allocation8 + $0xe68] sm:$0xff]
    %v1219 = vld [vmem:[#allocation8 + $0xe70] sm:$0xff]
    %v1220 = vld [vmem:[#allocation8 + $0xe78] sm:$0xff]
    %v1221 = vld [vmem:[#allocation8 + $0xe80] sm:$0xff]
    %v1222 = vld [vmem:[#allocation8 + $0xe88] sm:$0xff]
    %v1223 = vld [vmem:[#allocation8 + $0xe90] sm:$0xff]
    %v1224 = vld [vmem:[#allocation8 + $0xe98] sm:$0xff]
    %v1225 = vld [vmem:[#allocation8 + $0xea0] sm:$0xff]
    %v1226 = vld [vmem:[#allocation8 + $0xea8] sm:$0xff]
    %v1227 = vld [vmem:[#allocation8 + $0xeb0] sm:$0xff]
    %v1228 = vld [vmem:[#allocation8 + $0xeb8] sm:$0xff]
    %v1229 = vld [vmem:[#allocation8 + $0xec0] sm:$0xff]
    %v1230 = vld [vmem:[#allocation8 + $0xec8] sm:$0xff]
    %v1231 = vld [vmem:[#allocation8 + $0xed0] sm:$0xff]
    %v1232 = vld [vmem:[#allocation8 + $0xed8] sm:$0xff]
    %v1233 = vld [vmem:[#allocation8 + $0xee0] sm:$0xff]
    %v1234 = vld [vmem:[#allocation8 + $0xee8] sm:$0xff]
    %v1235 = vld [vmem:[#allocation8 + $0xef0] sm:$0xff]
    %v1236 = vld [vmem:[#allocation8 + $0xef8] sm:$0xff]
    %v1237 = vld [vmem:[#allocation8 + $0xf00] sm:$0xff]
    %v1238 = vld [vmem:[#allocation8 + $0xf08] sm:$0xff]
    %v1239 = vld [vmem:[#allocation8 + $0xf10] sm:$0xff]
    %v1240 = vld [vmem:[#allocation8 + $0xf18] sm:$0xff]
    %v1241 = vld [vmem:[#allocation8 + $0xf20] sm:$0xff]
    %v1242 = vld [vmem:[#allocation8 + $0xf28] sm:$0xff]
    %v1243 = vld [vmem:[#allocation8 + $0xf30] sm:$0xff]
    %v1244 = vld [vmem:[#allocation8 + $0xf38] sm:$0xff]
    %v1245 = vld [vmem:[#allocation8 + $0xf40] sm:$0xff]
    %v1246 = vld [vmem:[#allocation8 + $0xf48] sm:$0xff]
    %v1247 = vld [vmem:[#allocation8 + $0xf50] sm:$0xff]
    %v1248 = vld [vmem:[#allocation8 + $0xf58] sm:$0xff]
    %v1249 = vld [vmem:[#allocation8 + $0xf60] sm:$0xff]
    %v1250 = vld [vmem:[#allocation8 + $0xf68] sm:$0xff]
    %v1251 = vld [vmem:[#allocation8 + $0xf70] sm:$0xff]
    %v1252 = vld [vmem:[#allocation8 + $0xf78] sm:$0xff]
    %v1253 = vld [vmem:[#allocation8 + $0xf80] sm:$0xff]
    %v1254 = vld [vmem:[#allocation8 + $0xf88] sm:$0xff]
    %v1255 = vld [vmem:[#allocation8 + $0xf90] sm:$0xff]
    %v1256 = vld [vmem:[#allocation8 + $0xf98] sm:$0xff]
    %v1257 = vld [vmem:[#allocation8 + $0xfa0] sm:$0xff]
    %v1258 = vld [vmem:[#allocation8 + $0xfa8] sm:$0xff]
    %v1259 = vld [vmem:[#allocation8 + $0xfb0] sm:$0xff]
    %v1260 = vld [vmem:[#allocation8 + $0xfb8] sm:$0xff]
    %v1261 = vld [vmem:[#allocation8 + $0xfc0] sm:$0xff]
    %v1262 = vld [vmem:[#allocation8 + $0xfc8] sm:$0xff]
    %v1263 = vld [vmem:[#allocation8 + $0xfd0] sm:$0xff]
    %v1264 = vld [vmem:[#allocation8 + $0xfd8] sm:$0xff]
    %v1265 = vld [vmem:[#allocation8 + $0xfe0] sm:$0xff]
    %v1266 = vld [vmem:[#allocation8 + $0xfe8] sm:$0xff]
    %v1267 = vld [vmem:[#allocation8 + $0xff0] sm:$0xff]
    %v1268 = vld [vmem:[#allocation8 + $0xff8] sm:$0xff]
    %v1269 = vld [vmem:[#allocation8 + $0x1000] sm:$0xff]
    %v1270 = vld [vmem:[#allocation8 + $0x1008] sm:$0xff]
    %v1271 = vld [vmem:[#allocation8 + $0x1010] sm:$0xff]
    %v1272 = vld [vmem:[#allocation8 + $0x1018] sm:$0xff]
    %v1273 = vld [vmem:[#allocation8 + $0x1020] sm:$0xff]
    %v1274 = vld [vmem:[#allocation8 + $0x1028] sm:$0xff]
    %v1275 = vld [vmem:[#allocation8 + $0x1030] sm:$0xff]
    %v1276 = vld [vmem:[#allocation8 + $0x1038] sm:$0xff]
    %v1277 = vld [vmem:[#allocation8 + $0x1040] sm:$0xff]
    %v1278 = vld [vmem:[#allocation8 + $0x1048] sm:$0xff]
    %v1279 = vld [vmem:[#allocation8 + $0x1050] sm:$0xff]
    %v1280 = vld [vmem:[#allocation8 + $0x1058] sm:$0xff]
    %v1281 = vld [vmem:[#allocation8 + $0x1060] sm:$0xff]
    %v1282 = vld [vmem:[#allocation8 + $0x1068] sm:$0xff]
    %v1283 = vld [vmem:[#allocation8 + $0x1070] sm:$0xff]
    %v1284 = vld [vmem:[#allocation8 + $0x1078] sm:$0xff]
    %v1285 = vld [vmem:[#allocation8 + $0x1080] sm:$0xff]
    %v1286 = vld [vmem:[#allocation8 + $0x1088] sm:$0xff]
    %v1287 = vld [vmem:[#allocation8 + $0x1090] sm:$0xff]
    %v1288 = vld [vmem:[#allocation8 + $0x1098] sm:$0xff]
    %v1289 = vld [vmem:[#allocation8 + $0x10a0] sm:$0xff]
    %v1290 = vld [vmem:[#allocation8 + $0x10a8] sm:$0xff]
    %v1291 = vld [vmem:[#allocation8 + $0x10b0] sm:$0xff]
    %v1292 = vld [vmem:[#allocation8 + $0x10b8] sm:$0xff]
    %v1293 = vld [vmem:[#allocation8 + $0x10c0] sm:$0xff]
    %v1294 = vld [vmem:[#allocation8 + $0x10c8] sm:$0xff]
    %v1295 = vld [vmem:[#allocation8 + $0x10d0] sm:$0xff]
    %v1296 = vld [vmem:[#allocation8 + $0x10d8] sm:$0xff]
    %v1297 = vld [vmem:[#allocation8 + $0x10e0] sm:$0xff]
    %v1298 = vld [vmem:[#allocation8 + $0x10e8] sm:$0xff]
    %v1299 = vld [vmem:[#allocation8 + $0x10f0] sm:$0xff]
    %v1300 = vld [vmem:[#allocation8 + $0x10f8] sm:$0xff]
    %v1301 = vld [vmem:[#allocation8 + $0x1100] sm:$0xff]
    %v1302 = vld [vmem:[#allocation8 + $0x1108] sm:$0xff]
    %v1303 = vld [vmem:[#allocation8 + $0x1110] sm:$0xff]
    %v1304 = vld [vmem:[#allocation8 + $0x1118] sm:$0xff]
    %v1305 = vld [vmem:[#allocation8 + $0x1120] sm:$0xff]
    %v1306 = vld [vmem:[#allocation8 + $0x1128] sm:$0xff]
    %v1307 = vld [vmem:[#allocation8 + $0x1130] sm:$0xff]
    %v1308 = vld [vmem:[#allocation8 + $0x1138] sm:$0xff]
    %v1309 = vld [vmem:[#allocation8 + $0x1140] sm:$0xff]
    %v1310 = vld [vmem:[#allocation8 + $0x1148] sm:$0xff]
    %v1311 = vld [vmem:[#allocation8 + $0x1150] sm:$0xff]
    %v1312 = vld [vmem:[#allocation8 + $0x1158] sm:$0xff]
    %v1313 = vld [vmem:[#allocation8 + $0x1160] sm:$0xff]
    %v1314 = vld [vmem:[#allocation8 + $0x1168] sm:$0xff]
    %v1315 = vld [vmem:[#allocation8 + $0x1170] sm:$0xff]
    %v1316 = vld [vmem:[#allocation8 + $0x1178] sm:$0xff]
    %v1317 = vld [vmem:[#allocation8 + $0x1180] sm:$0xff]
    %v1318 = vld [vmem:[#allocation8 + $0x1188] sm:$0xff]
    %v1319 = vld [vmem:[#allocation8 + $0x1190] sm:$0xff]
    %v1320 = vld [vmem:[#allocation8 + $0x1198] sm:$0xff]
    %v1321 = vld [vmem:[#allocation8 + $0x11a0] sm:$0xff]
    %v1322 = vld [vmem:[#allocation8 + $0x11a8] sm:$0xff]
    %v1323 = vld [vmem:[#allocation8 + $0x11b0] sm:$0xff]
    %v1324 = vld [vmem:[#allocation8 + $0x11b8] sm:$0xff]
    %v1325 = vld [vmem:[#allocation8 + $0x11c0] sm:$0xff]
    %v1326 = vld [vmem:[#allocation8 + $0x11c8] sm:$0xff]
    %v1327 = vld [vmem:[#allocation8 + $0x11d0] sm:$0xff]
    %v1328 = vld [vmem:[#allocation8 + $0x11d8] sm:$0xff]
    %v1329 = vld [vmem:[#allocation8 + $0x11e0] sm:$0xff]
    %v1330 = vld [vmem:[#allocation8 + $0x11e8] sm:$0xff]
    %v1331 = vld [vmem:[#allocation8 + $0x11f0] sm:$0xff]
    %v1332 = vld [vmem:[#allocation8 + $0x11f8] sm:$0xff]
    %v1333 = vld [vmem:[#allocation8 + $0x1200] sm:$0xff]
    %v1334 = vld [vmem:[#allocation8 + $0x1208] sm:$0xff]
    %v1335 = vld [vmem:[#allocation8 + $0x1210] sm:$0xff]
    %v1336 = vld [vmem:[#allocation8 + $0x1218] sm:$0xff]
    %v1337 = vld [vmem:[#allocation8 + $0x1220] sm:$0xff]
    %v1338 = vld [vmem:[#allocation8 + $0x1228] sm:$0xff]
    %v1339 = vld [vmem:[#allocation8 + $0x1230] sm:$0xff]
    %v1340 = vld [vmem:[#allocation8 + $0x1238] sm:$0xff]
    %v1341 = vld [vmem:[#allocation8 + $0x1240] sm:$0xff]
    %v1342 = vld [vmem:[#allocation8 + $0x1248] sm:$0xff]
    %v1343 = vld [vmem:[#allocation8 + $0x1250] sm:$0xff]
    %v1344 = vld [vmem:[#allocation8 + $0x1258] sm:$0xff]
    %v1345 = vld [vmem:[#allocation8 + $0x1260] sm:$0xff]
    %v1346 = vld [vmem:[#allocation8 + $0x1268] sm:$0xff]
    %v1347 = vld [vmem:[#allocation8 + $0x1270] sm:$0xff]
    %v1348 = vld [vmem:[#allocation8 + $0x1278] sm:$0xff]
    %v1349 = vld [vmem:[#allocation8 + $0x1280] sm:$0xff]
    %v1350 = vld [vmem:[#allocation8 + $0x1288] sm:$0xff]
    %v1351 = vld [vmem:[#allocation8 + $0x1290] sm:$0xff]
    %v1352 = vld [vmem:[#allocation8 + $0x1298] sm:$0xff]
    %v1353 = vld [vmem:[#allocation8 + $0x12a0] sm:$0xff]
    %v1354 = vld [vmem:[#allocation8 + $0x12a8] sm:$0xff]
    %v1355 = vld [vmem:[#allocation8 + $0x12b0] sm:$0xff]
    %v1356 = vld [vmem:[#allocation8 + $0x12b8] sm:$0xff]
    %v1357 = vld [vmem:[#allocation8 + $0x12c0] sm:$0xff]
    %v1358 = vld [vmem:[#allocation8 + $0x12c8] sm:$0xff]
    %v1359 = vld [vmem:[#allocation8 + $0x12d0] sm:$0xff]
    %v1360 = vld [vmem:[#allocation8 + $0x12d8] sm:$0xff]
    %v1361 = vld [vmem:[#allocation8 + $0x12e0] sm:$0xff]
    %v1362 = vld [vmem:[#allocation8 + $0x12e8] sm:$0xff]
    %v1363 = vld [vmem:[#allocation8 + $0x12f0] sm:$0xff]
    %v1364 = vld [vmem:[#allocation8 + $0x12f8] sm:$0xff]
    %v1365 = vld [vmem:[#allocation8 + $0x1300] sm:$0xff]
    %v1366 = vld [vmem:[#allocation8 + $0x1308] sm:$0xff]
    %v1367 = vld [vmem:[#allocation8 + $0x1310] sm:$0xff]
    %v1368 = vld [vmem:[#allocation8 + $0x1318] sm:$0xff]
    %v1369 = vld [vmem:[#allocation8 + $0x1320] sm:$0xff]
    %v1370 = vld [vmem:[#allocation8 + $0x1328] sm:$0xff]
    %v1371 = vld [vmem:[#allocation8 + $0x1330] sm:$0xff]
    %v1372 = vld [vmem:[#allocation8 + $0x1338] sm:$0xff]
    %v1373 = vld [vmem:[#allocation8 + $0x1340] sm:$0xff]
    %v1374 = vld [vmem:[#allocation8 + $0x1348] sm:$0xff]
    %v1375 = vld [vmem:[#allocation8 + $0x1350] sm:$0xff]
    %v1376 = vld [vmem:[#allocation8 + $0x1358] sm:$0xff]
    %v1377 = vld [vmem:[#allocation8 + $0x1360] sm:$0xff]
    %v1378 = vld [vmem:[#allocation8 + $0x1368] sm:$0xff]
    %v1379 = vld [vmem:[#allocation8 + $0x1370] sm:$0xff]
    %v1380 = vld [vmem:[#allocation8 + $0x1378] sm:$0xff]
    %v1381 = vld [vmem:[#allocation8 + $0x1380] sm:$0xff]
    %v1382 = vld [vmem:[#allocation8 + $0x1388] sm:$0xff]
    %v1383 = vld [vmem:[#allocation8 + $0x1390] sm:$0xff]
    %v1384 = vld [vmem:[#allocation8 + $0x1398] sm:$0xff]
    %v1385 = vld [vmem:[#allocation8 + $0x13a0] sm:$0xff]
    %v1386 = vld [vmem:[#allocation8 + $0x13a8] sm:$0xff]
    %v1387 = vld [vmem:[#allocation8 + $0x13b0] sm:$0xff]
    %v1388 = vld [vmem:[#allocation8 + $0x13b8] sm:$0xff]
    %v1389 = vld [vmem:[#allocation8 + $0x13c0] sm:$0xff]
    %v1390 = vld [vmem:[#allocation8 + $0x13c8] sm:$0xff]
    %v1391 = vld [vmem:[#allocation8 + $0x13d0] sm:$0xff]
    %v1392 = vld [vmem:[#allocation8 + $0x13d8] sm:$0xff]
    %v1393 = vld [vmem:[#allocation8 + $0x13e0] sm:$0xff]
    %v1394 = vld [vmem:[#allocation8 + $0x13e8] sm:$0xff]
    %v1395 = vld [vmem:[#allocation8 + $0x13f0] sm:$0xff]
    %v1396 = vld [vmem:[#allocation8 + $0x13f8] sm:$0xff]
    %v1397 = vld [vmem:[#allocation8 + $0x1400] sm:$0xff]
    %v1398 = vld [vmem:[#allocation8 + $0x1408] sm:$0xff]
    %v1399 = vld [vmem:[#allocation8 + $0x1410] sm:$0xff]
    %v1400 = vld [vmem:[#allocation8 + $0x1418] sm:$0xff]
    %v1401 = vld [vmem:[#allocation8 + $0x1420] sm:$0xff]
    %v1402 = vld [vmem:[#allocation8 + $0x1428] sm:$0xff]
    %v1403 = vld [vmem:[#allocation8 + $0x1430] sm:$0xff]
    %v1404 = vld [vmem:[#allocation8 + $0x1438] sm:$0xff]
    %v1405 = vld [vmem:[#allocation8 + $0x1440] sm:$0xff]
    %v1406 = vld [vmem:[#allocation8 + $0x1448] sm:$0xff]
    %v1407 = vld [vmem:[#allocation8 + $0x1450] sm:$0xff]
    %v1408 = vld [vmem:[#allocation8 + $0x1458] sm:$0xff]
    %v1409 = vld [vmem:[#allocation8 + $0x1460] sm:$0xff]
    %v1410 = vld [vmem:[#allocation8 + $0x1468] sm:$0xff]
    %v1411 = vld [vmem:[#allocation8 + $0x1470] sm:$0xff]
    %v1412 = vld [vmem:[#allocation8 + $0x1478] sm:$0xff]
    %v1413 = vld [vmem:[#allocation8 + $0x1480] sm:$0xff]
    %v1414 = vld [vmem:[#allocation8 + $0x1488] sm:$0xff]
    %v1415 = vld [vmem:[#allocation8 + $0x1490] sm:$0xff]
    %v1416 = vld [vmem:[#allocation8 + $0x1498] sm:$0xff]
    %v1417 = vld [vmem:[#allocation8 + $0x14a0] sm:$0xff]
    %v1418 = vld [vmem:[#allocation8 + $0x14a8] sm:$0xff]
    %v1419 = vld [vmem:[#allocation8 + $0x14b0] sm:$0xff]
    %v1420 = vld [vmem:[#allocation8 + $0x14b8] sm:$0xff]
    %v1421 = vld [vmem:[#allocation8 + $0x14c0] sm:$0xff]
    %v1422 = vld [vmem:[#allocation8 + $0x14c8] sm:$0xff]
    %v1423 = vld [vmem:[#allocation8 + $0x14d0] sm:$0xff]
    %v1424 = vld [vmem:[#allocation8 + $0x14d8] sm:$0xff]
    %v1425 = vld [vmem:[#allocation8 + $0x14e0] sm:$0xff]
    %v1426 = vld [vmem:[#allocation8 + $0x14e8] sm:$0xff]
    %v1427 = vld [vmem:[#allocation8 + $0x14f0] sm:$0xff]
    %v1428 = vld [vmem:[#allocation8 + $0x14f8] sm:$0xff]
    %v1429 = vld [vmem:[#allocation8 + $0x1500] sm:$0xff]
    %v1430 = vld [vmem:[#allocation8 + $0x1508] sm:$0xff]
    %v1431 = vld [vmem:[#allocation8 + $0x1510] sm:$0xff]
    %v1432 = vld [vmem:[#allocation8 + $0x1518] sm:$0xff]
    %v1433 = vld [vmem:[#allocation8 + $0x1520] sm:$0xff]
    %v1434 = vld [vmem:[#allocation8 + $0x1528] sm:$0xff]
    %v1435 = vld [vmem:[#allocation8 + $0x1530] sm:$0xff]
    %v1436 = vld [vmem:[#allocation8 + $0x1538] sm:$0xff]
    %v1437 = vld [vmem:[#allocation8 + $0x1540] sm:$0xff]
    %v1438 = vld [vmem:[#allocation8 + $0x1548] sm:$0xff]
    %v1439 = vld [vmem:[#allocation8 + $0x1550] sm:$0xff]
    %v1440 = vld [vmem:[#allocation8 + $0x1558] sm:$0xff]
    %v1441 = vld [vmem:[#allocation8 + $0x1560] sm:$0xff]
    %v1442 = vld [vmem:[#allocation8 + $0x1568] sm:$0xff]
    %v1443 = vld [vmem:[#allocation8 + $0x1570] sm:$0xff]
    %v1444 = vld [vmem:[#allocation8 + $0x1578] sm:$0xff]
    %v1445 = vld [vmem:[#allocation8 + $0x1580] sm:$0xff]
    %v1446 = vld [vmem:[#allocation8 + $0x1588] sm:$0xff]
    %v1447 = vld [vmem:[#allocation8 + $0x1590] sm:$0xff]
    %v1448 = vld [vmem:[#allocation8 + $0x1598] sm:$0xff]
    %v1449 = vld [vmem:[#allocation8 + $0x15a0] sm:$0xff]
    %v1450 = vld [vmem:[#allocation8 + $0x15a8] sm:$0xff]
    %v1451 = vld [vmem:[#allocation8 + $0x15b0] sm:$0xff]
    %v1452 = vld [vmem:[#allocation8 + $0x15b8] sm:$0xff]
    %v1453 = vld [vmem:[#allocation8 + $0x15c0] sm:$0xff]
    %v1454 = vld [vmem:[#allocation8 + $0x15c8] sm:$0xff]
    %v1455 = vld [vmem:[#allocation8 + $0x15d0] sm:$0xff]
    %v1456 = vld [vmem:[#allocation8 + $0x15d8] sm:$0xff]
    %v1457 = vld [vmem:[#allocation8 + $0x15e0] sm:$0xff]
    %v1458 = vld [vmem:[#allocation8 + $0x15e8] sm:$0xff]
    %v1459 = vld [vmem:[#allocation8 + $0x15f0] sm:$0xff]
    %v1460 = vld [vmem:[#allocation8 + $0x15f8] sm:$0xff]
    %v1461 = vld [vmem:[#allocation8 + $0x1600] sm:$0xff]
    %v1462 = vld [vmem:[#allocation8 + $0x1608] sm:$0xff]
    %v1463 = vld [vmem:[#allocation8 + $0x1610] sm:$0xff]
    %v1464 = vld [vmem:[#allocation8 + $0x1618] sm:$0xff]
    %v1465 = vld [vmem:[#allocation8 + $0x1620] sm:$0xff]
    %v1466 = vld [vmem:[#allocation8 + $0x1628] sm:$0xff]
    %v1467 = vld [vmem:[#allocation8 + $0x1630] sm:$0xff]
    %v1468 = vld [vmem:[#allocation8 + $0x1638] sm:$0xff]
    %v1469 = vld [vmem:[#allocation8 + $0x1640] sm:$0xff]
    %v1470 = vld [vmem:[#allocation8 + $0x1648] sm:$0xff]
    %v1471 = vld [vmem:[#allocation8 + $0x1650] sm:$0xff]
    %v1472 = vld [vmem:[#allocation8 + $0x1658] sm:$0xff]
    %v1473 = vld [vmem:[#allocation8 + $0x1660] sm:$0xff]
    %v1474 = vld [vmem:[#allocation8 + $0x1668] sm:$0xff]
    %v1475 = vld [vmem:[#allocation8 + $0x1670] sm:$0xff]
    %v1476 = vld [vmem:[#allocation8 + $0x1678] sm:$0xff]
    %v1477 = vld [vmem:[#allocation8 + $0x1680] sm:$0xff]
    %v1478 = vld [vmem:[#allocation8 + $0x1688] sm:$0xff]
    %v1479 = vld [vmem:[#allocation8 + $0x1690] sm:$0xff]
    %v1480 = vld [vmem:[#allocation8 + $0x1698] sm:$0xff]
    %v1481 = vld [vmem:[#allocation8 + $0x16a0] sm:$0xff]
    %v1482 = vld [vmem:[#allocation8 + $0x16a8] sm:$0xff]
    %v1483 = vld [vmem:[#allocation8 + $0x16b0] sm:$0xff]
    %v1484 = vld [vmem:[#allocation8 + $0x16b8] sm:$0xff]
    %v1485 = vld [vmem:[#allocation8 + $0x16c0] sm:$0xff]
    %v1486 = vld [vmem:[#allocation8 + $0x16c8] sm:$0xff]
    %v1487 = vld [vmem:[#allocation8 + $0x16d0] sm:$0xff]
    %v1488 = vld [vmem:[#allocation8 + $0x16d8] sm:$0xff]
    %v1489 = vld [vmem:[#allocation8 + $0x16e0] sm:$0xff]
    %v1490 = vld [vmem:[#allocation8 + $0x16e8] sm:$0xff]
    %v1491 = vld [vmem:[#allocation8 + $0x16f0] sm:$0xff]
    %v1492 = vld [vmem:[#allocation8 + $0x16f8] sm:$0xff]
    %v1493 = vld [vmem:[#allocation8 + $0x1700] sm:$0xff]
    %v1494 = vld [vmem:[#allocation8 + $0x1708] sm:$0xff]
    %v1495 = vld [vmem:[#allocation8 + $0x1710] sm:$0xff]
    %v1496 = vld [vmem:[#allocation8 + $0x1718] sm:$0xff]
    %v1497 = vld [vmem:[#allocation8 + $0x1720] sm:$0xff]
    %v1498 = vld [vmem:[#allocation8 + $0x1728] sm:$0xff]
    %v1499 = vld [vmem:[#allocation8 + $0x1730] sm:$0xff]
    %v1500 = vld [vmem:[#allocation8 + $0x1738] sm:$0xff]
    %v1501 = vld [vmem:[#allocation8 + $0x1740] sm:$0xff]
    %v1502 = vld [vmem:[#allocation8 + $0x1748] sm:$0xff]
    %v1503 = vld [vmem:[#allocation8 + $0x1750] sm:$0xff]
    %v1504 = vld [vmem:[#allocation8 + $0x1758] sm:$0xff]
    %v1505 = vld [vmem:[#allocation8 + $0x1760] sm:$0xff]
    %v1506 = vld [vmem:[#allocation8 + $0x1768] sm:$0xff]
    %v1507 = vld [vmem:[#allocation8 + $0x1770] sm:$0xff]
    %v1508 = vld [vmem:[#allocation8 + $0x1778] sm:$0xff]
    %v1509 = vld [vmem:[#allocation8 + $0x1780] sm:$0xff]
    %v1510 = vld [vmem:[#allocation8 + $0x1788] sm:$0xff]
    %v1511 = vld [vmem:[#allocation8 + $0x1790] sm:$0xff]
    %v1512 = vld [vmem:[#allocation8 + $0x1798] sm:$0xff]
    %v1513 = vld [vmem:[#allocation8 + $0x17a0] sm:$0xff]
    %v1514 = vld [vmem:[#allocation8 + $0x17a8] sm:$0xff]
    %v1515 = vld [vmem:[#allocation8 + $0x17b0] sm:$0xff]
    %v1516 = vld [vmem:[#allocation8 + $0x17b8] sm:$0xff]
    %v1517 = vld [vmem:[#allocation8 + $0x17c0] sm:$0xff]
    %v1518 = vld [vmem:[#allocation8 + $0x17c8] sm:$0xff]
    %v1519 = vld [vmem:[#allocation8 + $0x17d0] sm:$0xff]
    %v1520 = vld [vmem:[#allocation8 + $0x17d8] sm:$0xff]
    %v1521 = vld [vmem:[#allocation8 + $0x17e0] sm:$0xff]
    %v1522 = vld [vmem:[#allocation8 + $0x17e8] sm:$0xff]
    %v1523 = vld [vmem:[#allocation8 + $0x17f0] sm:$0xff]
    %v1524 = vld [vmem:[#allocation8 + $0x17f8] sm:$0xff]
    %v1525 = vld [vmem:[#allocation8 + $0x1800] sm:$0xff]
    %v1526 = vld [vmem:[#allocation8 + $0x1808] sm:$0xff]
    %v1527 = vld [vmem:[#allocation8 + $0x1810] sm:$0xff]
    %v1528 = vld [vmem:[#allocation8 + $0x1818] sm:$0xff]
    %v1529 = vld [vmem:[#allocation8 + $0x1820] sm:$0xff]
    %v1530 = vld [vmem:[#allocation8 + $0x1828] sm:$0xff]
    %v1531 = vld [vmem:[#allocation8 + $0x1830] sm:$0xff]
    %v1532 = vld [vmem:[#allocation8 + $0x1838] sm:$0xff]
    %v1533 = vld [vmem:[#allocation8 + $0x1840] sm:$0xff]
    %v1534 = vld [vmem:[#allocation8 + $0x1848] sm:$0xff]
    %v1535 = vld [vmem:[#allocation8 + $0x1850] sm:$0xff]
    %v1536 = vld [vmem:[#allocation8 + $0x1858] sm:$0xff]
    %v1537 = vld [vmem:[#allocation8 + $0x1860] sm:$0xff]
    %v1538 = vld [vmem:[#allocation8 + $0x1868] sm:$0xff]
    %v1539 = vld [vmem:[#allocation8 + $0x1870] sm:$0xff]
    %v1540 = vld [vmem:[#allocation8 + $0x1878] sm:$0xff]
    %v1541 = vld [vmem:[#allocation8 + $0x1880] sm:$0xff]
    %v1542 = vld [vmem:[#allocation8 + $0x1888] sm:$0xff]
    %v1543 = vld [vmem:[#allocation8 + $0x1890] sm:$0xff]
    %v1544 = vld [vmem:[#allocation8 + $0x1898] sm:$0xff]
    %v1545 = vld [vmem:[#allocation8 + $0x18a0] sm:$0xff]
    %v1546 = vld [vmem:[#allocation8 + $0x18a8] sm:$0xff]
    %v1547 = vld [vmem:[#allocation8 + $0x18b0] sm:$0xff]
    %v1548 = vld [vmem:[#allocation8 + $0x18b8] sm:$0xff]
    %v1549 = vld [vmem:[#allocation8 + $0x18c0] sm:$0xff]
    %v1550 = vld [vmem:[#allocation8 + $0x18c8] sm:$0xff]
    %v1551 = vld [vmem:[#allocation8 + $0x18d0] sm:$0xff]
    %v1552 = vld [vmem:[#allocation8 + $0x18d8] sm:$0xff]
    %v1553 = vld [vmem:[#allocation8 + $0x18e0] sm:$0xff]
    %v1554 = vld [vmem:[#allocation8 + $0x18e8] sm:$0xff]
    %v1555 = vld [vmem:[#allocation8 + $0x18f0] sm:$0xff]
    %v1556 = vld [vmem:[#allocation8 + $0x18f8] sm:$0xff]
    %v1557 = vld [vmem:[#allocation8 + $0x1900] sm:$0xff]
    %v1558 = vld [vmem:[#allocation8 + $0x1908] sm:$0xff]
    %v1559 = vld [vmem:[#allocation8 + $0x1910] sm:$0xff]
    %v1560 = vld [vmem:[#allocation8 + $0x1918] sm:$0xff]
    %v1561 = vld [vmem:[#allocation8 + $0x1920] sm:$0xff]
    %v1562 = vld [vmem:[#allocation8 + $0x1928] sm:$0xff]
    %v1563 = vld [vmem:[#allocation8 + $0x1930] sm:$0xff]
    %v1564 = vld [vmem:[#allocation8 + $0x1938] sm:$0xff]
    %v1565 = vld [vmem:[#allocation8 + $0x1940] sm:$0xff]
    %v1566 = vld [vmem:[#allocation8 + $0x1948] sm:$0xff]
    %v1567 = vld [vmem:[#allocation8 + $0x1950] sm:$0xff]
    %v1568 = vld [vmem:[#allocation8 + $0x1958] sm:$0xff]
    %v1569 = vld [vmem:[#allocation8 + $0x1960] sm:$0xff]
    %v1570 = vld [vmem:[#allocation8 + $0x1968] sm:$0xff]
    %v1571 = vld [vmem:[#allocation8 + $0x1970] sm:$0xff]
    %v1572 = vld [vmem:[#allocation8 + $0x1978] sm:$0xff]
    %v1573 = vld [vmem:[#allocation8 + $0x1980] sm:$0xff]
    %v1574 = vld [vmem:[#allocation8 + $0x1988] sm:$0xff]
    %v1575 = vld [vmem:[#allocation8 + $0x1990] sm:$0xff]
    %v1576 = vld [vmem:[#allocation8 + $0x1998] sm:$0xff]
    %v1577 = vld [vmem:[#allocation8 + $0x19a0] sm:$0xff]
    %v1578 = vld [vmem:[#allocation8 + $0x19a8] sm:$0xff]
    %v1579 = vld [vmem:[#allocation8 + $0x19b0] sm:$0xff]
    %v1580 = vld [vmem:[#allocation8 + $0x19b8] sm:$0xff]
    %v1581 = vld [vmem:[#allocation8 + $0x19c0] sm:$0xff]
    %v1582 = vld [vmem:[#allocation8 + $0x19c8] sm:$0xff]
    %v1583 = vld [vmem:[#allocation8 + $0x19d0] sm:$0xff]
    %v1584 = vld [vmem:[#allocation8 + $0x19d8] sm:$0xff]
    %v1585 = vld [vmem:[#allocation8 + $0x19e0] sm:$0xff]
    %v1586 = vld [vmem:[#allocation8 + $0x19e8] sm:$0xff]
    %v1587 = vld [vmem:[#allocation8 + $0x19f0] sm:$0xff]
    %v1588 = vld [vmem:[#allocation8 + $0x19f8] sm:$0xff]
    %v1589 = vld [vmem:[#allocation8 + $0x1a00] sm:$0xff]
    %v1590 = vld [vmem:[#allocation8 + $0x1a08] sm:$0xff]
    %v1591 = vld [vmem:[#allocation8 + $0x1a10] sm:$0xff]
    %v1592 = vld [vmem:[#allocation8 + $0x1a18] sm:$0xff]
    %v1593 = vld [vmem:[#allocation8 + $0x1a20] sm:$0xff]
    %v1594 = vld [vmem:[#allocation8 + $0x1a28] sm:$0xff]
    %v1595 = vld [vmem:[#allocation8 + $0x1a30] sm:$0xff]
    %v1596 = vld [vmem:[#allocation8 + $0x1a38] sm:$0xff]
    %v1597 = vld [vmem:[#allocation8 + $0x1a40] sm:$0xff]
    %v1598 = vld [vmem:[#allocation8 + $0x1a48] sm:$0xff]
    %v1599 = vld [vmem:[#allocation8 + $0x1a50] sm:$0xff]
    %v1600 = vld [vmem:[#allocation8 + $0x1a58] sm:$0xff]
    %v1601 = vld [vmem:[#allocation8 + $0x1a60] sm:$0xff]
    %v1602 = vld [vmem:[#allocation8 + $0x1a68] sm:$0xff]
    %v1603 = vld [vmem:[#allocation8 + $0x1a70] sm:$0xff]
    %v1604 = vld [vmem:[#allocation8 + $0x1a78] sm:$0xff]
    %v1605 = vld [vmem:[#allocation8 + $0x1a80] sm:$0xff]
    %v1606 = vld [vmem:[#allocation8 + $0x1a88] sm:$0xff]
    %v1607 = vld [vmem:[#allocation8 + $0x1a90] sm:$0xff]
    %v1608 = vld [vmem:[#allocation8 + $0x1a98] sm:$0xff]
    %v1609 = vld [vmem:[#allocation8 + $0x1aa0] sm:$0xff]
    %v1610 = vld [vmem:[#allocation8 + $0x1aa8] sm:$0xff]
    %v1611 = vld [vmem:[#allocation8 + $0x1ab0] sm:$0xff]
    %v1612 = vld [vmem:[#allocation8 + $0x1ab8] sm:$0xff]
    %v1613 = vld [vmem:[#allocation8 + $0x1ac0] sm:$0xff]
    %v1614 = vld [vmem:[#allocation8 + $0x1ac8] sm:$0xff]
    %v1615 = vld [vmem:[#allocation8 + $0x1ad0] sm:$0xff]
    %v1616 = vld [vmem:[#allocation8 + $0x1ad8] sm:$0xff]
    %v1617 = vld [vmem:[#allocation8 + $0x1ae0] sm:$0xff]
    %v1618 = vld [vmem:[#allocation8 + $0x1ae8] sm:$0xff]
    %v1619 = vld [vmem:[#allocation8 + $0x1af0] sm:$0xff]
    %v1620 = vld [vmem:[#allocation8 + $0x1af8] sm:$0xff]
    %v1621 = vld [vmem:[#allocation8 + $0x1b00] sm:$0xff]
    %v1622 = vld [vmem:[#allocation8 + $0x1b08] sm:$0xff]
    %v1623 = vld [vmem:[#allocation8 + $0x1b10] sm:$0xff]
    %v1624 = vld [vmem:[#allocation8 + $0x1b18] sm:$0xff]
    %v1625 = vld [vmem:[#allocation8 + $0x1b20] sm:$0xff]
    %v1626 = vld [vmem:[#allocation8 + $0x1b28] sm:$0xff]
    %v1627 = vld [vmem:[#allocation8 + $0x1b30] sm:$0xff]
    %v1628 = vld [vmem:[#allocation8 + $0x1b38] sm:$0xff]
    %v1629 = vld [vmem:[#allocation8 + $0x1b40] sm:$0xff]
    %v1630 = vld [vmem:[#allocation8 + $0x1b48] sm:$0xff]
    %v1631 = vld [vmem:[#allocation8 + $0x1b50] sm:$0xff]
    %v1632 = vld [vmem:[#allocation8 + $0x1b58] sm:$0xff]
    %v1633 = vld [vmem:[#allocation8 + $0x1b60] sm:$0xff]
    %v1634 = vld [vmem:[#allocation8 + $0x1b68] sm:$0xff]
    %v1635 = vld [vmem:[#allocation8 + $0x1b70] sm:$0xff]
    %v1636 = vld [vmem:[#allocation8 + $0x1b78] sm:$0xff]
    %v1637 = vld [vmem:[#allocation8 + $0x1b80] sm:$0xff]
    %v1638 = vld [vmem:[#allocation8 + $0x1b88] sm:$0xff]
    %v1639 = vld [vmem:[#allocation8 + $0x1b90] sm:$0xff]
    %v1640 = vld [vmem:[#allocation8 + $0x1b98] sm:$0xff]
    %v1641 = vld [vmem:[#allocation8 + $0x1ba0] sm:$0xff]
    %v1642 = vld [vmem:[#allocation8 + $0x1ba8] sm:$0xff]
    %v1643 = vld [vmem:[#allocation8 + $0x1bb0] sm:$0xff]
    %v1644 = vld [vmem:[#allocation8 + $0x1bb8] sm:$0xff]
    %v1645 = vld [vmem:[#allocation8 + $0x1bc0] sm:$0xff]
    %v1646 = vld [vmem:[#allocation8 + $0x1bc8] sm:$0xff]
    %v1647 = vld [vmem:[#allocation8 + $0x1bd0] sm:$0xff]
    %v1648 = vld [vmem:[#allocation8 + $0x1bd8] sm:$0xff]
    %v1649 = vld [vmem:[#allocation8 + $0x1be0] sm:$0xff]
    %v1650 = vld [vmem:[#allocation8 + $0x1be8] sm:$0xff]
    %v1651 = vld [vmem:[#allocation8 + $0x1bf0] sm:$0xff]
    %v1652 = vld [vmem:[#allocation8 + $0x1bf8] sm:$0xff]
    %v1653 = vld [vmem:[#allocation8 + $0x1c00] sm:$0xff]
    %v1654 = vld [vmem:[#allocation8 + $0x1c08] sm:$0xff]
    %v1655 = vld [vmem:[#allocation8 + $0x1c10] sm:$0xff]
    %v1656 = vld [vmem:[#allocation8 + $0x1c18] sm:$0xff]
    %v1657 = vld [vmem:[#allocation8 + $0x1c20] sm:$0xff]
    %v1658 = vld [vmem:[#allocation8 + $0x1c28] sm:$0xff]
    %v1659 = vld [vmem:[#allocation8 + $0x1c30] sm:$0xff]
    %v1660 = vld [vmem:[#allocation8 + $0x1c38] sm:$0xff]
    %v1661 = vld [vmem:[#allocation8 + $0x1c40] sm:$0xff]
    %v1662 = vld [vmem:[#allocation8 + $0x1c48] sm:$0xff]
    %v1663 = vld [vmem:[#allocation8 + $0x1c50] sm:$0xff]
    %v1664 = vld [vmem:[#allocation8 + $0x1c58] sm:$0xff]
    %v1665 = vld [vmem:[#allocation8 + $0x1c60] sm:$0xff]
    %v1666 = vld [vmem:[#allocation8 + $0x1c68] sm:$0xff]
    %v1667 = vld [vmem:[#allocation8 + $0x1c70] sm:$0xff]
    %v1668 = vld [vmem:[#allocation8 + $0x1c78] sm:$0xff]
    %v1669 = vld [vmem:[#allocation8 + $0x1c80] sm:$0xff]
    %v1670 = vld [vmem:[#allocation8 + $0x1c88] sm:$0xff]
    %v1671 = vld [vmem:[#allocation8 + $0x1c90] sm:$0xff]
    %v1672 = vld [vmem:[#allocation8 + $0x1c98] sm:$0xff]
    %v1673 = vld [vmem:[#allocation8 + $0x1ca0] sm:$0xff]
    %v1674 = vld [vmem:[#allocation8 + $0x1ca8] sm:$0xff]
    %v1675 = vld [vmem:[#allocation8 + $0x1cb0] sm:$0xff]
    %v1676 = vld [vmem:[#allocation8 + $0x1cb8] sm:$0xff]
    %v1677 = vld [vmem:[#allocation8 + $0x1cc0] sm:$0xff]
    %v1678 = vld [vmem:[#allocation8 + $0x1cc8] sm:$0xff]
    %v1679 = vld [vmem:[#allocation8 + $0x1cd0] sm:$0xff]
    %v1680 = vld [vmem:[#allocation8 + $0x1cd8] sm:$0xff]
    %v1681 = vld [vmem:[#allocation8 + $0x1ce0] sm:$0xff]
    %v1682 = vld [vmem:[#allocation8 + $0x1ce8] sm:$0xff]
    %v1683 = vld [vmem:[#allocation8 + $0x1cf0] sm:$0xff]
    %v1684 = vld [vmem:[#allocation8 + $0x1cf8] sm:$0xff]
    %v1685 = vld [vmem:[#allocation8 + $0x1d00] sm:$0xff]
    %v1686 = vld [vmem:[#allocation8 + $0x1d08] sm:$0xff]
    %v1687 = vld [vmem:[#allocation8 + $0x1d10] sm:$0xff]
    %v1688 = vld [vmem:[#allocation8 + $0x1d18] sm:$0xff]
    %v1689 = vld [vmem:[#allocation8 + $0x1d20] sm:$0xff]
    %v1690 = vld [vmem:[#allocation8 + $0x1d28] sm:$0xff]
    %v1691 = vld [vmem:[#allocation8 + $0x1d30] sm:$0xff]
    %v1692 = vld [vmem:[#allocation8 + $0x1d38] sm:$0xff]
    %v1693 = vld [vmem:[#allocation8 + $0x1d40] sm:$0xff]
    %v1694 = vld [vmem:[#allocation8 + $0x1d48] sm:$0xff]
    %v1695 = vld [vmem:[#allocation8 + $0x1d50] sm:$0xff]
    %v1696 = vld [vmem:[#allocation8 + $0x1d58] sm:$0xff]
    %v1697 = vld [vmem:[#allocation8 + $0x1d60] sm:$0xff]
    %v1698 = vld [vmem:[#allocation8 + $0x1d68] sm:$0xff]
    %v1699 = vld [vmem:[#allocation8 + $0x1d70] sm:$0xff]
    %v1700 = vld [vmem:[#allocation8 + $0x1d78] sm:$0xff]
    %v1701 = vld [vmem:[#allocation8 + $0x1d80] sm:$0xff]
    %v1702 = vld [vmem:[#allocation8 + $0x1d88] sm:$0xff]
    %v1703 = vld [vmem:[#allocation8 + $0x1d90] sm:$0xff]
    %v1704 = vld [vmem:[#allocation8 + $0x1d98] sm:$0xff]
    %v1705 = vld [vmem:[#allocation8 + $0x1da0] sm:$0xff]
    %v1706 = vld [vmem:[#allocation8 + $0x1da8] sm:$0xff]
    %v1707 = vld [vmem:[#allocation8 + $0x1db0] sm:$0xff]
    %v1708 = vld [vmem:[#allocation8 + $0x1db8] sm:$0xff]
    %v1709 = vld [vmem:[#allocation8 + $0x1dc0] sm:$0xff]
    %v1710 = vld [vmem:[#allocation8 + $0x1dc8] sm:$0xff]
    %v1711 = vld [vmem:[#allocation8 + $0x1dd0] sm:$0xff]
    %v1712 = vld [vmem:[#allocation8 + $0x1dd8] sm:$0xff]
    %v1713 = vld [vmem:[#allocation8 + $0x1de0] sm:$0xff]
    %v1714 = vld [vmem:[#allocation8 + $0x1de8] sm:$0xff]
    %v1715 = vld [vmem:[#allocation8 + $0x1df0] sm:$0xff]
    %v1716 = vld [vmem:[#allocation8 + $0x1df8] sm:$0xff]
    %v1717 = vld [vmem:[#allocation8 + $0x1e00] sm:$0xff]
    %v1718 = vld [vmem:[#allocation8 + $0x1e08] sm:$0xff]
    %v1719 = vld [vmem:[#allocation8 + $0x1e10] sm:$0xff]
    %v1720 = vld [vmem:[#allocation8 + $0x1e18] sm:$0xff]
    %v1721 = vld [vmem:[#allocation8 + $0x1e20] sm:$0xff]
    %v1722 = vld [vmem:[#allocation8 + $0x1e28] sm:$0xff]
    %v1723 = vld [vmem:[#allocation8 + $0x1e30] sm:$0xff]
    %v1724 = vld [vmem:[#allocation8 + $0x1e38] sm:$0xff]
    %v1725 = vld [vmem:[#allocation8 + $0x1e40] sm:$0xff]
    %v1726 = vld [vmem:[#allocation8 + $0x1e48] sm:$0xff]
    %v1727 = vld [vmem:[#allocation8 + $0x1e50] sm:$0xff]
    %v1728 = vld [vmem:[#allocation8 + $0x1e58] sm:$0xff]
    %v1729 = vld [vmem:[#allocation8 + $0x1e60] sm:$0xff]
    %v1730 = vld [vmem:[#allocation8 + $0x1e68] sm:$0xff]
    %v1731 = vld [vmem:[#allocation8 + $0x1e70] sm:$0xff]
    %v1732 = vld [vmem:[#allocation8 + $0x1e78] sm:$0xff]
    %v1733 = vld [vmem:[#allocation8 + $0x1e80] sm:$0xff]
    %v1734 = vld [vmem:[#allocation8 + $0x1e88] sm:$0xff]
    %v1735 = vld [vmem:[#allocation8 + $0x1e90] sm:$0xff]
    %v1736 = vld [vmem:[#allocation8 + $0x1e98] sm:$0xff]
    %v1737 = vld [vmem:[#allocation8 + $0x1ea0] sm:$0xff]
    %v1738 = vld [vmem:[#allocation8 + $0x1ea8] sm:$0xff]
    %v1739 = vld [vmem:[#allocation8 + $0x1eb0] sm:$0xff]
    %v1740 = vld [vmem:[#allocation8 + $0x1eb8] sm:$0xff]
    %v1741 = vld [vmem:[#allocation8 + $0x1ec0] sm:$0xff]
    %v1742 = vld [vmem:[#allocation8 + $0x1ec8] sm:$0xff]
    %v1743 = vld [vmem:[#allocation8 + $0x1ed0] sm:$0xff]
    %v1744 = vld [vmem:[#allocation8 + $0x1ed8] sm:$0xff]
    %v1745 = vld [vmem:[#allocation8 + $0x1ee0] sm:$0xff]
    %v1746 = vld [vmem:[#allocation8 + $0x1ee8] sm:$0xff]
    %v1747 = vld [vmem:[#allocation8 + $0x1ef0] sm:$0xff]
    %v1748 = vld [vmem:[#allocation8 + $0x1ef8] sm:$0xff]
    %v1749 = vld [vmem:[#allocation8 + $0x1f00] sm:$0xff]
    %v1750 = vld [vmem:[#allocation8 + $0x1f08] sm:$0xff]
    %v1751 = vld [vmem:[#allocation8 + $0x1f10] sm:$0xff]
    %v1752 = vld [vmem:[#allocation8 + $0x1f18] sm:$0xff]
    %v1753 = vld [vmem:[#allocation8 + $0x1f20] sm:$0xff]
    %v1754 = vld [vmem:[#allocation8 + $0x1f28] sm:$0xff]
    %v1755 = vld [vmem:[#allocation8 + $0x1f30] sm:$0xff]
    %v1756 = vld [vmem:[#allocation8 + $0x1f38] sm:$0xff]
    %v1757 = vld [vmem:[#allocation8 + $0x1f40] sm:$0xff]
    %v1758 = vld [vmem:[#allocation8 + $0x1f48] sm:$0xff]
    %v1759 = vld [vmem:[#allocation8 + $0x1f50] sm:$0xff]
    %v1760 = vld [vmem:[#allocation8 + $0x1f58] sm:$0xff]
    %v1761 = vld [vmem:[#allocation8 + $0x1f60] sm:$0xff]
    %v1762 = vld [vmem:[#allocation8 + $0x1f68] sm:$0xff]
    %v1763 = vld [vmem:[#allocation8 + $0x1f70] sm:$0xff]
    %v1764 = vld [vmem:[#allocation8 + $0x1f78] sm:$0xff]
    %v1765 = vld [vmem:[#allocation8 + $0x1f80] sm:$0xff]
    %v1766 = vld [vmem:[#allocation8 + $0x1f88] sm:$0xff]
    %v1767 = vld [vmem:[#allocation8 + $0x1f90] sm:$0xff]
    %v1768 = vld [vmem:[#allocation8 + $0x1f98] sm:$0xff]
    %v1769 = vld [vmem:[#allocation8 + $0x1fa0] sm:$0xff]
    %v1770 = vld [vmem:[#allocation8 + $0x1fa8] sm:$0xff]
    %v1771 = vld [vmem:[#allocation8 + $0x1fb0] sm:$0xff]
    %v1772 = vld [vmem:[#allocation8 + $0x1fb8] sm:$0xff]
    %v1773 = vld [vmem:[#allocation8 + $0x1fc0] sm:$0xff]
    %v1774 = vld [vmem:[#allocation8 + $0x1fc8] sm:$0xff]
    %v1775 = vld [vmem:[#allocation8 + $0x1fd0] sm:$0xff]
    %v1776 = vld [vmem:[#allocation8 + $0x1fd8] sm:$0xff]
    %v1777 = vld [vmem:[#allocation8 + $0x1fe0] sm:$0xff]
    %v1778 = vld [vmem:[#allocation8 + $0x1fe8] sm:$0xff]
    %v1779 = vld [vmem:[#allocation8 + $0x1ff0] sm:$0xff]
    %v1780 = vld [vmem:[#allocation8 + $0x1ff8] sm:$0xff]
    %v1781 = vld [vmem:[#allocation10] sm:$0xff]
    %v1783 = vlaneseq
    %v1784 = vshrl.u32 %v1783, 7
    %v1785 = vsub.s32 0, %v1784
    %v1786 = vrot.slane %v1781, %v1785
    %v1787 = vlaneseq
    %v1788 = vshrl.u32 %v1787, 7
    %v1789 = vsub.s32 1, %v1788
    %v1790 = vrot.slane %v1781, %v1789
    %v1791 = vlaneseq
    %v1792 = vshrl.u32 %v1791, 7
    %v1793 = vsub.s32 2, %v1792
    %v1794 = vrot.slane %v1781, %v1793
    %v1795 = vlaneseq
    %v1796 = vshrl.u32 %v1795, 7
    %v1797 = vsub.s32 3, %v1796
    %v1798 = vrot.slane %v1781, %v1797
    %v1799 = vlaneseq
    %v1800 = vshrl.u32 %v1799, 7
    %v1801 = vsub.s32 4, %v1800
    %v1802 = vrot.slane %v1781, %v1801
    %v1803 = vlaneseq
    %v1804 = vshrl.u32 %v1803, 7
    %v1805 = vsub.s32 5, %v1804
    %v1806 = vrot.slane %v1781, %v1805
    %v1807 = vlaneseq
    %v1808 = vshrl.u32 %v1807, 7
    %v1809 = vsub.s32 6, %v1808
    %v1810 = vrot.slane %v1781, %v1809
    %v1811 = vlaneseq
    %v1812 = vshrl.u32 %v1811, 7
    %v1813 = vsub.s32 7, %v1812
    %v1814 = vrot.slane %v1781, %v1813
    %v2847 = vunpack.c.l.b16 %v757
    %v2848 = vunpack.c.h.b16 %v757
    %v2849 = vunpack.c.l.b16 %v758
    %v2850 = vunpack.c.h.b16 %v758
    %v2851 = vunpack.c.l.b16 %v759
    %v2852 = vunpack.c.h.b16 %v759
    %v2853 = vunpack.c.l.b16 %v760
    %v2854 = vunpack.c.h.b16 %v760
    %v2855 = vunpack.c.l.b16 %v761
    %v2856 = vunpack.c.h.b16 %v761
    %v2857 = vunpack.c.l.b16 %v762
    %v2858 = vunpack.c.h.b16 %v762
    %v2859 = vunpack.c.l.b16 %v763
    %v2860 = vunpack.c.h.b16 %v763
    %v2861 = vunpack.c.l.b16 %v764
    %v2862 = vunpack.c.h.b16 %v764
    %v2863 = vunpack.c.l.b16 %v765
    %v2864 = vunpack.c.h.b16 %v765
    %v2865 = vunpack.c.l.b16 %v766
    %v2866 = vunpack.c.h.b16 %v766
    %v2867 = vunpack.c.l.b16 %v767
    %v2868 = vunpack.c.h.b16 %v767
    %v2869 = vunpack.c.l.b16 %v768
    %v2870 = vunpack.c.h.b16 %v768
    %v2871 = vunpack.c.l.b16 %v769
    %v2872 = vunpack.c.h.b16 %v769
    %v2873 = vunpack.c.l.b16 %v770
    %v2874 = vunpack.c.h.b16 %v770
    %v2875 = vunpack.c.l.b16 %v771
    %v2876 = vunpack.c.h.b16 %v771
    %v2877 = vunpack.c.l.b16 %v772
    %v2878 = vunpack.c.h.b16 %v772
    %v2879 = vunpack.c.l.b16 %v773
    %v2880 = vunpack.c.h.b16 %v773
    %v2881 = vunpack.c.l.b16 %v774
    %v2882 = vunpack.c.h.b16 %v774
    %v2883 = vunpack.c.l.b16 %v775
    %v2884 = vunpack.c.h.b16 %v775
    %v2885 = vunpack.c.l.b16 %v776
    %v2886 = vunpack.c.h.b16 %v776
    %v2887 = vunpack.c.l.b16 %v777
    %v2888 = vunpack.c.h.b16 %v777
    %v2889 = vunpack.c.l.b16 %v778
    %v2890 = vunpack.c.h.b16 %v778
    %v2891 = vunpack.c.l.b16 %v779
    %v2892 = vunpack.c.h.b16 %v779
    %v2893 = vunpack.c.l.b16 %v780
    %v2894 = vunpack.c.h.b16 %v780
    %v2895 = vunpack.c.l.b16 %v781
    %v2896 = vunpack.c.h.b16 %v781
    %v2897 = vunpack.c.l.b16 %v782
    %v2898 = vunpack.c.h.b16 %v782
    %v2899 = vunpack.c.l.b16 %v783
    %v2900 = vunpack.c.h.b16 %v783
    %v2901 = vunpack.c.l.b16 %v784
    %v2902 = vunpack.c.h.b16 %v784
    %v2903 = vunpack.c.l.b16 %v785
    %v2904 = vunpack.c.h.b16 %v785
    %v2905 = vunpack.c.l.b16 %v786
    %v2906 = vunpack.c.h.b16 %v786
    %v2907 = vunpack.c.l.b16 %v787
    %v2908 = vunpack.c.h.b16 %v787
    %v2909 = vunpack.c.l.b16 %v788
    %v2910 = vunpack.c.h.b16 %v788
    %v2911 = vunpack.c.l.b16 %v789
    %v2912 = vunpack.c.h.b16 %v789
    %v2913 = vunpack.c.l.b16 %v790
    %v2914 = vunpack.c.h.b16 %v790
    %v2915 = vunpack.c.l.b16 %v791
    %v2916 = vunpack.c.h.b16 %v791
    %v2917 = vunpack.c.l.b16 %v792
    %v2918 = vunpack.c.h.b16 %v792
    %v2919 = vunpack.c.l.b16 %v793
    %v2920 = vunpack.c.h.b16 %v793
    %v2921 = vunpack.c.l.b16 %v794
    %v2922 = vunpack.c.h.b16 %v794
    %v2923 = vunpack.c.l.b16 %v795
    %v2924 = vunpack.c.h.b16 %v795
    %v2925 = vunpack.c.l.b16 %v796
    %v2926 = vunpack.c.h.b16 %v796
    %v2927 = vunpack.c.l.b16 %v797
    %v2928 = vunpack.c.h.b16 %v797
    %v2929 = vunpack.c.l.b16 %v798
    %v2930 = vunpack.c.h.b16 %v798
    %v2931 = vunpack.c.l.b16 %v799
    %v2932 = vunpack.c.h.b16 %v799
    %v2933 = vunpack.c.l.b16 %v800
    %v2934 = vunpack.c.h.b16 %v800
    %v2935 = vunpack.c.l.b16 %v801
    %v2936 = vunpack.c.h.b16 %v801
    %v2937 = vunpack.c.l.b16 %v802
    %v2938 = vunpack.c.h.b16 %v802
    %v2939 = vunpack.c.l.b16 %v803
    %v2940 = vunpack.c.h.b16 %v803
    %v2941 = vunpack.c.l.b16 %v804
    %v2942 = vunpack.c.h.b16 %v804
    %v2943 = vunpack.c.l.b16 %v805
    %v2944 = vunpack.c.h.b16 %v805
    %v2945 = vunpack.c.l.b16 %v806
    %v2946 = vunpack.c.h.b16 %v806
    %v2947 = vunpack.c.l.b16 %v807
    %v2948 = vunpack.c.h.b16 %v807
    %v2949 = vunpack.c.l.b16 %v808
    %v2950 = vunpack.c.h.b16 %v808
    %v2951 = vunpack.c.l.b16 %v809
    %v2952 = vunpack.c.h.b16 %v809
    %v2953 = vunpack.c.l.b16 %v810
    %v2954 = vunpack.c.h.b16 %v810
    %v2955 = vunpack.c.l.b16 %v811
    %v2956 = vunpack.c.h.b16 %v811
    %v2957 = vunpack.c.l.b16 %v812
    %v2958 = vunpack.c.h.b16 %v812
    %v2959 = vunpack.c.l.b16 %v813
    %v2960 = vunpack.c.h.b16 %v813
    %v2961 = vunpack.c.l.b16 %v814
    %v2962 = vunpack.c.h.b16 %v814
    %v2963 = vunpack.c.l.b16 %v815
    %v2964 = vunpack.c.h.b16 %v815
    %v2965 = vunpack.c.l.b16 %v816
    %v2966 = vunpack.c.h.b16 %v816
    %v2967 = vunpack.c.l.b16 %v817
    %v2968 = vunpack.c.h.b16 %v817
    %v2969 = vunpack.c.l.b16 %v818
    %v2970 = vunpack.c.h.b16 %v818
    %v2971 = vunpack.c.l.b16 %v819
    %v2972 = vunpack.c.h.b16 %v819
    %v2973 = vunpack.c.l.b16 %v820
    %v2974 = vunpack.c.h.b16 %v820
    %v2975 = vunpack.c.l.b16 %v821
    %v2976 = vunpack.c.h.b16 %v821
    %v2977 = vunpack.c.l.b16 %v822
    %v2978 = vunpack.c.h.b16 %v822
    %v2979 = vunpack.c.l.b16 %v823
    %v2980 = vunpack.c.h.b16 %v823
    %v2981 = vunpack.c.l.b16 %v824
    %v2982 = vunpack.c.h.b16 %v824
    %v2983 = vunpack.c.l.b16 %v825
    %v2984 = vunpack.c.h.b16 %v825
    %v2985 = vunpack.c.l.b16 %v826
    %v2986 = vunpack.c.h.b16 %v826
    %v2987 = vunpack.c.l.b16 %v827
    %v2988 = vunpack.c.h.b16 %v827
    %v2989 = vunpack.c.l.b16 %v828
    %v2990 = vunpack.c.h.b16 %v828
    %v2991 = vunpack.c.l.b16 %v829
    %v2992 = vunpack.c.h.b16 %v829
    %v2993 = vunpack.c.l.b16 %v830
    %v2994 = vunpack.c.h.b16 %v830
    %v2995 = vunpack.c.l.b16 %v831
    %v2996 = vunpack.c.h.b16 %v831
    %v2997 = vunpack.c.l.b16 %v832
    %v2998 = vunpack.c.h.b16 %v832
    %v2999 = vunpack.c.l.b16 %v833
    %v3000 = vunpack.c.h.b16 %v833
    %v3001 = vunpack.c.l.b16 %v834
    %v3002 = vunpack.c.h.b16 %v834
    %v3003 = vunpack.c.l.b16 %v835
    %v3004 = vunpack.c.h.b16 %v835
    %v3005 = vunpack.c.l.b16 %v836
    %v3006 = vunpack.c.h.b16 %v836
    %v3007 = vunpack.c.l.b16 %v837
    %v3008 = vunpack.c.h.b16 %v837
    %v3009 = vunpack.c.l.b16 %v838
    %v3010 = vunpack.c.h.b16 %v838
    %v3011 = vunpack.c.l.b16 %v839
    %v3012 = vunpack.c.h.b16 %v839
    %v3013 = vunpack.c.l.b16 %v840
    %v3014 = vunpack.c.h.b16 %v840
    %v3015 = vunpack.c.l.b16 %v841
    %v3016 = vunpack.c.h.b16 %v841
    %v3017 = vunpack.c.l.b16 %v842
    %v3018 = vunpack.c.h.b16 %v842
    %v3019 = vunpack.c.l.b16 %v843
    %v3020 = vunpack.c.h.b16 %v843
    %v3021 = vunpack.c.l.b16 %v844
    %v3022 = vunpack.c.h.b16 %v844
    %v3023 = vunpack.c.l.b16 %v845
    %v3024 = vunpack.c.h.b16 %v845
    %v3025 = vunpack.c.l.b16 %v846
    %v3026 = vunpack.c.h.b16 %v846
    %v3027 = vunpack.c.l.b16 %v847
    %v3028 = vunpack.c.h.b16 %v847
    %v3029 = vunpack.c.l.b16 %v848
    %v3030 = vunpack.c.h.b16 %v848
    %v3031 = vunpack.c.l.b16 %v849
    %v3032 = vunpack.c.h.b16 %v849
    %v3033 = vunpack.c.l.b16 %v850
    %v3034 = vunpack.c.h.b16 %v850
    %v3035 = vunpack.c.l.b16 %v851
    %v3036 = vunpack.c.h.b16 %v851
    %v3037 = vunpack.c.l.b16 %v852
    %v3038 = vunpack.c.h.b16 %v852
    %v3039 = vunpack.c.l.b16 %v853
    %v3040 = vunpack.c.h.b16 %v853
    %v3041 = vunpack.c.l.b16 %v854
    %v3042 = vunpack.c.h.b16 %v854
    %v3043 = vunpack.c.l.b16 %v855
    %v3044 = vunpack.c.h.b16 %v855
    %v3045 = vunpack.c.l.b16 %v856
    %v3046 = vunpack.c.h.b16 %v856
    %v3047 = vunpack.c.l.b16 %v857
    %v3048 = vunpack.c.h.b16 %v857
    %v3049 = vunpack.c.l.b16 %v858
    %v3050 = vunpack.c.h.b16 %v858
    %v3051 = vunpack.c.l.b16 %v859
    %v3052 = vunpack.c.h.b16 %v859
    %v3053 = vunpack.c.l.b16 %v860
    %v3054 = vunpack.c.h.b16 %v860
    %v3055 = vunpack.c.l.b16 %v861
    %v3056 = vunpack.c.h.b16 %v861
    %v3057 = vunpack.c.l.b16 %v862
    %v3058 = vunpack.c.h.b16 %v862
    %v3059 = vunpack.c.l.b16 %v863
    %v3060 = vunpack.c.h.b16 %v863
    %v3061 = vunpack.c.l.b16 %v864
    %v3062 = vunpack.c.h.b16 %v864
    %v3063 = vunpack.c.l.b16 %v865
    %v3064 = vunpack.c.h.b16 %v865
    %v3065 = vunpack.c.l.b16 %v866
    %v3066 = vunpack.c.h.b16 %v866
    %v3067 = vunpack.c.l.b16 %v867
    %v3068 = vunpack.c.h.b16 %v867
    %v3069 = vunpack.c.l.b16 %v868
    %v3070 = vunpack.c.h.b16 %v868
    %v3071 = vunpack.c.l.b16 %v869
    %v3072 = vunpack.c.h.b16 %v869
    %v3073 = vunpack.c.l.b16 %v870
    %v3074 = vunpack.c.h.b16 %v870
    %v3075 = vunpack.c.l.b16 %v871
    %v3076 = vunpack.c.h.b16 %v871
    %v3077 = vunpack.c.l.b16 %v872
    %v3078 = vunpack.c.h.b16 %v872
    %v3079 = vunpack.c.l.b16 %v873
    %v3080 = vunpack.c.h.b16 %v873
    %v3081 = vunpack.c.l.b16 %v874
    %v3082 = vunpack.c.h.b16 %v874
    %v3083 = vunpack.c.l.b16 %v875
    %v3084 = vunpack.c.h.b16 %v875
    %v3085 = vunpack.c.l.b16 %v876
    %v3086 = vunpack.c.h.b16 %v876
    %v3087 = vunpack.c.l.b16 %v877
    %v3088 = vunpack.c.h.b16 %v877
    %v3089 = vunpack.c.l.b16 %v878
    %v3090 = vunpack.c.h.b16 %v878
    %v3091 = vunpack.c.l.b16 %v879
    %v3092 = vunpack.c.h.b16 %v879
    %v3093 = vunpack.c.l.b16 %v880
    %v3094 = vunpack.c.h.b16 %v880
    %v3095 = vunpack.c.l.b16 %v881
    %v3096 = vunpack.c.h.b16 %v881
    %v3097 = vunpack.c.l.b16 %v882
    %v3098 = vunpack.c.h.b16 %v882
    %v3099 = vunpack.c.l.b16 %v883
    %v3100 = vunpack.c.h.b16 %v883
    %v3101 = vunpack.c.l.b16 %v884
    %v3102 = vunpack.c.h.b16 %v884
    %v3103 = vunpack.c.l.b16 %v885
    %v3104 = vunpack.c.h.b16 %v885
    %v3105 = vunpack.c.l.b16 %v886
    %v3106 = vunpack.c.h.b16 %v886
    %v3107 = vunpack.c.l.b16 %v887
    %v3108 = vunpack.c.h.b16 %v887
    %v3109 = vunpack.c.l.b16 %v888
    %v3110 = vunpack.c.h.b16 %v888
    %v3111 = vunpack.c.l.b16 %v889
    %v3112 = vunpack.c.h.b16 %v889
    %v3113 = vunpack.c.l.b16 %v890
    %v3114 = vunpack.c.h.b16 %v890
    %v3115 = vunpack.c.l.b16 %v891
    %v3116 = vunpack.c.h.b16 %v891
    %v3117 = vunpack.c.l.b16 %v892
    %v3118 = vunpack.c.h.b16 %v892
    %v3119 = vunpack.c.l.b16 %v893
    %v3120 = vunpack.c.h.b16 %v893
    %v3121 = vunpack.c.l.b16 %v894
    %v3122 = vunpack.c.h.b16 %v894
    %v3123 = vunpack.c.l.b16 %v895
    %v3124 = vunpack.c.h.b16 %v895
    %v3125 = vunpack.c.l.b16 %v896
    %v3126 = vunpack.c.h.b16 %v896
    %v3127 = vunpack.c.l.b16 %v897
    %v3128 = vunpack.c.h.b16 %v897
    %v3129 = vunpack.c.l.b16 %v898
    %v3130 = vunpack.c.h.b16 %v898
    %v3131 = vunpack.c.l.b16 %v899
    %v3132 = vunpack.c.h.b16 %v899
    %v3133 = vunpack.c.l.b16 %v900
    %v3134 = vunpack.c.h.b16 %v900
    %v3135 = vunpack.c.l.b16 %v901
    %v3136 = vunpack.c.h.b16 %v901
    %v3137 = vunpack.c.l.b16 %v902
    %v3138 = vunpack.c.h.b16 %v902
    %v3139 = vunpack.c.l.b16 %v903
    %v3140 = vunpack.c.h.b16 %v903
    %v3141 = vunpack.c.l.b16 %v904
    %v3142 = vunpack.c.h.b16 %v904
    %v3143 = vunpack.c.l.b16 %v905
    %v3144 = vunpack.c.h.b16 %v905
    %v3145 = vunpack.c.l.b16 %v906
    %v3146 = vunpack.c.h.b16 %v906
    %v3147 = vunpack.c.l.b16 %v907
    %v3148 = vunpack.c.h.b16 %v907
    %v3149 = vunpack.c.l.b16 %v908
    %v3150 = vunpack.c.h.b16 %v908
    %v3151 = vunpack.c.l.b16 %v909
    %v3152 = vunpack.c.h.b16 %v909
    %v3153 = vunpack.c.l.b16 %v910
    %v3154 = vunpack.c.h.b16 %v910
    %v3155 = vunpack.c.l.b16 %v911
    %v3156 = vunpack.c.h.b16 %v911
    %v3157 = vunpack.c.l.b16 %v912
    %v3158 = vunpack.c.h.b16 %v912
    %v3159 = vunpack.c.l.b16 %v913
    %v3160 = vunpack.c.h.b16 %v913
    %v3161 = vunpack.c.l.b16 %v914
    %v3162 = vunpack.c.h.b16 %v914
    %v3163 = vunpack.c.l.b16 %v915
    %v3164 = vunpack.c.h.b16 %v915
    %v3165 = vunpack.c.l.b16 %v916
    %v3166 = vunpack.c.h.b16 %v916
    %v3167 = vunpack.c.l.b16 %v917
    %v3168 = vunpack.c.h.b16 %v917
    %v3169 = vunpack.c.l.b16 %v918
    %v3170 = vunpack.c.h.b16 %v918
    %v3171 = vunpack.c.l.b16 %v919
    %v3172 = vunpack.c.h.b16 %v919
    %v3173 = vunpack.c.l.b16 %v920
    %v3174 = vunpack.c.h.b16 %v920
    %v3175 = vunpack.c.l.b16 %v921
    %v3176 = vunpack.c.h.b16 %v921
    %v3177 = vunpack.c.l.b16 %v922
    %v3178 = vunpack.c.h.b16 %v922
    %v3179 = vunpack.c.l.b16 %v923
    %v3180 = vunpack.c.h.b16 %v923
    %v3181 = vunpack.c.l.b16 %v924
    %v3182 = vunpack.c.h.b16 %v924
    %v3183 = vunpack.c.l.b16 %v925
    %v3184 = vunpack.c.h.b16 %v925
    %v3185 = vunpack.c.l.b16 %v926
    %v3186 = vunpack.c.h.b16 %v926
    %v3187 = vunpack.c.l.b16 %v927
    %v3188 = vunpack.c.h.b16 %v927
    %v3189 = vunpack.c.l.b16 %v928
    %v3190 = vunpack.c.h.b16 %v928
    %v3191 = vunpack.c.l.b16 %v929
    %v3192 = vunpack.c.h.b16 %v929
    %v3193 = vunpack.c.l.b16 %v930
    %v3194 = vunpack.c.h.b16 %v930
    %v3195 = vunpack.c.l.b16 %v931
    %v3196 = vunpack.c.h.b16 %v931
    %v3197 = vunpack.c.l.b16 %v932
    %v3198 = vunpack.c.h.b16 %v932
    %v3199 = vunpack.c.l.b16 %v933
    %v3200 = vunpack.c.h.b16 %v933
    %v3201 = vunpack.c.l.b16 %v934
    %v3202 = vunpack.c.h.b16 %v934
    %v3203 = vunpack.c.l.b16 %v935
    %v3204 = vunpack.c.h.b16 %v935
    %v3205 = vunpack.c.l.b16 %v936
    %v3206 = vunpack.c.h.b16 %v936
    %v3207 = vunpack.c.l.b16 %v937
    %v3208 = vunpack.c.h.b16 %v937
    %v3209 = vunpack.c.l.b16 %v938
    %v3210 = vunpack.c.h.b16 %v938
    %v3211 = vunpack.c.l.b16 %v939
    %v3212 = vunpack.c.h.b16 %v939
    %v3213 = vunpack.c.l.b16 %v940
    %v3214 = vunpack.c.h.b16 %v940
    %v3215 = vunpack.c.l.b16 %v941
    %v3216 = vunpack.c.h.b16 %v941
    %v3217 = vunpack.c.l.b16 %v942
    %v3218 = vunpack.c.h.b16 %v942
    %v3219 = vunpack.c.l.b16 %v943
    %v3220 = vunpack.c.h.b16 %v943
    %v3221 = vunpack.c.l.b16 %v944
    %v3222 = vunpack.c.h.b16 %v944
    %v3223 = vunpack.c.l.b16 %v945
    %v3224 = vunpack.c.h.b16 %v945
    %v3225 = vunpack.c.l.b16 %v946
    %v3226 = vunpack.c.h.b16 %v946
    %v3227 = vunpack.c.l.b16 %v947
    %v3228 = vunpack.c.h.b16 %v947
    %v3229 = vunpack.c.l.b16 %v948
    %v3230 = vunpack.c.h.b16 %v948
    %v3231 = vunpack.c.l.b16 %v949
    %v3232 = vunpack.c.h.b16 %v949
    %v3233 = vunpack.c.l.b16 %v950
    %v3234 = vunpack.c.h.b16 %v950
    %v3235 = vunpack.c.l.b16 %v951
    %v3236 = vunpack.c.h.b16 %v951
    %v3237 = vunpack.c.l.b16 %v952
    %v3238 = vunpack.c.h.b16 %v952
    %v3239 = vunpack.c.l.b16 %v953
    %v3240 = vunpack.c.h.b16 %v953
    %v3241 = vunpack.c.l.b16 %v954
    %v3242 = vunpack.c.h.b16 %v954
    %v3243 = vunpack.c.l.b16 %v955
    %v3244 = vunpack.c.h.b16 %v955
    %v3245 = vunpack.c.l.b16 %v956
    %v3246 = vunpack.c.h.b16 %v956
    %v3247 = vunpack.c.l.b16 %v957
    %v3248 = vunpack.c.h.b16 %v957
    %v3249 = vunpack.c.l.b16 %v958
    %v3250 = vunpack.c.h.b16 %v958
    %v3251 = vunpack.c.l.b16 %v959
    %v3252 = vunpack.c.h.b16 %v959
    %v3253 = vunpack.c.l.b16 %v960
    %v3254 = vunpack.c.h.b16 %v960
    %v3255 = vunpack.c.l.b16 %v961
    %v3256 = vunpack.c.h.b16 %v961
    %v3257 = vunpack.c.l.b16 %v962
    %v3258 = vunpack.c.h.b16 %v962
    %v3259 = vunpack.c.l.b16 %v963
    %v3260 = vunpack.c.h.b16 %v963
    %v3261 = vunpack.c.l.b16 %v964
    %v3262 = vunpack.c.h.b16 %v964
    %v3263 = vunpack.c.l.b16 %v965
    %v3264 = vunpack.c.h.b16 %v965
    %v3265 = vunpack.c.l.b16 %v966
    %v3266 = vunpack.c.h.b16 %v966
    %v3267 = vunpack.c.l.b16 %v967
    %v3268 = vunpack.c.h.b16 %v967
    %v3269 = vunpack.c.l.b16 %v968
    %v3270 = vunpack.c.h.b16 %v968
    %v3271 = vunpack.c.l.b16 %v969
    %v3272 = vunpack.c.h.b16 %v969
    %v3273 = vunpack.c.l.b16 %v970
    %v3274 = vunpack.c.h.b16 %v970
    %v3275 = vunpack.c.l.b16 %v971
    %v3276 = vunpack.c.h.b16 %v971
    %v3277 = vunpack.c.l.b16 %v972
    %v3278 = vunpack.c.h.b16 %v972
    %v3279 = vunpack.c.l.b16 %v973
    %v3280 = vunpack.c.h.b16 %v973
    %v3281 = vunpack.c.l.b16 %v974
    %v3282 = vunpack.c.h.b16 %v974
    %v3283 = vunpack.c.l.b16 %v975
    %v3284 = vunpack.c.h.b16 %v975
    %v3285 = vunpack.c.l.b16 %v976
    %v3286 = vunpack.c.h.b16 %v976
    %v3287 = vunpack.c.l.b16 %v977
    %v3288 = vunpack.c.h.b16 %v977
    %v3289 = vunpack.c.l.b16 %v978
    %v3290 = vunpack.c.h.b16 %v978
    %v3291 = vunpack.c.l.b16 %v979
    %v3292 = vunpack.c.h.b16 %v979
    %v3293 = vunpack.c.l.b16 %v980
    %v3294 = vunpack.c.h.b16 %v980
    %v3295 = vunpack.c.l.b16 %v981
    %v3296 = vunpack.c.h.b16 %v981
    %v3297 = vunpack.c.l.b16 %v982
    %v3298 = vunpack.c.h.b16 %v982
    %v3299 = vunpack.c.l.b16 %v983
    %v3300 = vunpack.c.h.b16 %v983
    %v3301 = vunpack.c.l.b16 %v984
    %v3302 = vunpack.c.h.b16 %v984
    %v3303 = vunpack.c.l.b16 %v985
    %v3304 = vunpack.c.h.b16 %v985
    %v3305 = vunpack.c.l.b16 %v986
    %v3306 = vunpack.c.h.b16 %v986
    %v3307 = vunpack.c.l.b16 %v987
    %v3308 = vunpack.c.h.b16 %v987
    %v3309 = vunpack.c.l.b16 %v988
    %v3310 = vunpack.c.h.b16 %v988
    %v3311 = vunpack.c.l.b16 %v989
    %v3312 = vunpack.c.h.b16 %v989
    %v3313 = vunpack.c.l.b16 %v990
    %v3314 = vunpack.c.h.b16 %v990
    %v3315 = vunpack.c.l.b16 %v991
    %v3316 = vunpack.c.h.b16 %v991
    %v3317 = vunpack.c.l.b16 %v992
    %v3318 = vunpack.c.h.b16 %v992
    %v3319 = vunpack.c.l.b16 %v993
    %v3320 = vunpack.c.h.b16 %v993
    %v3321 = vunpack.c.l.b16 %v994
    %v3322 = vunpack.c.h.b16 %v994
    %v3323 = vunpack.c.l.b16 %v995
    %v3324 = vunpack.c.h.b16 %v995
    %v3325 = vunpack.c.l.b16 %v996
    %v3326 = vunpack.c.h.b16 %v996
    %v3327 = vunpack.c.l.b16 %v997
    %v3328 = vunpack.c.h.b16 %v997
    %v3329 = vunpack.c.l.b16 %v998
    %v3330 = vunpack.c.h.b16 %v998
    %v3331 = vunpack.c.l.b16 %v999
    %v3332 = vunpack.c.h.b16 %v999
    %v3333 = vunpack.c.l.b16 %v1000
    %v3334 = vunpack.c.h.b16 %v1000
    %v3335 = vunpack.c.l.b16 %v1001
    %v3336 = vunpack.c.h.b16 %v1001
    %v3337 = vunpack.c.l.b16 %v1002
    %v3338 = vunpack.c.h.b16 %v1002
    %v3339 = vunpack.c.l.b16 %v1003
    %v3340 = vunpack.c.h.b16 %v1003
    %v3341 = vunpack.c.l.b16 %v1004
    %v3342 = vunpack.c.h.b16 %v1004
    %v3343 = vunpack.c.l.b16 %v1005
    %v3344 = vunpack.c.h.b16 %v1005
    %v3345 = vunpack.c.l.b16 %v1006
    %v3346 = vunpack.c.h.b16 %v1006
    %v3347 = vunpack.c.l.b16 %v1007
    %v3348 = vunpack.c.h.b16 %v1007
    %v3349 = vunpack.c.l.b16 %v1008
    %v3350 = vunpack.c.h.b16 %v1008
    %v3351 = vunpack.c.l.b16 %v1009
    %v3352 = vunpack.c.h.b16 %v1009
    %v3353 = vunpack.c.l.b16 %v1010
    %v3354 = vunpack.c.h.b16 %v1010
    %v3355 = vunpack.c.l.b16 %v1011
    %v3356 = vunpack.c.h.b16 %v1011
    %v3357 = vunpack.c.l.b16 %v1012
    %v3358 = vunpack.c.h.b16 %v1012
    %v3359 = vunpack.c.l.b16 %v1013
    %v3360 = vunpack.c.h.b16 %v1013
    %v3361 = vunpack.c.l.b16 %v1014
    %v3362 = vunpack.c.h.b16 %v1014
    %v3363 = vunpack.c.l.b16 %v1015
    %v3364 = vunpack.c.h.b16 %v1015
    %v3365 = vunpack.c.l.b16 %v1016
    %v3366 = vunpack.c.h.b16 %v1016
    %v3367 = vunpack.c.l.b16 %v1017
    %v3368 = vunpack.c.h.b16 %v1017
    %v3369 = vunpack.c.l.b16 %v1018
    %v3370 = vunpack.c.h.b16 %v1018
    %v3371 = vunpack.c.l.b16 %v1019
    %v3372 = vunpack.c.h.b16 %v1019
    %v3373 = vunpack.c.l.b16 %v1020
    %v3374 = vunpack.c.h.b16 %v1020
    %v3375 = vunpack.c.l.b16 %v1021
    %v3376 = vunpack.c.h.b16 %v1021
    %v3377 = vunpack.c.l.b16 %v1022
    %v3378 = vunpack.c.h.b16 %v1022
    %v3379 = vunpack.c.l.b16 %v1023
    %v3380 = vunpack.c.h.b16 %v1023
    %v3381 = vunpack.c.l.b16 %v1024
    %v3382 = vunpack.c.h.b16 %v1024
    %v3383 = vunpack.c.l.b16 %v1025
    %v3384 = vunpack.c.h.b16 %v1025
    %v3385 = vunpack.c.l.b16 %v1026
    %v3386 = vunpack.c.h.b16 %v1026
    %v3387 = vunpack.c.l.b16 %v1027
    %v3388 = vunpack.c.h.b16 %v1027
    %v3389 = vunpack.c.l.b16 %v1028
    %v3390 = vunpack.c.h.b16 %v1028
    %v3391 = vunpack.c.l.b16 %v1029
    %v3392 = vunpack.c.h.b16 %v1029
    %v3393 = vunpack.c.l.b16 %v1030
    %v3394 = vunpack.c.h.b16 %v1030
    %v3395 = vunpack.c.l.b16 %v1031
    %v3396 = vunpack.c.h.b16 %v1031
    %v3397 = vunpack.c.l.b16 %v1032
    %v3398 = vunpack.c.h.b16 %v1032
    %v3399 = vunpack.c.l.b16 %v1033
    %v3400 = vunpack.c.h.b16 %v1033
    %v3401 = vunpack.c.l.b16 %v1034
    %v3402 = vunpack.c.h.b16 %v1034
    %v3403 = vunpack.c.l.b16 %v1035
    %v3404 = vunpack.c.h.b16 %v1035
    %v3405 = vunpack.c.l.b16 %v1036
    %v3406 = vunpack.c.h.b16 %v1036
    %v3407 = vunpack.c.l.b16 %v1037
    %v3408 = vunpack.c.h.b16 %v1037
    %v3409 = vunpack.c.l.b16 %v1038
    %v3410 = vunpack.c.h.b16 %v1038
    %v3411 = vunpack.c.l.b16 %v1039
    %v3412 = vunpack.c.h.b16 %v1039
    %v3413 = vunpack.c.l.b16 %v1040
    %v3414 = vunpack.c.h.b16 %v1040
    %v3415 = vunpack.c.l.b16 %v1041
    %v3416 = vunpack.c.h.b16 %v1041
    %v3417 = vunpack.c.l.b16 %v1042
    %v3418 = vunpack.c.h.b16 %v1042
    %v3419 = vunpack.c.l.b16 %v1043
    %v3420 = vunpack.c.h.b16 %v1043
    %v3421 = vunpack.c.l.b16 %v1044
    %v3422 = vunpack.c.h.b16 %v1044
    %v3423 = vunpack.c.l.b16 %v1045
    %v3424 = vunpack.c.h.b16 %v1045
    %v3425 = vunpack.c.l.b16 %v1046
    %v3426 = vunpack.c.h.b16 %v1046
    %v3427 = vunpack.c.l.b16 %v1047
    %v3428 = vunpack.c.h.b16 %v1047
    %v3429 = vunpack.c.l.b16 %v1048
    %v3430 = vunpack.c.h.b16 %v1048
    %v3431 = vunpack.c.l.b16 %v1049
    %v3432 = vunpack.c.h.b16 %v1049
    %v3433 = vunpack.c.l.b16 %v1050
    %v3434 = vunpack.c.h.b16 %v1050
    %v3435 = vunpack.c.l.b16 %v1051
    %v3436 = vunpack.c.h.b16 %v1051
    %v3437 = vunpack.c.l.b16 %v1052
    %v3438 = vunpack.c.h.b16 %v1052
    %v3439 = vunpack.c.l.b16 %v1053
    %v3440 = vunpack.c.h.b16 %v1053
    %v3441 = vunpack.c.l.b16 %v1054
    %v3442 = vunpack.c.h.b16 %v1054
    %v3443 = vunpack.c.l.b16 %v1055
    %v3444 = vunpack.c.h.b16 %v1055
    %v3445 = vunpack.c.l.b16 %v1056
    %v3446 = vunpack.c.h.b16 %v1056
    %v3447 = vunpack.c.l.b16 %v1057
    %v3448 = vunpack.c.h.b16 %v1057
    %v3449 = vunpack.c.l.b16 %v1058
    %v3450 = vunpack.c.h.b16 %v1058
    %v3451 = vunpack.c.l.b16 %v1059
    %v3452 = vunpack.c.h.b16 %v1059
    %v3453 = vunpack.c.l.b16 %v1060
    %v3454 = vunpack.c.h.b16 %v1060
    %v3455 = vunpack.c.l.b16 %v1061
    %v3456 = vunpack.c.h.b16 %v1061
    %v3457 = vunpack.c.l.b16 %v1062
    %v3458 = vunpack.c.h.b16 %v1062
    %v3459 = vunpack.c.l.b16 %v1063
    %v3460 = vunpack.c.h.b16 %v1063
    %v3461 = vunpack.c.l.b16 %v1064
    %v3462 = vunpack.c.h.b16 %v1064
    %v3463 = vunpack.c.l.b16 %v1065
    %v3464 = vunpack.c.h.b16 %v1065
    %v3465 = vunpack.c.l.b16 %v1066
    %v3466 = vunpack.c.h.b16 %v1066
    %v3467 = vunpack.c.l.b16 %v1067
    %v3468 = vunpack.c.h.b16 %v1067
    %v3469 = vunpack.c.l.b16 %v1068
    %v3470 = vunpack.c.h.b16 %v1068
    %v3471 = vunpack.c.l.b16 %v1069
    %v3472 = vunpack.c.h.b16 %v1069
    %v3473 = vunpack.c.l.b16 %v1070
    %v3474 = vunpack.c.h.b16 %v1070
    %v3475 = vunpack.c.l.b16 %v1071
    %v3476 = vunpack.c.h.b16 %v1071
    %v3477 = vunpack.c.l.b16 %v1072
    %v3478 = vunpack.c.h.b16 %v1072
    %v3479 = vunpack.c.l.b16 %v1073
    %v3480 = vunpack.c.h.b16 %v1073
    %v3481 = vunpack.c.l.b16 %v1074
    %v3482 = vunpack.c.h.b16 %v1074
    %v3483 = vunpack.c.l.b16 %v1075
    %v3484 = vunpack.c.h.b16 %v1075
    %v3485 = vunpack.c.l.b16 %v1076
    %v3486 = vunpack.c.h.b16 %v1076
    %v3487 = vunpack.c.l.b16 %v1077
    %v3488 = vunpack.c.h.b16 %v1077
    %v3489 = vunpack.c.l.b16 %v1078
    %v3490 = vunpack.c.h.b16 %v1078
    %v3491 = vunpack.c.l.b16 %v1079
    %v3492 = vunpack.c.h.b16 %v1079
    %v3493 = vunpack.c.l.b16 %v1080
    %v3494 = vunpack.c.h.b16 %v1080
    %v3495 = vunpack.c.l.b16 %v1081
    %v3496 = vunpack.c.h.b16 %v1081
    %v3497 = vunpack.c.l.b16 %v1082
    %v3498 = vunpack.c.h.b16 %v1082
    %v3499 = vunpack.c.l.b16 %v1083
    %v3500 = vunpack.c.h.b16 %v1083
    %v3501 = vunpack.c.l.b16 %v1084
    %v3502 = vunpack.c.h.b16 %v1084
    %v3503 = vunpack.c.l.b16 %v1085
    %v3504 = vunpack.c.h.b16 %v1085
    %v3505 = vunpack.c.l.b16 %v1086
    %v3506 = vunpack.c.h.b16 %v1086
    %v3507 = vunpack.c.l.b16 %v1087
    %v3508 = vunpack.c.h.b16 %v1087
    %v3509 = vunpack.c.l.b16 %v1088
    %v3510 = vunpack.c.h.b16 %v1088
    %v3511 = vunpack.c.l.b16 %v1089
    %v3512 = vunpack.c.h.b16 %v1089
    %v3513 = vunpack.c.l.b16 %v1090
    %v3514 = vunpack.c.h.b16 %v1090
    %v3515 = vunpack.c.l.b16 %v1091
    %v3516 = vunpack.c.h.b16 %v1091
    %v3517 = vunpack.c.l.b16 %v1092
    %v3518 = vunpack.c.h.b16 %v1092
    %v3519 = vunpack.c.l.b16 %v1093
    %v3520 = vunpack.c.h.b16 %v1093
    %v3521 = vunpack.c.l.b16 %v1094
    %v3522 = vunpack.c.h.b16 %v1094
    %v3523 = vunpack.c.l.b16 %v1095
    %v3524 = vunpack.c.h.b16 %v1095
    %v3525 = vunpack.c.l.b16 %v1096
    %v3526 = vunpack.c.h.b16 %v1096
    %v3527 = vunpack.c.l.b16 %v1097
    %v3528 = vunpack.c.h.b16 %v1097
    %v3529 = vunpack.c.l.b16 %v1098
    %v3530 = vunpack.c.h.b16 %v1098
    %v3531 = vunpack.c.l.b16 %v1099
    %v3532 = vunpack.c.h.b16 %v1099
    %v3533 = vunpack.c.l.b16 %v1100
    %v3534 = vunpack.c.h.b16 %v1100
    %v3535 = vunpack.c.l.b16 %v1101
    %v3536 = vunpack.c.h.b16 %v1101
    %v3537 = vunpack.c.l.b16 %v1102
    %v3538 = vunpack.c.h.b16 %v1102
    %v3539 = vunpack.c.l.b16 %v1103
    %v3540 = vunpack.c.h.b16 %v1103
    %v3541 = vunpack.c.l.b16 %v1104
    %v3542 = vunpack.c.h.b16 %v1104
    %v3543 = vunpack.c.l.b16 %v1105
    %v3544 = vunpack.c.h.b16 %v1105
    %v3545 = vunpack.c.l.b16 %v1106
    %v3546 = vunpack.c.h.b16 %v1106
    %v3547 = vunpack.c.l.b16 %v1107
    %v3548 = vunpack.c.h.b16 %v1107
    %v3549 = vunpack.c.l.b16 %v1108
    %v3550 = vunpack.c.h.b16 %v1108
    %v3551 = vunpack.c.l.b16 %v1109
    %v3552 = vunpack.c.h.b16 %v1109
    %v3553 = vunpack.c.l.b16 %v1110
    %v3554 = vunpack.c.h.b16 %v1110
    %v3555 = vunpack.c.l.b16 %v1111
    %v3556 = vunpack.c.h.b16 %v1111
    %v3557 = vunpack.c.l.b16 %v1112
    %v3558 = vunpack.c.h.b16 %v1112
    %v3559 = vunpack.c.l.b16 %v1113
    %v3560 = vunpack.c.h.b16 %v1113
    %v3561 = vunpack.c.l.b16 %v1114
    %v3562 = vunpack.c.h.b16 %v1114
    %v3563 = vunpack.c.l.b16 %v1115
    %v3564 = vunpack.c.h.b16 %v1115
    %v3565 = vunpack.c.l.b16 %v1116
    %v3566 = vunpack.c.h.b16 %v1116
    %v3567 = vunpack.c.l.b16 %v1117
    %v3568 = vunpack.c.h.b16 %v1117
    %v3569 = vunpack.c.l.b16 %v1118
    %v3570 = vunpack.c.h.b16 %v1118
    %v3571 = vunpack.c.l.b16 %v1119
    %v3572 = vunpack.c.h.b16 %v1119
    %v3573 = vunpack.c.l.b16 %v1120
    %v3574 = vunpack.c.h.b16 %v1120
    %v3575 = vunpack.c.l.b16 %v1121
    %v3576 = vunpack.c.h.b16 %v1121
    %v3577 = vunpack.c.l.b16 %v1122
    %v3578 = vunpack.c.h.b16 %v1122
    %v3579 = vunpack.c.l.b16 %v1123
    %v3580 = vunpack.c.h.b16 %v1123
    %v3581 = vunpack.c.l.b16 %v1124
    %v3582 = vunpack.c.h.b16 %v1124
    %v3583 = vunpack.c.l.b16 %v1125
    %v3584 = vunpack.c.h.b16 %v1125
    %v3585 = vunpack.c.l.b16 %v1126
    %v3586 = vunpack.c.h.b16 %v1126
    %v3587 = vunpack.c.l.b16 %v1127
    %v3588 = vunpack.c.h.b16 %v1127
    %v3589 = vunpack.c.l.b16 %v1128
    %v3590 = vunpack.c.h.b16 %v1128
    %v3591 = vunpack.c.l.b16 %v1129
    %v3592 = vunpack.c.h.b16 %v1129
    %v3593 = vunpack.c.l.b16 %v1130
    %v3594 = vunpack.c.h.b16 %v1130
    %v3595 = vunpack.c.l.b16 %v1131
    %v3596 = vunpack.c.h.b16 %v1131
    %v3597 = vunpack.c.l.b16 %v1132
    %v3598 = vunpack.c.h.b16 %v1132
    %v3599 = vunpack.c.l.b16 %v1133
    %v3600 = vunpack.c.h.b16 %v1133
    %v3601 = vunpack.c.l.b16 %v1134
    %v3602 = vunpack.c.h.b16 %v1134
    %v3603 = vunpack.c.l.b16 %v1135
    %v3604 = vunpack.c.h.b16 %v1135
    %v3605 = vunpack.c.l.b16 %v1136
    %v3606 = vunpack.c.h.b16 %v1136
    %v3607 = vunpack.c.l.b16 %v1137
    %v3608 = vunpack.c.h.b16 %v1137
    %v3609 = vunpack.c.l.b16 %v1138
    %v3610 = vunpack.c.h.b16 %v1138
    %v3611 = vunpack.c.l.b16 %v1139
    %v3612 = vunpack.c.h.b16 %v1139
    %v3613 = vunpack.c.l.b16 %v1140
    %v3614 = vunpack.c.h.b16 %v1140
    %v3615 = vunpack.c.l.b16 %v1141
    %v3616 = vunpack.c.h.b16 %v1141
    %v3617 = vunpack.c.l.b16 %v1142
    %v3618 = vunpack.c.h.b16 %v1142
    %v3619 = vunpack.c.l.b16 %v1143
    %v3620 = vunpack.c.h.b16 %v1143
    %v3621 = vunpack.c.l.b16 %v1144
    %v3622 = vunpack.c.h.b16 %v1144
    %v3623 = vunpack.c.l.b16 %v1145
    %v3624 = vunpack.c.h.b16 %v1145
    %v3625 = vunpack.c.l.b16 %v1146
    %v3626 = vunpack.c.h.b16 %v1146
    %v3627 = vunpack.c.l.b16 %v1147
    %v3628 = vunpack.c.h.b16 %v1147
    %v3629 = vunpack.c.l.b16 %v1148
    %v3630 = vunpack.c.h.b16 %v1148
    %v3631 = vunpack.c.l.b16 %v1149
    %v3632 = vunpack.c.h.b16 %v1149
    %v3633 = vunpack.c.l.b16 %v1150
    %v3634 = vunpack.c.h.b16 %v1150
    %v3635 = vunpack.c.l.b16 %v1151
    %v3636 = vunpack.c.h.b16 %v1151
    %v3637 = vunpack.c.l.b16 %v1152
    %v3638 = vunpack.c.h.b16 %v1152
    %v3639 = vunpack.c.l.b16 %v1153
    %v3640 = vunpack.c.h.b16 %v1153
    %v3641 = vunpack.c.l.b16 %v1154
    %v3642 = vunpack.c.h.b16 %v1154
    %v3643 = vunpack.c.l.b16 %v1155
    %v3644 = vunpack.c.h.b16 %v1155
    %v3645 = vunpack.c.l.b16 %v1156
    %v3646 = vunpack.c.h.b16 %v1156
    %v3647 = vunpack.c.l.b16 %v1157
    %v3648 = vunpack.c.h.b16 %v1157
    %v3649 = vunpack.c.l.b16 %v1158
    %v3650 = vunpack.c.h.b16 %v1158
    %v3651 = vunpack.c.l.b16 %v1159
    %v3652 = vunpack.c.h.b16 %v1159
    %v3653 = vunpack.c.l.b16 %v1160
    %v3654 = vunpack.c.h.b16 %v1160
    %v3655 = vunpack.c.l.b16 %v1161
    %v3656 = vunpack.c.h.b16 %v1161
    %v3657 = vunpack.c.l.b16 %v1162
    %v3658 = vunpack.c.h.b16 %v1162
    %v3659 = vunpack.c.l.b16 %v1163
    %v3660 = vunpack.c.h.b16 %v1163
    %v3661 = vunpack.c.l.b16 %v1164
    %v3662 = vunpack.c.h.b16 %v1164
    %v3663 = vunpack.c.l.b16 %v1165
    %v3664 = vunpack.c.h.b16 %v1165
    %v3665 = vunpack.c.l.b16 %v1166
    %v3666 = vunpack.c.h.b16 %v1166
    %v3667 = vunpack.c.l.b16 %v1167
    %v3668 = vunpack.c.h.b16 %v1167
    %v3669 = vunpack.c.l.b16 %v1168
    %v3670 = vunpack.c.h.b16 %v1168
    %v3671 = vunpack.c.l.b16 %v1169
    %v3672 = vunpack.c.h.b16 %v1169
    %v3673 = vunpack.c.l.b16 %v1170
    %v3674 = vunpack.c.h.b16 %v1170
    %v3675 = vunpack.c.l.b16 %v1171
    %v3676 = vunpack.c.h.b16 %v1171
    %v3677 = vunpack.c.l.b16 %v1172
    %v3678 = vunpack.c.h.b16 %v1172
    %v3679 = vunpack.c.l.b16 %v1173
    %v3680 = vunpack.c.h.b16 %v1173
    %v3681 = vunpack.c.l.b16 %v1174
    %v3682 = vunpack.c.h.b16 %v1174
    %v3683 = vunpack.c.l.b16 %v1175
    %v3684 = vunpack.c.h.b16 %v1175
    %v3685 = vunpack.c.l.b16 %v1176
    %v3686 = vunpack.c.h.b16 %v1176
    %v3687 = vunpack.c.l.b16 %v1177
    %v3688 = vunpack.c.h.b16 %v1177
    %v3689 = vunpack.c.l.b16 %v1178
    %v3690 = vunpack.c.h.b16 %v1178
    %v3691 = vunpack.c.l.b16 %v1179
    %v3692 = vunpack.c.h.b16 %v1179
    %v3693 = vunpack.c.l.b16 %v1180
    %v3694 = vunpack.c.h.b16 %v1180
    %v3695 = vunpack.c.l.b16 %v1181
    %v3696 = vunpack.c.h.b16 %v1181
    %v3697 = vunpack.c.l.b16 %v1182
    %v3698 = vunpack.c.h.b16 %v1182
    %v3699 = vunpack.c.l.b16 %v1183
    %v3700 = vunpack.c.h.b16 %v1183
    %v3701 = vunpack.c.l.b16 %v1184
    %v3702 = vunpack.c.h.b16 %v1184
    %v3703 = vunpack.c.l.b16 %v1185
    %v3704 = vunpack.c.h.b16 %v1185
    %v3705 = vunpack.c.l.b16 %v1186
    %v3706 = vunpack.c.h.b16 %v1186
    %v3707 = vunpack.c.l.b16 %v1187
    %v3708 = vunpack.c.h.b16 %v1187
    %v3709 = vunpack.c.l.b16 %v1188
    %v3710 = vunpack.c.h.b16 %v1188
    %v3711 = vunpack.c.l.b16 %v1189
    %v3712 = vunpack.c.h.b16 %v1189
    %v3713 = vunpack.c.l.b16 %v1190
    %v3714 = vunpack.c.h.b16 %v1190
    %v3715 = vunpack.c.l.b16 %v1191
    %v3716 = vunpack.c.h.b16 %v1191
    %v3717 = vunpack.c.l.b16 %v1192
    %v3718 = vunpack.c.h.b16 %v1192
    %v3719 = vunpack.c.l.b16 %v1193
    %v3720 = vunpack.c.h.b16 %v1193
    %v3721 = vunpack.c.l.b16 %v1194
    %v3722 = vunpack.c.h.b16 %v1194
    %v3723 = vunpack.c.l.b16 %v1195
    %v3724 = vunpack.c.h.b16 %v1195
    %v3725 = vunpack.c.l.b16 %v1196
    %v3726 = vunpack.c.h.b16 %v1196
    %v3727 = vunpack.c.l.b16 %v1197
    %v3728 = vunpack.c.h.b16 %v1197
    %v3729 = vunpack.c.l.b16 %v1198
    %v3730 = vunpack.c.h.b16 %v1198
    %v3731 = vunpack.c.l.b16 %v1199
    %v3732 = vunpack.c.h.b16 %v1199
    %v3733 = vunpack.c.l.b16 %v1200
    %v3734 = vunpack.c.h.b16 %v1200
    %v3735 = vunpack.c.l.b16 %v1201
    %v3736 = vunpack.c.h.b16 %v1201
    %v3737 = vunpack.c.l.b16 %v1202
    %v3738 = vunpack.c.h.b16 %v1202
    %v3739 = vunpack.c.l.b16 %v1203
    %v3740 = vunpack.c.h.b16 %v1203
    %v3741 = vunpack.c.l.b16 %v1204
    %v3742 = vunpack.c.h.b16 %v1204
    %v3743 = vunpack.c.l.b16 %v1205
    %v3744 = vunpack.c.h.b16 %v1205
    %v3745 = vunpack.c.l.b16 %v1206
    %v3746 = vunpack.c.h.b16 %v1206
    %v3747 = vunpack.c.l.b16 %v1207
    %v3748 = vunpack.c.h.b16 %v1207
    %v3749 = vunpack.c.l.b16 %v1208
    %v3750 = vunpack.c.h.b16 %v1208
    %v3751 = vunpack.c.l.b16 %v1209
    %v3752 = vunpack.c.h.b16 %v1209
    %v3753 = vunpack.c.l.b16 %v1210
    %v3754 = vunpack.c.h.b16 %v1210
    %v3755 = vunpack.c.l.b16 %v1211
    %v3756 = vunpack.c.h.b16 %v1211
    %v3757 = vunpack.c.l.b16 %v1212
    %v3758 = vunpack.c.h.b16 %v1212
    %v3759 = vunpack.c.l.b16 %v1213
    %v3760 = vunpack.c.h.b16 %v1213
    %v3761 = vunpack.c.l.b16 %v1214
    %v3762 = vunpack.c.h.b16 %v1214
    %v3763 = vunpack.c.l.b16 %v1215
    %v3764 = vunpack.c.h.b16 %v1215
    %v3765 = vunpack.c.l.b16 %v1216
    %v3766 = vunpack.c.h.b16 %v1216
    %v3767 = vunpack.c.l.b16 %v1217
    %v3768 = vunpack.c.h.b16 %v1217
    %v3769 = vunpack.c.l.b16 %v1218
    %v3770 = vunpack.c.h.b16 %v1218
    %v3771 = vunpack.c.l.b16 %v1219
    %v3772 = vunpack.c.h.b16 %v1219
    %v3773 = vunpack.c.l.b16 %v1220
    %v3774 = vunpack.c.h.b16 %v1220
    %v3775 = vunpack.c.l.b16 %v1221
    %v3776 = vunpack.c.h.b16 %v1221
    %v3777 = vunpack.c.l.b16 %v1222
    %v3778 = vunpack.c.h.b16 %v1222
    %v3779 = vunpack.c.l.b16 %v1223
    %v3780 = vunpack.c.h.b16 %v1223
    %v3781 = vunpack.c.l.b16 %v1224
    %v3782 = vunpack.c.h.b16 %v1224
    %v3783 = vunpack.c.l.b16 %v1225
    %v3784 = vunpack.c.h.b16 %v1225
    %v3785 = vunpack.c.l.b16 %v1226
    %v3786 = vunpack.c.h.b16 %v1226
    %v3787 = vunpack.c.l.b16 %v1227
    %v3788 = vunpack.c.h.b16 %v1227
    %v3789 = vunpack.c.l.b16 %v1228
    %v3790 = vunpack.c.h.b16 %v1228
    %v3791 = vunpack.c.l.b16 %v1229
    %v3792 = vunpack.c.h.b16 %v1229
    %v3793 = vunpack.c.l.b16 %v1230
    %v3794 = vunpack.c.h.b16 %v1230
    %v3795 = vunpack.c.l.b16 %v1231
    %v3796 = vunpack.c.h.b16 %v1231
    %v3797 = vunpack.c.l.b16 %v1232
    %v3798 = vunpack.c.h.b16 %v1232
    %v3799 = vunpack.c.l.b16 %v1233
    %v3800 = vunpack.c.h.b16 %v1233
    %v3801 = vunpack.c.l.b16 %v1234
    %v3802 = vunpack.c.h.b16 %v1234
    %v3803 = vunpack.c.l.b16 %v1235
    %v3804 = vunpack.c.h.b16 %v1235
    %v3805 = vunpack.c.l.b16 %v1236
    %v3806 = vunpack.c.h.b16 %v1236
    %v3807 = vunpack.c.l.b16 %v1237
    %v3808 = vunpack.c.h.b16 %v1237
    %v3809 = vunpack.c.l.b16 %v1238
    %v3810 = vunpack.c.h.b16 %v1238
    %v3811 = vunpack.c.l.b16 %v1239
    %v3812 = vunpack.c.h.b16 %v1239
    %v3813 = vunpack.c.l.b16 %v1240
    %v3814 = vunpack.c.h.b16 %v1240
    %v3815 = vunpack.c.l.b16 %v1241
    %v3816 = vunpack.c.h.b16 %v1241
    %v3817 = vunpack.c.l.b16 %v1242
    %v3818 = vunpack.c.h.b16 %v1242
    %v3819 = vunpack.c.l.b16 %v1243
    %v3820 = vunpack.c.h.b16 %v1243
    %v3821 = vunpack.c.l.b16 %v1244
    %v3822 = vunpack.c.h.b16 %v1244
    %v3823 = vunpack.c.l.b16 %v1245
    %v3824 = vunpack.c.h.b16 %v1245
    %v3825 = vunpack.c.l.b16 %v1246
    %v3826 = vunpack.c.h.b16 %v1246
    %v3827 = vunpack.c.l.b16 %v1247
    %v3828 = vunpack.c.h.b16 %v1247
    %v3829 = vunpack.c.l.b16 %v1248
    %v3830 = vunpack.c.h.b16 %v1248
    %v3831 = vunpack.c.l.b16 %v1249
    %v3832 = vunpack.c.h.b16 %v1249
    %v3833 = vunpack.c.l.b16 %v1250
    %v3834 = vunpack.c.h.b16 %v1250
    %v3835 = vunpack.c.l.b16 %v1251
    %v3836 = vunpack.c.h.b16 %v1251
    %v3837 = vunpack.c.l.b16 %v1252
    %v3838 = vunpack.c.h.b16 %v1252
    %v3839 = vunpack.c.l.b16 %v1253
    %v3840 = vunpack.c.h.b16 %v1253
    %v3841 = vunpack.c.l.b16 %v1254
    %v3842 = vunpack.c.h.b16 %v1254
    %v3843 = vunpack.c.l.b16 %v1255
    %v3844 = vunpack.c.h.b16 %v1255
    %v3845 = vunpack.c.l.b16 %v1256
    %v3846 = vunpack.c.h.b16 %v1256
    %v3847 = vunpack.c.l.b16 %v1257
    %v3848 = vunpack.c.h.b16 %v1257
    %v3849 = vunpack.c.l.b16 %v1258
    %v3850 = vunpack.c.h.b16 %v1258
    %v3851 = vunpack.c.l.b16 %v1259
    %v3852 = vunpack.c.h.b16 %v1259
    %v3853 = vunpack.c.l.b16 %v1260
    %v3854 = vunpack.c.h.b16 %v1260
    %v3855 = vunpack.c.l.b16 %v1261
    %v3856 = vunpack.c.h.b16 %v1261
    %v3857 = vunpack.c.l.b16 %v1262
    %v3858 = vunpack.c.h.b16 %v1262
    %v3859 = vunpack.c.l.b16 %v1263
    %v3860 = vunpack.c.h.b16 %v1263
    %v3861 = vunpack.c.l.b16 %v1264
    %v3862 = vunpack.c.h.b16 %v1264
    %v3863 = vunpack.c.l.b16 %v1265
    %v3864 = vunpack.c.h.b16 %v1265
    %v3865 = vunpack.c.l.b16 %v1266
    %v3866 = vunpack.c.h.b16 %v1266
    %v3867 = vunpack.c.l.b16 %v1267
    %v3868 = vunpack.c.h.b16 %v1267
    %v3869 = vunpack.c.l.b16 %v1268
    %v3870 = vunpack.c.h.b16 %v1268
    %v3871 = vunpack.c.l.b16 %v1269
    %v3872 = vunpack.c.h.b16 %v1269
    %v3873 = vunpack.c.l.b16 %v1270
    %v3874 = vunpack.c.h.b16 %v1270
    %v3875 = vunpack.c.l.b16 %v1271
    %v3876 = vunpack.c.h.b16 %v1271
    %v3877 = vunpack.c.l.b16 %v1272
    %v3878 = vunpack.c.h.b16 %v1272
    %v3879 = vunpack.c.l.b16 %v1273
    %v3880 = vunpack.c.h.b16 %v1273
    %v3881 = vunpack.c.l.b16 %v1274
    %v3882 = vunpack.c.h.b16 %v1274
    %v3883 = vunpack.c.l.b16 %v1275
    %v3884 = vunpack.c.h.b16 %v1275
    %v3885 = vunpack.c.l.b16 %v1276
    %v3886 = vunpack.c.h.b16 %v1276
    %v3887 = vunpack.c.l.b16 %v1277
    %v3888 = vunpack.c.h.b16 %v1277
    %v3889 = vunpack.c.l.b16 %v1278
    %v3890 = vunpack.c.h.b16 %v1278
    %v3891 = vunpack.c.l.b16 %v1279
    %v3892 = vunpack.c.h.b16 %v1279
    %v3893 = vunpack.c.l.b16 %v1280
    %v3894 = vunpack.c.h.b16 %v1280
    %v3895 = vunpack.c.l.b16 %v1281
    %v3896 = vunpack.c.h.b16 %v1281
    %v3897 = vunpack.c.l.b16 %v1282
    %v3898 = vunpack.c.h.b16 %v1282
    %v3899 = vunpack.c.l.b16 %v1283
    %v3900 = vunpack.c.h.b16 %v1283
    %v3901 = vunpack.c.l.b16 %v1284
    %v3902 = vunpack.c.h.b16 %v1284
    %v3903 = vunpack.c.l.b16 %v1285
    %v3904 = vunpack.c.h.b16 %v1285
    %v3905 = vunpack.c.l.b16 %v1286
    %v3906 = vunpack.c.h.b16 %v1286
    %v3907 = vunpack.c.l.b16 %v1287
    %v3908 = vunpack.c.h.b16 %v1287
    %v3909 = vunpack.c.l.b16 %v1288
    %v3910 = vunpack.c.h.b16 %v1288
    %v3911 = vunpack.c.l.b16 %v1289
    %v3912 = vunpack.c.h.b16 %v1289
    %v3913 = vunpack.c.l.b16 %v1290
    %v3914 = vunpack.c.h.b16 %v1290
    %v3915 = vunpack.c.l.b16 %v1291
    %v3916 = vunpack.c.h.b16 %v1291
    %v3917 = vunpack.c.l.b16 %v1292
    %v3918 = vunpack.c.h.b16 %v1292
    %v3919 = vunpack.c.l.b16 %v1293
    %v3920 = vunpack.c.h.b16 %v1293
    %v3921 = vunpack.c.l.b16 %v1294
    %v3922 = vunpack.c.h.b16 %v1294
    %v3923 = vunpack.c.l.b16 %v1295
    %v3924 = vunpack.c.h.b16 %v1295
    %v3925 = vunpack.c.l.b16 %v1296
    %v3926 = vunpack.c.h.b16 %v1296
    %v3927 = vunpack.c.l.b16 %v1297
    %v3928 = vunpack.c.h.b16 %v1297
    %v3929 = vunpack.c.l.b16 %v1298
    %v3930 = vunpack.c.h.b16 %v1298
    %v3931 = vunpack.c.l.b16 %v1299
    %v3932 = vunpack.c.h.b16 %v1299
    %v3933 = vunpack.c.l.b16 %v1300
    %v3934 = vunpack.c.h.b16 %v1300
    %v3935 = vunpack.c.l.b16 %v1301
    %v3936 = vunpack.c.h.b16 %v1301
    %v3937 = vunpack.c.l.b16 %v1302
    %v3938 = vunpack.c.h.b16 %v1302
    %v3939 = vunpack.c.l.b16 %v1303
    %v3940 = vunpack.c.h.b16 %v1303
    %v3941 = vunpack.c.l.b16 %v1304
    %v3942 = vunpack.c.h.b16 %v1304
    %v3943 = vunpack.c.l.b16 %v1305
    %v3944 = vunpack.c.h.b16 %v1305
    %v3945 = vunpack.c.l.b16 %v1306
    %v3946 = vunpack.c.h.b16 %v1306
    %v3947 = vunpack.c.l.b16 %v1307
    %v3948 = vunpack.c.h.b16 %v1307
    %v3949 = vunpack.c.l.b16 %v1308
    %v3950 = vunpack.c.h.b16 %v1308
    %v3951 = vunpack.c.l.b16 %v1309
    %v3952 = vunpack.c.h.b16 %v1309
    %v3953 = vunpack.c.l.b16 %v1310
    %v3954 = vunpack.c.h.b16 %v1310
    %v3955 = vunpack.c.l.b16 %v1311
    %v3956 = vunpack.c.h.b16 %v1311
    %v3957 = vunpack.c.l.b16 %v1312
    %v3958 = vunpack.c.h.b16 %v1312
    %v3959 = vunpack.c.l.b16 %v1313
    %v3960 = vunpack.c.h.b16 %v1313
    %v3961 = vunpack.c.l.b16 %v1314
    %v3962 = vunpack.c.h.b16 %v1314
    %v3963 = vunpack.c.l.b16 %v1315
    %v3964 = vunpack.c.h.b16 %v1315
    %v3965 = vunpack.c.l.b16 %v1316
    %v3966 = vunpack.c.h.b16 %v1316
    %v3967 = vunpack.c.l.b16 %v1317
    %v3968 = vunpack.c.h.b16 %v1317
    %v3969 = vunpack.c.l.b16 %v1318
    %v3970 = vunpack.c.h.b16 %v1318
    %v3971 = vunpack.c.l.b16 %v1319
    %v3972 = vunpack.c.h.b16 %v1319
    %v3973 = vunpack.c.l.b16 %v1320
    %v3974 = vunpack.c.h.b16 %v1320
    %v3975 = vunpack.c.l.b16 %v1321
    %v3976 = vunpack.c.h.b16 %v1321
    %v3977 = vunpack.c.l.b16 %v1322
    %v3978 = vunpack.c.h.b16 %v1322
    %v3979 = vunpack.c.l.b16 %v1323
    %v3980 = vunpack.c.h.b16 %v1323
    %v3981 = vunpack.c.l.b16 %v1324
    %v3982 = vunpack.c.h.b16 %v1324
    %v3983 = vunpack.c.l.b16 %v1325
    %v3984 = vunpack.c.h.b16 %v1325
    %v3985 = vunpack.c.l.b16 %v1326
    %v3986 = vunpack.c.h.b16 %v1326
    %v3987 = vunpack.c.l.b16 %v1327
    %v3988 = vunpack.c.h.b16 %v1327
    %v3989 = vunpack.c.l.b16 %v1328
    %v3990 = vunpack.c.h.b16 %v1328
    %v3991 = vunpack.c.l.b16 %v1329
    %v3992 = vunpack.c.h.b16 %v1329
    %v3993 = vunpack.c.l.b16 %v1330
    %v3994 = vunpack.c.h.b16 %v1330
    %v3995 = vunpack.c.l.b16 %v1331
    %v3996 = vunpack.c.h.b16 %v1331
    %v3997 = vunpack.c.l.b16 %v1332
    %v3998 = vunpack.c.h.b16 %v1332
    %v3999 = vunpack.c.l.b16 %v1333
    %v4000 = vunpack.c.h.b16 %v1333
    %v4001 = vunpack.c.l.b16 %v1334
    %v4002 = vunpack.c.h.b16 %v1334
    %v4003 = vunpack.c.l.b16 %v1335
    %v4004 = vunpack.c.h.b16 %v1335
    %v4005 = vunpack.c.l.b16 %v1336
    %v4006 = vunpack.c.h.b16 %v1336
    %v4007 = vunpack.c.l.b16 %v1337
    %v4008 = vunpack.c.h.b16 %v1337
    %v4009 = vunpack.c.l.b16 %v1338
    %v4010 = vunpack.c.h.b16 %v1338
    %v4011 = vunpack.c.l.b16 %v1339
    %v4012 = vunpack.c.h.b16 %v1339
    %v4013 = vunpack.c.l.b16 %v1340
    %v4014 = vunpack.c.h.b16 %v1340
    %v4015 = vunpack.c.l.b16 %v1341
    %v4016 = vunpack.c.h.b16 %v1341
    %v4017 = vunpack.c.l.b16 %v1342
    %v4018 = vunpack.c.h.b16 %v1342
    %v4019 = vunpack.c.l.b16 %v1343
    %v4020 = vunpack.c.h.b16 %v1343
    %v4021 = vunpack.c.l.b16 %v1344
    %v4022 = vunpack.c.h.b16 %v1344
    %v4023 = vunpack.c.l.b16 %v1345
    %v4024 = vunpack.c.h.b16 %v1345
    %v4025 = vunpack.c.l.b16 %v1346
    %v4026 = vunpack.c.h.b16 %v1346
    %v4027 = vunpack.c.l.b16 %v1347
    %v4028 = vunpack.c.h.b16 %v1347
    %v4029 = vunpack.c.l.b16 %v1348
    %v4030 = vunpack.c.h.b16 %v1348
    %v4031 = vunpack.c.l.b16 %v1349
    %v4032 = vunpack.c.h.b16 %v1349
    %v4033 = vunpack.c.l.b16 %v1350
    %v4034 = vunpack.c.h.b16 %v1350
    %v4035 = vunpack.c.l.b16 %v1351
    %v4036 = vunpack.c.h.b16 %v1351
    %v4037 = vunpack.c.l.b16 %v1352
    %v4038 = vunpack.c.h.b16 %v1352
    %v4039 = vunpack.c.l.b16 %v1353
    %v4040 = vunpack.c.h.b16 %v1353
    %v4041 = vunpack.c.l.b16 %v1354
    %v4042 = vunpack.c.h.b16 %v1354
    %v4043 = vunpack.c.l.b16 %v1355
    %v4044 = vunpack.c.h.b16 %v1355
    %v4045 = vunpack.c.l.b16 %v1356
    %v4046 = vunpack.c.h.b16 %v1356
    %v4047 = vunpack.c.l.b16 %v1357
    %v4048 = vunpack.c.h.b16 %v1357
    %v4049 = vunpack.c.l.b16 %v1358
    %v4050 = vunpack.c.h.b16 %v1358
    %v4051 = vunpack.c.l.b16 %v1359
    %v4052 = vunpack.c.h.b16 %v1359
    %v4053 = vunpack.c.l.b16 %v1360
    %v4054 = vunpack.c.h.b16 %v1360
    %v4055 = vunpack.c.l.b16 %v1361
    %v4056 = vunpack.c.h.b16 %v1361
    %v4057 = vunpack.c.l.b16 %v1362
    %v4058 = vunpack.c.h.b16 %v1362
    %v4059 = vunpack.c.l.b16 %v1363
    %v4060 = vunpack.c.h.b16 %v1363
    %v4061 = vunpack.c.l.b16 %v1364
    %v4062 = vunpack.c.h.b16 %v1364
    %v4063 = vunpack.c.l.b16 %v1365
    %v4064 = vunpack.c.h.b16 %v1365
    %v4065 = vunpack.c.l.b16 %v1366
    %v4066 = vunpack.c.h.b16 %v1366
    %v4067 = vunpack.c.l.b16 %v1367
    %v4068 = vunpack.c.h.b16 %v1367
    %v4069 = vunpack.c.l.b16 %v1368
    %v4070 = vunpack.c.h.b16 %v1368
    %v4071 = vunpack.c.l.b16 %v1369
    %v4072 = vunpack.c.h.b16 %v1369
    %v4073 = vunpack.c.l.b16 %v1370
    %v4074 = vunpack.c.h.b16 %v1370
    %v4075 = vunpack.c.l.b16 %v1371
    %v4076 = vunpack.c.h.b16 %v1371
    %v4077 = vunpack.c.l.b16 %v1372
    %v4078 = vunpack.c.h.b16 %v1372
    %v4079 = vunpack.c.l.b16 %v1373
    %v4080 = vunpack.c.h.b16 %v1373
    %v4081 = vunpack.c.l.b16 %v1374
    %v4082 = vunpack.c.h.b16 %v1374
    %v4083 = vunpack.c.l.b16 %v1375
    %v4084 = vunpack.c.h.b16 %v1375
    %v4085 = vunpack.c.l.b16 %v1376
    %v4086 = vunpack.c.h.b16 %v1376
    %v4087 = vunpack.c.l.b16 %v1377
    %v4088 = vunpack.c.h.b16 %v1377
    %v4089 = vunpack.c.l.b16 %v1378
    %v4090 = vunpack.c.h.b16 %v1378
    %v4091 = vunpack.c.l.b16 %v1379
    %v4092 = vunpack.c.h.b16 %v1379
    %v4093 = vunpack.c.l.b16 %v1380
    %v4094 = vunpack.c.h.b16 %v1380
    %v4095 = vunpack.c.l.b16 %v1381
    %v4096 = vunpack.c.h.b16 %v1381
    %v4097 = vunpack.c.l.b16 %v1382
    %v4098 = vunpack.c.h.b16 %v1382
    %v4099 = vunpack.c.l.b16 %v1383
    %v4100 = vunpack.c.h.b16 %v1383
    %v4101 = vunpack.c.l.b16 %v1384
    %v4102 = vunpack.c.h.b16 %v1384
    %v4103 = vunpack.c.l.b16 %v1385
    %v4104 = vunpack.c.h.b16 %v1385
    %v4105 = vunpack.c.l.b16 %v1386
    %v4106 = vunpack.c.h.b16 %v1386
    %v4107 = vunpack.c.l.b16 %v1387
    %v4108 = vunpack.c.h.b16 %v1387
    %v4109 = vunpack.c.l.b16 %v1388
    %v4110 = vunpack.c.h.b16 %v1388
    %v4111 = vunpack.c.l.b16 %v1389
    %v4112 = vunpack.c.h.b16 %v1389
    %v4113 = vunpack.c.l.b16 %v1390
    %v4114 = vunpack.c.h.b16 %v1390
    %v4115 = vunpack.c.l.b16 %v1391
    %v4116 = vunpack.c.h.b16 %v1391
    %v4117 = vunpack.c.l.b16 %v1392
    %v4118 = vunpack.c.h.b16 %v1392
    %v4119 = vunpack.c.l.b16 %v1393
    %v4120 = vunpack.c.h.b16 %v1393
    %v4121 = vunpack.c.l.b16 %v1394
    %v4122 = vunpack.c.h.b16 %v1394
    %v4123 = vunpack.c.l.b16 %v1395
    %v4124 = vunpack.c.h.b16 %v1395
    %v4125 = vunpack.c.l.b16 %v1396
    %v4126 = vunpack.c.h.b16 %v1396
    %v4127 = vunpack.c.l.b16 %v1397
    %v4128 = vunpack.c.h.b16 %v1397
    %v4129 = vunpack.c.l.b16 %v1398
    %v4130 = vunpack.c.h.b16 %v1398
    %v4131 = vunpack.c.l.b16 %v1399
    %v4132 = vunpack.c.h.b16 %v1399
    %v4133 = vunpack.c.l.b16 %v1400
    %v4134 = vunpack.c.h.b16 %v1400
    %v4135 = vunpack.c.l.b16 %v1401
    %v4136 = vunpack.c.h.b16 %v1401
    %v4137 = vunpack.c.l.b16 %v1402
    %v4138 = vunpack.c.h.b16 %v1402
    %v4139 = vunpack.c.l.b16 %v1403
    %v4140 = vunpack.c.h.b16 %v1403
    %v4141 = vunpack.c.l.b16 %v1404
    %v4142 = vunpack.c.h.b16 %v1404
    %v4143 = vunpack.c.l.b16 %v1405
    %v4144 = vunpack.c.h.b16 %v1405
    %v4145 = vunpack.c.l.b16 %v1406
    %v4146 = vunpack.c.h.b16 %v1406
    %v4147 = vunpack.c.l.b16 %v1407
    %v4148 = vunpack.c.h.b16 %v1407
    %v4149 = vunpack.c.l.b16 %v1408
    %v4150 = vunpack.c.h.b16 %v1408
    %v4151 = vunpack.c.l.b16 %v1409
    %v4152 = vunpack.c.h.b16 %v1409
    %v4153 = vunpack.c.l.b16 %v1410
    %v4154 = vunpack.c.h.b16 %v1410
    %v4155 = vunpack.c.l.b16 %v1411
    %v4156 = vunpack.c.h.b16 %v1411
    %v4157 = vunpack.c.l.b16 %v1412
    %v4158 = vunpack.c.h.b16 %v1412
    %v4159 = vunpack.c.l.b16 %v1413
    %v4160 = vunpack.c.h.b16 %v1413
    %v4161 = vunpack.c.l.b16 %v1414
    %v4162 = vunpack.c.h.b16 %v1414
    %v4163 = vunpack.c.l.b16 %v1415
    %v4164 = vunpack.c.h.b16 %v1415
    %v4165 = vunpack.c.l.b16 %v1416
    %v4166 = vunpack.c.h.b16 %v1416
    %v4167 = vunpack.c.l.b16 %v1417
    %v4168 = vunpack.c.h.b16 %v1417
    %v4169 = vunpack.c.l.b16 %v1418
    %v4170 = vunpack.c.h.b16 %v1418
    %v4171 = vunpack.c.l.b16 %v1419
    %v4172 = vunpack.c.h.b16 %v1419
    %v4173 = vunpack.c.l.b16 %v1420
    %v4174 = vunpack.c.h.b16 %v1420
    %v4175 = vunpack.c.l.b16 %v1421
    %v4176 = vunpack.c.h.b16 %v1421
    %v4177 = vunpack.c.l.b16 %v1422
    %v4178 = vunpack.c.h.b16 %v1422
    %v4179 = vunpack.c.l.b16 %v1423
    %v4180 = vunpack.c.h.b16 %v1423
    %v4181 = vunpack.c.l.b16 %v1424
    %v4182 = vunpack.c.h.b16 %v1424
    %v4183 = vunpack.c.l.b16 %v1425
    %v4184 = vunpack.c.h.b16 %v1425
    %v4185 = vunpack.c.l.b16 %v1426
    %v4186 = vunpack.c.h.b16 %v1426
    %v4187 = vunpack.c.l.b16 %v1427
    %v4188 = vunpack.c.h.b16 %v1427
    %v4189 = vunpack.c.l.b16 %v1428
    %v4190 = vunpack.c.h.b16 %v1428
    %v4191 = vunpack.c.l.b16 %v1429
    %v4192 = vunpack.c.h.b16 %v1429
    %v4193 = vunpack.c.l.b16 %v1430
    %v4194 = vunpack.c.h.b16 %v1430
    %v4195 = vunpack.c.l.b16 %v1431
    %v4196 = vunpack.c.h.b16 %v1431
    %v4197 = vunpack.c.l.b16 %v1432
    %v4198 = vunpack.c.h.b16 %v1432
    %v4199 = vunpack.c.l.b16 %v1433
    %v4200 = vunpack.c.h.b16 %v1433
    %v4201 = vunpack.c.l.b16 %v1434
    %v4202 = vunpack.c.h.b16 %v1434
    %v4203 = vunpack.c.l.b16 %v1435
    %v4204 = vunpack.c.h.b16 %v1435
    %v4205 = vunpack.c.l.b16 %v1436
    %v4206 = vunpack.c.h.b16 %v1436
    %v4207 = vunpack.c.l.b16 %v1437
    %v4208 = vunpack.c.h.b16 %v1437
    %v4209 = vunpack.c.l.b16 %v1438
    %v4210 = vunpack.c.h.b16 %v1438
    %v4211 = vunpack.c.l.b16 %v1439
    %v4212 = vunpack.c.h.b16 %v1439
    %v4213 = vunpack.c.l.b16 %v1440
    %v4214 = vunpack.c.h.b16 %v1440
    %v4215 = vunpack.c.l.b16 %v1441
    %v4216 = vunpack.c.h.b16 %v1441
    %v4217 = vunpack.c.l.b16 %v1442
    %v4218 = vunpack.c.h.b16 %v1442
    %v4219 = vunpack.c.l.b16 %v1443
    %v4220 = vunpack.c.h.b16 %v1443
    %v4221 = vunpack.c.l.b16 %v1444
    %v4222 = vunpack.c.h.b16 %v1444
    %v4223 = vunpack.c.l.b16 %v1445
    %v4224 = vunpack.c.h.b16 %v1445
    %v4225 = vunpack.c.l.b16 %v1446
    %v4226 = vunpack.c.h.b16 %v1446
    %v4227 = vunpack.c.l.b16 %v1447
    %v4228 = vunpack.c.h.b16 %v1447
    %v4229 = vunpack.c.l.b16 %v1448
    %v4230 = vunpack.c.h.b16 %v1448
    %v4231 = vunpack.c.l.b16 %v1449
    %v4232 = vunpack.c.h.b16 %v1449
    %v4233 = vunpack.c.l.b16 %v1450
    %v4234 = vunpack.c.h.b16 %v1450
    %v4235 = vunpack.c.l.b16 %v1451
    %v4236 = vunpack.c.h.b16 %v1451
    %v4237 = vunpack.c.l.b16 %v1452
    %v4238 = vunpack.c.h.b16 %v1452
    %v4239 = vunpack.c.l.b16 %v1453
    %v4240 = vunpack.c.h.b16 %v1453
    %v4241 = vunpack.c.l.b16 %v1454
    %v4242 = vunpack.c.h.b16 %v1454
    %v4243 = vunpack.c.l.b16 %v1455
    %v4244 = vunpack.c.h.b16 %v1455
    %v4245 = vunpack.c.l.b16 %v1456
    %v4246 = vunpack.c.h.b16 %v1456
    %v4247 = vunpack.c.l.b16 %v1457
    %v4248 = vunpack.c.h.b16 %v1457
    %v4249 = vunpack.c.l.b16 %v1458
    %v4250 = vunpack.c.h.b16 %v1458
    %v4251 = vunpack.c.l.b16 %v1459
    %v4252 = vunpack.c.h.b16 %v1459
    %v4253 = vunpack.c.l.b16 %v1460
    %v4254 = vunpack.c.h.b16 %v1460
    %v4255 = vunpack.c.l.b16 %v1461
    %v4256 = vunpack.c.h.b16 %v1461
    %v4257 = vunpack.c.l.b16 %v1462
    %v4258 = vunpack.c.h.b16 %v1462
    %v4259 = vunpack.c.l.b16 %v1463
    %v4260 = vunpack.c.h.b16 %v1463
    %v4261 = vunpack.c.l.b16 %v1464
    %v4262 = vunpack.c.h.b16 %v1464
    %v4263 = vunpack.c.l.b16 %v1465
    %v4264 = vunpack.c.h.b16 %v1465
    %v4265 = vunpack.c.l.b16 %v1466
    %v4266 = vunpack.c.h.b16 %v1466
    %v4267 = vunpack.c.l.b16 %v1467
    %v4268 = vunpack.c.h.b16 %v1467
    %v4269 = vunpack.c.l.b16 %v1468
    %v4270 = vunpack.c.h.b16 %v1468
    %v4271 = vunpack.c.l.b16 %v1469
    %v4272 = vunpack.c.h.b16 %v1469
    %v4273 = vunpack.c.l.b16 %v1470
    %v4274 = vunpack.c.h.b16 %v1470
    %v4275 = vunpack.c.l.b16 %v1471
    %v4276 = vunpack.c.h.b16 %v1471
    %v4277 = vunpack.c.l.b16 %v1472
    %v4278 = vunpack.c.h.b16 %v1472
    %v4279 = vunpack.c.l.b16 %v1473
    %v4280 = vunpack.c.h.b16 %v1473
    %v4281 = vunpack.c.l.b16 %v1474
    %v4282 = vunpack.c.h.b16 %v1474
    %v4283 = vunpack.c.l.b16 %v1475
    %v4284 = vunpack.c.h.b16 %v1475
    %v4285 = vunpack.c.l.b16 %v1476
    %v4286 = vunpack.c.h.b16 %v1476
    %v4287 = vunpack.c.l.b16 %v1477
    %v4288 = vunpack.c.h.b16 %v1477
    %v4289 = vunpack.c.l.b16 %v1478
    %v4290 = vunpack.c.h.b16 %v1478
    %v4291 = vunpack.c.l.b16 %v1479
    %v4292 = vunpack.c.h.b16 %v1479
    %v4293 = vunpack.c.l.b16 %v1480
    %v4294 = vunpack.c.h.b16 %v1480
    %v4295 = vunpack.c.l.b16 %v1481
    %v4296 = vunpack.c.h.b16 %v1481
    %v4297 = vunpack.c.l.b16 %v1482
    %v4298 = vunpack.c.h.b16 %v1482
    %v4299 = vunpack.c.l.b16 %v1483
    %v4300 = vunpack.c.h.b16 %v1483
    %v4301 = vunpack.c.l.b16 %v1484
    %v4302 = vunpack.c.h.b16 %v1484
    %v4303 = vunpack.c.l.b16 %v1485
    %v4304 = vunpack.c.h.b16 %v1485
    %v4305 = vunpack.c.l.b16 %v1486
    %v4306 = vunpack.c.h.b16 %v1486
    %v4307 = vunpack.c.l.b16 %v1487
    %v4308 = vunpack.c.h.b16 %v1487
    %v4309 = vunpack.c.l.b16 %v1488
    %v4310 = vunpack.c.h.b16 %v1488
    %v4311 = vunpack.c.l.b16 %v1489
    %v4312 = vunpack.c.h.b16 %v1489
    %v4313 = vunpack.c.l.b16 %v1490
    %v4314 = vunpack.c.h.b16 %v1490
    %v4315 = vunpack.c.l.b16 %v1491
    %v4316 = vunpack.c.h.b16 %v1491
    %v4317 = vunpack.c.l.b16 %v1492
    %v4318 = vunpack.c.h.b16 %v1492
    %v4319 = vunpack.c.l.b16 %v1493
    %v4320 = vunpack.c.h.b16 %v1493
    %v4321 = vunpack.c.l.b16 %v1494
    %v4322 = vunpack.c.h.b16 %v1494
    %v4323 = vunpack.c.l.b16 %v1495
    %v4324 = vunpack.c.h.b16 %v1495
    %v4325 = vunpack.c.l.b16 %v1496
    %v4326 = vunpack.c.h.b16 %v1496
    %v4327 = vunpack.c.l.b16 %v1497
    %v4328 = vunpack.c.h.b16 %v1497
    %v4329 = vunpack.c.l.b16 %v1498
    %v4330 = vunpack.c.h.b16 %v1498
    %v4331 = vunpack.c.l.b16 %v1499
    %v4332 = vunpack.c.h.b16 %v1499
    %v4333 = vunpack.c.l.b16 %v1500
    %v4334 = vunpack.c.h.b16 %v1500
    %v4335 = vunpack.c.l.b16 %v1501
    %v4336 = vunpack.c.h.b16 %v1501
    %v4337 = vunpack.c.l.b16 %v1502
    %v4338 = vunpack.c.h.b16 %v1502
    %v4339 = vunpack.c.l.b16 %v1503
    %v4340 = vunpack.c.h.b16 %v1503
    %v4341 = vunpack.c.l.b16 %v1504
    %v4342 = vunpack.c.h.b16 %v1504
    %v4343 = vunpack.c.l.b16 %v1505
    %v4344 = vunpack.c.h.b16 %v1505
    %v4345 = vunpack.c.l.b16 %v1506
    %v4346 = vunpack.c.h.b16 %v1506
    %v4347 = vunpack.c.l.b16 %v1507
    %v4348 = vunpack.c.h.b16 %v1507
    %v4349 = vunpack.c.l.b16 %v1508
    %v4350 = vunpack.c.h.b16 %v1508
    %v4351 = vunpack.c.l.b16 %v1509
    %v4352 = vunpack.c.h.b16 %v1509
    %v4353 = vunpack.c.l.b16 %v1510
    %v4354 = vunpack.c.h.b16 %v1510
    %v4355 = vunpack.c.l.b16 %v1511
    %v4356 = vunpack.c.h.b16 %v1511
    %v4357 = vunpack.c.l.b16 %v1512
    %v4358 = vunpack.c.h.b16 %v1512
    %v4359 = vunpack.c.l.b16 %v1513
    %v4360 = vunpack.c.h.b16 %v1513
    %v4361 = vunpack.c.l.b16 %v1514
    %v4362 = vunpack.c.h.b16 %v1514
    %v4363 = vunpack.c.l.b16 %v1515
    %v4364 = vunpack.c.h.b16 %v1515
    %v4365 = vunpack.c.l.b16 %v1516
    %v4366 = vunpack.c.h.b16 %v1516
    %v4367 = vunpack.c.l.b16 %v1517
    %v4368 = vunpack.c.h.b16 %v1517
    %v4369 = vunpack.c.l.b16 %v1518
    %v4370 = vunpack.c.h.b16 %v1518
    %v4371 = vunpack.c.l.b16 %v1519
    %v4372 = vunpack.c.h.b16 %v1519
    %v4373 = vunpack.c.l.b16 %v1520
    %v4374 = vunpack.c.h.b16 %v1520
    %v4375 = vunpack.c.l.b16 %v1521
    %v4376 = vunpack.c.h.b16 %v1521
    %v4377 = vunpack.c.l.b16 %v1522
    %v4378 = vunpack.c.h.b16 %v1522
    %v4379 = vunpack.c.l.b16 %v1523
    %v4380 = vunpack.c.h.b16 %v1523
    %v4381 = vunpack.c.l.b16 %v1524
    %v4382 = vunpack.c.h.b16 %v1524
    %v4383 = vunpack.c.l.b16 %v1525
    %v4384 = vunpack.c.h.b16 %v1525
    %v4385 = vunpack.c.l.b16 %v1526
    %v4386 = vunpack.c.h.b16 %v1526
    %v4387 = vunpack.c.l.b16 %v1527
    %v4388 = vunpack.c.h.b16 %v1527
    %v4389 = vunpack.c.l.b16 %v1528
    %v4390 = vunpack.c.h.b16 %v1528
    %v4391 = vunpack.c.l.b16 %v1529
    %v4392 = vunpack.c.h.b16 %v1529
    %v4393 = vunpack.c.l.b16 %v1530
    %v4394 = vunpack.c.h.b16 %v1530
    %v4395 = vunpack.c.l.b16 %v1531
    %v4396 = vunpack.c.h.b16 %v1531
    %v4397 = vunpack.c.l.b16 %v1532
    %v4398 = vunpack.c.h.b16 %v1532
    %v4399 = vunpack.c.l.b16 %v1533
    %v4400 = vunpack.c.h.b16 %v1533
    %v4401 = vunpack.c.l.b16 %v1534
    %v4402 = vunpack.c.h.b16 %v1534
    %v4403 = vunpack.c.l.b16 %v1535
    %v4404 = vunpack.c.h.b16 %v1535
    %v4405 = vunpack.c.l.b16 %v1536
    %v4406 = vunpack.c.h.b16 %v1536
    %v4407 = vunpack.c.l.b16 %v1537
    %v4408 = vunpack.c.h.b16 %v1537
    %v4409 = vunpack.c.l.b16 %v1538
    %v4410 = vunpack.c.h.b16 %v1538
    %v4411 = vunpack.c.l.b16 %v1539
    %v4412 = vunpack.c.h.b16 %v1539
    %v4413 = vunpack.c.l.b16 %v1540
    %v4414 = vunpack.c.h.b16 %v1540
    %v4415 = vunpack.c.l.b16 %v1541
    %v4416 = vunpack.c.h.b16 %v1541
    %v4417 = vunpack.c.l.b16 %v1542
    %v4418 = vunpack.c.h.b16 %v1542
    %v4419 = vunpack.c.l.b16 %v1543
    %v4420 = vunpack.c.h.b16 %v1543
    %v4421 = vunpack.c.l.b16 %v1544
    %v4422 = vunpack.c.h.b16 %v1544
    %v4423 = vunpack.c.l.b16 %v1545
    %v4424 = vunpack.c.h.b16 %v1545
    %v4425 = vunpack.c.l.b16 %v1546
    %v4426 = vunpack.c.h.b16 %v1546
    %v4427 = vunpack.c.l.b16 %v1547
    %v4428 = vunpack.c.h.b16 %v1547
    %v4429 = vunpack.c.l.b16 %v1548
    %v4430 = vunpack.c.h.b16 %v1548
    %v4431 = vunpack.c.l.b16 %v1549
    %v4432 = vunpack.c.h.b16 %v1549
    %v4433 = vunpack.c.l.b16 %v1550
    %v4434 = vunpack.c.h.b16 %v1550
    %v4435 = vunpack.c.l.b16 %v1551
    %v4436 = vunpack.c.h.b16 %v1551
    %v4437 = vunpack.c.l.b16 %v1552
    %v4438 = vunpack.c.h.b16 %v1552
    %v4439 = vunpack.c.l.b16 %v1553
    %v4440 = vunpack.c.h.b16 %v1553
    %v4441 = vunpack.c.l.b16 %v1554
    %v4442 = vunpack.c.h.b16 %v1554
    %v4443 = vunpack.c.l.b16 %v1555
    %v4444 = vunpack.c.h.b16 %v1555
    %v4445 = vunpack.c.l.b16 %v1556
    %v4446 = vunpack.c.h.b16 %v1556
    %v4447 = vunpack.c.l.b16 %v1557
    %v4448 = vunpack.c.h.b16 %v1557
    %v4449 = vunpack.c.l.b16 %v1558
    %v4450 = vunpack.c.h.b16 %v1558
    %v4451 = vunpack.c.l.b16 %v1559
    %v4452 = vunpack.c.h.b16 %v1559
    %v4453 = vunpack.c.l.b16 %v1560
    %v4454 = vunpack.c.h.b16 %v1560
    %v4455 = vunpack.c.l.b16 %v1561
    %v4456 = vunpack.c.h.b16 %v1561
    %v4457 = vunpack.c.l.b16 %v1562
    %v4458 = vunpack.c.h.b16 %v1562
    %v4459 = vunpack.c.l.b16 %v1563
    %v4460 = vunpack.c.h.b16 %v1563
    %v4461 = vunpack.c.l.b16 %v1564
    %v4462 = vunpack.c.h.b16 %v1564
    %v4463 = vunpack.c.l.b16 %v1565
    %v4464 = vunpack.c.h.b16 %v1565
    %v4465 = vunpack.c.l.b16 %v1566
    %v4466 = vunpack.c.h.b16 %v1566
    %v4467 = vunpack.c.l.b16 %v1567
    %v4468 = vunpack.c.h.b16 %v1567
    %v4469 = vunpack.c.l.b16 %v1568
    %v4470 = vunpack.c.h.b16 %v1568
    %v4471 = vunpack.c.l.b16 %v1569
    %v4472 = vunpack.c.h.b16 %v1569
    %v4473 = vunpack.c.l.b16 %v1570
    %v4474 = vunpack.c.h.b16 %v1570
    %v4475 = vunpack.c.l.b16 %v1571
    %v4476 = vunpack.c.h.b16 %v1571
    %v4477 = vunpack.c.l.b16 %v1572
    %v4478 = vunpack.c.h.b16 %v1572
    %v4479 = vunpack.c.l.b16 %v1573
    %v4480 = vunpack.c.h.b16 %v1573
    %v4481 = vunpack.c.l.b16 %v1574
    %v4482 = vunpack.c.h.b16 %v1574
    %v4483 = vunpack.c.l.b16 %v1575
    %v4484 = vunpack.c.h.b16 %v1575
    %v4485 = vunpack.c.l.b16 %v1576
    %v4486 = vunpack.c.h.b16 %v1576
    %v4487 = vunpack.c.l.b16 %v1577
    %v4488 = vunpack.c.h.b16 %v1577
    %v4489 = vunpack.c.l.b16 %v1578
    %v4490 = vunpack.c.h.b16 %v1578
    %v4491 = vunpack.c.l.b16 %v1579
    %v4492 = vunpack.c.h.b16 %v1579
    %v4493 = vunpack.c.l.b16 %v1580
    %v4494 = vunpack.c.h.b16 %v1580
    %v4495 = vunpack.c.l.b16 %v1581
    %v4496 = vunpack.c.h.b16 %v1581
    %v4497 = vunpack.c.l.b16 %v1582
    %v4498 = vunpack.c.h.b16 %v1582
    %v4499 = vunpack.c.l.b16 %v1583
    %v4500 = vunpack.c.h.b16 %v1583
    %v4501 = vunpack.c.l.b16 %v1584
    %v4502 = vunpack.c.h.b16 %v1584
    %v4503 = vunpack.c.l.b16 %v1585
    %v4504 = vunpack.c.h.b16 %v1585
    %v4505 = vunpack.c.l.b16 %v1586
    %v4506 = vunpack.c.h.b16 %v1586
    %v4507 = vunpack.c.l.b16 %v1587
    %v4508 = vunpack.c.h.b16 %v1587
    %v4509 = vunpack.c.l.b16 %v1588
    %v4510 = vunpack.c.h.b16 %v1588
    %v4511 = vunpack.c.l.b16 %v1589
    %v4512 = vunpack.c.h.b16 %v1589
    %v4513 = vunpack.c.l.b16 %v1590
    %v4514 = vunpack.c.h.b16 %v1590
    %v4515 = vunpack.c.l.b16 %v1591
    %v4516 = vunpack.c.h.b16 %v1591
    %v4517 = vunpack.c.l.b16 %v1592
    %v4518 = vunpack.c.h.b16 %v1592
    %v4519 = vunpack.c.l.b16 %v1593
    %v4520 = vunpack.c.h.b16 %v1593
    %v4521 = vunpack.c.l.b16 %v1594
    %v4522 = vunpack.c.h.b16 %v1594
    %v4523 = vunpack.c.l.b16 %v1595
    %v4524 = vunpack.c.h.b16 %v1595
    %v4525 = vunpack.c.l.b16 %v1596
    %v4526 = vunpack.c.h.b16 %v1596
    %v4527 = vunpack.c.l.b16 %v1597
    %v4528 = vunpack.c.h.b16 %v1597
    %v4529 = vunpack.c.l.b16 %v1598
    %v4530 = vunpack.c.h.b16 %v1598
    %v4531 = vunpack.c.l.b16 %v1599
    %v4532 = vunpack.c.h.b16 %v1599
    %v4533 = vunpack.c.l.b16 %v1600
    %v4534 = vunpack.c.h.b16 %v1600
    %v4535 = vunpack.c.l.b16 %v1601
    %v4536 = vunpack.c.h.b16 %v1601
    %v4537 = vunpack.c.l.b16 %v1602
    %v4538 = vunpack.c.h.b16 %v1602
    %v4539 = vunpack.c.l.b16 %v1603
    %v4540 = vunpack.c.h.b16 %v1603
    %v4541 = vunpack.c.l.b16 %v1604
    %v4542 = vunpack.c.h.b16 %v1604
    %v4543 = vunpack.c.l.b16 %v1605
    %v4544 = vunpack.c.h.b16 %v1605
    %v4545 = vunpack.c.l.b16 %v1606
    %v4546 = vunpack.c.h.b16 %v1606
    %v4547 = vunpack.c.l.b16 %v1607
    %v4548 = vunpack.c.h.b16 %v1607
    %v4549 = vunpack.c.l.b16 %v1608
    %v4550 = vunpack.c.h.b16 %v1608
    %v4551 = vunpack.c.l.b16 %v1609
    %v4552 = vunpack.c.h.b16 %v1609
    %v4553 = vunpack.c.l.b16 %v1610
    %v4554 = vunpack.c.h.b16 %v1610
    %v4555 = vunpack.c.l.b16 %v1611
    %v4556 = vunpack.c.h.b16 %v1611
    %v4557 = vunpack.c.l.b16 %v1612
    %v4558 = vunpack.c.h.b16 %v1612
    %v4559 = vunpack.c.l.b16 %v1613
    %v4560 = vunpack.c.h.b16 %v1613
    %v4561 = vunpack.c.l.b16 %v1614
    %v4562 = vunpack.c.h.b16 %v1614
    %v4563 = vunpack.c.l.b16 %v1615
    %v4564 = vunpack.c.h.b16 %v1615
    %v4565 = vunpack.c.l.b16 %v1616
    %v4566 = vunpack.c.h.b16 %v1616
    %v4567 = vunpack.c.l.b16 %v1617
    %v4568 = vunpack.c.h.b16 %v1617
    %v4569 = vunpack.c.l.b16 %v1618
    %v4570 = vunpack.c.h.b16 %v1618
    %v4571 = vunpack.c.l.b16 %v1619
    %v4572 = vunpack.c.h.b16 %v1619
    %v4573 = vunpack.c.l.b16 %v1620
    %v4574 = vunpack.c.h.b16 %v1620
    %v4575 = vunpack.c.l.b16 %v1621
    %v4576 = vunpack.c.h.b16 %v1621
    %v4577 = vunpack.c.l.b16 %v1622
    %v4578 = vunpack.c.h.b16 %v1622
    %v4579 = vunpack.c.l.b16 %v1623
    %v4580 = vunpack.c.h.b16 %v1623
    %v4581 = vunpack.c.l.b16 %v1624
    %v4582 = vunpack.c.h.b16 %v1624
    %v4583 = vunpack.c.l.b16 %v1625
    %v4584 = vunpack.c.h.b16 %v1625
    %v4585 = vunpack.c.l.b16 %v1626
    %v4586 = vunpack.c.h.b16 %v1626
    %v4587 = vunpack.c.l.b16 %v1627
    %v4588 = vunpack.c.h.b16 %v1627
    %v4589 = vunpack.c.l.b16 %v1628
    %v4590 = vunpack.c.h.b16 %v1628
    %v4591 = vunpack.c.l.b16 %v1629
    %v4592 = vunpack.c.h.b16 %v1629
    %v4593 = vunpack.c.l.b16 %v1630
    %v4594 = vunpack.c.h.b16 %v1630
    %v4595 = vunpack.c.l.b16 %v1631
    %v4596 = vunpack.c.h.b16 %v1631
    %v4597 = vunpack.c.l.b16 %v1632
    %v4598 = vunpack.c.h.b16 %v1632
    %v4599 = vunpack.c.l.b16 %v1633
    %v4600 = vunpack.c.h.b16 %v1633
    %v4601 = vunpack.c.l.b16 %v1634
    %v4602 = vunpack.c.h.b16 %v1634
    %v4603 = vunpack.c.l.b16 %v1635
    %v4604 = vunpack.c.h.b16 %v1635
    %v4605 = vunpack.c.l.b16 %v1636
    %v4606 = vunpack.c.h.b16 %v1636
    %v4607 = vunpack.c.l.b16 %v1637
    %v4608 = vunpack.c.h.b16 %v1637
    %v4609 = vunpack.c.l.b16 %v1638
    %v4610 = vunpack.c.h.b16 %v1638
    %v4611 = vunpack.c.l.b16 %v1639
    %v4612 = vunpack.c.h.b16 %v1639
    %v4613 = vunpack.c.l.b16 %v1640
    %v4614 = vunpack.c.h.b16 %v1640
    %v4615 = vunpack.c.l.b16 %v1641
    %v4616 = vunpack.c.h.b16 %v1641
    %v4617 = vunpack.c.l.b16 %v1642
    %v4618 = vunpack.c.h.b16 %v1642
    %v4619 = vunpack.c.l.b16 %v1643
    %v4620 = vunpack.c.h.b16 %v1643
    %v4621 = vunpack.c.l.b16 %v1644
    %v4622 = vunpack.c.h.b16 %v1644
    %v4623 = vunpack.c.l.b16 %v1645
    %v4624 = vunpack.c.h.b16 %v1645
    %v4625 = vunpack.c.l.b16 %v1646
    %v4626 = vunpack.c.h.b16 %v1646
    %v4627 = vunpack.c.l.b16 %v1647
    %v4628 = vunpack.c.h.b16 %v1647
    %v4629 = vunpack.c.l.b16 %v1648
    %v4630 = vunpack.c.h.b16 %v1648
    %v4631 = vunpack.c.l.b16 %v1649
    %v4632 = vunpack.c.h.b16 %v1649
    %v4633 = vunpack.c.l.b16 %v1650
    %v4634 = vunpack.c.h.b16 %v1650
    %v4635 = vunpack.c.l.b16 %v1651
    %v4636 = vunpack.c.h.b16 %v1651
    %v4637 = vunpack.c.l.b16 %v1652
    %v4638 = vunpack.c.h.b16 %v1652
    %v4639 = vunpack.c.l.b16 %v1653
    %v4640 = vunpack.c.h.b16 %v1653
    %v4641 = vunpack.c.l.b16 %v1654
    %v4642 = vunpack.c.h.b16 %v1654
    %v4643 = vunpack.c.l.b16 %v1655
    %v4644 = vunpack.c.h.b16 %v1655
    %v4645 = vunpack.c.l.b16 %v1656
    %v4646 = vunpack.c.h.b16 %v1656
    %v4647 = vunpack.c.l.b16 %v1657
    %v4648 = vunpack.c.h.b16 %v1657
    %v4649 = vunpack.c.l.b16 %v1658
    %v4650 = vunpack.c.h.b16 %v1658
    %v4651 = vunpack.c.l.b16 %v1659
    %v4652 = vunpack.c.h.b16 %v1659
    %v4653 = vunpack.c.l.b16 %v1660
    %v4654 = vunpack.c.h.b16 %v1660
    %v4655 = vunpack.c.l.b16 %v1661
    %v4656 = vunpack.c.h.b16 %v1661
    %v4657 = vunpack.c.l.b16 %v1662
    %v4658 = vunpack.c.h.b16 %v1662
    %v4659 = vunpack.c.l.b16 %v1663
    %v4660 = vunpack.c.h.b16 %v1663
    %v4661 = vunpack.c.l.b16 %v1664
    %v4662 = vunpack.c.h.b16 %v1664
    %v4663 = vunpack.c.l.b16 %v1665
    %v4664 = vunpack.c.h.b16 %v1665
    %v4665 = vunpack.c.l.b16 %v1666
    %v4666 = vunpack.c.h.b16 %v1666
    %v4667 = vunpack.c.l.b16 %v1667
    %v4668 = vunpack.c.h.b16 %v1667
    %v4669 = vunpack.c.l.b16 %v1668
    %v4670 = vunpack.c.h.b16 %v1668
    %v4671 = vunpack.c.l.b16 %v1669
    %v4672 = vunpack.c.h.b16 %v1669
    %v4673 = vunpack.c.l.b16 %v1670
    %v4674 = vunpack.c.h.b16 %v1670
    %v4675 = vunpack.c.l.b16 %v1671
    %v4676 = vunpack.c.h.b16 %v1671
    %v4677 = vunpack.c.l.b16 %v1672
    %v4678 = vunpack.c.h.b16 %v1672
    %v4679 = vunpack.c.l.b16 %v1673
    %v4680 = vunpack.c.h.b16 %v1673
    %v4681 = vunpack.c.l.b16 %v1674
    %v4682 = vunpack.c.h.b16 %v1674
    %v4683 = vunpack.c.l.b16 %v1675
    %v4684 = vunpack.c.h.b16 %v1675
    %v4685 = vunpack.c.l.b16 %v1676
    %v4686 = vunpack.c.h.b16 %v1676
    %v4687 = vunpack.c.l.b16 %v1677
    %v4688 = vunpack.c.h.b16 %v1677
    %v4689 = vunpack.c.l.b16 %v1678
    %v4690 = vunpack.c.h.b16 %v1678
    %v4691 = vunpack.c.l.b16 %v1679
    %v4692 = vunpack.c.h.b16 %v1679
    %v4693 = vunpack.c.l.b16 %v1680
    %v4694 = vunpack.c.h.b16 %v1680
    %v4695 = vunpack.c.l.b16 %v1681
    %v4696 = vunpack.c.h.b16 %v1681
    %v4697 = vunpack.c.l.b16 %v1682
    %v4698 = vunpack.c.h.b16 %v1682
    %v4699 = vunpack.c.l.b16 %v1683
    %v4700 = vunpack.c.h.b16 %v1683
    %v4701 = vunpack.c.l.b16 %v1684
    %v4702 = vunpack.c.h.b16 %v1684
    %v4703 = vunpack.c.l.b16 %v1685
    %v4704 = vunpack.c.h.b16 %v1685
    %v4705 = vunpack.c.l.b16 %v1686
    %v4706 = vunpack.c.h.b16 %v1686
    %v4707 = vunpack.c.l.b16 %v1687
    %v4708 = vunpack.c.h.b16 %v1687
    %v4709 = vunpack.c.l.b16 %v1688
    %v4710 = vunpack.c.h.b16 %v1688
    %v4711 = vunpack.c.l.b16 %v1689
    %v4712 = vunpack.c.h.b16 %v1689
    %v4713 = vunpack.c.l.b16 %v1690
    %v4714 = vunpack.c.h.b16 %v1690
    %v4715 = vunpack.c.l.b16 %v1691
    %v4716 = vunpack.c.h.b16 %v1691
    %v4717 = vunpack.c.l.b16 %v1692
    %v4718 = vunpack.c.h.b16 %v1692
    %v4719 = vunpack.c.l.b16 %v1693
    %v4720 = vunpack.c.h.b16 %v1693
    %v4721 = vunpack.c.l.b16 %v1694
    %v4722 = vunpack.c.h.b16 %v1694
    %v4723 = vunpack.c.l.b16 %v1695
    %v4724 = vunpack.c.h.b16 %v1695
    %v4725 = vunpack.c.l.b16 %v1696
    %v4726 = vunpack.c.h.b16 %v1696
    %v4727 = vunpack.c.l.b16 %v1697
    %v4728 = vunpack.c.h.b16 %v1697
    %v4729 = vunpack.c.l.b16 %v1698
    %v4730 = vunpack.c.h.b16 %v1698
    %v4731 = vunpack.c.l.b16 %v1699
    %v4732 = vunpack.c.h.b16 %v1699
    %v4733 = vunpack.c.l.b16 %v1700
    %v4734 = vunpack.c.h.b16 %v1700
    %v4735 = vunpack.c.l.b16 %v1701
    %v4736 = vunpack.c.h.b16 %v1701
    %v4737 = vunpack.c.l.b16 %v1702
    %v4738 = vunpack.c.h.b16 %v1702
    %v4739 = vunpack.c.l.b16 %v1703
    %v4740 = vunpack.c.h.b16 %v1703
    %v4741 = vunpack.c.l.b16 %v1704
    %v4742 = vunpack.c.h.b16 %v1704
    %v4743 = vunpack.c.l.b16 %v1705
    %v4744 = vunpack.c.h.b16 %v1705
    %v4745 = vunpack.c.l.b16 %v1706
    %v4746 = vunpack.c.h.b16 %v1706
    %v4747 = vunpack.c.l.b16 %v1707
    %v4748 = vunpack.c.h.b16 %v1707
    %v4749 = vunpack.c.l.b16 %v1708
    %v4750 = vunpack.c.h.b16 %v1708
    %v4751 = vunpack.c.l.b16 %v1709
    %v4752 = vunpack.c.h.b16 %v1709
    %v4753 = vunpack.c.l.b16 %v1710
    %v4754 = vunpack.c.h.b16 %v1710
    %v4755 = vunpack.c.l.b16 %v1711
    %v4756 = vunpack.c.h.b16 %v1711
    %v4757 = vunpack.c.l.b16 %v1712
    %v4758 = vunpack.c.h.b16 %v1712
    %v4759 = vunpack.c.l.b16 %v1713
    %v4760 = vunpack.c.h.b16 %v1713
    %v4761 = vunpack.c.l.b16 %v1714
    %v4762 = vunpack.c.h.b16 %v1714
    %v4763 = vunpack.c.l.b16 %v1715
    %v4764 = vunpack.c.h.b16 %v1715
    %v4765 = vunpack.c.l.b16 %v1716
    %v4766 = vunpack.c.h.b16 %v1716
    %v4767 = vunpack.c.l.b16 %v1717
    %v4768 = vunpack.c.h.b16 %v1717
    %v4769 = vunpack.c.l.b16 %v1718
    %v4770 = vunpack.c.h.b16 %v1718
    %v4771 = vunpack.c.l.b16 %v1719
    %v4772 = vunpack.c.h.b16 %v1719
    %v4773 = vunpack.c.l.b16 %v1720
    %v4774 = vunpack.c.h.b16 %v1720
    %v4775 = vunpack.c.l.b16 %v1721
    %v4776 = vunpack.c.h.b16 %v1721
    %v4777 = vunpack.c.l.b16 %v1722
    %v4778 = vunpack.c.h.b16 %v1722
    %v4779 = vunpack.c.l.b16 %v1723
    %v4780 = vunpack.c.h.b16 %v1723
    %v4781 = vunpack.c.l.b16 %v1724
    %v4782 = vunpack.c.h.b16 %v1724
    %v4783 = vunpack.c.l.b16 %v1725
    %v4784 = vunpack.c.h.b16 %v1725
    %v4785 = vunpack.c.l.b16 %v1726
    %v4786 = vunpack.c.h.b16 %v1726
    %v4787 = vunpack.c.l.b16 %v1727
    %v4788 = vunpack.c.h.b16 %v1727
    %v4789 = vunpack.c.l.b16 %v1728
    %v4790 = vunpack.c.h.b16 %v1728
    %v4791 = vunpack.c.l.b16 %v1729
    %v4792 = vunpack.c.h.b16 %v1729
    %v4793 = vunpack.c.l.b16 %v1730
    %v4794 = vunpack.c.h.b16 %v1730
    %v4795 = vunpack.c.l.b16 %v1731
    %v4796 = vunpack.c.h.b16 %v1731
    %v4797 = vunpack.c.l.b16 %v1732
    %v4798 = vunpack.c.h.b16 %v1732
    %v4799 = vunpack.c.l.b16 %v1733
    %v4800 = vunpack.c.h.b16 %v1733
    %v4801 = vunpack.c.l.b16 %v1734
    %v4802 = vunpack.c.h.b16 %v1734
    %v4803 = vunpack.c.l.b16 %v1735
    %v4804 = vunpack.c.h.b16 %v1735
    %v4805 = vunpack.c.l.b16 %v1736
    %v4806 = vunpack.c.h.b16 %v1736
    %v4807 = vunpack.c.l.b16 %v1737
    %v4808 = vunpack.c.h.b16 %v1737
    %v4809 = vunpack.c.l.b16 %v1738
    %v4810 = vunpack.c.h.b16 %v1738
    %v4811 = vunpack.c.l.b16 %v1739
    %v4812 = vunpack.c.h.b16 %v1739
    %v4813 = vunpack.c.l.b16 %v1740
    %v4814 = vunpack.c.h.b16 %v1740
    %v4815 = vunpack.c.l.b16 %v1741
    %v4816 = vunpack.c.h.b16 %v1741
    %v4817 = vunpack.c.l.b16 %v1742
    %v4818 = vunpack.c.h.b16 %v1742
    %v4819 = vunpack.c.l.b16 %v1743
    %v4820 = vunpack.c.h.b16 %v1743
    %v4821 = vunpack.c.l.b16 %v1744
    %v4822 = vunpack.c.h.b16 %v1744
    %v4823 = vunpack.c.l.b16 %v1745
    %v4824 = vunpack.c.h.b16 %v1745
    %v4825 = vunpack.c.l.b16 %v1746
    %v4826 = vunpack.c.h.b16 %v1746
    %v4827 = vunpack.c.l.b16 %v1747
    %v4828 = vunpack.c.h.b16 %v1747
    %v4829 = vunpack.c.l.b16 %v1748
    %v4830 = vunpack.c.h.b16 %v1748
    %v4831 = vunpack.c.l.b16 %v1749
    %v4832 = vunpack.c.h.b16 %v1749
    %v4833 = vunpack.c.l.b16 %v1750
    %v4834 = vunpack.c.h.b16 %v1750
    %v4835 = vunpack.c.l.b16 %v1751
    %v4836 = vunpack.c.h.b16 %v1751
    %v4837 = vunpack.c.l.b16 %v1752
    %v4838 = vunpack.c.h.b16 %v1752
    %v4839 = vunpack.c.l.b16 %v1753
    %v4840 = vunpack.c.h.b16 %v1753
    %v4841 = vunpack.c.l.b16 %v1754
    %v4842 = vunpack.c.h.b16 %v1754
    %v4843 = vunpack.c.l.b16 %v1755
    %v4844 = vunpack.c.h.b16 %v1755
    %v4845 = vunpack.c.l.b16 %v1756
    %v4846 = vunpack.c.h.b16 %v1756
    %v4847 = vunpack.c.l.b16 %v1757
    %v4848 = vunpack.c.h.b16 %v1757
    %v4849 = vunpack.c.l.b16 %v1758
    %v4850 = vunpack.c.h.b16 %v1758
    %v4851 = vunpack.c.l.b16 %v1759
    %v4852 = vunpack.c.h.b16 %v1759
    %v4853 = vunpack.c.l.b16 %v1760
    %v4854 = vunpack.c.h.b16 %v1760
    %v4855 = vunpack.c.l.b16 %v1761
    %v4856 = vunpack.c.h.b16 %v1761
    %v4857 = vunpack.c.l.b16 %v1762
    %v4858 = vunpack.c.h.b16 %v1762
    %v4859 = vunpack.c.l.b16 %v1763
    %v4860 = vunpack.c.h.b16 %v1763
    %v4861 = vunpack.c.l.b16 %v1764
    %v4862 = vunpack.c.h.b16 %v1764
    %v4863 = vunpack.c.l.b16 %v1765
    %v4864 = vunpack.c.h.b16 %v1765
    %v4865 = vunpack.c.l.b16 %v1766
    %v4866 = vunpack.c.h.b16 %v1766
    %v4867 = vunpack.c.l.b16 %v1767
    %v4868 = vunpack.c.h.b16 %v1767
    %v4869 = vunpack.c.l.b16 %v1768
    %v4870 = vunpack.c.h.b16 %v1768
    %v4871 = vunpack.c.l.b16 %v1769
    %v4872 = vunpack.c.h.b16 %v1769
    %v4873 = vunpack.c.l.b16 %v1770
    %v4874 = vunpack.c.h.b16 %v1770
    %v4875 = vunpack.c.l.b16 %v1771
    %v4876 = vunpack.c.h.b16 %v1771
    %v4877 = vunpack.c.l.b16 %v1772
    %v4878 = vunpack.c.h.b16 %v1772
    %v4879 = vunpack.c.l.b16 %v1773
    %v4880 = vunpack.c.h.b16 %v1773
    %v4881 = vunpack.c.l.b16 %v1774
    %v4882 = vunpack.c.h.b16 %v1774
    %v4883 = vunpack.c.l.b16 %v1775
    %v4884 = vunpack.c.h.b16 %v1775
    %v4885 = vunpack.c.l.b16 %v1776
    %v4886 = vunpack.c.h.b16 %v1776
    %v4887 = vunpack.c.l.b16 %v1777
    %v4888 = vunpack.c.h.b16 %v1777
    %v4889 = vunpack.c.l.b16 %v1778
    %v4890 = vunpack.c.h.b16 %v1778
    %v4891 = vunpack.c.l.b16 %v1779
    %v4892 = vunpack.c.h.b16 %v1779
    %v4893 = vunpack.c.l.b16 %v1780
    %v4894 = vunpack.c.h.b16 %v1780
    %v4895 = vpack.c.b16 %v2855, %v2847
    %v4896 = vpack.c.b16 %v2856, %v2848
    %v4897 = vpack.c.b16 %v2857, %v2849
    %v4898 = vpack.c.b16 %v2858, %v2850
    %v4899 = vpack.c.b16 %v2859, %v2851
    %v4900 = vpack.c.b16 %v2860, %v2852
    %v4901 = vpack.c.b16 %v2861, %v2853
    %v4902 = vpack.c.b16 %v2862, %v2854
    %v4903 = vpack.c.b16 %v2871, %v2863
    %v4904 = vpack.c.b16 %v2872, %v2864
    %v4905 = vpack.c.b16 %v2873, %v2865
    %v4906 = vpack.c.b16 %v2874, %v2866
    %v4907 = vpack.c.b16 %v2875, %v2867
    %v4908 = vpack.c.b16 %v2876, %v2868
    %v4909 = vpack.c.b16 %v2877, %v2869
    %v4910 = vpack.c.b16 %v2878, %v2870
    %v4911 = vpack.c.b16 %v2887, %v2879
    %v4912 = vpack.c.b16 %v2888, %v2880
    %v4913 = vpack.c.b16 %v2889, %v2881
    %v4914 = vpack.c.b16 %v2890, %v2882
    %v4915 = vpack.c.b16 %v2891, %v2883
    %v4916 = vpack.c.b16 %v2892, %v2884
    %v4917 = vpack.c.b16 %v2893, %v2885
    %v4918 = vpack.c.b16 %v2894, %v2886
    %v4919 = vpack.c.b16 %v2903, %v2895
    %v4920 = vpack.c.b16 %v2904, %v2896
    %v4921 = vpack.c.b16 %v2905, %v2897
    %v4922 = vpack.c.b16 %v2906, %v2898
    %v4923 = vpack.c.b16 %v2907, %v2899
    %v4924 = vpack.c.b16 %v2908, %v2900
    %v4925 = vpack.c.b16 %v2909, %v2901
    %v4926 = vpack.c.b16 %v2910, %v2902
    %v4927 = vpack.c.b16 %v2919, %v2911
    %v4928 = vpack.c.b16 %v2920, %v2912
    %v4929 = vpack.c.b16 %v2921, %v2913
    %v4930 = vpack.c.b16 %v2922, %v2914
    %v4931 = vpack.c.b16 %v2923, %v2915
    %v4932 = vpack.c.b16 %v2924, %v2916
    %v4933 = vpack.c.b16 %v2925, %v2917
    %v4934 = vpack.c.b16 %v2926, %v2918
    %v4935 = vpack.c.b16 %v2935, %v2927
    %v4936 = vpack.c.b16 %v2936, %v2928
    %v4937 = vpack.c.b16 %v2937, %v2929
    %v4938 = vpack.c.b16 %v2938, %v2930
    %v4939 = vpack.c.b16 %v2939, %v2931
    %v4940 = vpack.c.b16 %v2940, %v2932
    %v4941 = vpack.c.b16 %v2941, %v2933
    %v4942 = vpack.c.b16 %v2942, %v2934
    %v4943 = vpack.c.b16 %v2951, %v2943
    %v4944 = vpack.c.b16 %v2952, %v2944
    %v4945 = vpack.c.b16 %v2953, %v2945
    %v4946 = vpack.c.b16 %v2954, %v2946
    %v4947 = vpack.c.b16 %v2955, %v2947
    %v4948 = vpack.c.b16 %v2956, %v2948
    %v4949 = vpack.c.b16 %v2957, %v2949
    %v4950 = vpack.c.b16 %v2958, %v2950
    %v4951 = vpack.c.b16 %v2967, %v2959
    %v4952 = vpack.c.b16 %v2968, %v2960
    %v4953 = vpack.c.b16 %v2969, %v2961
    %v4954 = vpack.c.b16 %v2970, %v2962
    %v4955 = vpack.c.b16 %v2971, %v2963
    %v4956 = vpack.c.b16 %v2972, %v2964
    %v4957 = vpack.c.b16 %v2973, %v2965
    %v4958 = vpack.c.b16 %v2974, %v2966
    %v4959 = vpack.c.b16 %v2983, %v2975
    %v4960 = vpack.c.b16 %v2984, %v2976
    %v4961 = vpack.c.b16 %v2985, %v2977
    %v4962 = vpack.c.b16 %v2986, %v2978
    %v4963 = vpack.c.b16 %v2987, %v2979
    %v4964 = vpack.c.b16 %v2988, %v2980
    %v4965 = vpack.c.b16 %v2989, %v2981
    %v4966 = vpack.c.b16 %v2990, %v2982
    %v4967 = vpack.c.b16 %v2999, %v2991
    %v4968 = vpack.c.b16 %v3000, %v2992
    %v4969 = vpack.c.b16 %v3001, %v2993
    %v4970 = vpack.c.b16 %v3002, %v2994
    %v4971 = vpack.c.b16 %v3003, %v2995
    %v4972 = vpack.c.b16 %v3004, %v2996
    %v4973 = vpack.c.b16 %v3005, %v2997
    %v4974 = vpack.c.b16 %v3006, %v2998
    %v4975 = vpack.c.b16 %v3015, %v3007
    %v4976 = vpack.c.b16 %v3016, %v3008
    %v4977 = vpack.c.b16 %v3017, %v3009
    %v4978 = vpack.c.b16 %v3018, %v3010
    %v4979 = vpack.c.b16 %v3019, %v3011
    %v4980 = vpack.c.b16 %v3020, %v3012
    %v4981 = vpack.c.b16 %v3021, %v3013
    %v4982 = vpack.c.b16 %v3022, %v3014
    %v4983 = vpack.c.b16 %v3031, %v3023
    %v4984 = vpack.c.b16 %v3032, %v3024
    %v4985 = vpack.c.b16 %v3033, %v3025
    %v4986 = vpack.c.b16 %v3034, %v3026
    %v4987 = vpack.c.b16 %v3035, %v3027
    %v4988 = vpack.c.b16 %v3036, %v3028
    %v4989 = vpack.c.b16 %v3037, %v3029
    %v4990 = vpack.c.b16 %v3038, %v3030
    %v4991 = vpack.c.b16 %v3047, %v3039
    %v4992 = vpack.c.b16 %v3048, %v3040
    %v4993 = vpack.c.b16 %v3049, %v3041
    %v4994 = vpack.c.b16 %v3050, %v3042
    %v4995 = vpack.c.b16 %v3051, %v3043
    %v4996 = vpack.c.b16 %v3052, %v3044
    %v4997 = vpack.c.b16 %v3053, %v3045
    %v4998 = vpack.c.b16 %v3054, %v3046
    %v4999 = vpack.c.b16 %v3063, %v3055
    %v5000 = vpack.c.b16 %v3064, %v3056
    %v5001 = vpack.c.b16 %v3065, %v3057
    %v5002 = vpack.c.b16 %v3066, %v3058
    %v5003 = vpack.c.b16 %v3067, %v3059
    %v5004 = vpack.c.b16 %v3068, %v3060
    %v5005 = vpack.c.b16 %v3069, %v3061
    %v5006 = vpack.c.b16 %v3070, %v3062
    %v5007 = vpack.c.b16 %v3079, %v3071
    %v5008 = vpack.c.b16 %v3080, %v3072
    %v5009 = vpack.c.b16 %v3081, %v3073
    %v5010 = vpack.c.b16 %v3082, %v3074
    %v5011 = vpack.c.b16 %v3083, %v3075
    %v5012 = vpack.c.b16 %v3084, %v3076
    %v5013 = vpack.c.b16 %v3085, %v3077
    %v5014 = vpack.c.b16 %v3086, %v3078
    %v5015 = vpack.c.b16 %v3095, %v3087
    %v5016 = vpack.c.b16 %v3096, %v3088
    %v5017 = vpack.c.b16 %v3097, %v3089
    %v5018 = vpack.c.b16 %v3098, %v3090
    %v5019 = vpack.c.b16 %v3099, %v3091
    %v5020 = vpack.c.b16 %v3100, %v3092
    %v5021 = vpack.c.b16 %v3101, %v3093
    %v5022 = vpack.c.b16 %v3102, %v3094
    %v5023 = vpack.c.b16 %v3111, %v3103
    %v5024 = vpack.c.b16 %v3112, %v3104
    %v5025 = vpack.c.b16 %v3113, %v3105
    %v5026 = vpack.c.b16 %v3114, %v3106
    %v5027 = vpack.c.b16 %v3115, %v3107
    %v5028 = vpack.c.b16 %v3116, %v3108
    %v5029 = vpack.c.b16 %v3117, %v3109
    %v5030 = vpack.c.b16 %v3118, %v3110
    %v5031 = vpack.c.b16 %v3127, %v3119
    %v5032 = vpack.c.b16 %v3128, %v3120
    %v5033 = vpack.c.b16 %v3129, %v3121
    %v5034 = vpack.c.b16 %v3130, %v3122
    %v5035 = vpack.c.b16 %v3131, %v3123
    %v5036 = vpack.c.b16 %v3132, %v3124
    %v5037 = vpack.c.b16 %v3133, %v3125
    %v5038 = vpack.c.b16 %v3134, %v3126
    %v5039 = vpack.c.b16 %v3143, %v3135
    %v5040 = vpack.c.b16 %v3144, %v3136
    %v5041 = vpack.c.b16 %v3145, %v3137
    %v5042 = vpack.c.b16 %v3146, %v3138
    %v5043 = vpack.c.b16 %v3147, %v3139
    %v5044 = vpack.c.b16 %v3148, %v3140
    %v5045 = vpack.c.b16 %v3149, %v3141
    %v5046 = vpack.c.b16 %v3150, %v3142
    %v5047 = vpack.c.b16 %v3159, %v3151
    %v5048 = vpack.c.b16 %v3160, %v3152
    %v5049 = vpack.c.b16 %v3161, %v3153
    %v5050 = vpack.c.b16 %v3162, %v3154
    %v5051 = vpack.c.b16 %v3163, %v3155
    %v5052 = vpack.c.b16 %v3164, %v3156
    %v5053 = vpack.c.b16 %v3165, %v3157
    %v5054 = vpack.c.b16 %v3166, %v3158
    %v5055 = vpack.c.b16 %v3175, %v3167
    %v5056 = vpack.c.b16 %v3176, %v3168
    %v5057 = vpack.c.b16 %v3177, %v3169
    %v5058 = vpack.c.b16 %v3178, %v3170
    %v5059 = vpack.c.b16 %v3179, %v3171
    %v5060 = vpack.c.b16 %v3180, %v3172
    %v5061 = vpack.c.b16 %v3181, %v3173
    %v5062 = vpack.c.b16 %v3182, %v3174
    %v5063 = vpack.c.b16 %v3191, %v3183
    %v5064 = vpack.c.b16 %v3192, %v3184
    %v5065 = vpack.c.b16 %v3193, %v3185
    %v5066 = vpack.c.b16 %v3194, %v3186
    %v5067 = vpack.c.b16 %v3195, %v3187
    %v5068 = vpack.c.b16 %v3196, %v3188
    %v5069 = vpack.c.b16 %v3197, %v3189
    %v5070 = vpack.c.b16 %v3198, %v3190
    %v5071 = vpack.c.b16 %v3207, %v3199
    %v5072 = vpack.c.b16 %v3208, %v3200
    %v5073 = vpack.c.b16 %v3209, %v3201
    %v5074 = vpack.c.b16 %v3210, %v3202
    %v5075 = vpack.c.b16 %v3211, %v3203
    %v5076 = vpack.c.b16 %v3212, %v3204
    %v5077 = vpack.c.b16 %v3213, %v3205
    %v5078 = vpack.c.b16 %v3214, %v3206
    %v5079 = vpack.c.b16 %v3223, %v3215
    %v5080 = vpack.c.b16 %v3224, %v3216
    %v5081 = vpack.c.b16 %v3225, %v3217
    %v5082 = vpack.c.b16 %v3226, %v3218
    %v5083 = vpack.c.b16 %v3227, %v3219
    %v5084 = vpack.c.b16 %v3228, %v3220
    %v5085 = vpack.c.b16 %v3229, %v3221
    %v5086 = vpack.c.b16 %v3230, %v3222
    %v5087 = vpack.c.b16 %v3239, %v3231
    %v5088 = vpack.c.b16 %v3240, %v3232
    %v5089 = vpack.c.b16 %v3241, %v3233
    %v5090 = vpack.c.b16 %v3242, %v3234
    %v5091 = vpack.c.b16 %v3243, %v3235
    %v5092 = vpack.c.b16 %v3244, %v3236
    %v5093 = vpack.c.b16 %v3245, %v3237
    %v5094 = vpack.c.b16 %v3246, %v3238
    %v5095 = vpack.c.b16 %v3255, %v3247
    %v5096 = vpack.c.b16 %v3256, %v3248
    %v5097 = vpack.c.b16 %v3257, %v3249
    %v5098 = vpack.c.b16 %v3258, %v3250
    %v5099 = vpack.c.b16 %v3259, %v3251
    %v5100 = vpack.c.b16 %v3260, %v3252
    %v5101 = vpack.c.b16 %v3261, %v3253
    %v5102 = vpack.c.b16 %v3262, %v3254
    %v5103 = vpack.c.b16 %v3271, %v3263
    %v5104 = vpack.c.b16 %v3272, %v3264
    %v5105 = vpack.c.b16 %v3273, %v3265
    %v5106 = vpack.c.b16 %v3274, %v3266
    %v5107 = vpack.c.b16 %v3275, %v3267
    %v5108 = vpack.c.b16 %v3276, %v3268
    %v5109 = vpack.c.b16 %v3277, %v3269
    %v5110 = vpack.c.b16 %v3278, %v3270
    %v5111 = vpack.c.b16 %v3287, %v3279
    %v5112 = vpack.c.b16 %v3288, %v3280
    %v5113 = vpack.c.b16 %v3289, %v3281
    %v5114 = vpack.c.b16 %v3290, %v3282
    %v5115 = vpack.c.b16 %v3291, %v3283
    %v5116 = vpack.c.b16 %v3292, %v3284
    %v5117 = vpack.c.b16 %v3293, %v3285
    %v5118 = vpack.c.b16 %v3294, %v3286
    %v5119 = vpack.c.b16 %v3303, %v3295
    %v5120 = vpack.c.b16 %v3304, %v3296
    %v5121 = vpack.c.b16 %v3305, %v3297
    %v5122 = vpack.c.b16 %v3306, %v3298
    %v5123 = vpack.c.b16 %v3307, %v3299
    %v5124 = vpack.c.b16 %v3308, %v3300
    %v5125 = vpack.c.b16 %v3309, %v3301
    %v5126 = vpack.c.b16 %v3310, %v3302
    %v5127 = vpack.c.b16 %v3319, %v3311
    %v5128 = vpack.c.b16 %v3320, %v3312
    %v5129 = vpack.c.b16 %v3321, %v3313
    %v5130 = vpack.c.b16 %v3322, %v3314
    %v5131 = vpack.c.b16 %v3323, %v3315
    %v5132 = vpack.c.b16 %v3324, %v3316
    %v5133 = vpack.c.b16 %v3325, %v3317
    %v5134 = vpack.c.b16 %v3326, %v3318
    %v5135 = vpack.c.b16 %v3335, %v3327
    %v5136 = vpack.c.b16 %v3336, %v3328
    %v5137 = vpack.c.b16 %v3337, %v3329
    %v5138 = vpack.c.b16 %v3338, %v3330
    %v5139 = vpack.c.b16 %v3339, %v3331
    %v5140 = vpack.c.b16 %v3340, %v3332
    %v5141 = vpack.c.b16 %v3341, %v3333
    %v5142 = vpack.c.b16 %v3342, %v3334
    %v5143 = vpack.c.b16 %v3351, %v3343
    %v5144 = vpack.c.b16 %v3352, %v3344
    %v5145 = vpack.c.b16 %v3353, %v3345
    %v5146 = vpack.c.b16 %v3354, %v3346
    %v5147 = vpack.c.b16 %v3355, %v3347
    %v5148 = vpack.c.b16 %v3356, %v3348
    %v5149 = vpack.c.b16 %v3357, %v3349
    %v5150 = vpack.c.b16 %v3358, %v3350
    %v5151 = vpack.c.b16 %v3367, %v3359
    %v5152 = vpack.c.b16 %v3368, %v3360
    %v5153 = vpack.c.b16 %v3369, %v3361
    %v5154 = vpack.c.b16 %v3370, %v3362
    %v5155 = vpack.c.b16 %v3371, %v3363
    %v5156 = vpack.c.b16 %v3372, %v3364
    %v5157 = vpack.c.b16 %v3373, %v3365
    %v5158 = vpack.c.b16 %v3374, %v3366
    %v5159 = vpack.c.b16 %v3383, %v3375
    %v5160 = vpack.c.b16 %v3384, %v3376
    %v5161 = vpack.c.b16 %v3385, %v3377
    %v5162 = vpack.c.b16 %v3386, %v3378
    %v5163 = vpack.c.b16 %v3387, %v3379
    %v5164 = vpack.c.b16 %v3388, %v3380
    %v5165 = vpack.c.b16 %v3389, %v3381
    %v5166 = vpack.c.b16 %v3390, %v3382
    %v5167 = vpack.c.b16 %v3399, %v3391
    %v5168 = vpack.c.b16 %v3400, %v3392
    %v5169 = vpack.c.b16 %v3401, %v3393
    %v5170 = vpack.c.b16 %v3402, %v3394
    %v5171 = vpack.c.b16 %v3403, %v3395
    %v5172 = vpack.c.b16 %v3404, %v3396
    %v5173 = vpack.c.b16 %v3405, %v3397
    %v5174 = vpack.c.b16 %v3406, %v3398
    %v5175 = vpack.c.b16 %v3415, %v3407
    %v5176 = vpack.c.b16 %v3416, %v3408
    %v5177 = vpack.c.b16 %v3417, %v3409
    %v5178 = vpack.c.b16 %v3418, %v3410
    %v5179 = vpack.c.b16 %v3419, %v3411
    %v5180 = vpack.c.b16 %v3420, %v3412
    %v5181 = vpack.c.b16 %v3421, %v3413
    %v5182 = vpack.c.b16 %v3422, %v3414
    %v5183 = vpack.c.b16 %v3431, %v3423
    %v5184 = vpack.c.b16 %v3432, %v3424
    %v5185 = vpack.c.b16 %v3433, %v3425
    %v5186 = vpack.c.b16 %v3434, %v3426
    %v5187 = vpack.c.b16 %v3435, %v3427
    %v5188 = vpack.c.b16 %v3436, %v3428
    %v5189 = vpack.c.b16 %v3437, %v3429
    %v5190 = vpack.c.b16 %v3438, %v3430
    %v5191 = vpack.c.b16 %v3447, %v3439
    %v5192 = vpack.c.b16 %v3448, %v3440
    %v5193 = vpack.c.b16 %v3449, %v3441
    %v5194 = vpack.c.b16 %v3450, %v3442
    %v5195 = vpack.c.b16 %v3451, %v3443
    %v5196 = vpack.c.b16 %v3452, %v3444
    %v5197 = vpack.c.b16 %v3453, %v3445
    %v5198 = vpack.c.b16 %v3454, %v3446
    %v5199 = vpack.c.b16 %v3463, %v3455
    %v5200 = vpack.c.b16 %v3464, %v3456
    %v5201 = vpack.c.b16 %v3465, %v3457
    %v5202 = vpack.c.b16 %v3466, %v3458
    %v5203 = vpack.c.b16 %v3467, %v3459
    %v5204 = vpack.c.b16 %v3468, %v3460
    %v5205 = vpack.c.b16 %v3469, %v3461
    %v5206 = vpack.c.b16 %v3470, %v3462
    %v5207 = vpack.c.b16 %v3479, %v3471
    %v5208 = vpack.c.b16 %v3480, %v3472
    %v5209 = vpack.c.b16 %v3481, %v3473
    %v5210 = vpack.c.b16 %v3482, %v3474
    %v5211 = vpack.c.b16 %v3483, %v3475
    %v5212 = vpack.c.b16 %v3484, %v3476
    %v5213 = vpack.c.b16 %v3485, %v3477
    %v5214 = vpack.c.b16 %v3486, %v3478
    %v5215 = vpack.c.b16 %v3495, %v3487
    %v5216 = vpack.c.b16 %v3496, %v3488
    %v5217 = vpack.c.b16 %v3497, %v3489
    %v5218 = vpack.c.b16 %v3498, %v3490
    %v5219 = vpack.c.b16 %v3499, %v3491
    %v5220 = vpack.c.b16 %v3500, %v3492
    %v5221 = vpack.c.b16 %v3501, %v3493
    %v5222 = vpack.c.b16 %v3502, %v3494
    %v5223 = vpack.c.b16 %v3511, %v3503
    %v5224 = vpack.c.b16 %v3512, %v3504
    %v5225 = vpack.c.b16 %v3513, %v3505
    %v5226 = vpack.c.b16 %v3514, %v3506
    %v5227 = vpack.c.b16 %v3515, %v3507
    %v5228 = vpack.c.b16 %v3516, %v3508
    %v5229 = vpack.c.b16 %v3517, %v3509
    %v5230 = vpack.c.b16 %v3518, %v3510
    %v5231 = vpack.c.b16 %v3527, %v3519
    %v5232 = vpack.c.b16 %v3528, %v3520
    %v5233 = vpack.c.b16 %v3529, %v3521
    %v5234 = vpack.c.b16 %v3530, %v3522
    %v5235 = vpack.c.b16 %v3531, %v3523
    %v5236 = vpack.c.b16 %v3532, %v3524
    %v5237 = vpack.c.b16 %v3533, %v3525
    %v5238 = vpack.c.b16 %v3534, %v3526
    %v5239 = vpack.c.b16 %v3543, %v3535
    %v5240 = vpack.c.b16 %v3544, %v3536
    %v5241 = vpack.c.b16 %v3545, %v3537
    %v5242 = vpack.c.b16 %v3546, %v3538
    %v5243 = vpack.c.b16 %v3547, %v3539
    %v5244 = vpack.c.b16 %v3548, %v3540
    %v5245 = vpack.c.b16 %v3549, %v3541
    %v5246 = vpack.c.b16 %v3550, %v3542
    %v5247 = vpack.c.b16 %v3559, %v3551
    %v5248 = vpack.c.b16 %v3560, %v3552
    %v5249 = vpack.c.b16 %v3561, %v3553
    %v5250 = vpack.c.b16 %v3562, %v3554
    %v5251 = vpack.c.b16 %v3563, %v3555
    %v5252 = vpack.c.b16 %v3564, %v3556
    %v5253 = vpack.c.b16 %v3565, %v3557
    %v5254 = vpack.c.b16 %v3566, %v3558
    %v5255 = vpack.c.b16 %v3575, %v3567
    %v5256 = vpack.c.b16 %v3576, %v3568
    %v5257 = vpack.c.b16 %v3577, %v3569
    %v5258 = vpack.c.b16 %v3578, %v3570
    %v5259 = vpack.c.b16 %v3579, %v3571
    %v5260 = vpack.c.b16 %v3580, %v3572
    %v5261 = vpack.c.b16 %v3581, %v3573
    %v5262 = vpack.c.b16 %v3582, %v3574
    %v5263 = vpack.c.b16 %v3591, %v3583
    %v5264 = vpack.c.b16 %v3592, %v3584
    %v5265 = vpack.c.b16 %v3593, %v3585
    %v5266 = vpack.c.b16 %v3594, %v3586
    %v5267 = vpack.c.b16 %v3595, %v3587
    %v5268 = vpack.c.b16 %v3596, %v3588
    %v5269 = vpack.c.b16 %v3597, %v3589
    %v5270 = vpack.c.b16 %v3598, %v3590
    %v5271 = vpack.c.b16 %v3607, %v3599
    %v5272 = vpack.c.b16 %v3608, %v3600
    %v5273 = vpack.c.b16 %v3609, %v3601
    %v5274 = vpack.c.b16 %v3610, %v3602
    %v5275 = vpack.c.b16 %v3611, %v3603
    %v5276 = vpack.c.b16 %v3612, %v3604
    %v5277 = vpack.c.b16 %v3613, %v3605
    %v5278 = vpack.c.b16 %v3614, %v3606
    %v5279 = vpack.c.b16 %v3623, %v3615
    %v5280 = vpack.c.b16 %v3624, %v3616
    %v5281 = vpack.c.b16 %v3625, %v3617
    %v5282 = vpack.c.b16 %v3626, %v3618
    %v5283 = vpack.c.b16 %v3627, %v3619
    %v5284 = vpack.c.b16 %v3628, %v3620
    %v5285 = vpack.c.b16 %v3629, %v3621
    %v5286 = vpack.c.b16 %v3630, %v3622
    %v5287 = vpack.c.b16 %v3639, %v3631
    %v5288 = vpack.c.b16 %v3640, %v3632
    %v5289 = vpack.c.b16 %v3641, %v3633
    %v5290 = vpack.c.b16 %v3642, %v3634
    %v5291 = vpack.c.b16 %v3643, %v3635
    %v5292 = vpack.c.b16 %v3644, %v3636
    %v5293 = vpack.c.b16 %v3645, %v3637
    %v5294 = vpack.c.b16 %v3646, %v3638
    %v5295 = vpack.c.b16 %v3655, %v3647
    %v5296 = vpack.c.b16 %v3656, %v3648
    %v5297 = vpack.c.b16 %v3657, %v3649
    %v5298 = vpack.c.b16 %v3658, %v3650
    %v5299 = vpack.c.b16 %v3659, %v3651
    %v5300 = vpack.c.b16 %v3660, %v3652
    %v5301 = vpack.c.b16 %v3661, %v3653
    %v5302 = vpack.c.b16 %v3662, %v3654
    %v5303 = vpack.c.b16 %v3671, %v3663
    %v5304 = vpack.c.b16 %v3672, %v3664
    %v5305 = vpack.c.b16 %v3673, %v3665
    %v5306 = vpack.c.b16 %v3674, %v3666
    %v5307 = vpack.c.b16 %v3675, %v3667
    %v5308 = vpack.c.b16 %v3676, %v3668
    %v5309 = vpack.c.b16 %v3677, %v3669
    %v5310 = vpack.c.b16 %v3678, %v3670
    %v5311 = vpack.c.b16 %v3687, %v3679
    %v5312 = vpack.c.b16 %v3688, %v3680
    %v5313 = vpack.c.b16 %v3689, %v3681
    %v5314 = vpack.c.b16 %v3690, %v3682
    %v5315 = vpack.c.b16 %v3691, %v3683
    %v5316 = vpack.c.b16 %v3692, %v3684
    %v5317 = vpack.c.b16 %v3693, %v3685
    %v5318 = vpack.c.b16 %v3694, %v3686
    %v5319 = vpack.c.b16 %v3703, %v3695
    %v5320 = vpack.c.b16 %v3704, %v3696
    %v5321 = vpack.c.b16 %v3705, %v3697
    %v5322 = vpack.c.b16 %v3706, %v3698
    %v5323 = vpack.c.b16 %v3707, %v3699
    %v5324 = vpack.c.b16 %v3708, %v3700
    %v5325 = vpack.c.b16 %v3709, %v3701
    %v5326 = vpack.c.b16 %v3710, %v3702
    %v5327 = vpack.c.b16 %v3719, %v3711
    %v5328 = vpack.c.b16 %v3720, %v3712
    %v5329 = vpack.c.b16 %v3721, %v3713
    %v5330 = vpack.c.b16 %v3722, %v3714
    %v5331 = vpack.c.b16 %v3723, %v3715
    %v5332 = vpack.c.b16 %v3724, %v3716
    %v5333 = vpack.c.b16 %v3725, %v3717
    %v5334 = vpack.c.b16 %v3726, %v3718
    %v5335 = vpack.c.b16 %v3735, %v3727
    %v5336 = vpack.c.b16 %v3736, %v3728
    %v5337 = vpack.c.b16 %v3737, %v3729
    %v5338 = vpack.c.b16 %v3738, %v3730
    %v5339 = vpack.c.b16 %v3739, %v3731
    %v5340 = vpack.c.b16 %v3740, %v3732
    %v5341 = vpack.c.b16 %v3741, %v3733
    %v5342 = vpack.c.b16 %v3742, %v3734
    %v5343 = vpack.c.b16 %v3751, %v3743
    %v5344 = vpack.c.b16 %v3752, %v3744
    %v5345 = vpack.c.b16 %v3753, %v3745
    %v5346 = vpack.c.b16 %v3754, %v3746
    %v5347 = vpack.c.b16 %v3755, %v3747
    %v5348 = vpack.c.b16 %v3756, %v3748
    %v5349 = vpack.c.b16 %v3757, %v3749
    %v5350 = vpack.c.b16 %v3758, %v3750
    %v5351 = vpack.c.b16 %v3767, %v3759
    %v5352 = vpack.c.b16 %v3768, %v3760
    %v5353 = vpack.c.b16 %v3769, %v3761
    %v5354 = vpack.c.b16 %v3770, %v3762
    %v5355 = vpack.c.b16 %v3771, %v3763
    %v5356 = vpack.c.b16 %v3772, %v3764
    %v5357 = vpack.c.b16 %v3773, %v3765
    %v5358 = vpack.c.b16 %v3774, %v3766
    %v5359 = vpack.c.b16 %v3783, %v3775
    %v5360 = vpack.c.b16 %v3784, %v3776
    %v5361 = vpack.c.b16 %v3785, %v3777
    %v5362 = vpack.c.b16 %v3786, %v3778
    %v5363 = vpack.c.b16 %v3787, %v3779
    %v5364 = vpack.c.b16 %v3788, %v3780
    %v5365 = vpack.c.b16 %v3789, %v3781
    %v5366 = vpack.c.b16 %v3790, %v3782
    %v5367 = vpack.c.b16 %v3799, %v3791
    %v5368 = vpack.c.b16 %v3800, %v3792
    %v5369 = vpack.c.b16 %v3801, %v3793
    %v5370 = vpack.c.b16 %v3802, %v3794
    %v5371 = vpack.c.b16 %v3803, %v3795
    %v5372 = vpack.c.b16 %v3804, %v3796
    %v5373 = vpack.c.b16 %v3805, %v3797
    %v5374 = vpack.c.b16 %v3806, %v3798
    %v5375 = vpack.c.b16 %v3815, %v3807
    %v5376 = vpack.c.b16 %v3816, %v3808
    %v5377 = vpack.c.b16 %v3817, %v3809
    %v5378 = vpack.c.b16 %v3818, %v3810
    %v5379 = vpack.c.b16 %v3819, %v3811
    %v5380 = vpack.c.b16 %v3820, %v3812
    %v5381 = vpack.c.b16 %v3821, %v3813
    %v5382 = vpack.c.b16 %v3822, %v3814
    %v5383 = vpack.c.b16 %v3831, %v3823
    %v5384 = vpack.c.b16 %v3832, %v3824
    %v5385 = vpack.c.b16 %v3833, %v3825
    %v5386 = vpack.c.b16 %v3834, %v3826
    %v5387 = vpack.c.b16 %v3835, %v3827
    %v5388 = vpack.c.b16 %v3836, %v3828
    %v5389 = vpack.c.b16 %v3837, %v3829
    %v5390 = vpack.c.b16 %v3838, %v3830
    %v5391 = vpack.c.b16 %v3847, %v3839
    %v5392 = vpack.c.b16 %v3848, %v3840
    %v5393 = vpack.c.b16 %v3849, %v3841
    %v5394 = vpack.c.b16 %v3850, %v3842
    %v5395 = vpack.c.b16 %v3851, %v3843
    %v5396 = vpack.c.b16 %v3852, %v3844
    %v5397 = vpack.c.b16 %v3853, %v3845
    %v5398 = vpack.c.b16 %v3854, %v3846
    %v5399 = vpack.c.b16 %v3863, %v3855
    %v5400 = vpack.c.b16 %v3864, %v3856
    %v5401 = vpack.c.b16 %v3865, %v3857
    %v5402 = vpack.c.b16 %v3866, %v3858
    %v5403 = vpack.c.b16 %v3867, %v3859
    %v5404 = vpack.c.b16 %v3868, %v3860
    %v5405 = vpack.c.b16 %v3869, %v3861
    %v5406 = vpack.c.b16 %v3870, %v3862
    %v5407 = vpack.c.b16 %v3879, %v3871
    %v5408 = vpack.c.b16 %v3880, %v3872
    %v5409 = vpack.c.b16 %v3881, %v3873
    %v5410 = vpack.c.b16 %v3882, %v3874
    %v5411 = vpack.c.b16 %v3883, %v3875
    %v5412 = vpack.c.b16 %v3884, %v3876
    %v5413 = vpack.c.b16 %v3885, %v3877
    %v5414 = vpack.c.b16 %v3886, %v3878
    %v5415 = vpack.c.b16 %v3895, %v3887
    %v5416 = vpack.c.b16 %v3896, %v3888
    %v5417 = vpack.c.b16 %v3897, %v3889
    %v5418 = vpack.c.b16 %v3898, %v3890
    %v5419 = vpack.c.b16 %v3899, %v3891
    %v5420 = vpack.c.b16 %v3900, %v3892
    %v5421 = vpack.c.b16 %v3901, %v3893
    %v5422 = vpack.c.b16 %v3902, %v3894
    %v5423 = vpack.c.b16 %v3911, %v3903
    %v5424 = vpack.c.b16 %v3912, %v3904
    %v5425 = vpack.c.b16 %v3913, %v3905
    %v5426 = vpack.c.b16 %v3914, %v3906
    %v5427 = vpack.c.b16 %v3915, %v3907
    %v5428 = vpack.c.b16 %v3916, %v3908
    %v5429 = vpack.c.b16 %v3917, %v3909
    %v5430 = vpack.c.b16 %v3918, %v3910
    %v5431 = vpack.c.b16 %v3927, %v3919
    %v5432 = vpack.c.b16 %v3928, %v3920
    %v5433 = vpack.c.b16 %v3929, %v3921
    %v5434 = vpack.c.b16 %v3930, %v3922
    %v5435 = vpack.c.b16 %v3931, %v3923
    %v5436 = vpack.c.b16 %v3932, %v3924
    %v5437 = vpack.c.b16 %v3933, %v3925
    %v5438 = vpack.c.b16 %v3934, %v3926
    %v5439 = vpack.c.b16 %v3943, %v3935
    %v5440 = vpack.c.b16 %v3944, %v3936
    %v5441 = vpack.c.b16 %v3945, %v3937
    %v5442 = vpack.c.b16 %v3946, %v3938
    %v5443 = vpack.c.b16 %v3947, %v3939
    %v5444 = vpack.c.b16 %v3948, %v3940
    %v5445 = vpack.c.b16 %v3949, %v3941
    %v5446 = vpack.c.b16 %v3950, %v3942
    %v5447 = vpack.c.b16 %v3959, %v3951
    %v5448 = vpack.c.b16 %v3960, %v3952
    %v5449 = vpack.c.b16 %v3961, %v3953
    %v5450 = vpack.c.b16 %v3962, %v3954
    %v5451 = vpack.c.b16 %v3963, %v3955
    %v5452 = vpack.c.b16 %v3964, %v3956
    %v5453 = vpack.c.b16 %v3965, %v3957
    %v5454 = vpack.c.b16 %v3966, %v3958
    %v5455 = vpack.c.b16 %v3975, %v3967
    %v5456 = vpack.c.b16 %v3976, %v3968
    %v5457 = vpack.c.b16 %v3977, %v3969
    %v5458 = vpack.c.b16 %v3978, %v3970
    %v5459 = vpack.c.b16 %v3979, %v3971
    %v5460 = vpack.c.b16 %v3980, %v3972
    %v5461 = vpack.c.b16 %v3981, %v3973
    %v5462 = vpack.c.b16 %v3982, %v3974
    %v5463 = vpack.c.b16 %v3991, %v3983
    %v5464 = vpack.c.b16 %v3992, %v3984
    %v5465 = vpack.c.b16 %v3993, %v3985
    %v5466 = vpack.c.b16 %v3994, %v3986
    %v5467 = vpack.c.b16 %v3995, %v3987
    %v5468 = vpack.c.b16 %v3996, %v3988
    %v5469 = vpack.c.b16 %v3997, %v3989
    %v5470 = vpack.c.b16 %v3998, %v3990
    %v5471 = vpack.c.b16 %v4007, %v3999
    %v5472 = vpack.c.b16 %v4008, %v4000
    %v5473 = vpack.c.b16 %v4009, %v4001
    %v5474 = vpack.c.b16 %v4010, %v4002
    %v5475 = vpack.c.b16 %v4011, %v4003
    %v5476 = vpack.c.b16 %v4012, %v4004
    %v5477 = vpack.c.b16 %v4013, %v4005
    %v5478 = vpack.c.b16 %v4014, %v4006
    %v5479 = vpack.c.b16 %v4023, %v4015
    %v5480 = vpack.c.b16 %v4024, %v4016
    %v5481 = vpack.c.b16 %v4025, %v4017
    %v5482 = vpack.c.b16 %v4026, %v4018
    %v5483 = vpack.c.b16 %v4027, %v4019
    %v5484 = vpack.c.b16 %v4028, %v4020
    %v5485 = vpack.c.b16 %v4029, %v4021
    %v5486 = vpack.c.b16 %v4030, %v4022
    %v5487 = vpack.c.b16 %v4039, %v4031
    %v5488 = vpack.c.b16 %v4040, %v4032
    %v5489 = vpack.c.b16 %v4041, %v4033
    %v5490 = vpack.c.b16 %v4042, %v4034
    %v5491 = vpack.c.b16 %v4043, %v4035
    %v5492 = vpack.c.b16 %v4044, %v4036
    %v5493 = vpack.c.b16 %v4045, %v4037
    %v5494 = vpack.c.b16 %v4046, %v4038
    %v5495 = vpack.c.b16 %v4055, %v4047
    %v5496 = vpack.c.b16 %v4056, %v4048
    %v5497 = vpack.c.b16 %v4057, %v4049
    %v5498 = vpack.c.b16 %v4058, %v4050
    %v5499 = vpack.c.b16 %v4059, %v4051
    %v5500 = vpack.c.b16 %v4060, %v4052
    %v5501 = vpack.c.b16 %v4061, %v4053
    %v5502 = vpack.c.b16 %v4062, %v4054
    %v5503 = vpack.c.b16 %v4071, %v4063
    %v5504 = vpack.c.b16 %v4072, %v4064
    %v5505 = vpack.c.b16 %v4073, %v4065
    %v5506 = vpack.c.b16 %v4074, %v4066
    %v5507 = vpack.c.b16 %v4075, %v4067
    %v5508 = vpack.c.b16 %v4076, %v4068
    %v5509 = vpack.c.b16 %v4077, %v4069
    %v5510 = vpack.c.b16 %v4078, %v4070
    %v5511 = vpack.c.b16 %v4087, %v4079
    %v5512 = vpack.c.b16 %v4088, %v4080
    %v5513 = vpack.c.b16 %v4089, %v4081
    %v5514 = vpack.c.b16 %v4090, %v4082
    %v5515 = vpack.c.b16 %v4091, %v4083
    %v5516 = vpack.c.b16 %v4092, %v4084
    %v5517 = vpack.c.b16 %v4093, %v4085
    %v5518 = vpack.c.b16 %v4094, %v4086
    %v5519 = vpack.c.b16 %v4103, %v4095
    %v5520 = vpack.c.b16 %v4104, %v4096
    %v5521 = vpack.c.b16 %v4105, %v4097
    %v5522 = vpack.c.b16 %v4106, %v4098
    %v5523 = vpack.c.b16 %v4107, %v4099
    %v5524 = vpack.c.b16 %v4108, %v4100
    %v5525 = vpack.c.b16 %v4109, %v4101
    %v5526 = vpack.c.b16 %v4110, %v4102
    %v5527 = vpack.c.b16 %v4119, %v4111
    %v5528 = vpack.c.b16 %v4120, %v4112
    %v5529 = vpack.c.b16 %v4121, %v4113
    %v5530 = vpack.c.b16 %v4122, %v4114
    %v5531 = vpack.c.b16 %v4123, %v4115
    %v5532 = vpack.c.b16 %v4124, %v4116
    %v5533 = vpack.c.b16 %v4125, %v4117
    %v5534 = vpack.c.b16 %v4126, %v4118
    %v5535 = vpack.c.b16 %v4135, %v4127
    %v5536 = vpack.c.b16 %v4136, %v4128
    %v5537 = vpack.c.b16 %v4137, %v4129
    %v5538 = vpack.c.b16 %v4138, %v4130
    %v5539 = vpack.c.b16 %v4139, %v4131
    %v5540 = vpack.c.b16 %v4140, %v4132
    %v5541 = vpack.c.b16 %v4141, %v4133
    %v5542 = vpack.c.b16 %v4142, %v4134
    %v5543 = vpack.c.b16 %v4151, %v4143
    %v5544 = vpack.c.b16 %v4152, %v4144
    %v5545 = vpack.c.b16 %v4153, %v4145
    %v5546 = vpack.c.b16 %v4154, %v4146
    %v5547 = vpack.c.b16 %v4155, %v4147
    %v5548 = vpack.c.b16 %v4156, %v4148
    %v5549 = vpack.c.b16 %v4157, %v4149
    %v5550 = vpack.c.b16 %v4158, %v4150
    %v5551 = vpack.c.b16 %v4167, %v4159
    %v5552 = vpack.c.b16 %v4168, %v4160
    %v5553 = vpack.c.b16 %v4169, %v4161
    %v5554 = vpack.c.b16 %v4170, %v4162
    %v5555 = vpack.c.b16 %v4171, %v4163
    %v5556 = vpack.c.b16 %v4172, %v4164
    %v5557 = vpack.c.b16 %v4173, %v4165
    %v5558 = vpack.c.b16 %v4174, %v4166
    %v5559 = vpack.c.b16 %v4183, %v4175
    %v5560 = vpack.c.b16 %v4184, %v4176
    %v5561 = vpack.c.b16 %v4185, %v4177
    %v5562 = vpack.c.b16 %v4186, %v4178
    %v5563 = vpack.c.b16 %v4187, %v4179
    %v5564 = vpack.c.b16 %v4188, %v4180
    %v5565 = vpack.c.b16 %v4189, %v4181
    %v5566 = vpack.c.b16 %v4190, %v4182
    %v5567 = vpack.c.b16 %v4199, %v4191
    %v5568 = vpack.c.b16 %v4200, %v4192
    %v5569 = vpack.c.b16 %v4201, %v4193
    %v5570 = vpack.c.b16 %v4202, %v4194
    %v5571 = vpack.c.b16 %v4203, %v4195
    %v5572 = vpack.c.b16 %v4204, %v4196
    %v5573 = vpack.c.b16 %v4205, %v4197
    %v5574 = vpack.c.b16 %v4206, %v4198
    %v5575 = vpack.c.b16 %v4215, %v4207
    %v5576 = vpack.c.b16 %v4216, %v4208
    %v5577 = vpack.c.b16 %v4217, %v4209
    %v5578 = vpack.c.b16 %v4218, %v4210
    %v5579 = vpack.c.b16 %v4219, %v4211
    %v5580 = vpack.c.b16 %v4220, %v4212
    %v5581 = vpack.c.b16 %v4221, %v4213
    %v5582 = vpack.c.b16 %v4222, %v4214
    %v5583 = vpack.c.b16 %v4231, %v4223
    %v5584 = vpack.c.b16 %v4232, %v4224
    %v5585 = vpack.c.b16 %v4233, %v4225
    %v5586 = vpack.c.b16 %v4234, %v4226
    %v5587 = vpack.c.b16 %v4235, %v4227
    %v5588 = vpack.c.b16 %v4236, %v4228
    %v5589 = vpack.c.b16 %v4237, %v4229
    %v5590 = vpack.c.b16 %v4238, %v4230
    %v5591 = vpack.c.b16 %v4247, %v4239
    %v5592 = vpack.c.b16 %v4248, %v4240
    %v5593 = vpack.c.b16 %v4249, %v4241
    %v5594 = vpack.c.b16 %v4250, %v4242
    %v5595 = vpack.c.b16 %v4251, %v4243
    %v5596 = vpack.c.b16 %v4252, %v4244
    %v5597 = vpack.c.b16 %v4253, %v4245
    %v5598 = vpack.c.b16 %v4254, %v4246
    %v5599 = vpack.c.b16 %v4263, %v4255
    %v5600 = vpack.c.b16 %v4264, %v4256
    %v5601 = vpack.c.b16 %v4265, %v4257
    %v5602 = vpack.c.b16 %v4266, %v4258
    %v5603 = vpack.c.b16 %v4267, %v4259
    %v5604 = vpack.c.b16 %v4268, %v4260
    %v5605 = vpack.c.b16 %v4269, %v4261
    %v5606 = vpack.c.b16 %v4270, %v4262
    %v5607 = vpack.c.b16 %v4279, %v4271
    %v5608 = vpack.c.b16 %v4280, %v4272
    %v5609 = vpack.c.b16 %v4281, %v4273
    %v5610 = vpack.c.b16 %v4282, %v4274
    %v5611 = vpack.c.b16 %v4283, %v4275
    %v5612 = vpack.c.b16 %v4284, %v4276
    %v5613 = vpack.c.b16 %v4285, %v4277
    %v5614 = vpack.c.b16 %v4286, %v4278
    %v5615 = vpack.c.b16 %v4295, %v4287
    %v5616 = vpack.c.b16 %v4296, %v4288
    %v5617 = vpack.c.b16 %v4297, %v4289
    %v5618 = vpack.c.b16 %v4298, %v4290
    %v5619 = vpack.c.b16 %v4299, %v4291
    %v5620 = vpack.c.b16 %v4300, %v4292
    %v5621 = vpack.c.b16 %v4301, %v4293
    %v5622 = vpack.c.b16 %v4302, %v4294
    %v5623 = vpack.c.b16 %v4311, %v4303
    %v5624 = vpack.c.b16 %v4312, %v4304
    %v5625 = vpack.c.b16 %v4313, %v4305
    %v5626 = vpack.c.b16 %v4314, %v4306
    %v5627 = vpack.c.b16 %v4315, %v4307
    %v5628 = vpack.c.b16 %v4316, %v4308
    %v5629 = vpack.c.b16 %v4317, %v4309
    %v5630 = vpack.c.b16 %v4318, %v4310
    %v5631 = vpack.c.b16 %v4327, %v4319
    %v5632 = vpack.c.b16 %v4328, %v4320
    %v5633 = vpack.c.b16 %v4329, %v4321
    %v5634 = vpack.c.b16 %v4330, %v4322
    %v5635 = vpack.c.b16 %v4331, %v4323
    %v5636 = vpack.c.b16 %v4332, %v4324
    %v5637 = vpack.c.b16 %v4333, %v4325
    %v5638 = vpack.c.b16 %v4334, %v4326
    %v5639 = vpack.c.b16 %v4343, %v4335
    %v5640 = vpack.c.b16 %v4344, %v4336
    %v5641 = vpack.c.b16 %v4345, %v4337
    %v5642 = vpack.c.b16 %v4346, %v4338
    %v5643 = vpack.c.b16 %v4347, %v4339
    %v5644 = vpack.c.b16 %v4348, %v4340
    %v5645 = vpack.c.b16 %v4349, %v4341
    %v5646 = vpack.c.b16 %v4350, %v4342
    %v5647 = vpack.c.b16 %v4359, %v4351
    %v5648 = vpack.c.b16 %v4360, %v4352
    %v5649 = vpack.c.b16 %v4361, %v4353
    %v5650 = vpack.c.b16 %v4362, %v4354
    %v5651 = vpack.c.b16 %v4363, %v4355
    %v5652 = vpack.c.b16 %v4364, %v4356
    %v5653 = vpack.c.b16 %v4365, %v4357
    %v5654 = vpack.c.b16 %v4366, %v4358
    %v5655 = vpack.c.b16 %v4375, %v4367
    %v5656 = vpack.c.b16 %v4376, %v4368
    %v5657 = vpack.c.b16 %v4377, %v4369
    %v5658 = vpack.c.b16 %v4378, %v4370
    %v5659 = vpack.c.b16 %v4379, %v4371
    %v5660 = vpack.c.b16 %v4380, %v4372
    %v5661 = vpack.c.b16 %v4381, %v4373
    %v5662 = vpack.c.b16 %v4382, %v4374
    %v5663 = vpack.c.b16 %v4391, %v4383
    %v5664 = vpack.c.b16 %v4392, %v4384
    %v5665 = vpack.c.b16 %v4393, %v4385
    %v5666 = vpack.c.b16 %v4394, %v4386
    %v5667 = vpack.c.b16 %v4395, %v4387
    %v5668 = vpack.c.b16 %v4396, %v4388
    %v5669 = vpack.c.b16 %v4397, %v4389
    %v5670 = vpack.c.b16 %v4398, %v4390
    %v5671 = vpack.c.b16 %v4407, %v4399
    %v5672 = vpack.c.b16 %v4408, %v4400
    %v5673 = vpack.c.b16 %v4409, %v4401
    %v5674 = vpack.c.b16 %v4410, %v4402
    %v5675 = vpack.c.b16 %v4411, %v4403
    %v5676 = vpack.c.b16 %v4412, %v4404
    %v5677 = vpack.c.b16 %v4413, %v4405
    %v5678 = vpack.c.b16 %v4414, %v4406
    %v5679 = vpack.c.b16 %v4423, %v4415
    %v5680 = vpack.c.b16 %v4424, %v4416
    %v5681 = vpack.c.b16 %v4425, %v4417
    %v5682 = vpack.c.b16 %v4426, %v4418
    %v5683 = vpack.c.b16 %v4427, %v4419
    %v5684 = vpack.c.b16 %v4428, %v4420
    %v5685 = vpack.c.b16 %v4429, %v4421
    %v5686 = vpack.c.b16 %v4430, %v4422
    %v5687 = vpack.c.b16 %v4439, %v4431
    %v5688 = vpack.c.b16 %v4440, %v4432
    %v5689 = vpack.c.b16 %v4441, %v4433
    %v5690 = vpack.c.b16 %v4442, %v4434
    %v5691 = vpack.c.b16 %v4443, %v4435
    %v5692 = vpack.c.b16 %v4444, %v4436
    %v5693 = vpack.c.b16 %v4445, %v4437
    %v5694 = vpack.c.b16 %v4446, %v4438
    %v5695 = vpack.c.b16 %v4455, %v4447
    %v5696 = vpack.c.b16 %v4456, %v4448
    %v5697 = vpack.c.b16 %v4457, %v4449
    %v5698 = vpack.c.b16 %v4458, %v4450
    %v5699 = vpack.c.b16 %v4459, %v4451
    %v5700 = vpack.c.b16 %v4460, %v4452
    %v5701 = vpack.c.b16 %v4461, %v4453
    %v5702 = vpack.c.b16 %v4462, %v4454
    %v5703 = vpack.c.b16 %v4471, %v4463
    %v5704 = vpack.c.b16 %v4472, %v4464
    %v5705 = vpack.c.b16 %v4473, %v4465
    %v5706 = vpack.c.b16 %v4474, %v4466
    %v5707 = vpack.c.b16 %v4475, %v4467
    %v5708 = vpack.c.b16 %v4476, %v4468
    %v5709 = vpack.c.b16 %v4477, %v4469
    %v5710 = vpack.c.b16 %v4478, %v4470
    %v5711 = vpack.c.b16 %v4487, %v4479
    %v5712 = vpack.c.b16 %v4488, %v4480
    %v5713 = vpack.c.b16 %v4489, %v4481
    %v5714 = vpack.c.b16 %v4490, %v4482
    %v5715 = vpack.c.b16 %v4491, %v4483
    %v5716 = vpack.c.b16 %v4492, %v4484
    %v5717 = vpack.c.b16 %v4493, %v4485
    %v5718 = vpack.c.b16 %v4494, %v4486
    %v5719 = vpack.c.b16 %v4503, %v4495
    %v5720 = vpack.c.b16 %v4504, %v4496
    %v5721 = vpack.c.b16 %v4505, %v4497
    %v5722 = vpack.c.b16 %v4506, %v4498
    %v5723 = vpack.c.b16 %v4507, %v4499
    %v5724 = vpack.c.b16 %v4508, %v4500
    %v5725 = vpack.c.b16 %v4509, %v4501
    %v5726 = vpack.c.b16 %v4510, %v4502
    %v5727 = vpack.c.b16 %v4519, %v4511
    %v5728 = vpack.c.b16 %v4520, %v4512
    %v5729 = vpack.c.b16 %v4521, %v4513
    %v5730 = vpack.c.b16 %v4522, %v4514
    %v5731 = vpack.c.b16 %v4523, %v4515
    %v5732 = vpack.c.b16 %v4524, %v4516
    %v5733 = vpack.c.b16 %v4525, %v4517
    %v5734 = vpack.c.b16 %v4526, %v4518
    %v5735 = vpack.c.b16 %v4535, %v4527
    %v5736 = vpack.c.b16 %v4536, %v4528
    %v5737 = vpack.c.b16 %v4537, %v4529
    %v5738 = vpack.c.b16 %v4538, %v4530
    %v5739 = vpack.c.b16 %v4539, %v4531
    %v5740 = vpack.c.b16 %v4540, %v4532
    %v5741 = vpack.c.b16 %v4541, %v4533
    %v5742 = vpack.c.b16 %v4542, %v4534
    %v5743 = vpack.c.b16 %v4551, %v4543
    %v5744 = vpack.c.b16 %v4552, %v4544
    %v5745 = vpack.c.b16 %v4553, %v4545
    %v5746 = vpack.c.b16 %v4554, %v4546
    %v5747 = vpack.c.b16 %v4555, %v4547
    %v5748 = vpack.c.b16 %v4556, %v4548
    %v5749 = vpack.c.b16 %v4557, %v4549
    %v5750 = vpack.c.b16 %v4558, %v4550
    %v5751 = vpack.c.b16 %v4567, %v4559
    %v5752 = vpack.c.b16 %v4568, %v4560
    %v5753 = vpack.c.b16 %v4569, %v4561
    %v5754 = vpack.c.b16 %v4570, %v4562
    %v5755 = vpack.c.b16 %v4571, %v4563
    %v5756 = vpack.c.b16 %v4572, %v4564
    %v5757 = vpack.c.b16 %v4573, %v4565
    %v5758 = vpack.c.b16 %v4574, %v4566
    %v5759 = vpack.c.b16 %v4583, %v4575
    %v5760 = vpack.c.b16 %v4584, %v4576
    %v5761 = vpack.c.b16 %v4585, %v4577
    %v5762 = vpack.c.b16 %v4586, %v4578
    %v5763 = vpack.c.b16 %v4587, %v4579
    %v5764 = vpack.c.b16 %v4588, %v4580
    %v5765 = vpack.c.b16 %v4589, %v4581
    %v5766 = vpack.c.b16 %v4590, %v4582
    %v5767 = vpack.c.b16 %v4599, %v4591
    %v5768 = vpack.c.b16 %v4600, %v4592
    %v5769 = vpack.c.b16 %v4601, %v4593
    %v5770 = vpack.c.b16 %v4602, %v4594
    %v5771 = vpack.c.b16 %v4603, %v4595
    %v5772 = vpack.c.b16 %v4604, %v4596
    %v5773 = vpack.c.b16 %v4605, %v4597
    %v5774 = vpack.c.b16 %v4606, %v4598
    %v5775 = vpack.c.b16 %v4615, %v4607
    %v5776 = vpack.c.b16 %v4616, %v4608
    %v5777 = vpack.c.b16 %v4617, %v4609
    %v5778 = vpack.c.b16 %v4618, %v4610
    %v5779 = vpack.c.b16 %v4619, %v4611
    %v5780 = vpack.c.b16 %v4620, %v4612
    %v5781 = vpack.c.b16 %v4621, %v4613
    %v5782 = vpack.c.b16 %v4622, %v4614
    %v5783 = vpack.c.b16 %v4631, %v4623
    %v5784 = vpack.c.b16 %v4632, %v4624
    %v5785 = vpack.c.b16 %v4633, %v4625
    %v5786 = vpack.c.b16 %v4634, %v4626
    %v5787 = vpack.c.b16 %v4635, %v4627
    %v5788 = vpack.c.b16 %v4636, %v4628
    %v5789 = vpack.c.b16 %v4637, %v4629
    %v5790 = vpack.c.b16 %v4638, %v4630
    %v5791 = vpack.c.b16 %v4647, %v4639
    %v5792 = vpack.c.b16 %v4648, %v4640
    %v5793 = vpack.c.b16 %v4649, %v4641
    %v5794 = vpack.c.b16 %v4650, %v4642
    %v5795 = vpack.c.b16 %v4651, %v4643
    %v5796 = vpack.c.b16 %v4652, %v4644
    %v5797 = vpack.c.b16 %v4653, %v4645
    %v5798 = vpack.c.b16 %v4654, %v4646
    %v5799 = vpack.c.b16 %v4663, %v4655
    %v5800 = vpack.c.b16 %v4664, %v4656
    %v5801 = vpack.c.b16 %v4665, %v4657
    %v5802 = vpack.c.b16 %v4666, %v4658
    %v5803 = vpack.c.b16 %v4667, %v4659
    %v5804 = vpack.c.b16 %v4668, %v4660
    %v5805 = vpack.c.b16 %v4669, %v4661
    %v5806 = vpack.c.b16 %v4670, %v4662
    %v5807 = vpack.c.b16 %v4679, %v4671
    %v5808 = vpack.c.b16 %v4680, %v4672
    %v5809 = vpack.c.b16 %v4681, %v4673
    %v5810 = vpack.c.b16 %v4682, %v4674
    %v5811 = vpack.c.b16 %v4683, %v4675
    %v5812 = vpack.c.b16 %v4684, %v4676
    %v5813 = vpack.c.b16 %v4685, %v4677
    %v5814 = vpack.c.b16 %v4686, %v4678
    %v5815 = vpack.c.b16 %v4695, %v4687
    %v5816 = vpack.c.b16 %v4696, %v4688
    %v5817 = vpack.c.b16 %v4697, %v4689
    %v5818 = vpack.c.b16 %v4698, %v4690
    %v5819 = vpack.c.b16 %v4699, %v4691
    %v5820 = vpack.c.b16 %v4700, %v4692
    %v5821 = vpack.c.b16 %v4701, %v4693
    %v5822 = vpack.c.b16 %v4702, %v4694
    %v5823 = vpack.c.b16 %v4711, %v4703
    %v5824 = vpack.c.b16 %v4712, %v4704
    %v5825 = vpack.c.b16 %v4713, %v4705
    %v5826 = vpack.c.b16 %v4714, %v4706
    %v5827 = vpack.c.b16 %v4715, %v4707
    %v5828 = vpack.c.b16 %v4716, %v4708
    %v5829 = vpack.c.b16 %v4717, %v4709
    %v5830 = vpack.c.b16 %v4718, %v4710
    %v5831 = vpack.c.b16 %v4727, %v4719
    %v5832 = vpack.c.b16 %v4728, %v4720
    %v5833 = vpack.c.b16 %v4729, %v4721
    %v5834 = vpack.c.b16 %v4730, %v4722
    %v5835 = vpack.c.b16 %v4731, %v4723
    %v5836 = vpack.c.b16 %v4732, %v4724
    %v5837 = vpack.c.b16 %v4733, %v4725
    %v5838 = vpack.c.b16 %v4734, %v4726
    %v5839 = vpack.c.b16 %v4743, %v4735
    %v5840 = vpack.c.b16 %v4744, %v4736
    %v5841 = vpack.c.b16 %v4745, %v4737
    %v5842 = vpack.c.b16 %v4746, %v4738
    %v5843 = vpack.c.b16 %v4747, %v4739
    %v5844 = vpack.c.b16 %v4748, %v4740
    %v5845 = vpack.c.b16 %v4749, %v4741
    %v5846 = vpack.c.b16 %v4750, %v4742
    %v5847 = vpack.c.b16 %v4759, %v4751
    %v5848 = vpack.c.b16 %v4760, %v4752
    %v5849 = vpack.c.b16 %v4761, %v4753
    %v5850 = vpack.c.b16 %v4762, %v4754
    %v5851 = vpack.c.b16 %v4763, %v4755
    %v5852 = vpack.c.b16 %v4764, %v4756
    %v5853 = vpack.c.b16 %v4765, %v4757
    %v5854 = vpack.c.b16 %v4766, %v4758
    %v5855 = vpack.c.b16 %v4775, %v4767
    %v5856 = vpack.c.b16 %v4776, %v4768
    %v5857 = vpack.c.b16 %v4777, %v4769
    %v5858 = vpack.c.b16 %v4778, %v4770
    %v5859 = vpack.c.b16 %v4779, %v4771
    %v5860 = vpack.c.b16 %v4780, %v4772
    %v5861 = vpack.c.b16 %v4781, %v4773
    %v5862 = vpack.c.b16 %v4782, %v4774
    %v5863 = vpack.c.b16 %v4791, %v4783
    %v5864 = vpack.c.b16 %v4792, %v4784
    %v5865 = vpack.c.b16 %v4793, %v4785
    %v5866 = vpack.c.b16 %v4794, %v4786
    %v5867 = vpack.c.b16 %v4795, %v4787
    %v5868 = vpack.c.b16 %v4796, %v4788
    %v5869 = vpack.c.b16 %v4797, %v4789
    %v5870 = vpack.c.b16 %v4798, %v4790
    %v5871 = vpack.c.b16 %v4807, %v4799
    %v5872 = vpack.c.b16 %v4808, %v4800
    %v5873 = vpack.c.b16 %v4809, %v4801
    %v5874 = vpack.c.b16 %v4810, %v4802
    %v5875 = vpack.c.b16 %v4811, %v4803
    %v5876 = vpack.c.b16 %v4812, %v4804
    %v5877 = vpack.c.b16 %v4813, %v4805
    %v5878 = vpack.c.b16 %v4814, %v4806
    %v5879 = vpack.c.b16 %v4823, %v4815
    %v5880 = vpack.c.b16 %v4824, %v4816
    %v5881 = vpack.c.b16 %v4825, %v4817
    %v5882 = vpack.c.b16 %v4826, %v4818
    %v5883 = vpack.c.b16 %v4827, %v4819
    %v5884 = vpack.c.b16 %v4828, %v4820
    %v5885 = vpack.c.b16 %v4829, %v4821
    %v5886 = vpack.c.b16 %v4830, %v4822
    %v5887 = vpack.c.b16 %v4839, %v4831
    %v5888 = vpack.c.b16 %v4840, %v4832
    %v5889 = vpack.c.b16 %v4841, %v4833
    %v5890 = vpack.c.b16 %v4842, %v4834
    %v5891 = vpack.c.b16 %v4843, %v4835
    %v5892 = vpack.c.b16 %v4844, %v4836
    %v5893 = vpack.c.b16 %v4845, %v4837
    %v5894 = vpack.c.b16 %v4846, %v4838
    %v5895 = vpack.c.b16 %v4855, %v4847
    %v5896 = vpack.c.b16 %v4856, %v4848
    %v5897 = vpack.c.b16 %v4857, %v4849
    %v5898 = vpack.c.b16 %v4858, %v4850
    %v5899 = vpack.c.b16 %v4859, %v4851
    %v5900 = vpack.c.b16 %v4860, %v4852
    %v5901 = vpack.c.b16 %v4861, %v4853
    %v5902 = vpack.c.b16 %v4862, %v4854
    %v5903 = vpack.c.b16 %v4871, %v4863
    %v5904 = vpack.c.b16 %v4872, %v4864
    %v5905 = vpack.c.b16 %v4873, %v4865
    %v5906 = vpack.c.b16 %v4874, %v4866
    %v5907 = vpack.c.b16 %v4875, %v4867
    %v5908 = vpack.c.b16 %v4876, %v4868
    %v5909 = vpack.c.b16 %v4877, %v4869
    %v5910 = vpack.c.b16 %v4878, %v4870
    %v5911 = vpack.c.b16 %v4887, %v4879
    %v5912 = vpack.c.b16 %v4888, %v4880
    %v5913 = vpack.c.b16 %v4889, %v4881
    %v5914 = vpack.c.b16 %v4890, %v4882
    %v5915 = vpack.c.b16 %v4891, %v4883
    %v5916 = vpack.c.b16 %v4892, %v4884
    %v5917 = vpack.c.b16 %v4893, %v4885
    %v5918 = vpack.c.b16 %v4894, %v4886
    %6943 = vmatprep.subr.bf16.mxu0 %v4896
    %6944 = vmatpush1.bf16.msra.mxu0 %v4895
    %6945 = vmatprep.subr.bf16.mxu0 %v4904
    %6946 = vmatpush1.bf16.msra.mxu0 %v4903
    %6947 = vmatprep.subr.bf16.mxu0 %v4912
    %6948 = vmatpush1.bf16.msra.mxu0 %v4911
    %6949 = vmatprep.subr.bf16.mxu0 %v4920
    %6950 = vmatpush1.bf16.msra.mxu0 %v4919
    %6951 = vmatprep.subr.bf16.mxu0 %v4928
    %6952 = vmatpush1.bf16.msra.mxu0 %v4927
    %6953 = vmatprep.subr.bf16.mxu0 %v4936
    %6954 = vmatpush1.bf16.msra.mxu0 %v4935
    %6955 = vmatprep.subr.bf16.mxu0 %v4944
    %6956 = vmatpush1.bf16.msra.mxu0 %v4943
    %6957 = vmatprep.subr.bf16.mxu0 %v4952
    %6958 = vmatpush1.bf16.msra.mxu0 %v4951
    %6959 = vmatprep.subr.bf16.mxu0 %v4960
    %6960 = vmatpush1.bf16.msra.mxu0 %v4959
    %6961 = vmatprep.subr.bf16.mxu0 %v4968
    %6962 = vmatpush1.bf16.msra.mxu0 %v4967
    %6963 = vmatprep.subr.bf16.mxu0 %v4976
    %6964 = vmatpush1.bf16.msra.mxu0 %v4975
    %6965 = vmatprep.subr.bf16.mxu0 %v4984
    %6966 = vmatpush1.bf16.msra.mxu0 %v4983
    %6967 = vmatprep.subr.bf16.mxu0 %v4992
    %6968 = vmatpush1.bf16.msra.mxu0 %v4991
    %6969 = vmatprep.subr.bf16.mxu0 %v5000
    %6970 = vmatpush1.bf16.msra.mxu0 %v4999
    %6971 = vmatprep.subr.bf16.mxu0 %v5008
    %6972 = vmatpush1.bf16.msra.mxu0 %v5007
    %6973 = vmatprep.subr.bf16.mxu0 %v5016
    %6974 = vmatpush1.bf16.msra.mxu0 %v5015
    %6975 = vmatprep.mubr.bf16.mxu0 %v742
    %6976 = vmatmul.mubr.bf16.gmra.mrb[0].mxu0 %v741
    %v6977 = vpop.f32.mrb[0].mxu0
    %v6978 = vadd.f32 %v1786, %v6977
    %v6979 = vpop.f32.mrb[0].mxu0
    %v6980 = vadd.f32 %v1790, %v6979
    %v6981 = vpop.f32.mrb[0].mxu0
    %v6982 = vpop.f32.mrb[0].mxu0
    %6983 = vdwg.mxu0
    %6984 = vmatprep.subr.bf16.mxu0 %v5024
    %6985 = vmatpush1.bf16.msra.mxu0 %v5023
    %6986 = vmatprep.subr.bf16.mxu0 %v5032
    %6987 = vmatpush1.bf16.msra.mxu0 %v5031
    %6988 = vmatprep.subr.bf16.mxu0 %v5040
    %6989 = vmatpush1.bf16.msra.mxu0 %v5039
    %6990 = vmatprep.subr.bf16.mxu0 %v5048
    %6991 = vmatpush1.bf16.msra.mxu0 %v5047
    %6992 = vmatprep.subr.bf16.mxu0 %v5056
    %6993 = vmatpush1.bf16.msra.mxu0 %v5055
    %6994 = vmatprep.subr.bf16.mxu0 %v5064
    %6995 = vmatpush1.bf16.msra.mxu0 %v5063
    %6996 = vmatprep.subr.bf16.mxu0 %v5072
    %6997 = vmatpush1.bf16.msra.mxu0 %v5071
    %6998 = vmatprep.subr.bf16.mxu0 %v5080
    %6999 = vmatpush1.bf16.msra.mxu0 %v5079
    %7000 = vmatprep.subr.bf16.mxu0 %v5088
    %7001 = vmatpush1.bf16.msra.mxu0 %v5087
    %7002 = vmatprep.subr.bf16.mxu0 %v5096
    %7003 = vmatpush1.bf16.msra.mxu0 %v5095
    %7004 = vmatprep.subr.bf16.mxu0 %v5104
    %7005 = vmatpush1.bf16.msra.mxu0 %v5103
    %7006 = vmatprep.subr.bf16.mxu0 %v5112
    %7007 = vmatpush1.bf16.msra.mxu0 %v5111
    %7008 = vmatprep.subr.bf16.mxu0 %v5120
    %7009 = vmatpush1.bf16.msra.mxu0 %v5119
    %7010 = vmatprep.subr.bf16.mxu0 %v5128
    %7011 = vmatpush1.bf16.msra.mxu0 %v5127
    %7012 = vmatprep.subr.bf16.mxu0 %v5136
    %7013 = vmatpush1.bf16.msra.mxu0 %v5135
    %7014 = vmatprep.subr.bf16.mxu0 %v5144
    %7015 = vmatpush1.bf16.msra.mxu0 %v5143
    %7016 = vmatprep.mubr.bf16.mxu0 %v744
    %7017 = vmatmul.mubr.bf16.gmra.mrb[0].mxu0 %v743
    %v7018 = vpop.f32.mrb[0].mxu0
    %v7019 = vadd.f32 %v6978, %v7018
    %v7020 = vpop.f32.mrb[0].mxu0
    %v7021 = vadd.f32 %v6980, %v7020
    %v7022 = vpop.f32.mrb[0].mxu0
    %v7023 = vpop.f32.mrb[0].mxu0
    %7024 = vdwg.mxu0
    %7025 = vmatprep.subr.bf16.mxu0 %v5152
    %7026 = vmatpush1.bf16.msra.mxu0 %v5151
    %7027 = vmatprep.subr.bf16.mxu0 %v5160
    %7028 = vmatpush1.bf16.msra.mxu0 %v5159
    %7029 = vmatprep.subr.bf16.mxu0 %v5168
    %7030 = vmatpush1.bf16.msra.mxu0 %v5167
    %7031 = vmatprep.subr.bf16.mxu0 %v5176
    %7032 = vmatpush1.bf16.msra.mxu0 %v5175
    %7033 = vmatprep.subr.bf16.mxu0 %v5184
    %7034 = vmatpush1.bf16.msra.mxu0 %v5183
    %7035 = vmatprep.subr.bf16.mxu0 %v5192
    %7036 = vmatpush1.bf16.msra.mxu0 %v5191
    %7037 = vmatprep.subr.bf16.mxu0 %v5200
    %7038 = vmatpush1.bf16.msra.mxu0 %v5199
    %7039 = vmatprep.subr.bf16.mxu0 %v5208
    %7040 = vmatpush1.bf16.msra.mxu0 %v5207
    %7041 = vmatprep.subr.bf16.mxu0 %v5216
    %7042 = vmatpush1.bf16.msra.mxu0 %v5215
    %7043 = vmatprep.subr.bf16.mxu0 %v5224
    %7044 = vmatpush1.bf16.msra.mxu0 %v5223
    %7045 = vmatprep.subr.bf16.mxu0 %v5232
    %7046 = vmatpush1.bf16.msra.mxu0 %v5231
    %7047 = vmatprep.subr.bf16.mxu0 %v5240
    %7048 = vmatpush1.bf16.msra.mxu0 %v5239
    %7049 = vmatprep.subr.bf16.mxu0 %v5248
    %7050 = vmatpush1.bf16.msra.mxu0 %v5247
    %7051 = vmatprep.subr.bf16.mxu0 %v5256
    %7052 = vmatpush1.bf16.msra.mxu0 %v5255
    %7053 = vmatprep.subr.bf16.mxu0 %v5264
    %7054 = vmatpush1.bf16.msra.mxu0 %v5263
    %7055 = vmatprep.subr.bf16.mxu0 %v5272
    %7056 = vmatpush1.bf16.msra.mxu0 %v5271
    %7057 = vmatprep.mubr.bf16.mxu0 %v746
    %7058 = vmatmul.mubr.bf16.gmra.mrb[0].mxu0 %v745
    %v7059 = vpop.f32.mrb[0].mxu0
    %v7060 = vadd.f32 %v7019, %v7059
    %v7061 = vpop.f32.mrb[0].mxu0
    %v7062 = vadd.f32 %v7021, %v7061
    %v7063 = vpop.f32.mrb[0].mxu0
    %v7064 = vpop.f32.mrb[0].mxu0
    %7065 = vdwg.mxu0
    %7066 = vmatprep.subr.bf16.mxu0 %v5280
    %7067 = vmatpush1.bf16.msra.mxu0 %v5279
    %7068 = vmatprep.subr.bf16.mxu0 %v5288
    %7069 = vmatpush1.bf16.msra.mxu0 %v5287
    %7070 = vmatprep.subr.bf16.mxu0 %v5296
    %7071 = vmatpush1.bf16.msra.mxu0 %v5295
    %7072 = vmatprep.subr.bf16.mxu0 %v5304
    %7073 = vmatpush1.bf16.msra.mxu0 %v5303
    %7074 = vmatprep.subr.bf16.mxu0 %v5312
    %7075 = vmatpush1.bf16.msra.mxu0 %v5311
    %7076 = vmatprep.subr.bf16.mxu0 %v5320
    %7077 = vmatpush1.bf16.msra.mxu0 %v5319
    %7078 = vmatprep.subr.bf16.mxu0 %v5328
    %7079 = vmatpush1.bf16.msra.mxu0 %v5327
    %7080 = vmatprep.subr.bf16.mxu0 %v5336
    %7081 = vmatpush1.bf16.msra.mxu0 %v5335
    %7082 = vmatprep.subr.bf16.mxu0 %v5344
    %7083 = vmatpush1.bf16.msra.mxu0 %v5343
    %7084 = vmatprep.subr.bf16.mxu0 %v5352
    %7085 = vmatpush1.bf16.msra.mxu0 %v5351
    %7086 = vmatprep.subr.bf16.mxu0 %v5360
    %7087 = vmatpush1.bf16.msra.mxu0 %v5359
    %7088 = vmatprep.subr.bf16.mxu0 %v5368
    %7089 = vmatpush1.bf16.msra.mxu0 %v5367
    %7090 = vmatprep.subr.bf16.mxu0 %v5376
    %7091 = vmatpush1.bf16.msra.mxu0 %v5375
    %7092 = vmatprep.subr.bf16.mxu0 %v5384
    %7093 = vmatpush1.bf16.msra.mxu0 %v5383
    %7094 = vmatprep.subr.bf16.mxu0 %v5392
    %7095 = vmatpush1.bf16.msra.mxu0 %v5391
    %7096 = vmatprep.subr.bf16.mxu0 %v5400
    %7097 = vmatpush1.bf16.msra.mxu0 %v5399
    %7098 = vmatprep.mubr.bf16.mxu0 %v748
    %7099 = vmatmul.mubr.bf16.gmra.mrb[0].mxu0 %v747
    %v7100 = vpop.f32.mrb[0].mxu0
    %v7101 = vadd.f32 %v7060, %v7100
    %v7102 = vpop.f32.mrb[0].mxu0
    %v7103 = vadd.f32 %v7062, %v7102
    %v7104 = vpop.f32.mrb[0].mxu0
    %v7105 = vpop.f32.mrb[0].mxu0
    %7106 = vdwg.mxu0
    %7107 = vmatprep.subr.bf16.mxu0 %v5408
    %7108 = vmatpush1.bf16.msra.mxu0 %v5407
    %7109 = vmatprep.subr.bf16.mxu0 %v5416
    %7110 = vmatpush1.bf16.msra.mxu0 %v5415
    %7111 = vmatprep.subr.bf16.mxu0 %v5424
    %7112 = vmatpush1.bf16.msra.mxu0 %v5423
    %7113 = vmatprep.subr.bf16.mxu0 %v5432
    %7114 = vmatpush1.bf16.msra.mxu0 %v5431
    %7115 = vmatprep.subr.bf16.mxu0 %v5440
    %7116 = vmatpush1.bf16.msra.mxu0 %v5439
    %7117 = vmatprep.subr.bf16.mxu0 %v5448
    %7118 = vmatpush1.bf16.msra.mxu0 %v5447
    %7119 = vmatprep.subr.bf16.mxu0 %v5456
    %7120 = vmatpush1.bf16.msra.mxu0 %v5455
    %7121 = vmatprep.subr.bf16.mxu0 %v5464
    %7122 = vmatpush1.bf16.msra.mxu0 %v5463
    %7123 = vmatprep.subr.bf16.mxu0 %v5472
    %7124 = vmatpush1.bf16.msra.mxu0 %v5471
    %7125 = vmatprep.subr.bf16.mxu0 %v5480
    %7126 = vmatpush1.bf16.msra.mxu0 %v5479
    %7127 = vmatprep.subr.bf16.mxu0 %v5488
    %7128 = vmatpush1.bf16.msra.mxu0 %v5487
    %7129 = vmatprep.subr.bf16.mxu0 %v5496
    %7130 = vmatpush1.bf16.msra.mxu0 %v5495
    %7131 = vmatprep.subr.bf16.mxu0 %v5504
    %7132 = vmatpush1.bf16.msra.mxu0 %v5503
    %7133 = vmatprep.subr.bf16.mxu0 %v5512
    %7134 = vmatpush1.bf16.msra.mxu0 %v5511
    %7135 = vmatprep.subr.bf16.mxu0 %v5520
    %7136 = vmatpush1.bf16.msra.mxu0 %v5519
    %7137 = vmatprep.subr.bf16.mxu0 %v5528
    %7138 = vmatpush1.bf16.msra.mxu0 %v5527
    %7139 = vmatprep.mubr.bf16.mxu0 %v750
    %7140 = vmatmul.mubr.bf16.gmra.mrb[0].mxu0 %v749
    %v7141 = vpop.f32.mrb[0].mxu0
    %v7142 = vadd.f32 %v7101, %v7141
    %v7143 = vpop.f32.mrb[0].mxu0
    %v7144 = vadd.f32 %v7103, %v7143
    %v7145 = vpop.f32.mrb[0].mxu0
    %v7146 = vpop.f32.mrb[0].mxu0
    %7147 = vdwg.mxu0
    %7148 = vmatprep.subr.bf16.mxu0 %v5536
    %7149 = vmatpush1.bf16.msra.mxu0 %v5535
    %7150 = vmatprep.subr.bf16.mxu0 %v5544
    %7151 = vmatpush1.bf16.msra.mxu0 %v5543
    %7152 = vmatprep.subr.bf16.mxu0 %v5552
    %7153 = vmatpush1.bf16.msra.mxu0 %v5551
    %7154 = vmatprep.subr.bf16.mxu0 %v5560
    %7155 = vmatpush1.bf16.msra.mxu0 %v5559
    %7156 = vmatprep.subr.bf16.mxu0 %v5568
    %7157 = vmatpush1.bf16.msra.mxu0 %v5567
    %7158 = vmatprep.subr.bf16.mxu0 %v5576
    %7159 = vmatpush1.bf16.msra.mxu0 %v5575
    %7160 = vmatprep.subr.bf16.mxu0 %v5584
    %7161 = vmatpush1.bf16.msra.mxu0 %v5583
    %7162 = vmatprep.subr.bf16.mxu0 %v5592
    %7163 = vmatpush1.bf16.msra.mxu0 %v5591
    %7164 = vmatprep.subr.bf16.mxu0 %v5600
    %7165 = vmatpush1.bf16.msra.mxu0 %v5599
    %7166 = vmatprep.subr.bf16.mxu0 %v5608
    %7167 = vmatpush1.bf16.msra.mxu0 %v5607
    %7168 = vmatprep.subr.bf16.mxu0 %v5616
    %7169 = vmatpush1.bf16.msra.mxu0 %v5615
    %7170 = vmatprep.subr.bf16.mxu0 %v5624
    %7171 = vmatpush1.bf16.msra.mxu0 %v5623
    %7172 = vmatprep.subr.bf16.mxu0 %v5632
    %7173 = vmatpush1.bf16.msra.mxu0 %v5631
    %7174 = vmatprep.subr.bf16.mxu0 %v5640
    %7175 = vmatpush1.bf16.msra.mxu0 %v5639
    %7176 = vmatprep.subr.bf16.mxu0 %v5648
    %7177 = vmatpush1.bf16.msra.mxu0 %v5647
    %7178 = vmatprep.subr.bf16.mxu0 %v5656
    %7179 = vmatpush1.bf16.msra.mxu0 %v5655
    %7180 = vmatprep.mubr.bf16.mxu0 %v752
    %7181 = vmatmul.mubr.bf16.gmra.mrb[0].mxu0 %v751
    %v7182 = vpop.f32.mrb[0].mxu0
    %v7183 = vadd.f32 %v7142, %v7182
    %v7184 = vpop.f32.mrb[0].mxu0
    %v7185 = vadd.f32 %v7144, %v7184
    %v7186 = vpop.f32.mrb[0].mxu0
    %v7187 = vpop.f32.mrb[0].mxu0
    %7188 = vdwg.mxu0
    %7189 = vmatprep.subr.bf16.mxu0 %v5664
    %7190 = vmatpush1.bf16.msra.mxu0 %v5663
    %7191 = vmatprep.subr.bf16.mxu0 %v5672
    %7192 = vmatpush1.bf16.msra.mxu0 %v5671
    %7193 = vmatprep.subr.bf16.mxu0 %v5680
    %7194 = vmatpush1.bf16.msra.mxu0 %v5679
    %7195 = vmatprep.subr.bf16.mxu0 %v5688
    %7196 = vmatpush1.bf16.msra.mxu0 %v5687
    %7197 = vmatprep.subr.bf16.mxu0 %v5696
    %7198 = vmatpush1.bf16.msra.mxu0 %v5695
    %7199 = vmatprep.subr.bf16.mxu0 %v5704
    %7200 = vmatpush1.bf16.msra.mxu0 %v5703
    %7201 = vmatprep.subr.bf16.mxu0 %v5712
    %7202 = vmatpush1.bf16.msra.mxu0 %v5711
    %7203 = vmatprep.subr.bf16.mxu0 %v5720
    %7204 = vmatpush1.bf16.msra.mxu0 %v5719
    %7205 = vmatprep.subr.bf16.mxu0 %v5728
    %7206 = vmatpush1.bf16.msra.mxu0 %v5727
    %7207 = vmatprep.subr.bf16.mxu0 %v5736
    %7208 = vmatpush1.bf16.msra.mxu0 %v5735
    %7209 = vmatprep.subr.bf16.mxu0 %v5744
    %7210 = vmatpush1.bf16.msra.mxu0 %v5743
    %7211 = vmatprep.subr.bf16.mxu0 %v5752
    %7212 = vmatpush1.bf16.msra.mxu0 %v5751
    %7213 = vmatprep.subr.bf16.mxu0 %v5760
    %7214 = vmatpush1.bf16.msra.mxu0 %v5759
    %7215 = vmatprep.subr.bf16.mxu0 %v5768
    %7216 = vmatpush1.bf16.msra.mxu0 %v5767
    %7217 = vmatprep.subr.bf16.mxu0 %v5776
    %7218 = vmatpush1.bf16.msra.mxu0 %v5775
    %7219 = vmatprep.subr.bf16.mxu0 %v5784
    %7220 = vmatpush1.bf16.msra.mxu0 %v5783
    %7221 = vmatprep.mubr.bf16.mxu0 %v754
    %7222 = vmatmul.mubr.bf16.gmra.mrb[0].mxu0 %v753
    %v7223 = vpop.f32.mrb[0].mxu0
    %v7224 = vadd.f32 %v7183, %v7223
    %v7225 = vpop.f32.mrb[0].mxu0
    %v7226 = vadd.f32 %v7185, %v7225
    %v7227 = vpop.f32.mrb[0].mxu0
    %v7228 = vpop.f32.mrb[0].mxu0
    %7229 = vdwg.mxu0
    %7230 = vmatprep.subr.bf16.mxu0 %v5792
    %7231 = vmatpush1.bf16.msra.mxu0 %v5791
    %7232 = vmatprep.subr.bf16.mxu0 %v5800
    %7233 = vmatpush1.bf16.msra.mxu0 %v5799
    %7234 = vmatprep.subr.bf16.mxu0 %v5808
    %7235 = vmatpush1.bf16.msra.mxu0 %v5807
    %7236 = vmatprep.subr.bf16.mxu0 %v5816
    %7237 = vmatpush1.bf16.msra.mxu0 %v5815
    %7238 = vmatprep.subr.bf16.mxu0 %v5824
    %7239 = vmatpush1.bf16.msra.mxu0 %v5823
    %7240 = vmatprep.subr.bf16.mxu0 %v5832
    %7241 = vmatpush1.bf16.msra.mxu0 %v5831
    %7242 = vmatprep.subr.bf16.mxu0 %v5840
    %7243 = vmatpush1.bf16.msra.mxu0 %v5839
    %7244 = vmatprep.subr.bf16.mxu0 %v5848
    %7245 = vmatpush1.bf16.msra.mxu0 %v5847
    %7246 = vmatprep.subr.bf16.mxu0 %v5856
    %7247 = vmatpush1.bf16.msra.mxu0 %v5855
    %7248 = vmatprep.subr.bf16.mxu0 %v5864
    %7249 = vmatpush1.bf16.msra.mxu0 %v5863
    %7250 = vmatprep.subr.bf16.mxu0 %v5872
    %7251 = vmatpush1.bf16.msra.mxu0 %v5871
    %7252 = vmatprep.subr.bf16.mxu0 %v5880
    %7253 = vmatpush1.bf16.msra.mxu0 %v5879
    %7254 = vmatprep.subr.bf16.mxu0 %v5888
    %7255 = vmatpush1.bf16.msra.mxu0 %v5887
    %7256 = vmatprep.subr.bf16.mxu0 %v5896
    %7257 = vmatpush1.bf16.msra.mxu0 %v5895
    %7258 = vmatprep.subr.bf16.mxu0 %v5904
    %7259 = vmatpush1.bf16.msra.mxu0 %v5903
    %7260 = vmatprep.subr.bf16.mxu0 %v5912
    %7261 = vmatpush1.bf16.msra.mxu0 %v5911
    %7262 = vmatprep.mubr.bf16.mxu0 %v756
    %7263 = vmatmul.mubr.bf16.gmra.mrb[0].mxu0 %v755
    %v7264 = vpop.f32.mrb[0].mxu0
    %v7265 = vadd.f32 %v7224, %v7264
    %v7266 = vpop.f32.mrb[0].mxu0
    %v7267 = vadd.f32 %v7226, %v7266
    %v7268 = vpop.f32.mrb[0].mxu0
    %v7269 = vpop.f32.mrb[0].mxu0
    %7270 = vdwg.mxu0
    %7271 = vmatprep.subr.bf16.mxu0 %v4898
    %7272 = vmatpush1.bf16.msra.mxu0 %v4897
    %7273 = vmatprep.subr.bf16.mxu0 %v4906
    %7274 = vmatpush1.bf16.msra.mxu0 %v4905
    %7275 = vmatprep.subr.bf16.mxu0 %v4914
    %7276 = vmatpush1.bf16.msra.mxu0 %v4913
    %7277 = vmatprep.subr.bf16.mxu0 %v4922
    %7278 = vmatpush1.bf16.msra.mxu0 %v4921
    %7279 = vmatprep.subr.bf16.mxu0 %v4930
    %7280 = vmatpush1.bf16.msra.mxu0 %v4929
    %7281 = vmatprep.subr.bf16.mxu0 %v4938
    %7282 = vmatpush1.bf16.msra.mxu0 %v4937
    %7283 = vmatprep.subr.bf16.mxu0 %v4946
    %7284 = vmatpush1.bf16.msra.mxu0 %v4945
    %7285 = vmatprep.subr.bf16.mxu0 %v4954
    %7286 = vmatpush1.bf16.msra.mxu0 %v4953
    %7287 = vmatprep.subr.bf16.mxu0 %v4962
    %7288 = vmatpush1.bf16.msra.mxu0 %v4961
    %7289 = vmatprep.subr.bf16.mxu0 %v4970
    %7290 = vmatpush1.bf16.msra.mxu0 %v4969
    %7291 = vmatprep.subr.bf16.mxu0 %v4978
    %7292 = vmatpush1.bf16.msra.mxu0 %v4977
    %7293 = vmatprep.subr.bf16.mxu0 %v4986
    %7294 = vmatpush1.bf16.msra.mxu0 %v4985
    %7295 = vmatprep.subr.bf16.mxu0 %v4994
    %7296 = vmatpush1.bf16.msra.mxu0 %v4993
    %7297 = vmatprep.subr.bf16.mxu0 %v5002
    %7298 = vmatpush1.bf16.msra.mxu0 %v5001
    %7299 = vmatprep.subr.bf16.mxu0 %v5010
    %7300 = vmatpush1.bf16.msra.mxu0 %v5009
    %7301 = vmatprep.subr.bf16.mxu0 %v5018
    %7302 = vmatpush1.bf16.msra.mxu0 %v5017
    %7303 = vmatprep.mubr.bf16.mxu0 %v742
    %7304 = vmatmul.mubr.bf16.gmra.mrb[0].mxu0 %v741
    %v7305 = vpop.f32.mrb[0].mxu0
    %v7306 = vadd.f32 %v1794, %v7305
    %v7307 = vpop.f32.mrb[0].mxu0
    %v7308 = vadd.f32 %v1798, %v7307
    %v7309 = vpop.f32.mrb[0].mxu0
    %v7310 = vpop.f32.mrb[0].mxu0
    %7311 = vdwg.mxu0
    %7312 = vmatprep.subr.bf16.mxu0 %v5026
    %7313 = vmatpush1.bf16.msra.mxu0 %v5025
    %7314 = vmatprep.subr.bf16.mxu0 %v5034
    %7315 = vmatpush1.bf16.msra.mxu0 %v5033
    %7316 = vmatprep.subr.bf16.mxu0 %v5042
    %7317 = vmatpush1.bf16.msra.mxu0 %v5041
    %7318 = vmatprep.subr.bf16.mxu0 %v5050
    %7319 = vmatpush1.bf16.msra.mxu0 %v5049
    %7320 = vmatprep.subr.bf16.mxu0 %v5058
    %7321 = vmatpush1.bf16.msra.mxu0 %v5057
    %7322 = vmatprep.subr.bf16.mxu0 %v5066
    %7323 = vmatpush1.bf16.msra.mxu0 %v5065
    %7324 = vmatprep.subr.bf16.mxu0 %v5074
    %7325 = vmatpush1.bf16.msra.mxu0 %v5073
    %7326 = vmatprep.subr.bf16.mxu0 %v5082
    %7327 = vmatpush1.bf16.msra.mxu0 %v5081
    %7328 = vmatprep.subr.bf16.mxu0 %v5090
    %7329 = vmatpush1.bf16.msra.mxu0 %v5089
    %7330 = vmatprep.subr.bf16.mxu0 %v5098
    %7331 = vmatpush1.bf16.msra.mxu0 %v5097
    %7332 = vmatprep.subr.bf16.mxu0 %v5106
    %7333 = vmatpush1.bf16.msra.mxu0 %v5105
    %7334 = vmatprep.subr.bf16.mxu0 %v5114
    %7335 = vmatpush1.bf16.msra.mxu0 %v5113
    %7336 = vmatprep.subr.bf16.mxu0 %v5122
    %7337 = vmatpush1.bf16.msra.mxu0 %v5121
    %7338 = vmatprep.subr.bf16.mxu0 %v5130
    %7339 = vmatpush1.bf16.msra.mxu0 %v5129
    %7340 = vmatprep.subr.bf16.mxu0 %v5138
    %7341 = vmatpush1.bf16.msra.mxu0 %v5137
    %7342 = vmatprep.subr.bf16.mxu0 %v5146
    %7343 = vmatpush1.bf16.msra.mxu0 %v5145
    %7344 = vmatprep.mubr.bf16.mxu0 %v744
    %7345 = vmatmul.mubr.bf16.gmra.mrb[0].mxu0 %v743
    %v7346 = vpop.f32.mrb[0].mxu0
    %v7347 = vadd.f32 %v7306, %v7346
    %v7348 = vpop.f32.mrb[0].mxu0
    %v7349 = vadd.f32 %v7308, %v7348
    %v7350 = vpop.f32.mrb[0].mxu0
    %v7351 = vpop.f32.mrb[0].mxu0
    %7352 = vdwg.mxu0
    %7353 = vmatprep.subr.bf16.mxu0 %v5154
    %7354 = vmatpush1.bf16.msra.mxu0 %v5153
    %7355 = vmatprep.subr.bf16.mxu0 %v5162
    %7356 = vmatpush1.bf16.msra.mxu0 %v5161
    %7357 = vmatprep.subr.bf16.mxu0 %v5170
    %7358 = vmatpush1.bf16.msra.mxu0 %v5169
    %7359 = vmatprep.subr.bf16.mxu0 %v5178
    %7360 = vmatpush1.bf16.msra.mxu0 %v5177
    %7361 = vmatprep.subr.bf16.mxu0 %v5186
    %7362 = vmatpush1.bf16.msra.mxu0 %v5185
    %7363 = vmatprep.subr.bf16.mxu0 %v5194
    %7364 = vmatpush1.bf16.msra.mxu0 %v5193
    %7365 = vmatprep.subr.bf16.mxu0 %v5202
    %7366 = vmatpush1.bf16.msra.mxu0 %v5201
    %7367 = vmatprep.subr.bf16.mxu0 %v5210
    %7368 = vmatpush1.bf16.msra.mxu0 %v5209
    %7369 = vmatprep.subr.bf16.mxu0 %v5218
    %7370 = vmatpush1.bf16.msra.mxu0 %v5217
    %7371 = vmatprep.subr.bf16.mxu0 %v5226
    %7372 = vmatpush1.bf16.msra.mxu0 %v5225
    %7373 = vmatprep.subr.bf16.mxu0 %v5234
    %7374 = vmatpush1.bf16.msra.mxu0 %v5233
    %7375 = vmatprep.subr.bf16.mxu0 %v5242
    %7376 = vmatpush1.bf16.msra.mxu0 %v5241
    %7377 = vmatprep.subr.bf16.mxu0 %v5250
    %7378 = vmatpush1.bf16.msra.mxu0 %v5249
    %7379 = vmatprep.subr.bf16.mxu0 %v5258
    %7380 = vmatpush1.bf16.msra.mxu0 %v5257
    %7381 = vmatprep.subr.bf16.mxu0 %v5266
    %7382 = vmatpush1.bf16.msra.mxu0 %v5265
    %7383 = vmatprep.subr.bf16.mxu0 %v5274
    %7384 = vmatpush1.bf16.msra.mxu0 %v5273
    %7385 = vmatprep.mubr.bf16.mxu0 %v746
    %7386 = vmatmul.mubr.bf16.gmra.mrb[0].mxu0 %v745
    %v7387 = vpop.f32.mrb[0].mxu0
    %v7388 = vadd.f32 %v7347, %v7387
    %v7389 = vpop.f32.mrb[0].mxu0
    %v7390 = vadd.f32 %v7349, %v7389
    %v7391 = vpop.f32.mrb[0].mxu0
    %v7392 = vpop.f32.mrb[0].mxu0
    %7393 = vdwg.mxu0
    %7394 = vmatprep.subr.bf16.mxu0 %v5282
    %7395 = vmatpush1.bf16.msra.mxu0 %v5281
    %7396 = vmatprep.subr.bf16.mxu0 %v5290
    %7397 = vmatpush1.bf16.msra.mxu0 %v5289
    %7398 = vmatprep.subr.bf16.mxu0 %v5298
    %7399 = vmatpush1.bf16.msra.mxu0 %v5297
    %7400 = vmatprep.subr.bf16.mxu0 %v5306
    %7401 = vmatpush1.bf16.msra.mxu0 %v5305
    %7402 = vmatprep.subr.bf16.mxu0 %v5314
    %7403 = vmatpush1.bf16.msra.mxu0 %v5313
    %7404 = vmatprep.subr.bf16.mxu0 %v5322
    %7405 = vmatpush1.bf16.msra.mxu0 %v5321
    %7406 = vmatprep.subr.bf16.mxu0 %v5330
    %7407 = vmatpush1.bf16.msra.mxu0 %v5329
    %7408 = vmatprep.subr.bf16.mxu0 %v5338
    %7409 = vmatpush1.bf16.msra.mxu0 %v5337
    %7410 = vmatprep.subr.bf16.mxu0 %v5346
    %7411 = vmatpush1.bf16.msra.mxu0 %v5345
    %7412 = vmatprep.subr.bf16.mxu0 %v5354
    %7413 = vmatpush1.bf16.msra.mxu0 %v5353
    %7414 = vmatprep.subr.bf16.mxu0 %v5362
    %7415 = vmatpush1.bf16.msra.mxu0 %v5361
    %7416 = vmatprep.subr.bf16.mxu0 %v5370
    %7417 = vmatpush1.bf16.msra.mxu0 %v5369
    %7418 = vmatprep.subr.bf16.mxu0 %v5378
    %7419 = vmatpush1.bf16.msra.mxu0 %v5377
    %7420 = vmatprep.subr.bf16.mxu0 %v5386
    %7421 = vmatpush1.bf16.msra.mxu0 %v5385
    %7422 = vmatprep.subr.bf16.mxu0 %v5394
    %7423 = vmatpush1.bf16.msra.mxu0 %v5393
    %7424 = vmatprep.subr.bf16.mxu0 %v5402
    %7425 = vmatpush1.bf16.msra.mxu0 %v5401
    %7426 = vmatprep.mubr.bf16.mxu0 %v748
    %7427 = vmatmul.mubr.bf16.gmra.mrb[0].mxu0 %v747
    %v7428 = vpop.f32.mrb[0].mxu0
    %v7429 = vadd.f32 %v7388, %v7428
    %v7430 = vpop.f32.mrb[0].mxu0
    %v7431 = vadd.f32 %v7390, %v7430
    %v7432 = vpop.f32.mrb[0].mxu0
    %v7433 = vpop.f32.mrb[0].mxu0
    %7434 = vdwg.mxu0
    %7435 = vmatprep.subr.bf16.mxu0 %v5410
    %7436 = vmatpush1.bf16.msra.mxu0 %v5409
    %7437 = vmatprep.subr.bf16.mxu0 %v5418
    %7438 = vmatpush1.bf16.msra.mxu0 %v5417
    %7439 = vmatprep.subr.bf16.mxu0 %v5426
    %7440 = vmatpush1.bf16.msra.mxu0 %v5425
    %7441 = vmatprep.subr.bf16.mxu0 %v5434
    %7442 = vmatpush1.bf16.msra.mxu0 %v5433
    %7443 = vmatprep.subr.bf16.mxu0 %v5442
    %7444 = vmatpush1.bf16.msra.mxu0 %v5441
    %7445 = vmatprep.subr.bf16.mxu0 %v5450
    %7446 = vmatpush1.bf16.msra.mxu0 %v5449
    %7447 = vmatprep.subr.bf16.mxu0 %v5458
    %7448 = vmatpush1.bf16.msra.mxu0 %v5457
    %7449 = vmatprep.subr.bf16.mxu0 %v5466
    %7450 = vmatpush1.bf16.msra.mxu0 %v5465
    %7451 = vmatprep.subr.bf16.mxu0 %v5474
    %7452 = vmatpush1.bf16.msra.mxu0 %v5473
    %7453 = vmatprep.subr.bf16.mxu0 %v5482
    %7454 = vmatpush1.bf16.msra.mxu0 %v5481
    %7455 = vmatprep.subr.bf16.mxu0 %v5490
    %7456 = vmatpush1.bf16.msra.mxu0 %v5489
    %7457 = vmatprep.subr.bf16.mxu0 %v5498
    %7458 = vmatpush1.bf16.msra.mxu0 %v5497
    %7459 = vmatprep.subr.bf16.mxu0 %v5506
    %7460 = vmatpush1.bf16.msra.mxu0 %v5505
    %7461 = vmatprep.subr.bf16.mxu0 %v5514
    %7462 = vmatpush1.bf16.msra.mxu0 %v5513
    %7463 = vmatprep.subr.bf16.mxu0 %v5522
    %7464 = vmatpush1.bf16.msra.mxu0 %v5521
    %7465 = vmatprep.subr.bf16.mxu0 %v5530
    %7466 = vmatpush1.bf16.msra.mxu0 %v5529
    %7467 = vmatprep.mubr.bf16.mxu0 %v750
    %7468 = vmatmul.mubr.bf16.gmra.mrb[0].mxu0 %v749
    %v7469 = vpop.f32.mrb[0].mxu0
    %v7470 = vadd.f32 %v7429, %v7469
    %v7471 = vpop.f32.mrb[0].mxu0
    %v7472 = vadd.f32 %v7431, %v7471
    %v7473 = vpop.f32.mrb[0].mxu0
    %v7474 = vpop.f32.mrb[0].mxu0
    %7475 = vdwg.mxu0
    %7476 = vmatprep.subr.bf16.mxu0 %v5538
    %7477 = vmatpush1.bf16.msra.mxu0 %v5537
    %7478 = vmatprep.subr.bf16.mxu0 %v5546
    %7479 = vmatpush1.bf16.msra.mxu0 %v5545
    %7480 = vmatprep.subr.bf16.mxu0 %v5554
    %7481 = vmatpush1.bf16.msra.mxu0 %v5553
    %7482 = vmatprep.subr.bf16.mxu0 %v5562
    %7483 = vmatpush1.bf16.msra.mxu0 %v5561
    %7484 = vmatprep.subr.bf16.mxu0 %v5570
    %7485 = vmatpush1.bf16.msra.mxu0 %v5569
    %7486 = vmatprep.subr.bf16.mxu0 %v5578
    %7487 = vmatpush1.bf16.msra.mxu0 %v5577
    %7488 = vmatprep.subr.bf16.mxu0 %v5586
    %7489 = vmatpush1.bf16.msra.mxu0 %v5585
    %7490 = vmatprep.subr.bf16.mxu0 %v5594
    %7491 = vmatpush1.bf16.msra.mxu0 %v5593
    %7492 = vmatprep.subr.bf16.mxu0 %v5602
    %7493 = vmatpush1.bf16.msra.mxu0 %v5601
    %7494 = vmatprep.subr.bf16.mxu0 %v5610
    %7495 = vmatpush1.bf16.msra.mxu0 %v5609
    %7496 = vmatprep.subr.bf16.mxu0 %v5618
    %7497 = vmatpush1.bf16.msra.mxu0 %v5617
    %7498 = vmatprep.subr.bf16.mxu0 %v5626
    %7499 = vmatpush1.bf16.msra.mxu0 %v5625
    %7500 = vmatprep.subr.bf16.mxu0 %v5634
    %7501 = vmatpush1.bf16.msra.mxu0 %v5633
    %7502 = vmatprep.subr.bf16.mxu0 %v5642
    %7503 = vmatpush1.bf16.msra.mxu0 %v5641
    %7504 = vmatprep.subr.bf16.mxu0 %v5650
    %7505 = vmatpush1.bf16.msra.mxu0 %v5649
    %7506 = vmatprep.subr.bf16.mxu0 %v5658
    %7507 = vmatpush1.bf16.msra.mxu0 %v5657
    %7508 = vmatprep.mubr.bf16.mxu0 %v752
    %7509 = vmatmul.mubr.bf16.gmra.mrb[0].mxu0 %v751
    %v7510 = vpop.f32.mrb[0].mxu0
    %v7511 = vadd.f32 %v7470, %v7510
    %v7512 = vpop.f32.mrb[0].mxu0
    %v7513 = vadd.f32 %v7472, %v7512
    %v7514 = vpop.f32.mrb[0].mxu0
    %v7515 = vpop.f32.mrb[0].mxu0
    %7516 = vdwg.mxu0
    %7517 = vmatprep.subr.bf16.mxu0 %v5666
    %7518 = vmatpush1.bf16.msra.mxu0 %v5665
    %7519 = vmatprep.subr.bf16.mxu0 %v5674
    %7520 = vmatpush1.bf16.msra.mxu0 %v5673
    %7521 = vmatprep.subr.bf16.mxu0 %v5682
    %7522 = vmatpush1.bf16.msra.mxu0 %v5681
    %7523 = vmatprep.subr.bf16.mxu0 %v5690
    %7524 = vmatpush1.bf16.msra.mxu0 %v5689
    %7525 = vmatprep.subr.bf16.mxu0 %v5698
    %7526 = vmatpush1.bf16.msra.mxu0 %v5697
    %7527 = vmatprep.subr.bf16.mxu0 %v5706
    %7528 = vmatpush1.bf16.msra.mxu0 %v5705
    %7529 = vmatprep.subr.bf16.mxu0 %v5714
    %7530 = vmatpush1.bf16.msra.mxu0 %v5713
    %7531 = vmatprep.subr.bf16.mxu0 %v5722
    %7532 = vmatpush1.bf16.msra.mxu0 %v5721
    %7533 = vmatprep.subr.bf16.mxu0 %v5730
    %7534 = vmatpush1.bf16.msra.mxu0 %v5729
    %7535 = vmatprep.subr.bf16.mxu0 %v5738
    %7536 = vmatpush1.bf16.msra.mxu0 %v5737
    %7537 = vmatprep.subr.bf16.mxu0 %v5746
    %7538 = vmatpush1.bf16.msra.mxu0 %v5745
    %7539 = vmatprep.subr.bf16.mxu0 %v5754
    %7540 = vmatpush1.bf16.msra.mxu0 %v5753
    %7541 = vmatprep.subr.bf16.mxu0 %v5762
    %7542 = vmatpush1.bf16.msra.mxu0 %v5761
    %7543 = vmatprep.subr.bf16.mxu0 %v5770
    %7544 = vmatpush1.bf16.msra.mxu0 %v5769
    %7545 = vmatprep.subr.bf16.mxu0 %v5778
    %7546 = vmatpush1.bf16.msra.mxu0 %v5777
    %7547 = vmatprep.subr.bf16.mxu0 %v5786
    %7548 = vmatpush1.bf16.msra.mxu0 %v5785
    %7549 = vmatprep.mubr.bf16.mxu0 %v754
    %7550 = vmatmul.mubr.bf16.gmra.mrb[0].mxu0 %v753
    %v7551 = vpop.f32.mrb[0].mxu0
    %v7552 = vadd.f32 %v7511, %v7551
    %v7553 = vpop.f32.mrb[0].mxu0
    %v7554 = vadd.f32 %v7513, %v7553
    %v7555 = vpop.f32.mrb[0].mxu0
    %v7556 = vpop.f32.mrb[0].mxu0
    %7557 = vdwg.mxu0
    %7558 = vmatprep.subr.bf16.mxu0 %v5794
    %7559 = vmatpush1.bf16.msra.mxu0 %v5793
    %7560 = vmatprep.subr.bf16.mxu0 %v5802
    %7561 = vmatpush1.bf16.msra.mxu0 %v5801
    %7562 = vmatprep.subr.bf16.mxu0 %v5810
    %7563 = vmatpush1.bf16.msra.mxu0 %v5809
    %7564 = vmatprep.subr.bf16.mxu0 %v5818
    %7565 = vmatpush1.bf16.msra.mxu0 %v5817
    %7566 = vmatprep.subr.bf16.mxu0 %v5826
    %7567 = vmatpush1.bf16.msra.mxu0 %v5825
    %7568 = vmatprep.subr.bf16.mxu0 %v5834
    %7569 = vmatpush1.bf16.msra.mxu0 %v5833
    %7570 = vmatprep.subr.bf16.mxu0 %v5842
    %7571 = vmatpush1.bf16.msra.mxu0 %v5841
    %7572 = vmatprep.subr.bf16.mxu0 %v5850
    %7573 = vmatpush1.bf16.msra.mxu0 %v5849
    %7574 = vmatprep.subr.bf16.mxu0 %v5858
    %7575 = vmatpush1.bf16.msra.mxu0 %v5857
    %7576 = vmatprep.subr.bf16.mxu0 %v5866
    %7577 = vmatpush1.bf16.msra.mxu0 %v5865
    %7578 = vmatprep.subr.bf16.mxu0 %v5874
    %7579 = vmatpush1.bf16.msra.mxu0 %v5873
    %7580 = vmatprep.subr.bf16.mxu0 %v5882
    %7581 = vmatpush1.bf16.msra.mxu0 %v5881
    %7582 = vmatprep.subr.bf16.mxu0 %v5890
    %7583 = vmatpush1.bf16.msra.mxu0 %v5889
    %7584 = vmatprep.subr.bf16.mxu0 %v5898
    %7585 = vmatpush1.bf16.msra.mxu0 %v5897
    %7586 = vmatprep.subr.bf16.mxu0 %v5906
    %7587 = vmatpush1.bf16.msra.mxu0 %v5905
    %7588 = vmatprep.subr.bf16.mxu0 %v5914
    %7589 = vmatpush1.bf16.msra.mxu0 %v5913
    %7590 = vmatprep.mubr.bf16.mxu0 %v756
    %7591 = vmatmul.mubr.bf16.gmra.mrb[0].mxu0 %v755
    %v7592 = vpop.f32.mrb[0].mxu0
    %v7593 = vadd.f32 %v7552, %v7592
    %v7594 = vpop.f32.mrb[0].mxu0
    %v7595 = vadd.f32 %v7554, %v7594
    %v7596 = vpop.f32.mrb[0].mxu0
    %v7597 = vpop.f32.mrb[0].mxu0
    %7598 = vdwg.mxu0
    %7599 = vmatprep.subr.bf16.mxu0 %v4900
    %7600 = vmatpush1.bf16.msra.mxu0 %v4899
    %7601 = vmatprep.subr.bf16.mxu0 %v4908
    %7602 = vmatpush1.bf16.msra.mxu0 %v4907
    %7603 = vmatprep.subr.bf16.mxu0 %v4916
    %7604 = vmatpush1.bf16.msra.mxu0 %v4915
    %7605 = vmatprep.subr.bf16.mxu0 %v4924
    %7606 = vmatpush1.bf16.msra.mxu0 %v4923
    %7607 = vmatprep.subr.bf16.mxu0 %v4932
    %7608 = vmatpush1.bf16.msra.mxu0 %v4931
    %7609 = vmatprep.subr.bf16.mxu0 %v4940
    %7610 = vmatpush1.bf16.msra.mxu0 %v4939
    %7611 = vmatprep.subr.bf16.mxu0 %v4948
    %7612 = vmatpush1.bf16.msra.mxu0 %v4947
    %7613 = vmatprep.subr.bf16.mxu0 %v4956
    %7614 = vmatpush1.bf16.msra.mxu0 %v4955
    %7615 = vmatprep.subr.bf16.mxu0 %v4964
    %7616 = vmatpush1.bf16.msra.mxu0 %v4963
    %7617 = vmatprep.subr.bf16.mxu0 %v4972
    %7618 = vmatpush1.bf16.msra.mxu0 %v4971
    %7619 = vmatprep.subr.bf16.mxu0 %v4980
    %7620 = vmatpush1.bf16.msra.mxu0 %v4979
    %7621 = vmatprep.subr.bf16.mxu0 %v4988
    %7622 = vmatpush1.bf16.msra.mxu0 %v4987
    %7623 = vmatprep.subr.bf16.mxu0 %v4996
    %7624 = vmatpush1.bf16.msra.mxu0 %v4995
    %7625 = vmatprep.subr.bf16.mxu0 %v5004
    %7626 = vmatpush1.bf16.msra.mxu0 %v5003
    %7627 = vmatprep.subr.bf16.mxu0 %v5012
    %7628 = vmatpush1.bf16.msra.mxu0 %v5011
    %7629 = vmatprep.subr.bf16.mxu0 %v5020
    %7630 = vmatpush1.bf16.msra.mxu0 %v5019
    %7631 = vmatprep.mubr.bf16.mxu0 %v742
    %7632 = vmatmul.mubr.bf16.gmra.mrb[0].mxu0 %v741
    %v7633 = vpop.f32.mrb[0].mxu0
    %v7634 = vadd.f32 %v1802, %v7633
    %v7635 = vpop.f32.mrb[0].mxu0
    %v7636 = vadd.f32 %v1806, %v7635
    %v7637 = vpop.f32.mrb[0].mxu0
    %v7638 = vpop.f32.mrb[0].mxu0
    %7639 = vdwg.mxu0
    %7640 = vmatprep.subr.bf16.mxu0 %v5028
    %7641 = vmatpush1.bf16.msra.mxu0 %v5027
    %7642 = vmatprep.subr.bf16.mxu0 %v5036
    %7643 = vmatpush1.bf16.msra.mxu0 %v5035
    %7644 = vmatprep.subr.bf16.mxu0 %v5044
    %7645 = vmatpush1.bf16.msra.mxu0 %v5043
    %7646 = vmatprep.subr.bf16.mxu0 %v5052
    %7647 = vmatpush1.bf16.msra.mxu0 %v5051
    %7648 = vmatprep.subr.bf16.mxu0 %v5060
    %7649 = vmatpush1.bf16.msra.mxu0 %v5059
    %7650 = vmatprep.subr.bf16.mxu0 %v5068
    %7651 = vmatpush1.bf16.msra.mxu0 %v5067
    %7652 = vmatprep.subr.bf16.mxu0 %v5076
    %7653 = vmatpush1.bf16.msra.mxu0 %v5075
    %7654 = vmatprep.subr.bf16.mxu0 %v5084
    %7655 = vmatpush1.bf16.msra.mxu0 %v5083
    %7656 = vmatprep.subr.bf16.mxu0 %v5092
    %7657 = vmatpush1.bf16.msra.mxu0 %v5091
    %7658 = vmatprep.subr.bf16.mxu0 %v5100
    %7659 = vmatpush1.bf16.msra.mxu0 %v5099
    %7660 = vmatprep.subr.bf16.mxu0 %v5108
    %7661 = vmatpush1.bf16.msra.mxu0 %v5107
    %7662 = vmatprep.subr.bf16.mxu0 %v5116
    %7663 = vmatpush1.bf16.msra.mxu0 %v5115
    %7664 = vmatprep.subr.bf16.mxu0 %v5124
    %7665 = vmatpush1.bf16.msra.mxu0 %v5123
    %7666 = vmatprep.subr.bf16.mxu0 %v5132
    %7667 = vmatpush1.bf16.msra.mxu0 %v5131
    %7668 = vmatprep.subr.bf16.mxu0 %v5140
    %7669 = vmatpush1.bf16.msra.mxu0 %v5139
    %7670 = vmatprep.subr.bf16.mxu0 %v5148
    %7671 = vmatpush1.bf16.msra.mxu0 %v5147
    %7672 = vmatprep.mubr.bf16.mxu0 %v744
    %7673 = vmatmul.mubr.bf16.gmra.mrb[0].mxu0 %v743
    %v7674 = vpop.f32.mrb[0].mxu0
    %v7675 = vadd.f32 %v7634, %v7674
    %v7676 = vpop.f32.mrb[0].mxu0
    %v7677 = vadd.f32 %v7636, %v7676
    %v7678 = vpop.f32.mrb[0].mxu0
    %v7679 = vpop.f32.mrb[0].mxu0
    %7680 = vdwg.mxu0
    %7681 = vmatprep.subr.bf16.mxu0 %v5156
    %7682 = vmatpush1.bf16.msra.mxu0 %v5155
    %7683 = vmatprep.subr.bf16.mxu0 %v5164
    %7684 = vmatpush1.bf16.msra.mxu0 %v5163
    %7685 = vmatprep.subr.bf16.mxu0 %v5172
    %7686 = vmatpush1.bf16.msra.mxu0 %v5171
    %7687 = vmatprep.subr.bf16.mxu0 %v5180
    %7688 = vmatpush1.bf16.msra.mxu0 %v5179
    %7689 = vmatprep.subr.bf16.mxu0 %v5188
    %7690 = vmatpush1.bf16.msra.mxu0 %v5187
    %7691 = vmatprep.subr.bf16.mxu0 %v5196
    %7692 = vmatpush1.bf16.msra.mxu0 %v5195
    %7693 = vmatprep.subr.bf16.mxu0 %v5204
    %7694 = vmatpush1.bf16.msra.mxu0 %v5203
    %7695 = vmatprep.subr.bf16.mxu0 %v5212
    %7696 = vmatpush1.bf16.msra.mxu0 %v5211
    %7697 = vmatprep.subr.bf16.mxu0 %v5220
    %7698 = vmatpush1.bf16.msra.mxu0 %v5219
    %7699 = vmatprep.subr.bf16.mxu0 %v5228
    %7700 = vmatpush1.bf16.msra.mxu0 %v5227
    %7701 = vmatprep.subr.bf16.mxu0 %v5236
    %7702 = vmatpush1.bf16.msra.mxu0 %v5235
    %7703 = vmatprep.subr.bf16.mxu0 %v5244
    %7704 = vmatpush1.bf16.msra.mxu0 %v5243
    %7705 = vmatprep.subr.bf16.mxu0 %v5252
    %7706 = vmatpush1.bf16.msra.mxu0 %v5251
    %7707 = vmatprep.subr.bf16.mxu0 %v5260
    %7708 = vmatpush1.bf16.msra.mxu0 %v5259
    %7709 = vmatprep.subr.bf16.mxu0 %v5268
    %7710 = vmatpush1.bf16.msra.mxu0 %v5267
    %7711 = vmatprep.subr.bf16.mxu0 %v5276
    %7712 = vmatpush1.bf16.msra.mxu0 %v5275
    %7713 = vmatprep.mubr.bf16.mxu0 %v746
    %7714 = vmatmul.mubr.bf16.gmra.mrb[0].mxu0 %v745
    %v7715 = vpop.f32.mrb[0].mxu0
    %v7716 = vadd.f32 %v7675, %v7715
    %v7717 = vpop.f32.mrb[0].mxu0
    %v7718 = vadd.f32 %v7677, %v7717
    %v7719 = vpop.f32.mrb[0].mxu0
    %v7720 = vpop.f32.mrb[0].mxu0
    %7721 = vdwg.mxu0
    %7722 = vmatprep.subr.bf16.mxu0 %v5284
    %7723 = vmatpush1.bf16.msra.mxu0 %v5283
    %7724 = vmatprep.subr.bf16.mxu0 %v5292
    %7725 = vmatpush1.bf16.msra.mxu0 %v5291
    %7726 = vmatprep.subr.bf16.mxu0 %v5300
    %7727 = vmatpush1.bf16.msra.mxu0 %v5299
    %7728 = vmatprep.subr.bf16.mxu0 %v5308
    %7729 = vmatpush1.bf16.msra.mxu0 %v5307
    %7730 = vmatprep.subr.bf16.mxu0 %v5316
    %7731 = vmatpush1.bf16.msra.mxu0 %v5315
    %7732 = vmatprep.subr.bf16.mxu0 %v5324
    %7733 = vmatpush1.bf16.msra.mxu0 %v5323
    %7734 = vmatprep.subr.bf16.mxu0 %v5332
    %7735 = vmatpush1.bf16.msra.mxu0 %v5331
    %7736 = vmatprep.subr.bf16.mxu0 %v5340
    %7737 = vmatpush1.bf16.msra.mxu0 %v5339
    %7738 = vmatprep.subr.bf16.mxu0 %v5348
    %7739 = vmatpush1.bf16.msra.mxu0 %v5347
    %7740 = vmatprep.subr.bf16.mxu0 %v5356
    %7741 = vmatpush1.bf16.msra.mxu0 %v5355
    %7742 = vmatprep.subr.bf16.mxu0 %v5364
    %7743 = vmatpush1.bf16.msra.mxu0 %v5363
    %7744 = vmatprep.subr.bf16.mxu0 %v5372
    %7745 = vmatpush1.bf16.msra.mxu0 %v5371
    %7746 = vmatprep.subr.bf16.mxu0 %v5380
    %7747 = vmatpush1.bf16.msra.mxu0 %v5379
    %7748 = vmatprep.subr.bf16.mxu0 %v5388
    %7749 = vmatpush1.bf16.msra.mxu0 %v5387
    %7750 = vmatprep.subr.bf16.mxu0 %v5396
    %7751 = vmatpush1.bf16.msra.mxu0 %v5395
    %7752 = vmatprep.subr.bf16.mxu0 %v5404
    %7753 = vmatpush1.bf16.msra.mxu0 %v5403
    %7754 = vmatprep.mubr.bf16.mxu0 %v748
    %7755 = vmatmul.mubr.bf16.gmra.mrb[0].mxu0 %v747
    %v7756 = vpop.f32.mrb[0].mxu0
    %v7757 = vadd.f32 %v7716, %v7756
    %v7758 = vpop.f32.mrb[0].mxu0
    %v7759 = vadd.f32 %v7718, %v7758
    %v7760 = vpop.f32.mrb[0].mxu0
    %v7761 = vpop.f32.mrb[0].mxu0
    %7762 = vdwg.mxu0
    %7763 = vmatprep.subr.bf16.mxu0 %v5412
    %7764 = vmatpush1.bf16.msra.mxu0 %v5411
    %7765 = vmatprep.subr.bf16.mxu0 %v5420
    %7766 = vmatpush1.bf16.msra.mxu0 %v5419
    %7767 = vmatprep.subr.bf16.mxu0 %v5428
    %7768 = vmatpush1.bf16.msra.mxu0 %v5427
    %7769 = vmatprep.subr.bf16.mxu0 %v5436
    %7770 = vmatpush1.bf16.msra.mxu0 %v5435
    %7771 = vmatprep.subr.bf16.mxu0 %v5444
    %7772 = vmatpush1.bf16.msra.mxu0 %v5443
    %7773 = vmatprep.subr.bf16.mxu0 %v5452
    %7774 = vmatpush1.bf16.msra.mxu0 %v5451
    %7775 = vmatprep.subr.bf16.mxu0 %v5460
    %7776 = vmatpush1.bf16.msra.mxu0 %v5459
    %7777 = vmatprep.subr.bf16.mxu0 %v5468
    %7778 = vmatpush1.bf16.msra.mxu0 %v5467
    %7779 = vmatprep.subr.bf16.mxu0 %v5476
    %7780 = vmatpush1.bf16.msra.mxu0 %v5475
    %7781 = vmatprep.subr.bf16.mxu0 %v5484
    %7782 = vmatpush1.bf16.msra.mxu0 %v5483
    %7783 = vmatprep.subr.bf16.mxu0 %v5492
    %7784 = vmatpush1.bf16.msra.mxu0 %v5491
    %7785 = vmatprep.subr.bf16.mxu0 %v5500
    %7786 = vmatpush1.bf16.msra.mxu0 %v5499
    %7787 = vmatprep.subr.bf16.mxu0 %v5508
    %7788 = vmatpush1.bf16.msra.mxu0 %v5507
    %7789 = vmatprep.subr.bf16.mxu0 %v5516
    %7790 = vmatpush1.bf16.msra.mxu0 %v5515
    %7791 = vmatprep.subr.bf16.mxu0 %v5524
    %7792 = vmatpush1.bf16.msra.mxu0 %v5523
    %7793 = vmatprep.subr.bf16.mxu0 %v5532
    %7794 = vmatpush1.bf16.msra.mxu0 %v5531
    %7795 = vmatprep.mubr.bf16.mxu0 %v750
    %7796 = vmatmul.mubr.bf16.gmra.mrb[0].mxu0 %v749
    %v7797 = vpop.f32.mrb[0].mxu0
    %v7798 = vadd.f32 %v7757, %v7797
    %v7799 = vpop.f32.mrb[0].mxu0
    %v7800 = vadd.f32 %v7759, %v7799
    %v7801 = vpop.f32.mrb[0].mxu0
    %v7802 = vpop.f32.mrb[0].mxu0
    %7803 = vdwg.mxu0
    %7804 = vmatprep.subr.bf16.mxu0 %v5540
    %7805 = vmatpush1.bf16.msra.mxu0 %v5539
    %7806 = vmatprep.subr.bf16.mxu0 %v5548
    %7807 = vmatpush1.bf16.msra.mxu0 %v5547
    %7808 = vmatprep.subr.bf16.mxu0 %v5556
    %7809 = vmatpush1.bf16.msra.mxu0 %v5555
    %7810 = vmatprep.subr.bf16.mxu0 %v5564
    %7811 = vmatpush1.bf16.msra.mxu0 %v5563
    %7812 = vmatprep.subr.bf16.mxu0 %v5572
    %7813 = vmatpush1.bf16.msra.mxu0 %v5571
    %7814 = vmatprep.subr.bf16.mxu0 %v5580
    %7815 = vmatpush1.bf16.msra.mxu0 %v5579
    %7816 = vmatprep.subr.bf16.mxu0 %v5588
    %7817 = vmatpush1.bf16.msra.mxu0 %v5587
    %7818 = vmatprep.subr.bf16.mxu0 %v5596
    %7819 = vmatpush1.bf16.msra.mxu0 %v5595
    %7820 = vmatprep.subr.bf16.mxu0 %v5604
    %7821 = vmatpush1.bf16.msra.mxu0 %v5603
    %7822 = vmatprep.subr.bf16.mxu0 %v5612
    %7823 = vmatpush1.bf16.msra.mxu0 %v5611
    %7824 = vmatprep.subr.bf16.mxu0 %v5620
    %7825 = vmatpush1.bf16.msra.mxu0 %v5619
    %7826 = vmatprep.subr.bf16.mxu0 %v5628
    %7827 = vmatpush1.bf16.msra.mxu0 %v5627
    %7828 = vmatprep.subr.bf16.mxu0 %v5636
    %7829 = vmatpush1.bf16.msra.mxu0 %v5635
    %7830 = vmatprep.subr.bf16.mxu0 %v5644
    %7831 = vmatpush1.bf16.msra.mxu0 %v5643
    %7832 = vmatprep.subr.bf16.mxu0 %v5652
    %7833 = vmatpush1.bf16.msra.mxu0 %v5651
    %7834 = vmatprep.subr.bf16.mxu0 %v5660
    %7835 = vmatpush1.bf16.msra.mxu0 %v5659
    %7836 = vmatprep.mubr.bf16.mxu0 %v752
    %7837 = vmatmul.mubr.bf16.gmra.mrb[0].mxu0 %v751
    %v7838 = vpop.f32.mrb[0].mxu0
    %v7839 = vadd.f32 %v7798, %v7838
    %v7840 = vpop.f32.mrb[0].mxu0
    %v7841 = vadd.f32 %v7800, %v7840
    %v7842 = vpop.f32.mrb[0].mxu0
    %v7843 = vpop.f32.mrb[0].mxu0
    %7844 = vdwg.mxu0
    %7845 = vmatprep.subr.bf16.mxu0 %v5668
    %7846 = vmatpush1.bf16.msra.mxu0 %v5667
    %7847 = vmatprep.subr.bf16.mxu0 %v5676
    %7848 = vmatpush1.bf16.msra.mxu0 %v5675
    %7849 = vmatprep.subr.bf16.mxu0 %v5684
    %7850 = vmatpush1.bf16.msra.mxu0 %v5683
    %7851 = vmatprep.subr.bf16.mxu0 %v5692
    %7852 = vmatpush1.bf16.msra.mxu0 %v5691
    %7853 = vmatprep.subr.bf16.mxu0 %v5700
    %7854 = vmatpush1.bf16.msra.mxu0 %v5699
    %7855 = vmatprep.subr.bf16.mxu0 %v5708
    %7856 = vmatpush1.bf16.msra.mxu0 %v5707
    %7857 = vmatprep.subr.bf16.mxu0 %v5716
    %7858 = vmatpush1.bf16.msra.mxu0 %v5715
    %7859 = vmatprep.subr.bf16.mxu0 %v5724
    %7860 = vmatpush1.bf16.msra.mxu0 %v5723
    %7861 = vmatprep.subr.bf16.mxu0 %v5732
    %7862 = vmatpush1.bf16.msra.mxu0 %v5731
    %7863 = vmatprep.subr.bf16.mxu0 %v5740
    %7864 = vmatpush1.bf16.msra.mxu0 %v5739
    %7865 = vmatprep.subr.bf16.mxu0 %v5748
    %7866 = vmatpush1.bf16.msra.mxu0 %v5747
    %7867 = vmatprep.subr.bf16.mxu0 %v5756
    %7868 = vmatpush1.bf16.msra.mxu0 %v5755
    %7869 = vmatprep.subr.bf16.mxu0 %v5764
    %7870 = vmatpush1.bf16.msra.mxu0 %v5763
    %7871 = vmatprep.subr.bf16.mxu0 %v5772
    %7872 = vmatpush1.bf16.msra.mxu0 %v5771
    %7873 = vmatprep.subr.bf16.mxu0 %v5780
    %7874 = vmatpush1.bf16.msra.mxu0 %v5779
    %7875 = vmatprep.subr.bf16.mxu0 %v5788
    %7876 = vmatpush1.bf16.msra.mxu0 %v5787
    %7877 = vmatprep.mubr.bf16.mxu0 %v754
    %7878 = vmatmul.mubr.bf16.gmra.mrb[0].mxu0 %v753
    %v7879 = vpop.f32.mrb[0].mxu0
    %v7880 = vadd.f32 %v7839, %v7879
    %v7881 = vpop.f32.mrb[0].mxu0
    %v7882 = vadd.f32 %v7841, %v7881
    %v7883 = vpop.f32.mrb[0].mxu0
    %v7884 = vpop.f32.mrb[0].mxu0
    %7885 = vdwg.mxu0
    %7886 = vmatprep.subr.bf16.mxu0 %v5796
    %7887 = vmatpush1.bf16.msra.mxu0 %v5795
    %7888 = vmatprep.subr.bf16.mxu0 %v5804
    %7889 = vmatpush1.bf16.msra.mxu0 %v5803
    %7890 = vmatprep.subr.bf16.mxu0 %v5812
    %7891 = vmatpush1.bf16.msra.mxu0 %v5811
    %7892 = vmatprep.subr.bf16.mxu0 %v5820
    %7893 = vmatpush1.bf16.msra.mxu0 %v5819
    %7894 = vmatprep.subr.bf16.mxu0 %v5828
    %7895 = vmatpush1.bf16.msra.mxu0 %v5827
    %7896 = vmatprep.subr.bf16.mxu0 %v5836
    %7897 = vmatpush1.bf16.msra.mxu0 %v5835
    %7898 = vmatprep.subr.bf16.mxu0 %v5844
    %7899 = vmatpush1.bf16.msra.mxu0 %v5843
    %7900 = vmatprep.subr.bf16.mxu0 %v5852
    %7901 = vmatpush1.bf16.msra.mxu0 %v5851
    %7902 = vmatprep.subr.bf16.mxu0 %v5860
    %7903 = vmatpush1.bf16.msra.mxu0 %v5859
    %7904 = vmatprep.subr.bf16.mxu0 %v5868
    %7905 = vmatpush1.bf16.msra.mxu0 %v5867
    %7906 = vmatprep.subr.bf16.mxu0 %v5876
    %7907 = vmatpush1.bf16.msra.mxu0 %v5875
    %7908 = vmatprep.subr.bf16.mxu0 %v5884
    %7909 = vmatpush1.bf16.msra.mxu0 %v5883
    %7910 = vmatprep.subr.bf16.mxu0 %v5892
    %7911 = vmatpush1.bf16.msra.mxu0 %v5891
    %7912 = vmatprep.subr.bf16.mxu0 %v5900
    %7913 = vmatpush1.bf16.msra.mxu0 %v5899
    %7914 = vmatprep.subr.bf16.mxu0 %v5908
    %7915 = vmatpush1.bf16.msra.mxu0 %v5907
    %7916 = vmatprep.subr.bf16.mxu0 %v5916
    %7917 = vmatpush1.bf16.msra.mxu0 %v5915
    %7918 = vmatprep.mubr.bf16.mxu0 %v756
    %7919 = vmatmul.mubr.bf16.gmra.mrb[0].mxu0 %v755
    %v7920 = vpop.f32.mrb[0].mxu0
    %v7921 = vadd.f32 %v7880, %v7920
    %v7922 = vpop.f32.mrb[0].mxu0
    %v7923 = vadd.f32 %v7882, %v7922
    %v7924 = vpop.f32.mrb[0].mxu0
    %v7925 = vpop.f32.mrb[0].mxu0
    %7926 = vdwg.mxu0
    %7927 = vmatprep.subr.bf16.mxu0 %v4902
    %7928 = vmatpush1.bf16.msra.mxu0 %v4901
    %7929 = vmatprep.subr.bf16.mxu0 %v4910
    %7930 = vmatpush1.bf16.msra.mxu0 %v4909
    %7931 = vmatprep.subr.bf16.mxu0 %v4918
    %7932 = vmatpush1.bf16.msra.mxu0 %v4917
    %7933 = vmatprep.subr.bf16.mxu0 %v4926
    %7934 = vmatpush1.bf16.msra.mxu0 %v4925
    %7935 = vmatprep.subr.bf16.mxu0 %v4934
    %7936 = vmatpush1.bf16.msra.mxu0 %v4933
    %7937 = vmatprep.subr.bf16.mxu0 %v4942
    %7938 = vmatpush1.bf16.msra.mxu0 %v4941
    %7939 = vmatprep.subr.bf16.mxu0 %v4950
    %7940 = vmatpush1.bf16.msra.mxu0 %v4949
    %7941 = vmatprep.subr.bf16.mxu0 %v4958
    %7942 = vmatpush1.bf16.msra.mxu0 %v4957
    %7943 = vmatprep.subr.bf16.mxu0 %v4966
    %7944 = vmatpush1.bf16.msra.mxu0 %v4965
    %7945 = vmatprep.subr.bf16.mxu0 %v4974
    %7946 = vmatpush1.bf16.msra.mxu0 %v4973
    %7947 = vmatprep.subr.bf16.mxu0 %v4982
    %7948 = vmatpush1.bf16.msra.mxu0 %v4981
    %7949 = vmatprep.subr.bf16.mxu0 %v4990
    %7950 = vmatpush1.bf16.msra.mxu0 %v4989
    %7951 = vmatprep.subr.bf16.mxu0 %v4998
    %7952 = vmatpush1.bf16.msra.mxu0 %v4997
    %7953 = vmatprep.subr.bf16.mxu0 %v5006
    %7954 = vmatpush1.bf16.msra.mxu0 %v5005
    %7955 = vmatprep.subr.bf16.mxu0 %v5014
    %7956 = vmatpush1.bf16.msra.mxu0 %v5013
    %7957 = vmatprep.subr.bf16.mxu0 %v5022
    %7958 = vmatpush1.bf16.msra.mxu0 %v5021
    %7959 = vmatprep.mubr.bf16.mxu0 %v742
    %7960 = vmatmul.mubr.bf16.gmra.mrb[0].mxu0 %v741
    %v7961 = vpop.f32.mrb[0].mxu0
    %v7962 = vadd.f32 %v1810, %v7961
    %v7963 = vpop.f32.mrb[0].mxu0
    %v7964 = vadd.f32 %v1814, %v7963
    %v7965 = vpop.f32.mrb[0].mxu0
    %v7966 = vpop.f32.mrb[0].mxu0
    %7967 = vdwg.mxu0
    %7968 = vmatprep.subr.bf16.mxu0 %v5030
    %7969 = vmatpush1.bf16.msra.mxu0 %v5029
    %7970 = vmatprep.subr.bf16.mxu0 %v5038
    %7971 = vmatpush1.bf16.msra.mxu0 %v5037
    %7972 = vmatprep.subr.bf16.mxu0 %v5046
    %7973 = vmatpush1.bf16.msra.mxu0 %v5045
    %7974 = vmatprep.subr.bf16.mxu0 %v5054
    %7975 = vmatpush1.bf16.msra.mxu0 %v5053
    %7976 = vmatprep.subr.bf16.mxu0 %v5062
    %7977 = vmatpush1.bf16.msra.mxu0 %v5061
    %7978 = vmatprep.subr.bf16.mxu0 %v5070
    %7979 = vmatpush1.bf16.msra.mxu0 %v5069
    %7980 = vmatprep.subr.bf16.mxu0 %v5078
    %7981 = vmatpush1.bf16.msra.mxu0 %v5077
    %7982 = vmatprep.subr.bf16.mxu0 %v5086
    %7983 = vmatpush1.bf16.msra.mxu0 %v5085
    %7984 = vmatprep.subr.bf16.mxu0 %v5094
    %7985 = vmatpush1.bf16.msra.mxu0 %v5093
    %7986 = vmatprep.subr.bf16.mxu0 %v5102
    %7987 = vmatpush1.bf16.msra.mxu0 %v5101
    %7988 = vmatprep.subr.bf16.mxu0 %v5110
    %7989 = vmatpush1.bf16.msra.mxu0 %v5109
    %7990 = vmatprep.subr.bf16.mxu0 %v5118
    %7991 = vmatpush1.bf16.msra.mxu0 %v5117
    %7992 = vmatprep.subr.bf16.mxu0 %v5126
    %7993 = vmatpush1.bf16.msra.mxu0 %v5125
    %7994 = vmatprep.subr.bf16.mxu0 %v5134
    %7995 = vmatpush1.bf16.msra.mxu0 %v5133
    %7996 = vmatprep.subr.bf16.mxu0 %v5142
    %7997 = vmatpush1.bf16.msra.mxu0 %v5141
    %7998 = vmatprep.subr.bf16.mxu0 %v5150
    %7999 = vmatpush1.bf16.msra.mxu0 %v5149
    %8000 = vmatprep.mubr.bf16.mxu0 %v744
    %8001 = vmatmul.mubr.bf16.gmra.mrb[0].mxu0 %v743
    %v8002 = vpop.f32.mrb[0].mxu0
    %v8003 = vadd.f32 %v7962, %v8002
    %v8004 = vpop.f32.mrb[0].mxu0
    %v8005 = vadd.f32 %v7964, %v8004
    %v8006 = vpop.f32.mrb[0].mxu0
    %v8007 = vpop.f32.mrb[0].mxu0
    %8008 = vdwg.mxu0
    %8009 = vmatprep.subr.bf16.mxu0 %v5158
    %8010 = vmatpush1.bf16.msra.mxu0 %v5157
    %8011 = vmatprep.subr.bf16.mxu0 %v5166
    %8012 = vmatpush1.bf16.msra.mxu0 %v5165
    %8013 = vmatprep.subr.bf16.mxu0 %v5174
    %8014 = vmatpush1.bf16.msra.mxu0 %v5173
    %8015 = vmatprep.subr.bf16.mxu0 %v5182
    %8016 = vmatpush1.bf16.msra.mxu0 %v5181
    %8017 = vmatprep.subr.bf16.mxu0 %v5190
    %8018 = vmatpush1.bf16.msra.mxu0 %v5189
    %8019 = vmatprep.subr.bf16.mxu0 %v5198
    %8020 = vmatpush1.bf16.msra.mxu0 %v5197
    %8021 = vmatprep.subr.bf16.mxu0 %v5206
    %8022 = vmatpush1.bf16.msra.mxu0 %v5205
    %8023 = vmatprep.subr.bf16.mxu0 %v5214
    %8024 = vmatpush1.bf16.msra.mxu0 %v5213
    %8025 = vmatprep.subr.bf16.mxu0 %v5222
    %8026 = vmatpush1.bf16.msra.mxu0 %v5221
    %8027 = vmatprep.subr.bf16.mxu0 %v5230
    %8028 = vmatpush1.bf16.msra.mxu0 %v5229
    %8029 = vmatprep.subr.bf16.mxu0 %v5238
    %8030 = vmatpush1.bf16.msra.mxu0 %v5237
    %8031 = vmatprep.subr.bf16.mxu0 %v5246
    %8032 = vmatpush1.bf16.msra.mxu0 %v5245
    %8033 = vmatprep.subr.bf16.mxu0 %v5254
    %8034 = vmatpush1.bf16.msra.mxu0 %v5253
    %8035 = vmatprep.subr.bf16.mxu0 %v5262
    %8036 = vmatpush1.bf16.msra.mxu0 %v5261
    %8037 = vmatprep.subr.bf16.mxu0 %v5270
    %8038 = vmatpush1.bf16.msra.mxu0 %v5269
    %8039 = vmatprep.subr.bf16.mxu0 %v5278
    %8040 = vmatpush1.bf16.msra.mxu0 %v5277
    %8041 = vmatprep.mubr.bf16.mxu0 %v746
    %8042 = vmatmul.mubr.bf16.gmra.mrb[0].mxu0 %v745
    %v8043 = vpop.f32.mrb[0].mxu0
    %v8044 = vadd.f32 %v8003, %v8043
    %v8045 = vpop.f32.mrb[0].mxu0
    %v8046 = vadd.f32 %v8005, %v8045
    %v8047 = vpop.f32.mrb[0].mxu0
    %v8048 = vpop.f32.mrb[0].mxu0
    %8049 = vdwg.mxu0
    %8050 = vmatprep.subr.bf16.mxu0 %v5286
    %8051 = vmatpush1.bf16.msra.mxu0 %v5285
    %8052 = vmatprep.subr.bf16.mxu0 %v5294
    %8053 = vmatpush1.bf16.msra.mxu0 %v5293
    %8054 = vmatprep.subr.bf16.mxu0 %v5302
    %8055 = vmatpush1.bf16.msra.mxu0 %v5301
    %8056 = vmatprep.subr.bf16.mxu0 %v5310
    %8057 = vmatpush1.bf16.msra.mxu0 %v5309
    %8058 = vmatprep.subr.bf16.mxu0 %v5318
    %8059 = vmatpush1.bf16.msra.mxu0 %v5317
    %8060 = vmatprep.subr.bf16.mxu0 %v5326
    %8061 = vmatpush1.bf16.msra.mxu0 %v5325
    %8062 = vmatprep.subr.bf16.mxu0 %v5334
    %8063 = vmatpush1.bf16.msra.mxu0 %v5333
    %8064 = vmatprep.subr.bf16.mxu0 %v5342
    %8065 = vmatpush1.bf16.msra.mxu0 %v5341
    %8066 = vmatprep.subr.bf16.mxu0 %v5350
    %8067 = vmatpush1.bf16.msra.mxu0 %v5349
    %8068 = vmatprep.subr.bf16.mxu0 %v5358
    %8069 = vmatpush1.bf16.msra.mxu0 %v5357
    %8070 = vmatprep.subr.bf16.mxu0 %v5366
    %8071 = vmatpush1.bf16.msra.mxu0 %v5365
    %8072 = vmatprep.subr.bf16.mxu0 %v5374
    %8073 = vmatpush1.bf16.msra.mxu0 %v5373
    %8074 = vmatprep.subr.bf16.mxu0 %v5382
    %8075 = vmatpush1.bf16.msra.mxu0 %v5381
    %8076 = vmatprep.subr.bf16.mxu0 %v5390
    %8077 = vmatpush1.bf16.msra.mxu0 %v5389
    %8078 = vmatprep.subr.bf16.mxu0 %v5398
    %8079 = vmatpush1.bf16.msra.mxu0 %v5397
    %8080 = vmatprep.subr.bf16.mxu0 %v5406
    %8081 = vmatpush1.bf16.msra.mxu0 %v5405
    %8082 = vmatprep.mubr.bf16.mxu0 %v748
    %8083 = vmatmul.mubr.bf16.gmra.mrb[0].mxu0 %v747
    %v8084 = vpop.f32.mrb[0].mxu0
    %v8085 = vadd.f32 %v8044, %v8084
    %v8086 = vpop.f32.mrb[0].mxu0
    %v8087 = vadd.f32 %v8046, %v8086
    %v8088 = vpop.f32.mrb[0].mxu0
    %v8089 = vpop.f32.mrb[0].mxu0
    %8090 = vdwg.mxu0
    %8091 = vmatprep.subr.bf16.mxu0 %v5414
    %8092 = vmatpush1.bf16.msra.mxu0 %v5413
    %8093 = vmatprep.subr.bf16.mxu0 %v5422
    %8094 = vmatpush1.bf16.msra.mxu0 %v5421
    %8095 = vmatprep.subr.bf16.mxu0 %v5430
    %8096 = vmatpush1.bf16.msra.mxu0 %v5429
    %8097 = vmatprep.subr.bf16.mxu0 %v5438
    %8098 = vmatpush1.bf16.msra.mxu0 %v5437
    %8099 = vmatprep.subr.bf16.mxu0 %v5446
    %8100 = vmatpush1.bf16.msra.mxu0 %v5445
    %8101 = vmatprep.subr.bf16.mxu0 %v5454
    %8102 = vmatpush1.bf16.msra.mxu0 %v5453
    %8103 = vmatprep.subr.bf16.mxu0 %v5462
    %8104 = vmatpush1.bf16.msra.mxu0 %v5461
    %8105 = vmatprep.subr.bf16.mxu0 %v5470
    %8106 = vmatpush1.bf16.msra.mxu0 %v5469
    %8107 = vmatprep.subr.bf16.mxu0 %v5478
    %8108 = vmatpush1.bf16.msra.mxu0 %v5477
    %8109 = vmatprep.subr.bf16.mxu0 %v5486
    %8110 = vmatpush1.bf16.msra.mxu0 %v5485
    %8111 = vmatprep.subr.bf16.mxu0 %v5494
    %8112 = vmatpush1.bf16.msra.mxu0 %v5493
    %8113 = vmatprep.subr.bf16.mxu0 %v5502
    %8114 = vmatpush1.bf16.msra.mxu0 %v5501
    %8115 = vmatprep.subr.bf16.mxu0 %v5510
    %8116 = vmatpush1.bf16.msra.mxu0 %v5509
    %8117 = vmatprep.subr.bf16.mxu0 %v5518
    %8118 = vmatpush1.bf16.msra.mxu0 %v5517
    %8119 = vmatprep.subr.bf16.mxu0 %v5526
    %8120 = vmatpush1.bf16.msra.mxu0 %v5525
    %8121 = vmatprep.subr.bf16.mxu0 %v5534
    %8122 = vmatpush1.bf16.msra.mxu0 %v5533
    %8123 = vmatprep.mubr.bf16.mxu0 %v750
    %8124 = vmatmul.mubr.bf16.gmra.mrb[0].mxu0 %v749
    %v8125 = vpop.f32.mrb[0].mxu0
    %v8126 = vadd.f32 %v8085, %v8125
    %v8127 = vpop.f32.mrb[0].mxu0
    %v8128 = vadd.f32 %v8087, %v8127
    %v8129 = vpop.f32.mrb[0].mxu0
    %v8130 = vpop.f32.mrb[0].mxu0
    %8131 = vdwg.mxu0
    %8132 = vmatprep.subr.bf16.mxu0 %v5542
    %8133 = vmatpush1.bf16.msra.mxu0 %v5541
    %8134 = vmatprep.subr.bf16.mxu0 %v5550
    %8135 = vmatpush1.bf16.msra.mxu0 %v5549
    %8136 = vmatprep.subr.bf16.mxu0 %v5558
    %8137 = vmatpush1.bf16.msra.mxu0 %v5557
    %8138 = vmatprep.subr.bf16.mxu0 %v5566
    %8139 = vmatpush1.bf16.msra.mxu0 %v5565
    %8140 = vmatprep.subr.bf16.mxu0 %v5574
    %8141 = vmatpush1.bf16.msra.mxu0 %v5573
    %8142 = vmatprep.subr.bf16.mxu0 %v5582
    %8143 = vmatpush1.bf16.msra.mxu0 %v5581
    %8144 = vmatprep.subr.bf16.mxu0 %v5590
    %8145 = vmatpush1.bf16.msra.mxu0 %v5589
    %8146 = vmatprep.subr.bf16.mxu0 %v5598
    %8147 = vmatpush1.bf16.msra.mxu0 %v5597
    %8148 = vmatprep.subr.bf16.mxu0 %v5606
    %8149 = vmatpush1.bf16.msra.mxu0 %v5605
    %8150 = vmatprep.subr.bf16.mxu0 %v5614
    %8151 = vmatpush1.bf16.msra.mxu0 %v5613
    %8152 = vmatprep.subr.bf16.mxu0 %v5622
    %8153 = vmatpush1.bf16.msra.mxu0 %v5621
    %8154 = vmatprep.subr.bf16.mxu0 %v5630
    %8155 = vmatpush1.bf16.msra.mxu0 %v5629
    %8156 = vmatprep.subr.bf16.mxu0 %v5638
    %8157 = vmatpush1.bf16.msra.mxu0 %v5637
    %8158 = vmatprep.subr.bf16.mxu0 %v5646
    %8159 = vmatpush1.bf16.msra.mxu0 %v5645
    %8160 = vmatprep.subr.bf16.mxu0 %v5654
    %8161 = vmatpush1.bf16.msra.mxu0 %v5653
    %8162 = vmatprep.subr.bf16.mxu0 %v5662
    %8163 = vmatpush1.bf16.msra.mxu0 %v5661
    %8164 = vmatprep.mubr.bf16.mxu0 %v752
    %8165 = vmatmul.mubr.bf16.gmra.mrb[0].mxu0 %v751
    %v8166 = vpop.f32.mrb[0].mxu0
    %v8167 = vadd.f32 %v8126, %v8166
    %v8168 = vpop.f32.mrb[0].mxu0
    %v8169 = vadd.f32 %v8128, %v8168
    %v8170 = vpop.f32.mrb[0].mxu0
    %v8171 = vpop.f32.mrb[0].mxu0
    %8172 = vdwg.mxu0
    %8173 = vmatprep.subr.bf16.mxu0 %v5670
    %8174 = vmatpush1.bf16.msra.mxu0 %v5669
    %8175 = vmatprep.subr.bf16.mxu0 %v5678
    %8176 = vmatpush1.bf16.msra.mxu0 %v5677
    %8177 = vmatprep.subr.bf16.mxu0 %v5686
    %8178 = vmatpush1.bf16.msra.mxu0 %v5685
    %8179 = vmatprep.subr.bf16.mxu0 %v5694
    %8180 = vmatpush1.bf16.msra.mxu0 %v5693
    %8181 = vmatprep.subr.bf16.mxu0 %v5702
    %8182 = vmatpush1.bf16.msra.mxu0 %v5701
    %8183 = vmatprep.subr.bf16.mxu0 %v5710
    %8184 = vmatpush1.bf16.msra.mxu0 %v5709
    %8185 = vmatprep.subr.bf16.mxu0 %v5718
    %8186 = vmatpush1.bf16.msra.mxu0 %v5717
    %8187 = vmatprep.subr.bf16.mxu0 %v5726
    %8188 = vmatpush1.bf16.msra.mxu0 %v5725
    %8189 = vmatprep.subr.bf16.mxu0 %v5734
    %8190 = vmatpush1.bf16.msra.mxu0 %v5733
    %8191 = vmatprep.subr.bf16.mxu0 %v5742
    %8192 = vmatpush1.bf16.msra.mxu0 %v5741
    %8193 = vmatprep.subr.bf16.mxu0 %v5750
    %8194 = vmatpush1.bf16.msra.mxu0 %v5749
    %8195 = vmatprep.subr.bf16.mxu0 %v5758
    %8196 = vmatpush1.bf16.msra.mxu0 %v5757
    %8197 = vmatprep.subr.bf16.mxu0 %v5766
    %8198 = vmatpush1.bf16.msra.mxu0 %v5765
    %8199 = vmatprep.subr.bf16.mxu0 %v5774
    %8200 = vmatpush1.bf16.msra.mxu0 %v5773
    %8201 = vmatprep.subr.bf16.mxu0 %v5782
    %8202 = vmatpush1.bf16.msra.mxu0 %v5781
    %8203 = vmatprep.subr.bf16.mxu0 %v5790
    %8204 = vmatpush1.bf16.msra.mxu0 %v5789
    %8205 = vmatprep.mubr.bf16.mxu0 %v754
    %8206 = vmatmul.mubr.bf16.gmra.mrb[0].mxu0 %v753
    %v8207 = vpop.f32.mrb[0].mxu0
    %v8208 = vadd.f32 %v8167, %v8207
    %v8209 = vpop.f32.mrb[0].mxu0
    %v8210 = vadd.f32 %v8169, %v8209
    %v8211 = vpop.f32.mrb[0].mxu0
    %v8212 = vpop.f32.mrb[0].mxu0
    %8213 = vdwg.mxu0
    %8214 = vmatprep.subr.bf16.mxu0 %v5798
    %8215 = vmatpush1.bf16.msra.mxu0 %v5797
    %8216 = vmatprep.subr.bf16.mxu0 %v5806
    %8217 = vmatpush1.bf16.msra.mxu0 %v5805
    %8218 = vmatprep.subr.bf16.mxu0 %v5814
    %8219 = vmatpush1.bf16.msra.mxu0 %v5813
    %8220 = vmatprep.subr.bf16.mxu0 %v5822
    %8221 = vmatpush1.bf16.msra.mxu0 %v5821
    %8222 = vmatprep.subr.bf16.mxu0 %v5830
    %8223 = vmatpush1.bf16.msra.mxu0 %v5829
    %8224 = vmatprep.subr.bf16.mxu0 %v5838
    %8225 = vmatpush1.bf16.msra.mxu0 %v5837
    %8226 = vmatprep.subr.bf16.mxu0 %v5846
    %8227 = vmatpush1.bf16.msra.mxu0 %v5845
    %8228 = vmatprep.subr.bf16.mxu0 %v5854
    %8229 = vmatpush1.bf16.msra.mxu0 %v5853
    %8230 = vmatprep.subr.bf16.mxu0 %v5862
    %8231 = vmatpush1.bf16.msra.mxu0 %v5861
    %8232 = vmatprep.subr.bf16.mxu0 %v5870
    %8233 = vmatpush1.bf16.msra.mxu0 %v5869
    %8234 = vmatprep.subr.bf16.mxu0 %v5878
    %8235 = vmatpush1.bf16.msra.mxu0 %v5877
    %8236 = vmatprep.subr.bf16.mxu0 %v5886
    %8237 = vmatpush1.bf16.msra.mxu0 %v5885
    %8238 = vmatprep.subr.bf16.mxu0 %v5894
    %8239 = vmatpush1.bf16.msra.mxu0 %v5893
    %8240 = vmatprep.subr.bf16.mxu0 %v5902
    %8241 = vmatpush1.bf16.msra.mxu0 %v5901
    %8242 = vmatprep.subr.bf16.mxu0 %v5910
    %8243 = vmatpush1.bf16.msra.mxu0 %v5909
    %8244 = vmatprep.subr.bf16.mxu0 %v5918
    %8245 = vmatpush1.bf16.msra.mxu0 %v5917
    %8246 = vmatprep.mubr.bf16.mxu0 %v756
    %8247 = vmatmul.mubr.bf16.gmra.mrb[0].mxu0 %v755
    %v8248 = vpop.f32.mrb[0].mxu0
    %v8249 = vadd.f32 %v8208, %v8248
    %v8250 = vpop.f32.mrb[0].mxu0
    %v8251 = vadd.f32 %v8210, %v8250
    %v8252 = vpop.f32.mrb[0].mxu0
    %v8253 = vpop.f32.mrb[0].mxu0
    %8254 = vdwg.mxu0
    %v8255 = vmax.f32 %v7265, 0.0
    %v8256 = vmax.f32 %v7267, 0.0
    %v8257 = vmax.f32 %v7593, 0.0
    %v8258 = vmax.f32 %v7595, 0.0
    %v8259 = vmax.f32 %v7921, 0.0
    %v8260 = vmax.f32 %v7923, 0.0
    %v8261 = vmax.f32 %v8249, 0.0
    %v8262 = vmax.f32 %v8251, 0.0
    %v8263 = vpack.c.bf16 %v8255, %v8255
    %v8264 = vpack.c.bf16 %v8256, %v8256
    %v8265 = vpack.c.bf16 %v8257, %v8257
    %v8266 = vpack.c.bf16 %v8258, %v8258
    %v8267 = vpack.c.bf16 %v8259, %v8259
    %v8268 = vpack.c.bf16 %v8260, %v8260
    %v8269 = vpack.c.bf16 %v8261, %v8261
    %v8270 = vpack.c.bf16 %v8262, %v8262
    %v8271 = vld [vmem:[#allocation11] sm:$0xf]
    %v8272 = vld [vmem:[#allocation11 + $0x4] sm:$0xf]
    %v8273 = vld [vmem:[#allocation11 + $0x8] sm:$0xf]
    %v8274 = vld [vmem:[#allocation11 + $0xc] sm:$0xf]
    %v8275 = vld [vmem:[#allocation11 + $0x10] sm:$0xf]
    %v8276 = vld [vmem:[#allocation11 + $0x14] sm:$0xf]
    %v8277 = vld [vmem:[#allocation11 + $0x18] sm:$0xf]
    %v8278 = vld [vmem:[#allocation11 + $0x1c] sm:$0xf]
    %v8279 = vld [vmem:[#allocation11 + $0x20] sm:$0xf]
    %v8280 = vld [vmem:[#allocation11 + $0x24] sm:$0xf]
    %v8281 = vld [vmem:[#allocation11 + $0x28] sm:$0xf]
    %v8282 = vld [vmem:[#allocation11 + $0x2c] sm:$0xf]
    %v8283 = vld [vmem:[#allocation11 + $0x30] sm:$0xf]
    %v8284 = vld [vmem:[#allocation11 + $0x34] sm:$0xf]
    %v8285 = vld [vmem:[#allocation11 + $0x38] sm:$0xf]
    %v8286 = vld [vmem:[#allocation11 + $0x3c] sm:$0xf]
    %v8287 = vld [vmem:[#allocation11 + $0x40] sm:$0xf]
    %v8288 = vld [vmem:[#allocation11 + $0x44] sm:$0xf]
    %v8289 = vld [vmem:[#allocation11 + $0x48] sm:$0xf]
    %v8290 = vld [vmem:[#allocation11 + $0x4c] sm:$0xf]
    %v8291 = vld [vmem:[#allocation11 + $0x50] sm:$0xf]
    %v8292 = vld [vmem:[#allocation11 + $0x54] sm:$0xf]
    %v8293 = vld [vmem:[#allocation11 + $0x58] sm:$0xf]
    %v8294 = vld [vmem:[#allocation11 + $0x5c] sm:$0xf]
    %v8295 = vld [vmem:[#allocation11 + $0x60] sm:$0xf]
    %v8296 = vld [vmem:[#allocation11 + $0x64] sm:$0xf]
    %v8297 = vld [vmem:[#allocation11 + $0x68] sm:$0xf]
    %v8298 = vld [vmem:[#allocation11 + $0x6c] sm:$0xf]
    %v8299 = vld [vmem:[#allocation11 + $0x70] sm:$0xf]
    %v8300 = vld [vmem:[#allocation11 + $0x74] sm:$0xf]
    %v8301 = vld [vmem:[#allocation11 + $0x78] sm:$0xf]
    %v8302 = vld [vmem:[#allocation11 + $0x7c] sm:$0xf]
    %v8303 = vld [vmem:[#allocation11 + $0x80] sm:$0xf]
    %v8304 = vld [vmem:[#allocation11 + $0x84] sm:$0xf]
    %v8305 = vld [vmem:[#allocation11 + $0x88] sm:$0xf]
    %v8306 = vld [vmem:[#allocation11 + $0x8c] sm:$0xf]
    %v8307 = vld [vmem:[#allocation11 + $0x90] sm:$0xf]
    %v8308 = vld [vmem:[#allocation11 + $0x94] sm:$0xf]
    %v8309 = vld [vmem:[#allocation11 + $0x98] sm:$0xf]
    %v8310 = vld [vmem:[#allocation11 + $0x9c] sm:$0xf]
    %v8311 = vld [vmem:[#allocation11 + $0xa0] sm:$0xf]
    %v8312 = vld [vmem:[#allocation11 + $0xa4] sm:$0xf]
    %v8313 = vld [vmem:[#allocation11 + $0xa8] sm:$0xf]
    %v8314 = vld [vmem:[#allocation11 + $0xac] sm:$0xf]
    %v8315 = vld [vmem:[#allocation11 + $0xb0] sm:$0xf]
    %v8316 = vld [vmem:[#allocation11 + $0xb4] sm:$0xf]
    %v8317 = vld [vmem:[#allocation11 + $0xb8] sm:$0xf]
    %v8318 = vld [vmem:[#allocation11 + $0xbc] sm:$0xf]
    %v8319 = vld [vmem:[#allocation11 + $0xc0] sm:$0xf]
    %v8320 = vld [vmem:[#allocation11 + $0xc4] sm:$0xf]
    %v8321 = vld [vmem:[#allocation11 + $0xc8] sm:$0xf]
    %v8322 = vld [vmem:[#allocation11 + $0xcc] sm:$0xf]
    %v8323 = vld [vmem:[#allocation11 + $0xd0] sm:$0xf]
    %v8324 = vld [vmem:[#allocation11 + $0xd4] sm:$0xf]
    %v8325 = vld [vmem:[#allocation11 + $0xd8] sm:$0xf]
    %v8326 = vld [vmem:[#allocation11 + $0xdc] sm:$0xf]
    %v8327 = vld [vmem:[#allocation11 + $0xe0] sm:$0xf]
    %v8328 = vld [vmem:[#allocation11 + $0xe4] sm:$0xf]
    %v8329 = vld [vmem:[#allocation11 + $0xe8] sm:$0xf]
    %v8330 = vld [vmem:[#allocation11 + $0xec] sm:$0xf]
    %v8331 = vld [vmem:[#allocation11 + $0xf0] sm:$0xf]
    %v8332 = vld [vmem:[#allocation11 + $0xf4] sm:$0xf]
    %v8333 = vld [vmem:[#allocation11 + $0xf8] sm:$0xf]
    %v8334 = vld [vmem:[#allocation11 + $0xfc] sm:$0xf]
    %v8335 = vld [vmem:[#allocation11 + $0x100] sm:$0xf]
    %v8336 = vld [vmem:[#allocation11 + $0x104] sm:$0xf]
    %v8337 = vld [vmem:[#allocation11 + $0x108] sm:$0xf]
    %v8338 = vld [vmem:[#allocation11 + $0x10c] sm:$0xf]
    %v8339 = vld [vmem:[#allocation11 + $0x110] sm:$0xf]
    %v8340 = vld [vmem:[#allocation11 + $0x114] sm:$0xf]
    %v8341 = vld [vmem:[#allocation11 + $0x118] sm:$0xf]
    %v8342 = vld [vmem:[#allocation11 + $0x11c] sm:$0xf]
    %v8343 = vld [vmem:[#allocation11 + $0x120] sm:$0xf]
    %v8344 = vld [vmem:[#allocation11 + $0x124] sm:$0xf]
    %v8345 = vld [vmem:[#allocation11 + $0x128] sm:$0xf]
    %v8346 = vld [vmem:[#allocation11 + $0x12c] sm:$0xf]
    %v8347 = vld [vmem:[#allocation11 + $0x130] sm:$0xf]
    %v8348 = vld [vmem:[#allocation11 + $0x134] sm:$0xf]
    %v8349 = vld [vmem:[#allocation11 + $0x138] sm:$0xf]
    %v8350 = vld [vmem:[#allocation11 + $0x13c] sm:$0xf]
    %v8351 = vld [vmem:[#allocation11 + $0x140] sm:$0xf]
    %v8352 = vld [vmem:[#allocation11 + $0x144] sm:$0xf]
    %v8353 = vld [vmem:[#allocation11 + $0x148] sm:$0xf]
    %v8354 = vld [vmem:[#allocation11 + $0x14c] sm:$0xf]
    %v8355 = vld [vmem:[#allocation11 + $0x150] sm:$0xf]
    %v8356 = vld [vmem:[#allocation11 + $0x154] sm:$0xf]
    %v8357 = vld [vmem:[#allocation11 + $0x158] sm:$0xf]
    %v8358 = vld [vmem:[#allocation11 + $0x15c] sm:$0xf]
    %v8359 = vld [vmem:[#allocation11 + $0x160] sm:$0xf]
    %v8360 = vld [vmem:[#allocation11 + $0x164] sm:$0xf]
    %v8361 = vld [vmem:[#allocation11 + $0x168] sm:$0xf]
    %v8362 = vld [vmem:[#allocation11 + $0x16c] sm:$0xf]
    %v8363 = vld [vmem:[#allocation11 + $0x170] sm:$0xf]
    %v8364 = vld [vmem:[#allocation11 + $0x174] sm:$0xf]
    %v8365 = vld [vmem:[#allocation11 + $0x178] sm:$0xf]
    %v8366 = vld [vmem:[#allocation11 + $0x17c] sm:$0xf]
    %v8367 = vld [vmem:[#allocation11 + $0x180] sm:$0xf]
    %v8368 = vld [vmem:[#allocation11 + $0x184] sm:$0xf]
    %v8369 = vld [vmem:[#allocation11 + $0x188] sm:$0xf]
    %v8370 = vld [vmem:[#allocation11 + $0x18c] sm:$0xf]
    %v8371 = vld [vmem:[#allocation11 + $0x190] sm:$0xf]
    %v8372 = vld [vmem:[#allocation11 + $0x194] sm:$0xf]
    %v8373 = vld [vmem:[#allocation11 + $0x198] sm:$0xf]
    %v8374 = vld [vmem:[#allocation11 + $0x19c] sm:$0xf]
    %v8375 = vld [vmem:[#allocation11 + $0x1a0] sm:$0xf]
    %v8376 = vld [vmem:[#allocation11 + $0x1a4] sm:$0xf]
    %v8377 = vld [vmem:[#allocation11 + $0x1a8] sm:$0xf]
    %v8378 = vld [vmem:[#allocation11 + $0x1ac] sm:$0xf]
    %v8379 = vld [vmem:[#allocation11 + $0x1b0] sm:$0xf]
    %v8380 = vld [vmem:[#allocation11 + $0x1b4] sm:$0xf]
    %v8381 = vld [vmem:[#allocation11 + $0x1b8] sm:$0xf]
    %v8382 = vld [vmem:[#allocation11 + $0x1bc] sm:$0xf]
    %v8383 = vld [vmem:[#allocation11 + $0x1c0] sm:$0xf]
    %v8384 = vld [vmem:[#allocation11 + $0x1c4] sm:$0xf]
    %v8385 = vld [vmem:[#allocation11 + $0x1c8] sm:$0xf]
    %v8386 = vld [vmem:[#allocation11 + $0x1cc] sm:$0xf]
    %v8387 = vld [vmem:[#allocation11 + $0x1d0] sm:$0xf]
    %v8388 = vld [vmem:[#allocation11 + $0x1d4] sm:$0xf]
    %v8389 = vld [vmem:[#allocation11 + $0x1d8] sm:$0xf]
    %v8390 = vld [vmem:[#allocation11 + $0x1dc] sm:$0xf]
    %v8391 = vld [vmem:[#allocation11 + $0x1e0] sm:$0xf]
    %v8392 = vld [vmem:[#allocation11 + $0x1e4] sm:$0xf]
    %v8393 = vld [vmem:[#allocation11 + $0x1e8] sm:$0xf]
    %v8394 = vld [vmem:[#allocation11 + $0x1ec] sm:$0xf]
    %v8395 = vld [vmem:[#allocation11 + $0x1f0] sm:$0xf]
    %v8396 = vld [vmem:[#allocation11 + $0x1f4] sm:$0xf]
    %v8397 = vld [vmem:[#allocation11 + $0x1f8] sm:$0xf]
    %v8398 = vld [vmem:[#allocation11 + $0x1fc] sm:$0xf]
    %v8399 = vld [vmem:[#allocation13] sm:$0x1]
    %v8401 = vlaneseq
    %v8402 = vshrl.u32 %v8401, 7
    %v8403 = vsub.s32 0, %v8402
    %v8404 = vrot.slane %v8399, %v8403
    %v8534 = vunpack.c.l.b16 %v8271
    %v8535 = vunpack.c.l.b16 %v8272
    %v8536 = vunpack.c.l.b16 %v8273
    %v8537 = vunpack.c.l.b16 %v8274
    %v8538 = vunpack.c.l.b16 %v8275
    %v8539 = vunpack.c.l.b16 %v8276
    %v8540 = vunpack.c.l.b16 %v8277
    %v8541 = vunpack.c.l.b16 %v8278
    %v8542 = vunpack.c.l.b16 %v8279
    %v8543 = vunpack.c.l.b16 %v8280
    %v8544 = vunpack.c.l.b16 %v8281
    %v8545 = vunpack.c.l.b16 %v8282
    %v8546 = vunpack.c.l.b16 %v8283
    %v8547 = vunpack.c.l.b16 %v8284
    %v8548 = vunpack.c.l.b16 %v8285
    %v8549 = vunpack.c.l.b16 %v8286
    %v8550 = vunpack.c.l.b16 %v8287
    %v8551 = vunpack.c.l.b16 %v8288
    %v8552 = vunpack.c.l.b16 %v8289
    %v8553 = vunpack.c.l.b16 %v8290
    %v8554 = vunpack.c.l.b16 %v8291
    %v8555 = vunpack.c.l.b16 %v8292
    %v8556 = vunpack.c.l.b16 %v8293
    %v8557 = vunpack.c.l.b16 %v8294
    %v8558 = vunpack.c.l.b16 %v8295
    %v8559 = vunpack.c.l.b16 %v8296
    %v8560 = vunpack.c.l.b16 %v8297
    %v8561 = vunpack.c.l.b16 %v8298
    %v8562 = vunpack.c.l.b16 %v8299
    %v8563 = vunpack.c.l.b16 %v8300
    %v8564 = vunpack.c.l.b16 %v8301
    %v8565 = vunpack.c.l.b16 %v8302
    %v8566 = vunpack.c.l.b16 %v8303
    %v8567 = vunpack.c.l.b16 %v8304
    %v8568 = vunpack.c.l.b16 %v8305
    %v8569 = vunpack.c.l.b16 %v8306
    %v8570 = vunpack.c.l.b16 %v8307
    %v8571 = vunpack.c.l.b16 %v8308
    %v8572 = vunpack.c.l.b16 %v8309
    %v8573 = vunpack.c.l.b16 %v8310
    %v8574 = vunpack.c.l.b16 %v8311
    %v8575 = vunpack.c.l.b16 %v8312
    %v8576 = vunpack.c.l.b16 %v8313
    %v8577 = vunpack.c.l.b16 %v8314
    %v8578 = vunpack.c.l.b16 %v8315
    %v8579 = vunpack.c.l.b16 %v8316
    %v8580 = vunpack.c.l.b16 %v8317
    %v8581 = vunpack.c.l.b16 %v8318
    %v8582 = vunpack.c.l.b16 %v8319
    %v8583 = vunpack.c.l.b16 %v8320
    %v8584 = vunpack.c.l.b16 %v8321
    %v8585 = vunpack.c.l.b16 %v8322
    %v8586 = vunpack.c.l.b16 %v8323
    %v8587 = vunpack.c.l.b16 %v8324
    %v8588 = vunpack.c.l.b16 %v8325
    %v8589 = vunpack.c.l.b16 %v8326
    %v8590 = vunpack.c.l.b16 %v8327
    %v8591 = vunpack.c.l.b16 %v8328
    %v8592 = vunpack.c.l.b16 %v8329
    %v8593 = vunpack.c.l.b16 %v8330
    %v8594 = vunpack.c.l.b16 %v8331
    %v8595 = vunpack.c.l.b16 %v8332
    %v8596 = vunpack.c.l.b16 %v8333
    %v8597 = vunpack.c.l.b16 %v8334
    %v8598 = vunpack.c.l.b16 %v8335
    %v8599 = vunpack.c.l.b16 %v8336
    %v8600 = vunpack.c.l.b16 %v8337
    %v8601 = vunpack.c.l.b16 %v8338
    %v8602 = vunpack.c.l.b16 %v8339
    %v8603 = vunpack.c.l.b16 %v8340
    %v8604 = vunpack.c.l.b16 %v8341
    %v8605 = vunpack.c.l.b16 %v8342
    %v8606 = vunpack.c.l.b16 %v8343
    %v8607 = vunpack.c.l.b16 %v8344
    %v8608 = vunpack.c.l.b16 %v8345
    %v8609 = vunpack.c.l.b16 %v8346
    %v8610 = vunpack.c.l.b16 %v8347
    %v8611 = vunpack.c.l.b16 %v8348
    %v8612 = vunpack.c.l.b16 %v8349
    %v8613 = vunpack.c.l.b16 %v8350
    %v8614 = vunpack.c.l.b16 %v8351
    %v8615 = vunpack.c.l.b16 %v8352
    %v8616 = vunpack.c.l.b16 %v8353
    %v8617 = vunpack.c.l.b16 %v8354
    %v8618 = vunpack.c.l.b16 %v8355
    %v8619 = vunpack.c.l.b16 %v8356
    %v8620 = vunpack.c.l.b16 %v8357
    %v8621 = vunpack.c.l.b16 %v8358
    %v8622 = vunpack.c.l.b16 %v8359
    %v8623 = vunpack.c.l.b16 %v8360
    %v8624 = vunpack.c.l.b16 %v8361
    %v8625 = vunpack.c.l.b16 %v8362
    %v8626 = vunpack.c.l.b16 %v8363
    %v8627 = vunpack.c.l.b16 %v8364
    %v8628 = vunpack.c.l.b16 %v8365
    %v8629 = vunpack.c.l.b16 %v8366
    %v8630 = vunpack.c.l.b16 %v8367
    %v8631 = vunpack.c.l.b16 %v8368
    %v8632 = vunpack.c.l.b16 %v8369
    %v8633 = vunpack.c.l.b16 %v8370
    %v8634 = vunpack.c.l.b16 %v8371
    %v8635 = vunpack.c.l.b16 %v8372
    %v8636 = vunpack.c.l.b16 %v8373
    %v8637 = vunpack.c.l.b16 %v8374
    %v8638 = vunpack.c.l.b16 %v8375
    %v8639 = vunpack.c.l.b16 %v8376
    %v8640 = vunpack.c.l.b16 %v8377
    %v8641 = vunpack.c.l.b16 %v8378
    %v8642 = vunpack.c.l.b16 %v8379
    %v8643 = vunpack.c.l.b16 %v8380
    %v8644 = vunpack.c.l.b16 %v8381
    %v8645 = vunpack.c.l.b16 %v8382
    %v8646 = vunpack.c.l.b16 %v8383
    %v8647 = vunpack.c.l.b16 %v8384
    %v8648 = vunpack.c.l.b16 %v8385
    %v8649 = vunpack.c.l.b16 %v8386
    %v8650 = vunpack.c.l.b16 %v8387
    %v8651 = vunpack.c.l.b16 %v8388
    %v8652 = vunpack.c.l.b16 %v8389
    %v8653 = vunpack.c.l.b16 %v8390
    %v8654 = vunpack.c.l.b16 %v8391
    %v8655 = vunpack.c.l.b16 %v8392
    %v8656 = vunpack.c.l.b16 %v8393
    %v8657 = vunpack.c.l.b16 %v8394
    %v8658 = vunpack.c.l.b16 %v8395
    %v8659 = vunpack.c.l.b16 %v8396
    %v8660 = vunpack.c.l.b16 %v8397
    %v8661 = vunpack.c.l.b16 %v8398
    %v8662 = vpack.c.b16 %v8535, %v8534
    %v8663 = vpack.c.b16 %v8537, %v8536
    %v8664 = vpack.c.b16 %v8539, %v8538
    %v8665 = vpack.c.b16 %v8541, %v8540
    %v8666 = vpack.c.b16 %v8543, %v8542
    %v8667 = vpack.c.b16 %v8545, %v8544
    %v8668 = vpack.c.b16 %v8547, %v8546
    %v8669 = vpack.c.b16 %v8549, %v8548
    %v8670 = vpack.c.b16 %v8551, %v8550
    %v8671 = vpack.c.b16 %v8553, %v8552
    %v8672 = vpack.c.b16 %v8555, %v8554
    %v8673 = vpack.c.b16 %v8557, %v8556
    %v8674 = vpack.c.b16 %v8559, %v8558
    %v8675 = vpack.c.b16 %v8561, %v8560
    %v8676 = vpack.c.b16 %v8563, %v8562
    %v8677 = vpack.c.b16 %v8565, %v8564
    %v8678 = vpack.c.b16 %v8567, %v8566
    %v8679 = vpack.c.b16 %v8569, %v8568
    %v8680 = vpack.c.b16 %v8571, %v8570
    %v8681 = vpack.c.b16 %v8573, %v8572
    %v8682 = vpack.c.b16 %v8575, %v8574
    %v8683 = vpack.c.b16 %v8577, %v8576
    %v8684 = vpack.c.b16 %v8579, %v8578
    %v8685 = vpack.c.b16 %v8581, %v8580
    %v8686 = vpack.c.b16 %v8583, %v8582
    %v8687 = vpack.c.b16 %v8585, %v8584
    %v8688 = vpack.c.b16 %v8587, %v8586
    %v8689 = vpack.c.b16 %v8589, %v8588
    %v8690 = vpack.c.b16 %v8591, %v8590
    %v8691 = vpack.c.b16 %v8593, %v8592
    %v8692 = vpack.c.b16 %v8595, %v8594
    %v8693 = vpack.c.b16 %v8597, %v8596
    %v8694 = vpack.c.b16 %v8599, %v8598
    %v8695 = vpack.c.b16 %v8601, %v8600
    %v8696 = vpack.c.b16 %v8603, %v8602
    %v8697 = vpack.c.b16 %v8605, %v8604
    %v8698 = vpack.c.b16 %v8607, %v8606
    %v8699 = vpack.c.b16 %v8609, %v8608
    %v8700 = vpack.c.b16 %v8611, %v8610
    %v8701 = vpack.c.b16 %v8613, %v8612
    %v8702 = vpack.c.b16 %v8615, %v8614
    %v8703 = vpack.c.b16 %v8617, %v8616
    %v8704 = vpack.c.b16 %v8619, %v8618
    %v8705 = vpack.c.b16 %v8621, %v8620
    %v8706 = vpack.c.b16 %v8623, %v8622
    %v8707 = vpack.c.b16 %v8625, %v8624
    %v8708 = vpack.c.b16 %v8627, %v8626
    %v8709 = vpack.c.b16 %v8629, %v8628
    %v8710 = vpack.c.b16 %v8631, %v8630
    %v8711 = vpack.c.b16 %v8633, %v8632
    %v8712 = vpack.c.b16 %v8635, %v8634
    %v8713 = vpack.c.b16 %v8637, %v8636
    %v8714 = vpack.c.b16 %v8639, %v8638
    %v8715 = vpack.c.b16 %v8641, %v8640
    %v8716 = vpack.c.b16 %v8643, %v8642
    %v8717 = vpack.c.b16 %v8645, %v8644
    %v8718 = vpack.c.b16 %v8647, %v8646
    %v8719 = vpack.c.b16 %v8649, %v8648
    %v8720 = vpack.c.b16 %v8651, %v8650
    %v8721 = vpack.c.b16 %v8653, %v8652
    %v8722 = vpack.c.b16 %v8655, %v8654
    %v8723 = vpack.c.b16 %v8657, %v8656
    %v8724 = vpack.c.b16 %v8659, %v8658
    %v8725 = vpack.c.b16 %v8661, %v8660
    %8790 = vmatprep.subr.bf16.mxu0 0
    %8791 = vmatpush1.bf16.msra.mxu0 %v8662
    %8792 = vmatprep.subr.bf16.mxu0 0
    %8793 = vmatpush1.bf16.msra.mxu0 %v8663
    %8794 = vmatprep.subr.bf16.mxu0 0
    %8795 = vmatpush1.bf16.msra.mxu0 %v8664
    %8796 = vmatprep.subr.bf16.mxu0 0
    %8797 = vmatpush1.bf16.msra.mxu0 %v8665
    %8798 = vmatprep.subr.bf16.mxu0 0
    %8799 = vmatpush1.bf16.msra.mxu0 %v8666
    %8800 = vmatprep.subr.bf16.mxu0 0
    %8801 = vmatpush1.bf16.msra.mxu0 %v8667
    %8802 = vmatprep.subr.bf16.mxu0 0
    %8803 = vmatpush1.bf16.msra.mxu0 %v8668
    %8804 = vmatprep.subr.bf16.mxu0 0
    %8805 = vmatpush1.bf16.msra.mxu0 %v8669
    %8806 = vmatprep.subr.bf16.mxu0 0
    %8807 = vmatpush1.bf16.msra.mxu0 %v8670
    %8808 = vmatprep.subr.bf16.mxu0 0
    %8809 = vmatpush1.bf16.msra.mxu0 %v8671
    %8810 = vmatprep.subr.bf16.mxu0 0
    %8811 = vmatpush1.bf16.msra.mxu0 %v8672
    %8812 = vmatprep.subr.bf16.mxu0 0
    %8813 = vmatpush1.bf16.msra.mxu0 %v8673
    %8814 = vmatprep.subr.bf16.mxu0 0
    %8815 = vmatpush1.bf16.msra.mxu0 %v8674
    %8816 = vmatprep.subr.bf16.mxu0 0
    %8817 = vmatpush1.bf16.msra.mxu0 %v8675
    %8818 = vmatprep.subr.bf16.mxu0 0
    %8819 = vmatpush1.bf16.msra.mxu0 %v8676
    %8820 = vmatprep.subr.bf16.mxu0 0
    %8821 = vmatpush1.bf16.msra.mxu0 %v8677
    %8822 = vmatprep.mubr.bf16.mxu0 %v8264
    %8823 = vmatmul.mubr.bf16.gmra.mrb[0].mxu0 %v8263
    %v8824 = vpop.f32.mrb[0].mxu0
    %v8825 = vadd.f32 %v8404, %v8824
    %v8826 = vpop.f32.mrb[0].mxu0
    %v8827 = vpop.f32.mrb[0].mxu0
    %v8828 = vpop.f32.mrb[0].mxu0
    %8829 = vdwg.mxu0
    %8830 = vmatprep.subr.bf16.mxu0 0
    %8831 = vmatpush1.bf16.msra.mxu0 %v8678
    %8832 = vmatprep.subr.bf16.mxu0 0
    %8833 = vmatpush1.bf16.msra.mxu0 %v8679
    %8834 = vmatprep.subr.bf16.mxu0 0
    %8835 = vmatpush1.bf16.msra.mxu0 %v8680
    %8836 = vmatprep.subr.bf16.mxu0 0
    %8837 = vmatpush1.bf16.msra.mxu0 %v8681
    %8838 = vmatprep.subr.bf16.mxu0 0
    %8839 = vmatpush1.bf16.msra.mxu0 %v8682
    %8840 = vmatprep.subr.bf16.mxu0 0
    %8841 = vmatpush1.bf16.msra.mxu0 %v8683
    %8842 = vmatprep.subr.bf16.mxu0 0
    %8843 = vmatpush1.bf16.msra.mxu0 %v8684
    %8844 = vmatprep.subr.bf16.mxu0 0
    %8845 = vmatpush1.bf16.msra.mxu0 %v8685
    %8846 = vmatprep.subr.bf16.mxu0 0
    %8847 = vmatpush1.bf16.msra.mxu0 %v8686
    %8848 = vmatprep.subr.bf16.mxu0 0
    %8849 = vmatpush1.bf16.msra.mxu0 %v8687
    %8850 = vmatprep.subr.bf16.mxu0 0
    %8851 = vmatpush1.bf16.msra.mxu0 %v8688
    %8852 = vmatprep.subr.bf16.mxu0 0
    %8853 = vmatpush1.bf16.msra.mxu0 %v8689
    %8854 = vmatprep.subr.bf16.mxu0 0
    %8855 = vmatpush1.bf16.msra.mxu0 %v8690
    %8856 = vmatprep.subr.bf16.mxu0 0
    %8857 = vmatpush1.bf16.msra.mxu0 %v8691
    %8858 = vmatprep.subr.bf16.mxu0 0
    %8859 = vmatpush1.bf16.msra.mxu0 %v8692
    %8860 = vmatprep.subr.bf16.mxu0 0
    %8861 = vmatpush1.bf16.msra.mxu0 %v8693
    %8862 = vmatprep.mubr.bf16.mxu0 %v8266
    %8863 = vmatmul.mubr.bf16.gmra.mrb[0].mxu0 %v8265
    %v8864 = vpop.f32.mrb[0].mxu0
    %v8865 = vadd.f32 %v8825, %v8864
    %v8866 = vpop.f32.mrb[0].mxu0
    %v8867 = vpop.f32.mrb[0].mxu0
    %v8868 = vpop.f32.mrb[0].mxu0
    %8869 = vdwg.mxu0
    %8870 = vmatprep.subr.bf16.mxu0 0
    %8871 = vmatpush1.bf16.msra.mxu0 %v8694
    %8872 = vmatprep.subr.bf16.mxu0 0
    %8873 = vmatpush1.bf16.msra.mxu0 %v8695
    %8874 = vmatprep.subr.bf16.mxu0 0
    %8875 = vmatpush1.bf16.msra.mxu0 %v8696
    %8876 = vmatprep.subr.bf16.mxu0 0
    %8877 = vmatpush1.bf16.msra.mxu0 %v8697
    %8878 = vmatprep.subr.bf16.mxu0 0
    %8879 = vmatpush1.bf16.msra.mxu0 %v8698
    %8880 = vmatprep.subr.bf16.mxu0 0
    %8881 = vmatpush1.bf16.msra.mxu0 %v8699
    %8882 = vmatprep.subr.bf16.mxu0 0
    %8883 = vmatpush1.bf16.msra.mxu0 %v8700
    %8884 = vmatprep.subr.bf16.mxu0 0
    %8885 = vmatpush1.bf16.msra.mxu0 %v8701
    %8886 = vmatprep.subr.bf16.mxu0 0
    %8887 = vmatpush1.bf16.msra.mxu0 %v8702
    %8888 = vmatprep.subr.bf16.mxu0 0
    %8889 = vmatpush1.bf16.msra.mxu0 %v8703
    %8890 = vmatprep.subr.bf16.mxu0 0
    %8891 = vmatpush1.bf16.msra.mxu0 %v8704
    %8892 = vmatprep.subr.bf16.mxu0 0
    %8893 = vmatpush1.bf16.msra.mxu0 %v8705
    %8894 = vmatprep.subr.bf16.mxu0 0
    %8895 = vmatpush1.bf16.msra.mxu0 %v8706
    %8896 = vmatprep.subr.bf16.mxu0 0
    %8897 = vmatpush1.bf16.msra.mxu0 %v8707
    %8898 = vmatprep.subr.bf16.mxu0 0
    %8899 = vmatpush1.bf16.msra.mxu0 %v8708
    %8900 = vmatprep.subr.bf16.mxu0 0
    %8901 = vmatpush1.bf16.msra.mxu0 %v8709
    %8902 = vmatprep.mubr.bf16.mxu0 %v8268
    %8903 = vmatmul.mubr.bf16.gmra.mrb[0].mxu0 %v8267
    %v8904 = vpop.f32.mrb[0].mxu0
    %v8905 = vadd.f32 %v8865, %v8904
    %v8906 = vpop.f32.mrb[0].mxu0
    %v8907 = vpop.f32.mrb[0].mxu0
    %v8908 = vpop.f32.mrb[0].mxu0
    %8909 = vdwg.mxu0
    %8910 = vmatprep.subr.bf16.mxu0 0
    %8911 = vmatpush1.bf16.msra.mxu0 %v8710
    %8912 = vmatprep.subr.bf16.mxu0 0
    %8913 = vmatpush1.bf16.msra.mxu0 %v8711
    %8914 = vmatprep.subr.bf16.mxu0 0
    %8915 = vmatpush1.bf16.msra.mxu0 %v8712
    %8916 = vmatprep.subr.bf16.mxu0 0
    %8917 = vmatpush1.bf16.msra.mxu0 %v8713
    %8918 = vmatprep.subr.bf16.mxu0 0
    %8919 = vmatpush1.bf16.msra.mxu0 %v8714
    %8920 = vmatprep.subr.bf16.mxu0 0
    %8921 = vmatpush1.bf16.msra.mxu0 %v8715
    %8922 = vmatprep.subr.bf16.mxu0 0
    %8923 = vmatpush1.bf16.msra.mxu0 %v8716
    %8924 = vmatprep.subr.bf16.mxu0 0
    %8925 = vmatpush1.bf16.msra.mxu0 %v8717
    %8926 = vmatprep.subr.bf16.mxu0 0
    %8927 = vmatpush1.bf16.msra.mxu0 %v8718
    %8928 = vmatprep.subr.bf16.mxu0 0
    %8929 = vmatpush1.bf16.msra.mxu0 %v8719
    %8930 = vmatprep.subr.bf16.mxu0 0
    %8931 = vmatpush1.bf16.msra.mxu0 %v8720
    %8932 = vmatprep.subr.bf16.mxu0 0
    %8933 = vmatpush1.bf16.msra.mxu0 %v8721
    %8934 = vmatprep.subr.bf16.mxu0 0
    %8935 = vmatpush1.bf16.msra.mxu0 %v8722
    %8936 = vmatprep.subr.bf16.mxu0 0
    %8937 = vmatpush1.bf16.msra.mxu0 %v8723
    %8938 = vmatprep.subr.bf16.mxu0 0
    %8939 = vmatpush1.bf16.msra.mxu0 %v8724
    %8940 = vmatprep.subr.bf16.mxu0 0
    %8941 = vmatpush1.bf16.msra.mxu0 %v8725
    %8942 = vmatprep.mubr.bf16.mxu0 %v8270
    %8943 = vmatmul.mubr.bf16.gmra.mrb[0].mxu0 %v8269
    %v8944 = vpop.f32.mrb[0].mxu0
    %v8945 = vadd.f32 %v8905, %v8944
    %v8946 = vpop.f32.mrb[0].mxu0
    %v8947 = vpop.f32.mrb[0].mxu0
    %v8948 = vpop.f32.mrb[0].mxu0
    %8949 = vdwg.mxu0
    %8950 = vmax.xlane.f32.xlu0 %v8945
    %v8951 = vpop.xlane.xlu0 %8950
    %v8952 = vsub.f32 %v8945, %v8951
    %v8953 = vmul.f32 %v8952, 1.442695
    %v8954 = vpow.pop %v8953
    %8955 = vadd.xlane.f32.xlu0 %v8954
    %v8956 = vpop.xlane.xlu0 %8955
    %v8957 = vrcp.pop %v8956
    %v8958 = vmul.f32 %v8954, %v8957
    %8959 = vst [vmem:[#allocation14] sm:$0xff] %v8958
    // Predicated region
    $region58: #{hansa_forward.1} parent=1 // pred_check
      _
    $region59: #{hansa_forward.1} parent=1 // pred_check_branch
      %8961 = sbr.rel (0) target = $region61
    $region60: #{hansa_forward.1} parent=1 // pred_region
      %s8963 = ssub.s32 128, 128
      %8964 = vsyncadd [#allocation4], %s8963
      %s8966 = sshll.u32 [#allocation14], 4
      %s8967 = int_to_ptr.vmem [resolvable:$true] %s8966
      %8969 = dma.vmem_to_hbm [thread:$0]  %s8967, 128, %s7, [#allocation4]
    $region61: #{hansa_forward.1} parent=1 // pred_fallthru
      _
    // Predicated region
    $region62: #{hansa_forward.1} parent=1 // pred_check
      _
    $region63: #{hansa_forward.1} parent=1 // pred_check_branch
      %8971 = sbr.rel (0) target = $region65
    $region64: #{hansa_forward.1} parent=1 // pred_region
      %8972 = dma.done [#allocation4], 128
    $region65: #{hansa_forward.1} parent=1 // pred_fallthru
      _
    %8973 = vsyncpa [#allocation3], 1
    %8974 = vsyncpa [#allocation6], 1
    %8975 = vsyncpa [#allocation9], 1
    %8976 = vsyncpa [#allocation12], 1
    %8977 = vsyncpa [#allocation4], 1

</llo_original>
